<compile_context>
chip_gen: v7x
topology: tpu7x:2x2x1
jax: 0.10.0
libtpu: 0.0.40
codegen_flags: <defaults>
</compile_context>

<pallas_src>
import functools

import jax
import jax.numpy as jnp
from jax import lax
from jax.experimental import pallas as pl
from jax.experimental.pallas import tpu as pltpu


def _srcnn_fused_kernel(p1_ref, w1_ref, b1_ref, w2_ref, b2_ref, w3_ref, b3_ref,
                        o_ref, a1_ref, a2_ref, *, H, W, KH2, KW2, KH3, KW3):
    """Fused SRCNN forward for one batch element (one grid step).

    p1_ref : (1, H*W, KH1*KW1*Cin)  conv1 im2col patches (built in wrapper)
    w1_ref : (KH1*KW1*Cin, 128)     b1_ref : (1, 128)
    w2_ref : (KH2*KW2*128, 64)      b2_ref : (1, 64)
    w3_ref : (KH3*KW3*64, Cout)     b3_ref : (1, Cout)
    o_ref  : (1, H*W, Cout)
    a1_ref : VMEM scratch (H+KH2-1, W+KW2-1, 128)  zero-padded conv1 output
    a2_ref : VMEM scratch (H+KH3-1, W+KW3-1, 64)   zero-padded conv2 output
    """
    HW = H * W

    # ---- conv1 + ReLU: one deep-K MXU matmul over the im2col patches ----
    y1 = jnp.dot(p1_ref[0], w1_ref[...], preferred_element_type=jnp.float32)
    y1 = jnp.maximum(y1 + b1_ref[...], 0.0)                       # (HW, 128) f32

    # Stash into a zero-padded VMEM buffer so conv2 can read shifted windows.
    ph2, pw2 = KH2 // 2, KW2 // 2
    a1_ref[...] = jnp.zeros_like(a1_ref)                          # zero the halo
    a1_ref[pl.ds(ph2, H), pl.ds(pw2, W), :] = (
        y1.reshape(H, W, y1.shape[-1]).astype(a1_ref.dtype))

    # ---- conv2 + ReLU: fold the KH2*KW2 taps into the contraction dim ----
    cols = [a1_ref[pl.ds(kh, H), pl.ds(kw, W), :].reshape(HW, a1_ref.shape[-1])
            for kh in range(KH2) for kw in range(KW2)]
    p2 = jnp.concatenate(cols, axis=1)                            # (HW, KH2*KW2*128)
    y2 = jnp.dot(p2, w2_ref[...], preferred_element_type=jnp.float32)
    y2 = jnp.maximum(y2 + b2_ref[...], 0.0)                       # (HW, 64) f32

    ph3, pw3 = KH3 // 2, KW3 // 2
    a2_ref[...] = jnp.zeros_like(a2_ref)
    a2_ref[pl.ds(ph3, H), pl.ds(pw3, W), :] = (
        y2.reshape(H, W, y2.shape[-1]).astype(a2_ref.dtype))

    # ---- conv3 (no ReLU) ----
    cols = [a2_ref[pl.ds(kh, H), pl.ds(kw, W), :].reshape(HW, a2_ref.shape[-1])
            for kh in range(KH3) for kw in range(KW3)]
    p3 = jnp.concatenate(cols, axis=1)                            # (HW, KH3*KW3*64)
    y3 = jnp.dot(p3, w3_ref[...], preferred_element_type=jnp.float32)
    # Output is only HW*Cout floats (1 KiB for Cout=1): store cost is negligible.
    o_ref[0] = (y3 + b3_ref[...]).astype(o_ref.dtype)


def _im2col(x_nhwc, KH, KW):
    """SAME-padding im2col: (N,H,W,C) -> (N, H*W, KH*KW*C), column order (kh,kw,c)."""
    N, H, W, C = x_nhwc.shape
    ph, pw = KH // 2, KW // 2
    xp = jnp.pad(x_nhwc, ((0, 0), (ph, ph), (pw, pw), (0, 0)))
    cols = [xp[:, kh:kh + H, kw:kw + W, :].reshape(N, H * W, C)
            for kh in range(KH) for kw in range(KW)]
    return jnp.concatenate(cols, axis=-1)


def srcnn_forward(x_nchw, params, *, compute_dtype=jnp.float32):
    """SRCNN forward (NCHW in / NCHW out) via one fused Pallas kernel."""
    N, Cin, H, W = x_nchw.shape
    w1, b1 = params["w1"], params["b1"]
    w2, b2 = params["w2"], params["b2"]
    w3, b3 = params["w3"], params["b3"]
    KH1, KW1, _, C1 = w1.shape
    KH2, KW2, _, C2 = w2.shape
    KH3, KW3, _, C3 = w3.shape
    HW = H * W

    # NCHW -> NHWC, then build conv1's im2col patches in the wrapper so the
    # size-1 input channel never lands on the lane axis inside the kernel.
    x = jnp.transpose(x_nchw, (0, 2, 3, 1)).astype(jnp.float32)
    p1 = _im2col(x, KH1, KW1).astype(compute_dtype)               # (N, HW, 81*Cin)

    w1f = w1.reshape(KH1 * KW1 * Cin, C1).astype(compute_dtype)
    w2f = w2.reshape(KH2 * KW2 * C1, C2).astype(compute_dtype)
    w3f = w3.reshape(KH3 * KW3 * C2, C3).astype(compute_dtype)
    b1r = b1.reshape(1, C1).astype(jnp.float32)
    b2r = b2.reshape(1, C2).astype(jnp.float32)
    b3r = b3.reshape(1, C3).astype(jnp.float32)

    kernel = functools.partial(
        _srcnn_fused_kernel, H=H, W=W, KH2=KH2, KW2=KW2, KH3=KH3, KW3=KW3)

    out = pl.pallas_call(
        kernel,
        out_shape=jax.ShapeDtypeStruct((N, HW, C3), jnp.float32),
        grid_spec=pltpu.PrefetchScalarGridSpec(
            num_scalar_prefetch=0,
            grid=(N,),
            in_specs=[
                pl.BlockSpec((1, HW, KH1 * KW1 * Cin), lambda n: (n, 0, 0)),
                pl.BlockSpec((KH1 * KW1 * Cin, C1), lambda n: (0, 0)),
                pl.BlockSpec((1, C1), lambda n: (0, 0)),
                pl.BlockSpec((KH2 * KW2 * C1, C2), lambda n: (0, 0)),
                pl.BlockSpec((1, C2), lambda n: (0, 0)),
                pl.BlockSpec((KH3 * KW3 * C2, C3), lambda n: (0, 0)),
                pl.BlockSpec((1, C3), lambda n: (0, 0)),
            ],
            out_specs=pl.BlockSpec((1, HW, C3), lambda n: (n, 0, 0)),
            scratch_shapes=[
                pltpu.VMEM((H + KH2 - 1, W + KW2 - 1, C1), compute_dtype),
                pltpu.VMEM((H + KH3 - 1, W + KW3 - 1, C2), compute_dtype),
            ],
        ),
        compiler_params=pltpu.CompilerParams(
            # Batch axis is independent -> shards across v7x's 2 TensorCores.
            dimension_semantics=("parallel",),
            # Working set ~8 MiB; 32 MiB leaves double-buffer headroom and is
            # well under v7x's 64 MiB physical VMEM.
            vmem_limit_bytes=32 << 20,
        ),
    )(p1, w1f, b1r, w2f, b2r, w3f, b3r)

    out = out.reshape(N, H, W, C3)
    return jnp.transpose(out, (0, 3, 1, 2))                       # NHWC -> NCHW


def init_params(key, num_channels=1):
    ks = jax.random.split(key, 6)
    scale = 0.05
    return {
        "w1": jax.random.normal(ks[0], (9, 9, num_channels, 128), jnp.float32) * scale,
        "b1": jax.random.normal(ks[1], (128,), jnp.float32) * scale,
        "w2": jax.random.normal(ks[2], (5, 5, 128, 64), jnp.float32) * scale,
        "b2": jax.random.normal(ks[3], (64,), jnp.float32) * scale,
        "w3": jax.random.normal(ks[4], (5, 5, 64, num_channels), jnp.float32) * scale,
        "b3": jax.random.normal(ks[5], (num_channels,), jnp.float32) * scale,
    }


def srcnn_reference(x_nchw, params):
    """Pure-JAX reference using lax.conv_general_dilated (NHWC/HWIO)."""
    dn = ("NHWC", "HWIO", "NHWC")
    x = jnp.transpose(x_nchw, (0, 2, 3, 1)).astype(jnp.float32)

    def conv(x, w, b):
        y = lax.conv_general_dilated(x, w, (1, 1), "SAME", dimension_numbers=dn)
        return y + b.reshape(1, 1, 1, -1)

    x = jax.nn.relu(conv(x, params["w1"], params["b1"]))
    x = jax.nn.relu(conv(x, params["w2"], params["b2"]))
    x = conv(x, params["w3"], params["b3"])
    return jnp.transpose(x, (0, 3, 1, 2))


if __name__ == "__main__":
    key = jax.random.PRNGKey(0)
    k_x, k_p = jax.random.split(key)

    # SRCNN(num_channels=1): input is NCHW [batch=2, channels=1, 16, 16]
    x = jax.random.normal(k_x, (2, 1, 16, 16), jnp.float32)
    params = init_params(k_p, num_channels=1)

    out = jax.block_until_ready(jax.jit(srcnn_forward)(x, params))
    ref = jax.block_until_ready(srcnn_reference(x, params))

    assert out.shape == (2, 1, 16, 16)
    assert jnp.allclose(out, ref, atol=1e-3, rtol=1e-3), "mismatch vs reference"

    print("KERNEL_OK")
</pallas_src>

<mosaic_0001>
module attributes {stable_mosaic.version = 11 : i64} {
  func.func @_srcnn_fused_kernel(%arg0: i32, %arg1: memref<1x256x81xf32, #tpu.memory_space<vmem>>, %arg2: memref<81x128xf32, #tpu.memory_space<vmem>>, %arg3: memref<1x128xf32, #tpu.memory_space<vmem>>, %arg4: memref<3200x64xf32, #tpu.memory_space<vmem>>, %arg5: memref<1x64xf32, #tpu.memory_space<vmem>>, %arg6: memref<1600x1xf32, #tpu.memory_space<vmem>>, %arg7: memref<1x1xf32, #tpu.memory_space<vmem>>, %arg8: memref<1x256x1xf32, #tpu.memory_space<vmem>>, %arg9: memref<20x20x128xf32, #tpu.memory_space<vmem>>, %arg10: memref<20x20x64xf32, #tpu.memory_space<vmem>>) attributes {dimension_semantics = [#tpu.dimension_semantics<parallel>], iteration_bounds = array<i64: 2>, scalar_prefetch = 0 : i64, scratch_operands = 2 : i64, tpu.core_type = #tpu.core_type<tc>, window_params = [{transform_indices = @transform_0, window_bounds = array<i64: 1, 256, 81>}, {pipeline_mode = #tpu.pipeline_mode<synchronous>, transform_indices = @transform_1, window_bounds = array<i64: 81, 128>}, {pipeline_mode = #tpu.pipeline_mode<synchronous>, transform_indices = @transform_2, window_bounds = array<i64: 1, 128>}, {pipeline_mode = #tpu.pipeline_mode<synchronous>, transform_indices = @transform_3, window_bounds = array<i64: 3200, 64>}, {pipeline_mode = #tpu.pipeline_mode<synchronous>, transform_indices = @transform_4, window_bounds = array<i64: 1, 64>}, {pipeline_mode = #tpu.pipeline_mode<synchronous>, transform_indices = @transform_5, window_bounds = array<i64: 1600, 1>}, {pipeline_mode = #tpu.pipeline_mode<synchronous>, transform_indices = @transform_6, window_bounds = array<i64: 1, 1>}, {transform_indices = @transform_7, window_bounds = array<i64: 1, 256, 1>}]} {
    %c0 = arith.constant 0 : index
    %c0_0 = arith.constant 0 : index
    %c0_1 = arith.constant 0 : index
    %0 = vector.load %arg1[%c0, %c0_0, %c0_1] : memref<1x256x81xf32, #tpu.memory_space<vmem>>, vector<1x256x81xf32>
    %1 = vector.shape_cast %0 : vector<1x256x81xf32> to vector<256x81xf32>
    %c0_2 = arith.constant 0 : index
    %c0_3 = arith.constant 0 : index
    %2 = vector.load %arg2[%c0_2, %c0_3] : memref<81x128xf32, #tpu.memory_space<vmem>>, vector<81x128xf32>
    %cst = arith.constant dense<0.000000e+00> : vector<256x128xf32>
    %3 = tpu.matmul %1, %2, %cst {dimension_numbers = #tpu.dot_dimension_numbers<[1], [0], [0], [1], [0, 0, 1, 1], [], []>} : vector<256x81xf32>, vector<81x128xf32>, vector<256x128xf32> -> vector<256x128xf32>
    %c0_4 = arith.constant 0 : index
    %c0_5 = arith.constant 0 : index
    %4 = vector.load %arg3[%c0_4, %c0_5] : memref<1x128xf32, #tpu.memory_space<vmem>>, vector<1x128xf32>
    %5 = vector.broadcast %4 : vector<1x128xf32> to vector<256x128xf32>
    %6 = arith.addf %3, %5 : vector<256x128xf32>
    %cst_6 = arith.constant 0.000000e+00 : f32
    %7 = vector.broadcast %cst_6 : f32 to vector<256x128xf32>
    %8 = arith.maximumf %6, %7 : vector<256x128xf32>
    %cst_7 = arith.constant 0.000000e+00 : f32
    %9 = vector.broadcast %cst_7 : f32 to vector<20x20x128xf32>
    %c0_8 = arith.constant 0 : index
    %c0_9 = arith.constant 0 : index
    %c0_10 = arith.constant 0 : index
    %10 = vector.load %arg9[%c0_8, %c0_9, %c0_10] : memref<20x20x128xf32, #tpu.memory_space<vmem>>, vector<20x20x128xf32>
    tpu.vector_store %arg9[%c0_8, %c0_9, %c0_10], %9 {strides = array<i32>} : memref<20x20x128xf32, #tpu.memory_space<vmem>>, vector<20x20x128xf32>,
    %11 = vector.shape_cast %8 : vector<256x128xf32> to vector<16x16x128xf32>
    %c2 = arith.constant 2 : index
    %c2_11 = arith.constant 2 : index
    %c0_12 = arith.constant 0 : index
    %12 = vector.load %arg9[%c2, %c2_11, %c0_12] : memref<20x20x128xf32, #tpu.memory_space<vmem>>, vector<16x16x128xf32>
    tpu.vector_store %arg9[%c2, %c2_11, %c0_12], %11 {strides = array<i32>} : memref<20x20x128xf32, #tpu.memory_space<vmem>>, vector<16x16x128xf32>,
    %c0_13 = arith.constant 0 : index
    %c0_14 = arith.constant 0 : index
    %c0_15 = arith.constant 0 : index
    %13 = vector.load %arg9[%c0_13, %c0_14, %c0_15] : memref<20x20x128xf32, #tpu.memory_space<vmem>>, vector<16x16x128xf32>
    %14 = vector.shape_cast %13 : vector<16x16x128xf32> to vector<256x128xf32>
    %c0_16 = arith.constant 0 : index
    %c1 = arith.constant 1 : index
    %c0_17 = arith.constant 0 : index
    %15 = vector.load %arg9[%c0_16, %c1, %c0_17] : memref<20x20x128xf32, #tpu.memory_space<vmem>>, vector<16x16x128xf32>
    %16 = vector.shape_cast %15 : vector<16x16x128xf32> to vector<256x128xf32>
    %c0_18 = arith.constant 0 : index
    %c2_19 = arith.constant 2 : index
    %c0_20 = arith.constant 0 : index
    %17 = vector.load %arg9[%c0_18, %c2_19, %c0_20] : memref<20x20x128xf32, #tpu.memory_space<vmem>>, vector<16x16x128xf32>
    %18 = vector.shape_cast %17 : vector<16x16x128xf32> to vector<256x128xf32>
    %c0_21 = arith.constant 0 : index
    %c3 = arith.constant 3 : index
    %c0_22 = arith.constant 0 : index
    %19 = vector.load %arg9[%c0_21, %c3, %c0_22] : memref<20x20x128xf32, #tpu.memory_space<vmem>>, vector<16x16x128xf32>
    %20 = vector.shape_cast %19 : vector<16x16x128xf32> to vector<256x128xf32>
    %c0_23 = arith.constant 0 : index
    %c4 = arith.constant 4 : index
    %c0_24 = arith.constant 0 : index
    %21 = vector.load %arg9[%c0_23, %c4, %c0_24] : memref<20x20x128xf32, #tpu.memory_space<vmem>>, vector<16x16x128xf32>
    %22 = vector.shape_cast %21 : vector<16x16x128xf32> to vector<256x128xf32>
    %c1_25 = arith.constant 1 : index
    %c0_26 = arith.constant 0 : index
    %c0_27 = arith.constant 0 : index
    %23 = vector.load %arg9[%c1_25, %c0_26, %c0_27] : memref<20x20x128xf32, #tpu.memory_space<vmem>>, vector<16x16x128xf32>
    %24 = vector.shape_cast %23 : vector<16x16x128xf32> to vector<256x128xf32>
    %c1_28 = arith.constant 1 : index
    %c1_29 = arith.constant 1 : index
    %c0_30 = arith.constant 0 : index
    %25 = vector.load %arg9[%c1_28, %c1_29, %c0_30] : memref<20x20x128xf32, #tpu.memory_space<vmem>>, vector<16x16x128xf32>
    %26 = vector.shape_cast %25 : vector<16x16x128xf32> to vector<256x128xf32>
    %c1_31 = arith.constant 1 : index
    %c2_32 = arith.constant 2 : index
    %c0_33 = arith.constant 0 : index
    %27 = vector.load %arg9[%c1_31, %c2_32, %c0_33] : memref<20x20x128xf32, #tpu.memory_space<vmem>>, vector<16x16x128xf32>
    %28 = vector.shape_cast %27 : vector<16x16x128xf32> to vector<256x128xf32>
    %c1_34 = arith.constant 1 : index
    %c3_35 = arith.constant 3 : index
    %c0_36 = arith.constant 0 : index
    %29 = vector.load %arg9[%c1_34, %c3_35, %c0_36] : memref<20x20x128xf32, #tpu.memory_space<vmem>>, vector<16x16x128xf32>
    %30 = vector.shape_cast %29 : vector<16x16x128xf32> to vector<256x128xf32>
    %c1_37 = arith.constant 1 : index
    %c4_38 = arith.constant 4 : index
    %c0_39 = arith.constant 0 : index
    %31 = vector.load %arg9[%c1_37, %c4_38, %c0_39] : memref<20x20x128xf32, #tpu.memory_space<vmem>>, vector<16x16x128xf32>
    %32 = vector.shape_cast %31 : vector<16x16x128xf32> to vector<256x128xf32>
    %c2_40 = arith.constant 2 : index
    %c0_41 = arith.constant 0 : index
    %c0_42 = arith.constant 0 : index
    %33 = vector.load %arg9[%c2_40, %c0_41, %c0_42] : memref<20x20x128xf32, #tpu.memory_space<vmem>>, vector<16x16x128xf32>
    %34 = vector.shape_cast %33 : vector<16x16x128xf32> to vector<256x128xf32>
    %c2_43 = arith.constant 2 : index
    %c1_44 = arith.constant 1 : index
    %c0_45 = arith.constant 0 : index
    %35 = vector.load %arg9[%c2_43, %c1_44, %c0_45] : memref<20x20x128xf32, #tpu.memory_space<vmem>>, vector<16x16x128xf32>
    %36 = vector.shape_cast %35 : vector<16x16x128xf32> to vector<256x128xf32>
    %c2_46 = arith.constant 2 : index
    %c2_47 = arith.constant 2 : index
    %c0_48 = arith.constant 0 : index
    %37 = vector.load %arg9[%c2_46, %c2_47, %c0_48] : memref<20x20x128xf32, #tpu.memory_space<vmem>>, vector<16x16x128xf32>
    %38 = vector.shape_cast %37 : vector<16x16x128xf32> to vector<256x128xf32>
    %c2_49 = arith.constant 2 : index
    %c3_50 = arith.constant 3 : index
    %c0_51 = arith.constant 0 : index
    %39 = vector.load %arg9[%c2_49, %c3_50, %c0_51] : memref<20x20x128xf32, #tpu.memory_space<vmem>>, vector<16x16x128xf32>
    %40 = vector.shape_cast %39 : vector<16x16x128xf32> to vector<256x128xf32>
    %c2_52 = arith.constant 2 : index
    %c4_53 = arith.constant 4 : index
    %c0_54 = arith.constant 0 : index
    %41 = vector.load %arg9[%c2_52, %c4_53, %c0_54] : memref<20x20x128xf32, #tpu.memory_space<vmem>>, vector<16x16x128xf32>
    %42 = vector.shape_cast %41 : vector<16x16x128xf32> to vector<256x128xf32>
    %c3_55 = arith.constant 3 : index
    %c0_56 = arith.constant 0 : index
    %c0_57 = arith.constant 0 : index
    %43 = vector.load %arg9[%c3_55, %c0_56, %c0_57] : memref<20x20x128xf32, #tpu.memory_space<vmem>>, vector<16x16x128xf32>
    %44 = vector.shape_cast %43 : vector<16x16x128xf32> to vector<256x128xf32>
    %c3_58 = arith.constant 3 : index
    %c1_59 = arith.constant 1 : index
    %c0_60 = arith.constant 0 : index
    %45 = vector.load %arg9[%c3_58, %c1_59, %c0_60] : memref<20x20x128xf32, #tpu.memory_space<vmem>>, vector<16x16x128xf32>
    %46 = vector.shape_cast %45 : vector<16x16x128xf32> to vector<256x128xf32>
    %c3_61 = arith.constant 3 : index
    %c2_62 = arith.constant 2 : index
    %c0_63 = arith.constant 0 : index
    %47 = vector.load %arg9[%c3_61, %c2_62, %c0_63] : memref<20x20x128xf32, #tpu.memory_space<vmem>>, vector<16x16x128xf32>
    %48 = vector.shape_cast %47 : vector<16x16x128xf32> to vector<256x128xf32>
    %c3_64 = arith.constant 3 : index
    %c3_65 = arith.constant 3 : index
    %c0_66 = arith.constant 0 : index
    %49 = vector.load %arg9[%c3_64, %c3_65, %c0_66] : memref<20x20x128xf32, #tpu.memory_space<vmem>>, vector<16x16x128xf32>
    %50 = vector.shape_cast %49 : vector<16x16x128xf32> to vector<256x128xf32>
    %c3_67 = arith.constant 3 : index
    %c4_68 = arith.constant 4 : index
    %c0_69 = arith.constant 0 : index
    %51 = vector.load %arg9[%c3_67, %c4_68, %c0_69] : memref<20x20x128xf32, #tpu.memory_space<vmem>>, vector<16x16x128xf32>
    %52 = vector.shape_cast %51 : vector<16x16x128xf32> to vector<256x128xf32>
    %c4_70 = arith.constant 4 : index
    %c0_71 = arith.constant 0 : index
    %c0_72 = arith.constant 0 : index
    %53 = vector.load %arg9[%c4_70, %c0_71, %c0_72] : memref<20x20x128xf32, #tpu.memory_space<vmem>>, vector<16x16x128xf32>
    %54 = vector.shape_cast %53 : vector<16x16x128xf32> to vector<256x128xf32>
    %c4_73 = arith.constant 4 : index
    %c1_74 = arith.constant 1 : index
    %c0_75 = arith.constant 0 : index
    %55 = vector.load %arg9[%c4_73, %c1_74, %c0_75] : memref<20x20x128xf32, #tpu.memory_space<vmem>>, vector<16x16x128xf32>
    %56 = vector.shape_cast %55 : vector<16x16x128xf32> to vector<256x128xf32>
    %c4_76 = arith.constant 4 : index
    %c2_77 = arith.constant 2 : index
    %c0_78 = arith.constant 0 : index
    %57 = vector.load %arg9[%c4_76, %c2_77, %c0_78] : memref<20x20x128xf32, #tpu.memory_space<vmem>>, vector<16x16x128xf32>
    %58 = vector.shape_cast %57 : vector<16x16x128xf32> to vector<256x128xf32>
    %c4_79 = arith.constant 4 : index
    %c3_80 = arith.constant 3 : index
    %c0_81 = arith.constant 0 : index
    %59 = vector.load %arg9[%c4_79, %c3_80, %c0_81] : memref<20x20x128xf32, #tpu.memory_space<vmem>>, vector<16x16x128xf32>
    %60 = vector.shape_cast %59 : vector<16x16x128xf32> to vector<256x128xf32>
    %c4_82 = arith.constant 4 : index
    %c4_83 = arith.constant 4 : index
    %c0_84 = arith.constant 0 : index
    %61 = vector.load %arg9[%c4_82, %c4_83, %c0_84] : memref<20x20x128xf32, #tpu.memory_space<vmem>>, vector<16x16x128xf32>
    %62 = vector.shape_cast %61 : vector<16x16x128xf32> to vector<256x128xf32>
    %63 = tpu.concatenate %14, %16, %18, %20, %22, %24, %26, %28, %30, %32, %34, %36, %38, %40, %42, %44 in 1 : vector<256x128xf32>, vector<256x128xf32>, vector<256x128xf32>, vector<256x128xf32>, vector<256x128xf32>, vector<256x128xf32>, vector<256x128xf32>, vector<256x128xf32>, vector<256x128xf32>, vector<256x128xf32>, vector<256x128xf32>, vector<256x128xf32>, vector<256x128xf32>, vector<256x128xf32>, vector<256x128xf32>, vector<256x128xf32> -> vector<256x2048xf32>
    %64 = tpu.concatenate %46, %48, %50, %52, %54, %56, %58, %60, %62 in 1 : vector<256x128xf32>, vector<256x128xf32>, vector<256x128xf32>, vector<256x128xf32>, vector<256x128xf32>, vector<256x128xf32>, vector<256x128xf32>, vector<256x128xf32>, vector<256x128xf32> -> vector<256x1152xf32>
    %65 = tpu.concatenate %63, %64 in 1 : vector<256x2048xf32>, vector<256x1152xf32> -> vector<256x3200xf32>
    %c0_85 = arith.constant 0 : index
    %c0_86 = arith.constant 0 : index
    %66 = vector.load %arg4[%c0_85, %c0_86] : memref<3200x64xf32, #tpu.memory_space<vmem>>, vector<3200x64xf32>
    %cst_87 = arith.constant dense<0.000000e+00> : vector<256x64xf32>
    %67 = tpu.matmul %65, %66, %cst_87 {dimension_numbers = #tpu.dot_dimension_numbers<[1], [0], [0], [1], [0, 0, 1, 1], [], []>} : vector<256x3200xf32>, vector<3200x64xf32>, vector<256x64xf32> -> vector<256x64xf32>
    %c0_88 = arith.constant 0 : index
    %c0_89 = arith.constant 0 : index
    %68 = vector.load %arg5[%c0_88, %c0_89] : memref<1x64xf32, #tpu.memory_space<vmem>>, vector<1x64xf32>
    %69 = vector.broadcast %68 : vector<1x64xf32> to vector<256x64xf32>
    %70 = arith.addf %67, %69 : vector<256x64xf32>
    %cst_90 = arith.constant 0.000000e+00 : f32
    %71 = vector.broadcast %cst_90 : f32 to vector<256x64xf32>
    %72 = arith.maximumf %70, %71 : vector<256x64xf32>
    %cst_91 = arith.constant 0.000000e+00 : f32
    %73 = vector.broadcast %cst_91 : f32 to vector<20x20x64xf32>
    %c0_92 = arith.constant 0 : index
    %c0_93 = arith.constant 0 : index
    %c0_94 = arith.constant 0 : index
    %74 = vector.load %arg10[%c0_92, %c0_93, %c0_94] : memref<20x20x64xf32, #tpu.memory_space<vmem>>, vector<20x20x64xf32>
    tpu.vector_store %arg10[%c0_92, %c0_93, %c0_94], %73 {strides = array<i32>} : memref<20x20x64xf32, #tpu.memory_space<vmem>>, vector<20x20x64xf32>,
    %75 = vector.shape_cast %72 : vector<256x64xf32> to vector<16x16x64xf32>
    %c2_95 = arith.constant 2 : index
    %c2_96 = arith.constant 2 : index
    %c0_97 = arith.constant 0 : index
    %76 = vector.load %arg10[%c2_95, %c2_96, %c0_97] : memref<20x20x64xf32, #tpu.memory_space<vmem>>, vector<16x16x64xf32>
    tpu.vector_store %arg10[%c2_95, %c2_96, %c0_97], %75 {strides = array<i32>} : memref<20x20x64xf32, #tpu.memory_space<vmem>>, vector<16x16x64xf32>,
    %c0_98 = arith.constant 0 : index
    %c0_99 = arith.constant 0 : index
    %c0_100 = arith.constant 0 : index
    %77 = vector.load %arg10[%c0_98, %c0_99, %c0_100] : memref<20x20x64xf32, #tpu.memory_space<vmem>>, vector<16x16x64xf32>
    %78 = vector.shape_cast %77 : vector<16x16x64xf32> to vector<256x64xf32>
    %c0_101 = arith.constant 0 : index
    %c1_102 = arith.constant 1 : index
    %c0_103 = arith.constant 0 : index
    %79 = vector.load %arg10[%c0_101, %c1_102, %c0_103] : memref<20x20x64xf32, #tpu.memory_space<vmem>>, vector<16x16x64xf32>
    %80 = vector.shape_cast %79 : vector<16x16x64xf32> to vector<256x64xf32>
    %c0_104 = arith.constant 0 : index
    %c2_105 = arith.constant 2 : index
    %c0_106 = arith.constant 0 : index
    %81 = vector.load %arg10[%c0_104, %c2_105, %c0_106] : memref<20x20x64xf32, #tpu.memory_space<vmem>>, vector<16x16x64xf32>
    %82 = vector.shape_cast %81 : vector<16x16x64xf32> to vector<256x64xf32>
    %c0_107 = arith.constant 0 : index
    %c3_108 = arith.constant 3 : index
    %c0_109 = arith.constant 0 : index
    %83 = vector.load %arg10[%c0_107, %c3_108, %c0_109] : memref<20x20x64xf32, #tpu.memory_space<vmem>>, vector<16x16x64xf32>
    %84 = vector.shape_cast %83 : vector<16x16x64xf32> to vector<256x64xf32>
    %c0_110 = arith.constant 0 : index
    %c4_111 = arith.constant 4 : index
    %c0_112 = arith.constant 0 : index
    %85 = vector.load %arg10[%c0_110, %c4_111, %c0_112] : memref<20x20x64xf32, #tpu.memory_space<vmem>>, vector<16x16x64xf32>
    %86 = vector.shape_cast %85 : vector<16x16x64xf32> to vector<256x64xf32>
    %c1_113 = arith.constant 1 : index
    %c0_114 = arith.constant 0 : index
    %c0_115 = arith.constant 0 : index
    %87 = vector.load %arg10[%c1_113, %c0_114, %c0_115] : memref<20x20x64xf32, #tpu.memory_space<vmem>>, vector<16x16x64xf32>
    %88 = vector.shape_cast %87 : vector<16x16x64xf32> to vector<256x64xf32>
    %c1_116 = arith.constant 1 : index
    %c1_117 = arith.constant 1 : index
    %c0_118 = arith.constant 0 : index
    %89 = vector.load %arg10[%c1_116, %c1_117, %c0_118] : memref<20x20x64xf32, #tpu.memory_space<vmem>>, vector<16x16x64xf32>
    %90 = vector.shape_cast %89 : vector<16x16x64xf32> to vector<256x64xf32>
    %c1_119 = arith.constant 1 : index
    %c2_120 = arith.constant 2 : index
    %c0_121 = arith.constant 0 : index
    %91 = vector.load %arg10[%c1_119, %c2_120, %c0_121] : memref<20x20x64xf32, #tpu.memory_space<vmem>>, vector<16x16x64xf32>
    %92 = vector.shape_cast %91 : vector<16x16x64xf32> to vector<256x64xf32>
    %c1_122 = arith.constant 1 : index
    %c3_123 = arith.constant 3 : index
    %c0_124 = arith.constant 0 : index
    %93 = vector.load %arg10[%c1_122, %c3_123, %c0_124] : memref<20x20x64xf32, #tpu.memory_space<vmem>>, vector<16x16x64xf32>
    %94 = vector.shape_cast %93 : vector<16x16x64xf32> to vector<256x64xf32>
    %c1_125 = arith.constant 1 : index
    %c4_126 = arith.constant 4 : index
    %c0_127 = arith.constant 0 : index
    %95 = vector.load %arg10[%c1_125, %c4_126, %c0_127] : memref<20x20x64xf32, #tpu.memory_space<vmem>>, vector<16x16x64xf32>
    %96 = vector.shape_cast %95 : vector<16x16x64xf32> to vector<256x64xf32>
    %c2_128 = arith.constant 2 : index
    %c0_129 = arith.constant 0 : index
    %c0_130 = arith.constant 0 : index
    %97 = vector.load %arg10[%c2_128, %c0_129, %c0_130] : memref<20x20x64xf32, #tpu.memory_space<vmem>>, vector<16x16x64xf32>
    %98 = vector.shape_cast %97 : vector<16x16x64xf32> to vector<256x64xf32>
    %c2_131 = arith.constant 2 : index
    %c1_132 = arith.constant 1 : index
    %c0_133 = arith.constant 0 : index
    %99 = vector.load %arg10[%c2_131, %c1_132, %c0_133] : memref<20x20x64xf32, #tpu.memory_space<vmem>>, vector<16x16x64xf32>
    %100 = vector.shape_cast %99 : vector<16x16x64xf32> to vector<256x64xf32>
    %c2_134 = arith.constant 2 : index
    %c2_135 = arith.constant 2 : index
    %c0_136 = arith.constant 0 : index
    %101 = vector.load %arg10[%c2_134, %c2_135, %c0_136] : memref<20x20x64xf32, #tpu.memory_space<vmem>>, vector<16x16x64xf32>
    %102 = vector.shape_cast %101 : vector<16x16x64xf32> to vector<256x64xf32>
    %c2_137 = arith.constant 2 : index
    %c3_138 = arith.constant 3 : index
    %c0_139 = arith.constant 0 : index
    %103 = vector.load %arg10[%c2_137, %c3_138, %c0_139] : memref<20x20x64xf32, #tpu.memory_space<vmem>>, vector<16x16x64xf32>
    %104 = vector.shape_cast %103 : vector<16x16x64xf32> to vector<256x64xf32>
    %c2_140 = arith.constant 2 : index
    %c4_141 = arith.constant 4 : index
    %c0_142 = arith.constant 0 : index
    %105 = vector.load %arg10[%c2_140, %c4_141, %c0_142] : memref<20x20x64xf32, #tpu.memory_space<vmem>>, vector<16x16x64xf32>
    %106 = vector.shape_cast %105 : vector<16x16x64xf32> to vector<256x64xf32>
    %c3_143 = arith.constant 3 : index
    %c0_144 = arith.constant 0 : index
    %c0_145 = arith.constant 0 : index
    %107 = vector.load %arg10[%c3_143, %c0_144, %c0_145] : memref<20x20x64xf32, #tpu.memory_space<vmem>>, vector<16x16x64xf32>
    %108 = vector.shape_cast %107 : vector<16x16x64xf32> to vector<256x64xf32>
    %c3_146 = arith.constant 3 : index
    %c1_147 = arith.constant 1 : index
    %c0_148 = arith.constant 0 : index
    %109 = vector.load %arg10[%c3_146, %c1_147, %c0_148] : memref<20x20x64xf32, #tpu.memory_space<vmem>>, vector<16x16x64xf32>
    %110 = vector.shape_cast %109 : vector<16x16x64xf32> to vector<256x64xf32>
    %c3_149 = arith.constant 3 : index
    %c2_150 = arith.constant 2 : index
    %c0_151 = arith.constant 0 : index
    %111 = vector.load %arg10[%c3_149, %c2_150, %c0_151] : memref<20x20x64xf32, #tpu.memory_space<vmem>>, vector<16x16x64xf32>
    %112 = vector.shape_cast %111 : vector<16x16x64xf32> to vector<256x64xf32>
    %c3_152 = arith.constant 3 : index
    %c3_153 = arith.constant 3 : index
    %c0_154 = arith.constant 0 : index
    %113 = vector.load %arg10[%c3_152, %c3_153, %c0_154] : memref<20x20x64xf32, #tpu.memory_space<vmem>>, vector<16x16x64xf32>
    %114 = vector.shape_cast %113 : vector<16x16x64xf32> to vector<256x64xf32>
    %c3_155 = arith.constant 3 : index
    %c4_156 = arith.constant 4 : index
    %c0_157 = arith.constant 0 : index
    %115 = vector.load %arg10[%c3_155, %c4_156, %c0_157] : memref<20x20x64xf32, #tpu.memory_space<vmem>>, vector<16x16x64xf32>
    %116 = vector.shape_cast %115 : vector<16x16x64xf32> to vector<256x64xf32>
    %c4_158 = arith.constant 4 : index
    %c0_159 = arith.constant 0 : index
    %c0_160 = arith.constant 0 : index
    %117 = vector.load %arg10[%c4_158, %c0_159, %c0_160] : memref<20x20x64xf32, #tpu.memory_space<vmem>>, vector<16x16x64xf32>
    %118 = vector.shape_cast %117 : vector<16x16x64xf32> to vector<256x64xf32>
    %c4_161 = arith.constant 4 : index
    %c1_162 = arith.constant 1 : index
    %c0_163 = arith.constant 0 : index
    %119 = vector.load %arg10[%c4_161, %c1_162, %c0_163] : memref<20x20x64xf32, #tpu.memory_space<vmem>>, vector<16x16x64xf32>
    %120 = vector.shape_cast %119 : vector<16x16x64xf32> to vector<256x64xf32>
    %c4_164 = arith.constant 4 : index
    %c2_165 = arith.constant 2 : index
    %c0_166 = arith.constant 0 : index
    %121 = vector.load %arg10[%c4_164, %c2_165, %c0_166] : memref<20x20x64xf32, #tpu.memory_space<vmem>>, vector<16x16x64xf32>
    %122 = vector.shape_cast %121 : vector<16x16x64xf32> to vector<256x64xf32>
    %c4_167 = arith.constant 4 : index
    %c3_168 = arith.constant 3 : index
    %c0_169 = arith.constant 0 : index
    %123 = vector.load %arg10[%c4_167, %c3_168, %c0_169] : memref<20x20x64xf32, #tpu.memory_space<vmem>>, vector<16x16x64xf32>
    %124 = vector.shape_cast %123 : vector<16x16x64xf32> to vector<256x64xf32>
    %c4_170 = arith.constant 4 : index
    %c4_171 = arith.constant 4 : index
    %c0_172 = arith.constant 0 : index
    %125 = vector.load %arg10[%c4_170, %c4_171, %c0_172] : memref<20x20x64xf32, #tpu.memory_space<vmem>>, vector<16x16x64xf32>
    %126 = vector.shape_cast %125 : vector<16x16x64xf32> to vector<256x64xf32>
    %127 = tpu.concatenate %78, %80, %82, %84, %86, %88, %90, %92, %94, %96, %98, %100, %102, %104, %106, %108 in 1 : vector<256x64xf32>, vector<256x64xf32>, vector<256x64xf32>, vector<256x64xf32>, vector<256x64xf32>, vector<256x64xf32>, vector<256x64xf32>, vector<256x64xf32>, vector<256x64xf32>, vector<256x64xf32>, vector<256x64xf32>, vector<256x64xf32>, vector<256x64xf32>, vector<256x64xf32>, vector<256x64xf32>, vector<256x64xf32> -> vector<256x1024xf32>
    %128 = tpu.concatenate %110, %112, %114, %116, %118, %120, %122, %124, %126 in 1 : vector<256x64xf32>, vector<256x64xf32>, vector<256x64xf32>, vector<256x64xf32>, vector<256x64xf32>, vector<256x64xf32>, vector<256x64xf32>, vector<256x64xf32>, vector<256x64xf32> -> vector<256x576xf32>
    %129 = tpu.concatenate %127, %128 in 1 : vector<256x1024xf32>, vector<256x576xf32> -> vector<256x1600xf32>
    %c0_173 = arith.constant 0 : index
    %c0_174 = arith.constant 0 : index
    %130 = vector.load %arg6[%c0_173, %c0_174] : memref<1600x1xf32, #tpu.memory_space<vmem>>, vector<1600x1xf32>
    %cst_175 = arith.constant dense<0.000000e+00> : vector<256x1xf32>
    %131 = tpu.matmul %129, %130, %cst_175 {dimension_numbers = #tpu.dot_dimension_numbers<[1], [0], [0], [1], [0, 0, 1, 1], [], []>} : vector<256x1600xf32>, vector<1600x1xf32>, vector<256x1xf32> -> vector<256x1xf32>
    %c0_176 = arith.constant 0 : index
    %c0_177 = arith.constant 0 : index
    %132 = vector.load %arg7[%c0_176, %c0_177] : memref<1x1xf32, #tpu.memory_space<vmem>>, vector<1x1xf32>
    %133 = vector.broadcast %132 : vector<1x1xf32> to vector<256x1xf32>
    %134 = arith.addf %131, %133 : vector<256x1xf32>
    %c0_178 = arith.constant 0 : index
    %c0_179 = arith.constant 0 : index
    %c0_180 = arith.constant 0 : index
    %135 = vector.load %arg8[%c0_178, %c0_179, %c0_180] : memref<1x256x1xf32, #tpu.memory_space<vmem>>, vector<1x256x1xf32>
    %136 = vector.shape_cast %135 : vector<1x256x1xf32> to vector<256x1xf32>
    %137 = vector.shape_cast %134 : vector<256x1xf32> to vector<1x256x1xf32>
    tpu.vector_store %arg8[%c0_178, %c0_179, %c0_180], %137 {strides = array<i32>} : memref<1x256x1xf32, #tpu.memory_space<vmem>>, vector<1x256x1xf32>,
    return
  }
  func.func @transform_0(%arg0: i32) -> (i32, i32, i32) {
    %c0_i32 = arith.constant 0 : i32
    %c0_i32_0 = arith.constant 0 : i32
    %c0_i32_1 = arith.constant 0 : i32
    return %arg0, %c0_i32, %c0_i32_0 : i32, i32, i32
  }
  func.func @transform_1(%arg0: i32) -> (i32, i32) {
    %c0_i32 = arith.constant 0 : i32
    %c0_i32_0 = arith.constant 0 : i32
    %c0_i32_1 = arith.constant 0 : i32
    return %c0_i32, %c0_i32_0 : i32, i32
  }
  func.func @transform_2(%arg0: i32) -> (i32, i32) {
    %c0_i32 = arith.constant 0 : i32
    %c0_i32_0 = arith.constant 0 : i32
    %c0_i32_1 = arith.constant 0 : i32
    return %c0_i32, %c0_i32_0 : i32, i32
  }
  func.func @transform_3(%arg0: i32) -> (i32, i32) {
    %c0_i32 = arith.constant 0 : i32
    %c0_i32_0 = arith.constant 0 : i32
    %c0_i32_1 = arith.constant 0 : i32
    return %c0_i32, %c0_i32_0 : i32, i32
  }
  func.func @transform_4(%arg0: i32) -> (i32, i32) {
    %c0_i32 = arith.constant 0 : i32
    %c0_i32_0 = arith.constant 0 : i32
    %c0_i32_1 = arith.constant 0 : i32
    return %c0_i32, %c0_i32_0 : i32, i32
  }
  func.func @transform_5(%arg0: i32) -> (i32, i32) {
    %c0_i32 = arith.constant 0 : i32
    %c0_i32_0 = arith.constant 0 : i32
    %c0_i32_1 = arith.constant 0 : i32
    return %c0_i32, %c0_i32_0 : i32, i32
  }
  func.func @transform_6(%arg0: i32) -> (i32, i32) {
    %c0_i32 = arith.constant 0 : i32
    %c0_i32_0 = arith.constant 0 : i32
    %c0_i32_1 = arith.constant 0 : i32
    return %c0_i32, %c0_i32_0 : i32, i32
  }
  func.func @transform_7(%arg0: i32) -> (i32, i32, i32) {
    %c0_i32 = arith.constant 0 : i32
    %c0_i32_0 = arith.constant 0 : i32
    %c0_i32_1 = arith.constant 0 : i32
    return %arg0, %c0_i32, %c0_i32_0 : i32, i32, i32
  }
}

</mosaic_0001>

<llo_original>
// kernel: srcnn_forward.1
$region0: #{srcnn_forward.1}
  #allocation0 [shape = 'u32[]', space=smem, size = 0x4, offset = 0x4, fixed_abs, tag = 'smem constant byte address 0x4 - core index']
  #allocation1 [shape = 'u32[144,128]{1,0:T(1,128)}', space=vmem, size = 0x12000, scoped, tag = 'internal scratch']
  #allocation2 [shape = 'f32[20,20,128]{2,1,0:T(8,128)}', space=vmem, size = 0x3c000, scoped, tag = 'scratch operand']
  #allocation3 [shape = 'f32[20,20,64]{2,1,0:T(8,128)}', space=vmem, size = 0x3c000, scoped, tag = 'scratch operand']
  #allocation4 [shape = 'f32[1,1]{1,0:T(1,128)S(1)}', space=vmem, size = 0x200, scoped, tag = 'scoped memory for srcnn_forward.1']
  %s0 = inlined_call_operand.vmem [shape: f32[2,256,81], index: 0, kind: input, shape index: {}]
  %s1 = inlined_call_operand.vmem [shape: f32[81,128], index: 1, kind: input, shape index: {}]
  %s2 = inlined_call_operand.vmem [shape: f32[1,128], index: 2, kind: input, shape index: {}]
  %s3 = inlined_call_operand.vmem [shape: f32[3200,64], index: 3, kind: input, shape index: {}]
  %s4 = inlined_call_operand.vmem [shape: f32[1,64], index: 4, kind: input, shape index: {}]
  %s5 = inlined_call_operand.vmem [shape: f32[1600,1], index: 5, kind: input, shape index: {}]
  %s6 = inlined_call_operand.<no memory space> [shape: f32[1,1], index: 6, kind: input, shape index: {}]
  %s7 = inlined_call_operand.vmem [shape: f32[2,256,1], index: 7, kind: output, shape index: {}]
  %s8 = sld [smem:[#allocation0]]
  $region61: #{srcnn_forward.1} parent=0
    _
  %s10 = ssub.s32 1, %s8
  %s11 = scalar_select 0, %s10, %s8
  %v12 = vstv %s6
  %13 = vst [vmem:[#allocation4] sm:$0x1] %v12
  loop: start=0, step=1, limit=4
  $region2: #{srcnn_forward.1} parent=0 // loop_pre_header
    _
  $region3: #{srcnn_forward.1} parent=0 // loop_header
    %s15 = sphi 0, %s19
    %p16 = scmp.ge.s32.totalorder %s15, 4
    %s25 = sphi 0, %s27
    %s28 = sphi 0, %s25
    %s29 = sphi 0, %s28
    %s45 = sphi 0, %s29
    %s49 = sphi 0, %s49
    %s51 = sphi 0, %s49
    %s52 = sphi 0, %s51
    %s66 = sphi 0, %s52
    %s70 = sphi 0, %s70
    %s72 = sphi 0, %s70
    %s73 = sphi 0, %s72
    %s87 = sphi 0, %s73
    %s91 = sphi 0, %s91
    %s93 = sphi 0, %s91
    %s94 = sphi 0, %s93
    %s108 = sphi 0, %s94
    %s112 = sphi 0, %s112
    %s114 = sphi 0, %s112
    %s115 = sphi 0, %s114
    %s129 = sphi 0, %s115
    %s133 = sphi 0, %s133
    %s135 = sphi 0, %s133
    %s136 = sphi 0, %s135
    %s150 = sphi 0, %s136
    %s154 = sphi 0, %s154
    %s156 = sphi 0, %s154
    %s157 = sphi 0, %s156
    %s171 = sphi 0, %s157
    %s177 = sphi 0, %s179
    %s180 = sphi 0, %s177
    %s181 = sphi 0, %s180
    %s197 = sphi 0, %s181
  $region4: #{srcnn_forward.1} parent=0 // loop_header_branch
    %18 = sbr.rel (%p16) target = $region8
  $region5: #{srcnn_forward.1} parent=0 // loop_body
    %s20 = ssub.s32 %s15, 1
    %s21 = ssub.s32 %s15, 2
    %s22 = sadd.s32 %s15, 1
    %s23 = ssub.s32 %s15, %s22
    %p24 = scmp.eq.s32.totalorder %s23, 0
    %s26 = sadd.s32 %s25, 1
    %s27 = scalar_select %p24, %s25, %s26
    %p30 = pneg %p24
    %p31 = scmp.eq.s32.totalorder %s15, 1
    %p32 = por %p30, %p31
    %p33 = scmp.ne.s32.totalorder %s25, %s28
    %p34 = scmp.eq.s32.totalorder %s15, 0
    %p35 = por %p33, %p34
    %p36 = scmp.ne.s32.totalorder %s25, %s28
    %p37 = scmp.eq.s32.totalorder %s20, 1
    %p38 = por %p36, %p37
    %p39 = scmp.ne.s32.totalorder %s28, %s29
    %p40 = scmp.eq.s32.totalorder %s20, 0
    %p41 = por %p39, %p40
    %p42 = scmp.ne.s32.totalorder %s28, %s29
    %p43 = scmp.eq.s32.totalorder %s21, 1
    %p44 = por %p42, %p43
    %p46 = scmp.ne.s32.totalorder %s29, %s45
    %p47 = scmp.eq.s32.totalorder %s21, 0
    %p48 = por %p46, %p47
    %s50 = sadd.s32 %s49, 1
    %p53 = scmp.eq.s32.totalorder %s15, 1
    %p54 = scmp.ne.s32.totalorder %s49, %s51
    %p55 = scmp.eq.s32.totalorder %s15, 0
    %p56 = por %p54, %p55
    %p57 = scmp.ne.s32.totalorder %s49, %s51
    %p58 = scmp.eq.s32.totalorder %s20, 1
    %p59 = por %p57, %p58
    %p60 = scmp.ne.s32.totalorder %s51, %s52
    %p61 = scmp.eq.s32.totalorder %s20, 0
    %p62 = por %p60, %p61
    %p63 = scmp.ne.s32.totalorder %s51, %s52
    %p64 = scmp.eq.s32.totalorder %s21, 1
    %p65 = por %p63, %p64
    %p67 = scmp.ne.s32.totalorder %s52, %s66
    %p68 = scmp.eq.s32.totalorder %s21, 0
    %p69 = por %p67, %p68
    %s71 = sadd.s32 %s70, 1
    %p74 = scmp.eq.s32.totalorder %s15, 1
    %p75 = scmp.ne.s32.totalorder %s70, %s72
    %p76 = scmp.eq.s32.totalorder %s15, 0
    %p77 = por %p75, %p76
    %p78 = scmp.ne.s32.totalorder %s70, %s72
    %p79 = scmp.eq.s32.totalorder %s20, 1
    %p80 = por %p78, %p79
    %p81 = scmp.ne.s32.totalorder %s72, %s73
    %p82 = scmp.eq.s32.totalorder %s20, 0
    %p83 = por %p81, %p82
    %p84 = scmp.ne.s32.totalorder %s72, %s73
    %p85 = scmp.eq.s32.totalorder %s21, 1
    %p86 = por %p84, %p85
    %p88 = scmp.ne.s32.totalorder %s73, %s87
    %p89 = scmp.eq.s32.totalorder %s21, 0
    %p90 = por %p88, %p89
    %s92 = sadd.s32 %s91, 1
    %p95 = scmp.eq.s32.totalorder %s15, 1
    %p96 = scmp.ne.s32.totalorder %s91, %s93
    %p97 = scmp.eq.s32.totalorder %s15, 0
    %p98 = por %p96, %p97
    %p99 = scmp.ne.s32.totalorder %s91, %s93
    %p100 = scmp.eq.s32.totalorder %s20, 1
    %p101 = por %p99, %p100
    %p102 = scmp.ne.s32.totalorder %s93, %s94
    %p103 = scmp.eq.s32.totalorder %s20, 0
    %p104 = por %p102, %p103
    %p105 = scmp.ne.s32.totalorder %s93, %s94
    %p106 = scmp.eq.s32.totalorder %s21, 1
    %p107 = por %p105, %p106
    %p109 = scmp.ne.s32.totalorder %s94, %s108
    %p110 = scmp.eq.s32.totalorder %s21, 0
    %p111 = por %p109, %p110
    %s113 = sadd.s32 %s112, 1
    %p116 = scmp.eq.s32.totalorder %s15, 1
    %p117 = scmp.ne.s32.totalorder %s112, %s114
    %p118 = scmp.eq.s32.totalorder %s15, 0
    %p119 = por %p117, %p118
    %p120 = scmp.ne.s32.totalorder %s112, %s114
    %p121 = scmp.eq.s32.totalorder %s20, 1
    %p122 = por %p120, %p121
    %p123 = scmp.ne.s32.totalorder %s114, %s115
    %p124 = scmp.eq.s32.totalorder %s20, 0
    %p125 = por %p123, %p124
    %p126 = scmp.ne.s32.totalorder %s114, %s115
    %p127 = scmp.eq.s32.totalorder %s21, 1
    %p128 = por %p126, %p127
    %p130 = scmp.ne.s32.totalorder %s115, %s129
    %p131 = scmp.eq.s32.totalorder %s21, 0
    %p132 = por %p130, %p131
    %s134 = sadd.s32 %s133, 1
    %p137 = scmp.eq.s32.totalorder %s15, 1
    %p138 = scmp.ne.s32.totalorder %s133, %s135
    %p139 = scmp.eq.s32.totalorder %s15, 0
    %p140 = por %p138, %p139
    %p141 = scmp.ne.s32.totalorder %s133, %s135
    %p142 = scmp.eq.s32.totalorder %s20, 1
    %p143 = por %p141, %p142
    %p144 = scmp.ne.s32.totalorder %s135, %s136
    %p145 = scmp.eq.s32.totalorder %s20, 0
    %p146 = por %p144, %p145
    %p147 = scmp.ne.s32.totalorder %s135, %s136
    %p148 = scmp.eq.s32.totalorder %s21, 1
    %p149 = por %p147, %p148
    %p151 = scmp.ne.s32.totalorder %s136, %s150
    %p152 = scmp.eq.s32.totalorder %s21, 0
    %p153 = por %p151, %p152
    %s155 = sadd.s32 %s154, 1
    %p158 = scmp.eq.s32.totalorder %s15, 1
    %p159 = scmp.ne.s32.totalorder %s154, %s156
    %p160 = scmp.eq.s32.totalorder %s15, 0
    %p161 = por %p159, %p160
    %p162 = scmp.ne.s32.totalorder %s154, %s156
    %p163 = scmp.eq.s32.totalorder %s20, 1
    %p164 = por %p162, %p163
    %p165 = scmp.ne.s32.totalorder %s156, %s157
    %p166 = scmp.eq.s32.totalorder %s20, 0
    %p167 = por %p165, %p166
    %p168 = scmp.ne.s32.totalorder %s156, %s157
    %p169 = scmp.eq.s32.totalorder %s21, 1
    %p170 = por %p168, %p169
    %p172 = scmp.ne.s32.totalorder %s157, %s171
    %p173 = scmp.eq.s32.totalorder %s21, 0
    %p174 = por %p172, %p173
    %s175 = ssub.s32 %s15, %s22
    %p176 = scmp.eq.s32.totalorder %s175, 0
    %s178 = sadd.s32 %s177, 1
    %s179 = scalar_select %p176, %s177, %s178
    %p182 = pneg %p176
    %p183 = scmp.eq.s32.totalorder %s15, 1
    %p184 = por %p182, %p183
    %p185 = scmp.ne.s32.totalorder %s177, %s180
    %p186 = scmp.eq.s32.totalorder %s15, 0
    %p187 = por %p185, %p186
    %p188 = scmp.ne.s32.totalorder %s177, %s180
    %p189 = scmp.eq.s32.totalorder %s20, 1
    %p190 = por %p188, %p189
    %p191 = scmp.ne.s32.totalorder %s180, %s181
    %p192 = scmp.eq.s32.totalorder %s20, 0
    %p193 = por %p191, %p192
    %p194 = scmp.ne.s32.totalorder %s180, %s181
    %p195 = scmp.eq.s32.totalorder %s21, 1
    %p196 = por %p194, %p195
    %p198 = scmp.ne.s32.totalorder %s181, %s197
    %p199 = scmp.eq.s32.totalorder %s21, 0
    %p200 = por %p198, %p199
    %p201 = scmp.le.s32.totalorder 1, %s15
    %p202 = scmp.lt.s32.totalorder %s15, 3
    %p203 = pnand %p201, %p202
    %p204 = pneg %p203
    // Predicated region
    $region9: #{srcnn_forward.1} parent=5 // pred_check
      _
    $region10: #{srcnn_forward.1} parent=5 // pred_check_branch
      %206 = sbr.rel (%p203) target = $region12
    $region11: #{srcnn_forward.1} parent=5 // pred_region
      %s207 = ssub.s32 %s15, 1
      // Predicated region
      $region13: #{srcnn_forward.1} parent=11 // pred_check
        %p208 = pneg %p62
      $region14: #{srcnn_forward.1} parent=11 // pred_check_branch
        %210 = sbr.rel (%p208) target = $region16
      $region15: #{srcnn_forward.1} parent=11 // pred_region
        _
      $region16: #{srcnn_forward.1} parent=11 // pred_fallthru
        _
      // Predicated region
      $region17: #{srcnn_forward.1} parent=11 // pred_check
        %p211 = pneg %p83
      $region18: #{srcnn_forward.1} parent=11 // pred_check_branch
        %213 = sbr.rel (%p211) target = $region20
      $region19: #{srcnn_forward.1} parent=11 // pred_region
        _
      $region20: #{srcnn_forward.1} parent=11 // pred_fallthru
        _
      // Predicated region
      $region21: #{srcnn_forward.1} parent=11 // pred_check
        %p214 = pneg %p104
      $region22: #{srcnn_forward.1} parent=11 // pred_check_branch
        %216 = sbr.rel (%p214) target = $region24
      $region23: #{srcnn_forward.1} parent=11 // pred_region
        _
      $region24: #{srcnn_forward.1} parent=11 // pred_fallthru
        _
      // Predicated region
      $region25: #{srcnn_forward.1} parent=11 // pred_check
        %p217 = pneg %p125
      $region26: #{srcnn_forward.1} parent=11 // pred_check_branch
        %219 = sbr.rel (%p217) target = $region28
      $region27: #{srcnn_forward.1} parent=11 // pred_region
        _
      $region28: #{srcnn_forward.1} parent=11 // pred_fallthru
        _
      // Predicated region
      $region29: #{srcnn_forward.1} parent=11 // pred_check
        %p220 = pneg %p146
      $region30: #{srcnn_forward.1} parent=11 // pred_check_branch
        %222 = sbr.rel (%p220) target = $region32
      $region31: #{srcnn_forward.1} parent=11 // pred_region
        _
      $region32: #{srcnn_forward.1} parent=11 // pred_fallthru
        _
      // Predicated region
      $region33: #{srcnn_forward.1} parent=11 // pred_check
        %p223 = pneg %p167
      $region34: #{srcnn_forward.1} parent=11 // pred_check_branch
        %225 = sbr.rel (%p223) target = $region36
      $region35: #{srcnn_forward.1} parent=11 // pred_region
        _
      $region36: #{srcnn_forward.1} parent=11 // pred_fallthru
        _
    $region12: #{srcnn_forward.1} parent=5 // pred_fallthru
      _
    %p226 = scmp.lt.s32.totalorder %s15, 2
    // Predicated region
    $region37: #{srcnn_forward.1} parent=5 // pred_check
      %p227 = pneg %p226
    $region38: #{srcnn_forward.1} parent=5 // pred_check_branch
      %229 = sbr.rel (%p227) target = $region40
    $region39: #{srcnn_forward.1} parent=5 // pred_region
      // Predicated region
      $region41: #{srcnn_forward.1} parent=39 // pred_check
        %p230 = pneg %p35
      $region42: #{srcnn_forward.1} parent=39 // pred_check_branch
        %232 = sbr.rel (%p230) target = $region44
      $region43: #{srcnn_forward.1} parent=39 // pred_region
        %p233 = scmp.lt.s32.totalorder %s15, 1
        %s234 = scalar_select %p233, %s15, 1
        %s235 = smul.addr %s234, 32
        %s236 = smul.addr %s235, 8
        %s237 = scalar_lea.vmem %s0, %s236
      $region44: #{srcnn_forward.1} parent=39 // pred_fallthru
        _
    $region40: #{srcnn_forward.1} parent=5 // pred_fallthru
      _
    %p238 = scmp.le.s32.totalorder 1, %s15
    %p239 = scmp.lt.s32.totalorder %s15, 3
    %p240 = pnand %p238, %p239
    %p241 = pneg %p240
    // Predicated region
    $region45: #{srcnn_forward.1} parent=5 // pred_check
      _
    $region46: #{srcnn_forward.1} parent=5 // pred_check_branch
      %243 = sbr.rel (%p240) target = $region48
    $region47: #{srcnn_forward.1} parent=5 // pred_region
      %s244 = ssub.s32 %s15, 1
      %p245 = scmp.lt.s32.totalorder %s20, 1
      %s246 = scalar_select %p245, %s20, 1
      %s247 = smul.addr %s246, 32
      %s248 = smul.addr %s247, 8
      %s249 = scalar_lea.vmem %s0, %s248
      %p250 = pneg %p41
      %p251 = pneg %p38
      %p252 = pneg %p62
      %p253 = pneg %p59
      %p254 = pneg %p83
      %p255 = pneg %p80
      %p256 = pneg %p104
      %p257 = pneg %p101
      %p258 = pneg %p125
      %p259 = pneg %p122
      %p260 = pneg %p146
      %p261 = pneg %p143
      %p262 = pneg %p167
      %p263 = pneg %p164
      %p264 = pneg %p193
      %p265 = pneg %p190
      %p266 = scmp.lt.s32.totalorder %s20, 1
      %s267 = scalar_select %p266, %s20, 1
      %s268 = smul.addr %s267, 32
      %s269 = smul.addr %s268, 8
      %s270 = scalar_lea.vmem %s7, %s269
      %p271 = scmp.lt.s32.totalorder %s20, 1
      %s272 = scalar_select %p271, %s20, 1
      %s273 = smul.addr %s272, 32
      %s274 = smul.addr %s273, 8
      %s275 = scalar_lea.vmem %s0, %s274
      %p276 = scmp.lt.s32.totalorder %s20, 1
      %s277 = scalar_select %p276, %s20, 1
      %s278 = smul.addr %s277, 32
      %s279 = smul.addr %s278, 8
      %s280 = scalar_lea.vmem %s7, %s279
      %v281 = vld [vmem:[%s275] sm:$0xff]
      %v282 = vld [vmem:[%s275 + $0x8] sm:$0xff]
      %v283 = vld [vmem:[%s275 + $0x10] sm:$0xff]
      %v284 = vld [vmem:[%s275 + $0x18] sm:$0xff]
      %v285 = vld [vmem:[%s275 + $0x20] sm:$0xff]
      %v286 = vld [vmem:[%s275 + $0x28] sm:$0xff]
      %v287 = vld [vmem:[%s275 + $0x30] sm:$0xff]
      %v288 = vld [vmem:[%s275 + $0x38] sm:$0xff]
      %v289 = vld [vmem:[%s275 + $0x40] sm:$0xff]
      %v290 = vld [vmem:[%s275 + $0x48] sm:$0xff]
      %v291 = vld [vmem:[%s275 + $0x50] sm:$0xff]
      %v292 = vld [vmem:[%s275 + $0x58] sm:$0xff]
      %v293 = vld [vmem:[%s275 + $0x60] sm:$0xff]
      %v294 = vld [vmem:[%s275 + $0x68] sm:$0xff]
      %v295 = vld [vmem:[%s275 + $0x70] sm:$0xff]
      %v296 = vld [vmem:[%s275 + $0x78] sm:$0xff]
      %v297 = vld [vmem:[%s275 + $0x80] sm:$0xff]
      %v298 = vld [vmem:[%s275 + $0x88] sm:$0xff]
      %v299 = vld [vmem:[%s275 + $0x90] sm:$0xff]
      %v300 = vld [vmem:[%s275 + $0x98] sm:$0xff]
      %v301 = vld [vmem:[%s275 + $0xa0] sm:$0xff]
      %v302 = vld [vmem:[%s275 + $0xa8] sm:$0xff]
      %v303 = vld [vmem:[%s275 + $0xb0] sm:$0xff]
      %v304 = vld [vmem:[%s275 + $0xb8] sm:$0xff]
      %v305 = vld [vmem:[%s275 + $0xc0] sm:$0xff]
      %v306 = vld [vmem:[%s275 + $0xc8] sm:$0xff]
      %v307 = vld [vmem:[%s275 + $0xd0] sm:$0xff]
      %v308 = vld [vmem:[%s275 + $0xd8] sm:$0xff]
      %v309 = vld [vmem:[%s275 + $0xe0] sm:$0xff]
      %v310 = vld [vmem:[%s275 + $0xe8] sm:$0xff]
      %v311 = vld [vmem:[%s275 + $0xf0] sm:$0xff]
      %v312 = vld [vmem:[%s275 + $0xf8] sm:$0xff]
      %v313 = vld [vmem:[%s1] sm:$0xff]
      %v314 = vld [vmem:[%s1 + $0x8] sm:$0xff]
      %v315 = vld [vmem:[%s1 + $0x10] sm:$0xff]
      %v316 = vld [vmem:[%s1 + $0x18] sm:$0xff]
      %v317 = vld [vmem:[%s1 + $0x20] sm:$0xff]
      %v318 = vld [vmem:[%s1 + $0x28] sm:$0xff]
      %v319 = vld [vmem:[%s1 + $0x30] sm:$0xff]
      %v320 = vld [vmem:[%s1 + $0x38] sm:$0xff]
      %v321 = vld [vmem:[%s1 + $0x40] sm:$0xff]
      %v322 = vld [vmem:[%s1 + $0x48] sm:$0xff]
      %v323 = vld [vmem:[%s1 + $0x50] sm:$0x1]
      %v324 = vld [vmem:[%s2] sm:$0x1]
      %v326 = vlaneseq
      %v327 = vshrl.u32 %v326, 7
      %v328 = vsub.s32 0, %v327
      %v329 = vrot.slane %v324, %v328
      %vm331 = vcmask 662528
      %v333 = vsel %vm331, %v281, 0
      %v336 = vsel %vm331, %v282, 0
      %v339 = vsel %vm331, %v283, 0
      %v342 = vsel %vm331, %v284, 0
      %v345 = vsel %vm331, %v285, 0
      %v348 = vsel %vm331, %v286, 0
      %v351 = vsel %vm331, %v287, 0
      %v354 = vsel %vm331, %v288, 0
      %v357 = vsel %vm331, %v289, 0
      %v360 = vsel %vm331, %v290, 0
      %v363 = vsel %vm331, %v291, 0
      %v366 = vsel %vm331, %v292, 0
      %v369 = vsel %vm331, %v293, 0
      %v372 = vsel %vm331, %v294, 0
      %v375 = vsel %vm331, %v295, 0
      %v378 = vsel %vm331, %v296, 0
      %v381 = vsel %vm331, %v297, 0
      %v384 = vsel %vm331, %v298, 0
      %v387 = vsel %vm331, %v299, 0
      %v390 = vsel %vm331, %v300, 0
      %v393 = vsel %vm331, %v301, 0
      %v396 = vsel %vm331, %v302, 0
      %v399 = vsel %vm331, %v303, 0
      %v402 = vsel %vm331, %v304, 0
      %v405 = vsel %vm331, %v305, 0
      %v408 = vsel %vm331, %v306, 0
      %v411 = vsel %vm331, %v307, 0
      %v414 = vsel %vm331, %v308, 0
      %v417 = vsel %vm331, %v309, 0
      %v420 = vsel %vm331, %v310, 0
      %v423 = vsel %vm331, %v311, 0
      %v426 = vsel %vm331, %v312, 0
      %vm428 = vcmask 1040384
      %v430 = vsel %vm428, %v323, 0
      %432 = vmatprep.subr.mxu0 0.0
      %433 = vmatpush1.msra.mxu0 %v313
      %434 = vmatprep.subr.mxu0 0.0
      %435 = vmatpush1.msra.mxu0 %v314
      %436 = vmatprep.subr.mxu0 0.0
      %437 = vmatpush1.msra.mxu0 %v315
      %438 = vmatprep.subr.mxu0 0.0
      %439 = vmatpush1.msra.mxu0 %v316
      %440 = vmatprep.subr.mxu0 0.0
      %441 = vmatpush1.msra.mxu0 %v317
      %442 = vmatprep.subr.mxu0 0.0
      %443 = vmatpush1.msra.mxu0 %v318
      %444 = vmatprep.subr.mxu0 0.0
      %445 = vmatpush1.msra.mxu0 %v319
      %446 = vmatprep.subr.mxu0 0.0
      %447 = vmatpush1.msra.mxu0 %v320
      %448 = vmatprep.subr.mxu0 0.0
      %449 = vmatpush1.msra.mxu0 %v321
      %450 = vmatprep.subr.mxu0 0.0
      %451 = vmatpush1.msra.mxu0 %v322
      %452 = vmatprep.subr.mxu0 0.0
      %453 = vmatpush1.msra.mxu0 %v430
      %454 = vmatprep.subr.mxu0 0.0
      %455 = vmatpush1.msra.mxu0 0.0
      %456 = vmatprep.subr.mxu0 0.0
      %457 = vmatpush1.msra.mxu0 0.0
      %458 = vmatprep.subr.mxu0 0.0
      %459 = vmatpush1.msra.mxu0 0.0
      %460 = vmatprep.subr.mxu0 0.0
      %461 = vmatpush1.msra.mxu0 0.0
      %462 = vmatprep.subr.mxu0 0.0
      %463 = vmatpush1.msra.mxu0 0.0
      %464 = vmatprep.subr.mxu0 0.0
      %465 = vmatpush1.msra.mxu0 0.0
      %466 = vmatprep.subr.mxu0 0.0
      %467 = vmatpush1.msra.mxu0 0.0
      %468 = vmatprep.subr.mxu0 0.0
      %469 = vmatpush1.msra.mxu0 0.0
      %470 = vmatprep.subr.mxu0 0.0
      %471 = vmatpush1.msra.mxu0 0.0
      %472 = vmatprep.subr.mxu0 0.0
      %473 = vmatpush1.msra.mxu0 0.0
      %474 = vmatprep.subr.mxu0 0.0
      %475 = vmatpush1.msra.mxu0 0.0
      %476 = vmatprep.subr.mxu0 0.0
      %477 = vmatpush1.msra.mxu0 0.0
      %478 = vmatprep.subr.mxu0 0.0
      %479 = vmatpush1.msra.mxu0 0.0
      %480 = vmatprep.subr.mxu0 0.0
      %481 = vmatpush1.msra.mxu0 0.0
      %482 = vmatprep.subr.mxu0 0.0
      %483 = vmatpush1.msra.mxu0 0.0
      %484 = vmatprep.subr.mxu0 0.0
      %485 = vmatpush1.msra.mxu0 0.0
      %486 = vmatprep.subr.mxu0 0.0
      %487 = vmatpush1.msra.mxu0 0.0
      %488 = vmatprep.subr.mxu0 0.0
      %489 = vmatpush1.msra.mxu0 0.0
      %490 = vmatprep.subr.mxu0 0.0
      %491 = vmatpush1.msra.mxu0 0.0
      %492 = vmatprep.subr.mxu0 0.0
      %493 = vmatpush1.msra.mxu0 0.0
      %494 = vmatprep.subr.mxu0 0.0
      %495 = vmatpush1.msra.mxu0 0.0
      %496 = vmatprep.mubr.f32.mxu0 0.0
      %497 = vmatmul.mubr.f32.gmra.mrb[0].mxu0 %v333
      %v498 = vpop.f32.mrb[0].mxu0
      %v499 = vadd.f32 %v329, %v498
      %v500 = vpop.f32.mrb[0].mxu0
      %501 = vmatprep.mubr.f32.mxu0 0.0
      %502 = vmatmul.mubr.f32.gmra.mrb[0].mxu0 %v336
      %v503 = vpop.f32.mrb[0].mxu0
      %v504 = vadd.f32 %v329, %v503
      %v505 = vpop.f32.mrb[0].mxu0
      %506 = vmatprep.mubr.f32.mxu0 0.0
      %507 = vmatmul.mubr.f32.gmra.mrb[0].mxu0 %v339
      %v508 = vpop.f32.mrb[0].mxu0
      %v509 = vadd.f32 %v329, %v508
      %v510 = vpop.f32.mrb[0].mxu0
      %511 = vmatprep.mubr.f32.mxu0 0.0
      %512 = vmatmul.mubr.f32.gmra.mrb[0].mxu0 %v342
      %v513 = vpop.f32.mrb[0].mxu0
      %v514 = vadd.f32 %v329, %v513
      %v515 = vpop.f32.mrb[0].mxu0
      %516 = vmatprep.mubr.f32.mxu0 0.0
      %517 = vmatmul.mubr.f32.gmra.mrb[0].mxu0 %v345
      %v518 = vpop.f32.mrb[0].mxu0
      %v519 = vadd.f32 %v329, %v518
      %v520 = vpop.f32.mrb[0].mxu0
      %521 = vmatprep.mubr.f32.mxu0 0.0
      %522 = vmatmul.mubr.f32.gmra.mrb[0].mxu0 %v348
      %v523 = vpop.f32.mrb[0].mxu0
      %v524 = vadd.f32 %v329, %v523
      %v525 = vpop.f32.mrb[0].mxu0
      %526 = vmatprep.mubr.f32.mxu0 0.0
      %527 = vmatmul.mubr.f32.gmra.mrb[0].mxu0 %v351
      %v528 = vpop.f32.mrb[0].mxu0
      %v529 = vadd.f32 %v329, %v528
      %v530 = vpop.f32.mrb[0].mxu0
      %531 = vmatprep.mubr.f32.mxu0 0.0
      %532 = vmatmul.mubr.f32.gmra.mrb[0].mxu0 %v354
      %v533 = vpop.f32.mrb[0].mxu0
      %v534 = vadd.f32 %v329, %v533
      %v535 = vpop.f32.mrb[0].mxu0
      %536 = vmatprep.mubr.f32.mxu0 0.0
      %537 = vmatmul.mubr.f32.gmra.mrb[0].mxu0 %v357
      %v538 = vpop.f32.mrb[0].mxu0
      %v539 = vadd.f32 %v329, %v538
      %v540 = vpop.f32.mrb[0].mxu0
      %541 = vmatprep.mubr.f32.mxu0 0.0
      %542 = vmatmul.mubr.f32.gmra.mrb[0].mxu0 %v360
      %v543 = vpop.f32.mrb[0].mxu0
      %v544 = vadd.f32 %v329, %v543
      %v545 = vpop.f32.mrb[0].mxu0
      %546 = vmatprep.mubr.f32.mxu0 0.0
      %547 = vmatmul.mubr.f32.gmra.mrb[0].mxu0 %v363
      %v548 = vpop.f32.mrb[0].mxu0
      %v549 = vadd.f32 %v329, %v548
      %v550 = vpop.f32.mrb[0].mxu0
      %551 = vmatprep.mubr.f32.mxu0 0.0
      %552 = vmatmul.mubr.f32.gmra.mrb[0].mxu0 %v366
      %v553 = vpop.f32.mrb[0].mxu0
      %v554 = vadd.f32 %v329, %v553
      %v555 = vpop.f32.mrb[0].mxu0
      %556 = vmatprep.mubr.f32.mxu0 0.0
      %557 = vmatmul.mubr.f32.gmra.mrb[0].mxu0 %v369
      %v558 = vpop.f32.mrb[0].mxu0
      %v559 = vadd.f32 %v329, %v558
      %v560 = vpop.f32.mrb[0].mxu0
      %561 = vmatprep.mubr.f32.mxu0 0.0
      %562 = vmatmul.mubr.f32.gmra.mrb[0].mxu0 %v372
      %v563 = vpop.f32.mrb[0].mxu0
      %v564 = vadd.f32 %v329, %v563
      %v565 = vpop.f32.mrb[0].mxu0
      %566 = vmatprep.mubr.f32.mxu0 0.0
      %567 = vmatmul.mubr.f32.gmra.mrb[0].mxu0 %v375
      %v568 = vpop.f32.mrb[0].mxu0
      %v569 = vadd.f32 %v329, %v568
      %v570 = vpop.f32.mrb[0].mxu0
      %571 = vmatprep.mubr.f32.mxu0 0.0
      %572 = vmatmul.mubr.f32.gmra.mrb[0].mxu0 %v378
      %v573 = vpop.f32.mrb[0].mxu0
      %v574 = vadd.f32 %v329, %v573
      %v575 = vpop.f32.mrb[0].mxu0
      %576 = vmatprep.mubr.f32.mxu0 0.0
      %577 = vmatmul.mubr.f32.gmra.mrb[0].mxu0 %v381
      %v578 = vpop.f32.mrb[0].mxu0
      %v579 = vadd.f32 %v329, %v578
      %v580 = vpop.f32.mrb[0].mxu0
      %581 = vmatprep.mubr.f32.mxu0 0.0
      %582 = vmatmul.mubr.f32.gmra.mrb[0].mxu0 %v384
      %v583 = vpop.f32.mrb[0].mxu0
      %v584 = vadd.f32 %v329, %v583
      %v585 = vpop.f32.mrb[0].mxu0
      %586 = vmatprep.mubr.f32.mxu0 0.0
      %587 = vmatmul.mubr.f32.gmra.mrb[0].mxu0 %v387
      %v588 = vpop.f32.mrb[0].mxu0
      %v589 = vadd.f32 %v329, %v588
      %v590 = vpop.f32.mrb[0].mxu0
      %591 = vmatprep.mubr.f32.mxu0 0.0
      %592 = vmatmul.mubr.f32.gmra.mrb[0].mxu0 %v390
      %v593 = vpop.f32.mrb[0].mxu0
      %v594 = vadd.f32 %v329, %v593
      %v595 = vpop.f32.mrb[0].mxu0
      %596 = vmatprep.mubr.f32.mxu0 0.0
      %597 = vmatmul.mubr.f32.gmra.mrb[0].mxu0 %v393
      %v598 = vpop.f32.mrb[0].mxu0
      %v599 = vadd.f32 %v329, %v598
      %v600 = vpop.f32.mrb[0].mxu0
      %601 = vmatprep.mubr.f32.mxu0 0.0
      %602 = vmatmul.mubr.f32.gmra.mrb[0].mxu0 %v396
      %v603 = vpop.f32.mrb[0].mxu0
      %v604 = vadd.f32 %v329, %v603
      %v605 = vpop.f32.mrb[0].mxu0
      %606 = vmatprep.mubr.f32.mxu0 0.0
      %607 = vmatmul.mubr.f32.gmra.mrb[0].mxu0 %v399
      %v608 = vpop.f32.mrb[0].mxu0
      %v609 = vadd.f32 %v329, %v608
      %v610 = vpop.f32.mrb[0].mxu0
      %611 = vmatprep.mubr.f32.mxu0 0.0
      %612 = vmatmul.mubr.f32.gmra.mrb[0].mxu0 %v402
      %v613 = vpop.f32.mrb[0].mxu0
      %v614 = vadd.f32 %v329, %v613
      %v615 = vpop.f32.mrb[0].mxu0
      %616 = vmatprep.mubr.f32.mxu0 0.0
      %617 = vmatmul.mubr.f32.gmra.mrb[0].mxu0 %v405
      %v618 = vpop.f32.mrb[0].mxu0
      %v619 = vadd.f32 %v329, %v618
      %v620 = vpop.f32.mrb[0].mxu0
      %621 = vmatprep.mubr.f32.mxu0 0.0
      %622 = vmatmul.mubr.f32.gmra.mrb[0].mxu0 %v408
      %v623 = vpop.f32.mrb[0].mxu0
      %v624 = vadd.f32 %v329, %v623
      %v625 = vpop.f32.mrb[0].mxu0
      %626 = vmatprep.mubr.f32.mxu0 0.0
      %627 = vmatmul.mubr.f32.gmra.mrb[0].mxu0 %v411
      %v628 = vpop.f32.mrb[0].mxu0
      %v629 = vadd.f32 %v329, %v628
      %v630 = vpop.f32.mrb[0].mxu0
      %631 = vmatprep.mubr.f32.mxu0 0.0
      %632 = vmatmul.mubr.f32.gmra.mrb[0].mxu0 %v414
      %v633 = vpop.f32.mrb[0].mxu0
      %v634 = vadd.f32 %v329, %v633
      %v635 = vpop.f32.mrb[0].mxu0
      %636 = vmatprep.mubr.f32.mxu0 0.0
      %637 = vmatmul.mubr.f32.gmra.mrb[0].mxu0 %v417
      %v638 = vpop.f32.mrb[0].mxu0
      %v639 = vadd.f32 %v329, %v638
      %v640 = vpop.f32.mrb[0].mxu0
      %641 = vmatprep.mubr.f32.mxu0 0.0
      %642 = vmatmul.mubr.f32.gmra.mrb[0].mxu0 %v420
      %v643 = vpop.f32.mrb[0].mxu0
      %v644 = vadd.f32 %v329, %v643
      %v645 = vpop.f32.mrb[0].mxu0
      %646 = vmatprep.mubr.f32.mxu0 0.0
      %647 = vmatmul.mubr.f32.gmra.mrb[0].mxu0 %v423
      %v648 = vpop.f32.mrb[0].mxu0
      %v649 = vadd.f32 %v329, %v648
      %v650 = vpop.f32.mrb[0].mxu0
      %651 = vmatprep.mubr.f32.mxu0 0.0
      %652 = vmatmul.mubr.f32.gmra.mrb[0].mxu0 %v426
      %v653 = vpop.f32.mrb[0].mxu0
      %v654 = vadd.f32 %v329, %v653
      %v655 = vpop.f32.mrb[0].mxu0
      %656 = vdwg.mxu0
      %v657 = vmax.f32 %v499, 0.0
      %v658 = vmax.f32 %v504, 0.0
      %v659 = vmax.f32 %v509, 0.0
      %v660 = vmax.f32 %v514, 0.0
      %v661 = vmax.f32 %v519, 0.0
      %v662 = vmax.f32 %v524, 0.0
      %v663 = vmax.f32 %v529, 0.0
      %v664 = vmax.f32 %v534, 0.0
      %v665 = vmax.f32 %v539, 0.0
      %v666 = vmax.f32 %v544, 0.0
      %v667 = vmax.f32 %v549, 0.0
      %v668 = vmax.f32 %v554, 0.0
      %v669 = vmax.f32 %v559, 0.0
      %v670 = vmax.f32 %v564, 0.0
      %v671 = vmax.f32 %v569, 0.0
      %v672 = vmax.f32 %v574, 0.0
      %v673 = vmax.f32 %v579, 0.0
      %v674 = vmax.f32 %v584, 0.0
      %v675 = vmax.f32 %v589, 0.0
      %v676 = vmax.f32 %v594, 0.0
      %v677 = vmax.f32 %v599, 0.0
      %v678 = vmax.f32 %v604, 0.0
      %v679 = vmax.f32 %v609, 0.0
      %v680 = vmax.f32 %v614, 0.0
      %v681 = vmax.f32 %v619, 0.0
      %v682 = vmax.f32 %v624, 0.0
      %v683 = vmax.f32 %v629, 0.0
      %v684 = vmax.f32 %v634, 0.0
      %v685 = vmax.f32 %v639, 0.0
      %v686 = vmax.f32 %v644, 0.0
      %v687 = vmax.f32 %v649, 0.0
      %v688 = vmax.f32 %v654, 0.0
      %689 = vst [vmem:[#allocation2] sm:$0xff] 0.0
      %690 = vst [vmem:[#allocation2 + $0x8] sm:$0xff] 0.0
      %691 = vst [vmem:[#allocation2 + $0x10] sm:$0xf] 0.0
      %692 = vst [vmem:[#allocation2 + $0x18] sm:$0xff] 0.0
      %693 = vst [vmem:[#allocation2 + $0x20] sm:$0xff] 0.0
      %694 = vst [vmem:[#allocation2 + $0x28] sm:$0xf] 0.0
      %695 = vst [vmem:[#allocation2 + $0x30] sm:$0xff] 0.0
      %696 = vst [vmem:[#allocation2 + $0x38] sm:$0xff] 0.0
      %697 = vst [vmem:[#allocation2 + $0x40] sm:$0xf] 0.0
      %698 = vst [vmem:[#allocation2 + $0x48] sm:$0xff] 0.0
      %699 = vst [vmem:[#allocation2 + $0x50] sm:$0xff] 0.0
      %700 = vst [vmem:[#allocation2 + $0x58] sm:$0xf] 0.0
      %701 = vst [vmem:[#allocation2 + $0x60] sm:$0xff] 0.0
      %702 = vst [vmem:[#allocation2 + $0x68] sm:$0xff] 0.0
      %703 = vst [vmem:[#allocation2 + $0x70] sm:$0xf] 0.0
      %704 = vst [vmem:[#allocation2 + $0x78] sm:$0xff] 0.0
      %705 = vst [vmem:[#allocation2 + $0x80] sm:$0xff] 0.0
      %706 = vst [vmem:[#allocation2 + $0x88] sm:$0xf] 0.0
      %707 = vst [vmem:[#allocation2 + $0x90] sm:$0xff] 0.0
      %708 = vst [vmem:[#allocation2 + $0x98] sm:$0xff] 0.0
      %709 = vst [vmem:[#allocation2 + $0xa0] sm:$0xf] 0.0
      %710 = vst [vmem:[#allocation2 + $0xa8] sm:$0xff] 0.0
      %711 = vst [vmem:[#allocation2 + $0xb0] sm:$0xff] 0.0
      %712 = vst [vmem:[#allocation2 + $0xb8] sm:$0xf] 0.0
      %713 = vst [vmem:[#allocation2 + $0xc0] sm:$0xff] 0.0
      %714 = vst [vmem:[#allocation2 + $0xc8] sm:$0xff] 0.0
      %715 = vst [vmem:[#allocation2 + $0xd0] sm:$0xf] 0.0
      %716 = vst [vmem:[#allocation2 + $0xd8] sm:$0xff] 0.0
      %717 = vst [vmem:[#allocation2 + $0xe0] sm:$0xff] 0.0
      %718 = vst [vmem:[#allocation2 + $0xe8] sm:$0xf] 0.0
      %719 = vst [vmem:[#allocation2 + $0xf0] sm:$0xff] 0.0
      %720 = vst [vmem:[#allocation2 + $0xf8] sm:$0xff] 0.0
      %721 = vst [vmem:[#allocation2 + $0x100] sm:$0xf] 0.0
      %722 = vst [vmem:[#allocation2 + $0x108] sm:$0xff] 0.0
      %723 = vst [vmem:[#allocation2 + $0x110] sm:$0xff] 0.0
      %724 = vst [vmem:[#allocation2 + $0x118] sm:$0xf] 0.0
      %725 = vst [vmem:[#allocation2 + $0x120] sm:$0xff] 0.0
      %726 = vst [vmem:[#allocation2 + $0x128] sm:$0xff] 0.0
      %727 = vst [vmem:[#allocation2 + $0x130] sm:$0xf] 0.0
      %728 = vst [vmem:[#allocation2 + $0x138] sm:$0xff] 0.0
      %729 = vst [vmem:[#allocation2 + $0x140] sm:$0xff] 0.0
      %730 = vst [vmem:[#allocation2 + $0x148] sm:$0xf] 0.0
      %731 = vst [vmem:[#allocation2 + $0x150] sm:$0xff] 0.0
      %732 = vst [vmem:[#allocation2 + $0x158] sm:$0xff] 0.0
      %733 = vst [vmem:[#allocation2 + $0x160] sm:$0xf] 0.0
      %734 = vst [vmem:[#allocation2 + $0x168] sm:$0xff] 0.0
      %735 = vst [vmem:[#allocation2 + $0x170] sm:$0xff] 0.0
      %736 = vst [vmem:[#allocation2 + $0x178] sm:$0xf] 0.0
      %737 = vst [vmem:[#allocation2 + $0x180] sm:$0xff] 0.0
      %738 = vst [vmem:[#allocation2 + $0x188] sm:$0xff] 0.0
      %739 = vst [vmem:[#allocation2 + $0x190] sm:$0xf] 0.0
      %740 = vst [vmem:[#allocation2 + $0x198] sm:$0xff] 0.0
      %741 = vst [vmem:[#allocation2 + $0x1a0] sm:$0xff] 0.0
      %742 = vst [vmem:[#allocation2 + $0x1a8] sm:$0xf] 0.0
      %743 = vst [vmem:[#allocation2 + $0x1b0] sm:$0xff] 0.0
      %744 = vst [vmem:[#allocation2 + $0x1b8] sm:$0xff] 0.0
      %745 = vst [vmem:[#allocation2 + $0x1c0] sm:$0xf] 0.0
      %746 = vst [vmem:[#allocation2 + $0x1c8] sm:$0xff] 0.0
      %747 = vst [vmem:[#allocation2 + $0x1d0] sm:$0xff] 0.0
      %748 = vst [vmem:[#allocation2 + $0x1d8] sm:$0xf] 0.0
      %s749 = scalar_lea.vmem [#allocation2], 48
      %750 = vst [vmem:[%s749 + $0x2] sm:$0xff] %v657
      %751 = vst [vmem:[%s749 + $0xa] sm:$0xff] %v658
      %752 = vst [vmem:[%s749 + $0x1a] sm:$0xff] %v659
      %753 = vst [vmem:[%s749 + $0x22] sm:$0xff] %v660
      %754 = vst [vmem:[%s749 + $0x32] sm:$0xff] %v661
      %755 = vst [vmem:[%s749 + $0x3a] sm:$0xff] %v662
      %756 = vst [vmem:[%s749 + $0x4a] sm:$0xff] %v663
      %757 = vst [vmem:[%s749 + $0x52] sm:$0xff] %v664
      %758 = vst [vmem:[%s749 + $0x62] sm:$0xff] %v665
      %759 = vst [vmem:[%s749 + $0x6a] sm:$0xff] %v666
      %760 = vst [vmem:[%s749 + $0x7a] sm:$0xff] %v667
      %761 = vst [vmem:[%s749 + $0x82] sm:$0xff] %v668
      %762 = vst [vmem:[%s749 + $0x92] sm:$0xff] %v669
      %763 = vst [vmem:[%s749 + $0x9a] sm:$0xff] %v670
      %764 = vst [vmem:[%s749 + $0xaa] sm:$0xff] %v671
      %765 = vst [vmem:[%s749 + $0xb2] sm:$0xff] %v672
      %766 = vst [vmem:[%s749 + $0xc2] sm:$0xff] %v673
      %767 = vst [vmem:[%s749 + $0xca] sm:$0xff] %v674
      %768 = vst [vmem:[%s749 + $0xda] sm:$0xff] %v675
      %769 = vst [vmem:[%s749 + $0xe2] sm:$0xff] %v676
      %770 = vst [vmem:[%s749 + $0xf2] sm:$0xff] %v677
      %771 = vst [vmem:[%s749 + $0xfa] sm:$0xff] %v678
      %772 = vst [vmem:[%s749 + $0x10a] sm:$0xff] %v679
      %773 = vst [vmem:[%s749 + $0x112] sm:$0xff] %v680
      %774 = vst [vmem:[%s749 + $0x122] sm:$0xff] %v681
      %775 = vst [vmem:[%s749 + $0x12a] sm:$0xff] %v682
      %776 = vst [vmem:[%s749 + $0x13a] sm:$0xff] %v683
      %777 = vst [vmem:[%s749 + $0x142] sm:$0xff] %v684
      %778 = vst [vmem:[%s749 + $0x152] sm:$0xff] %v685
      %779 = vst [vmem:[%s749 + $0x15a] sm:$0xff] %v686
      %780 = vst [vmem:[%s749 + $0x16a] sm:$0xff] %v687
      %781 = vst [vmem:[%s749 + $0x172] sm:$0xff] %v688
      %v782 = vld [vmem:[#allocation2] sm:$0xff]
      %v783 = vld [vmem:[#allocation2 + $0x8] sm:$0xff]
      %v784 = vld [vmem:[#allocation2 + $0x18] sm:$0xff]
      %v785 = vld [vmem:[#allocation2 + $0x20] sm:$0xff]
      %v786 = vld [vmem:[#allocation2 + $0x30] sm:$0xff]
      %v787 = vld [vmem:[#allocation2 + $0x38] sm:$0xff]
      %v788 = vld [vmem:[#allocation2 + $0x48] sm:$0xff]
      %v789 = vld [vmem:[#allocation2 + $0x50] sm:$0xff]
      %v790 = vld [vmem:[#allocation2 + $0x60] sm:$0xff]
      %v791 = vld [vmem:[#allocation2 + $0x68] sm:$0xff]
      %v792 = vld [vmem:[#allocation2 + $0x78] sm:$0xff]
      %v793 = vld [vmem:[#allocation2 + $0x80] sm:$0xff]
      %v794 = vld [vmem:[#allocation2 + $0x90] sm:$0xff]
      %v795 = vld [vmem:[#allocation2 + $0x98] sm:$0xff]
      %v796 = vld [vmem:[#allocation2 + $0xa8] sm:$0xff]
      %v797 = vld [vmem:[#allocation2 + $0xb0] sm:$0xff]
      %v798 = vld [vmem:[#allocation2 + $0xc0] sm:$0xff]
      %v799 = vld [vmem:[#allocation2 + $0xc8] sm:$0xff]
      %v800 = vld [vmem:[#allocation2 + $0xd8] sm:$0xff]
      %v801 = vld [vmem:[#allocation2 + $0xe0] sm:$0xff]
      %v802 = vld [vmem:[#allocation2 + $0xf0] sm:$0xff]
      %v803 = vld [vmem:[#allocation2 + $0xf8] sm:$0xff]
      %v804 = vld [vmem:[#allocation2 + $0x108] sm:$0xff]
      %v805 = vld [vmem:[#allocation2 + $0x110] sm:$0xff]
      %v806 = vld [vmem:[#allocation2 + $0x120] sm:$0xff]
      %v807 = vld [vmem:[#allocation2 + $0x128] sm:$0xff]
      %v808 = vld [vmem:[#allocation2 + $0x138] sm:$0xff]
      %v809 = vld [vmem:[#allocation2 + $0x140] sm:$0xff]
      %v810 = vld [vmem:[#allocation2 + $0x150] sm:$0xff]
      %v811 = vld [vmem:[#allocation2 + $0x158] sm:$0xff]
      %v812 = vld [vmem:[#allocation2 + $0x168] sm:$0xff]
      %v813 = vld [vmem:[#allocation2 + $0x170] sm:$0xff]
      %v814 = vld [vmem:[#allocation2 + $0x1] sm:$0xff]
      %v815 = vld [vmem:[#allocation2 + $0x9] sm:$0xff]
      %v816 = vld [vmem:[#allocation2 + $0x19] sm:$0xff]
      %v817 = vld [vmem:[#allocation2 + $0x21] sm:$0xff]
      %v818 = vld [vmem:[#allocation2 + $0x31] sm:$0xff]
      %v819 = vld [vmem:[#allocation2 + $0x39] sm:$0xff]
      %v820 = vld [vmem:[#allocation2 + $0x49] sm:$0xff]
      %v821 = vld [vmem:[#allocation2 + $0x51] sm:$0xff]
      %v822 = vld [vmem:[#allocation2 + $0x61] sm:$0xff]
      %v823 = vld [vmem:[#allocation2 + $0x69] sm:$0xff]
      %v824 = vld [vmem:[#allocation2 + $0x79] sm:$0xff]
      %v825 = vld [vmem:[#allocation2 + $0x81] sm:$0xff]
      %v826 = vld [vmem:[#allocation2 + $0x91] sm:$0xff]
      %v827 = vld [vmem:[#allocation2 + $0x99] sm:$0xff]
      %v828 = vld [vmem:[#allocation2 + $0xa9] sm:$0xff]
      %v829 = vld [vmem:[#allocation2 + $0xb1] sm:$0xff]
      %v830 = vld [vmem:[#allocation2 + $0xc1] sm:$0xff]
      %v831 = vld [vmem:[#allocation2 + $0xc9] sm:$0xff]
      %v832 = vld [vmem:[#allocation2 + $0xd9] sm:$0xff]
      %v833 = vld [vmem:[#allocation2 + $0xe1] sm:$0xff]
      %v834 = vld [vmem:[#allocation2 + $0xf1] sm:$0xff]
      %v835 = vld [vmem:[#allocation2 + $0xf9] sm:$0xff]
      %v836 = vld [vmem:[#allocation2 + $0x109] sm:$0xff]
      %v837 = vld [vmem:[#allocation2 + $0x111] sm:$0xff]
      %v838 = vld [vmem:[#allocation2 + $0x121] sm:$0xff]
      %v839 = vld [vmem:[#allocation2 + $0x129] sm:$0xff]
      %v840 = vld [vmem:[#allocation2 + $0x139] sm:$0xff]
      %v841 = vld [vmem:[#allocation2 + $0x141] sm:$0xff]
      %v842 = vld [vmem:[#allocation2 + $0x151] sm:$0xff]
      %v843 = vld [vmem:[#allocation2 + $0x159] sm:$0xff]
      %v844 = vld [vmem:[#allocation2 + $0x169] sm:$0xff]
      %v845 = vld [vmem:[#allocation2 + $0x171] sm:$0xff]
      %v846 = vld [vmem:[#allocation2 + $0x2] sm:$0xff]
      %v847 = vld [vmem:[#allocation2 + $0xa] sm:$0xff]
      %v848 = vld [vmem:[#allocation2 + $0x1a] sm:$0xff]
      %v849 = vld [vmem:[#allocation2 + $0x22] sm:$0xff]
      %v850 = vld [vmem:[#allocation2 + $0x32] sm:$0xff]
      %v851 = vld [vmem:[#allocation2 + $0x3a] sm:$0xff]
      %v852 = vld [vmem:[#allocation2 + $0x4a] sm:$0xff]
      %v853 = vld [vmem:[#allocation2 + $0x52] sm:$0xff]
      %v854 = vld [vmem:[#allocation2 + $0x62] sm:$0xff]
      %v855 = vld [vmem:[#allocation2 + $0x6a] sm:$0xff]
      %v856 = vld [vmem:[#allocation2 + $0x7a] sm:$0xff]
      %v857 = vld [vmem:[#allocation2 + $0x82] sm:$0xff]
      %v858 = vld [vmem:[#allocation2 + $0x92] sm:$0xff]
      %v859 = vld [vmem:[#allocation2 + $0x9a] sm:$0xff]
      %v860 = vld [vmem:[#allocation2 + $0xaa] sm:$0xff]
      %v861 = vld [vmem:[#allocation2 + $0xb2] sm:$0xff]
      %v862 = vld [vmem:[#allocation2 + $0xc2] sm:$0xff]
      %v863 = vld [vmem:[#allocation2 + $0xca] sm:$0xff]
      %v864 = vld [vmem:[#allocation2 + $0xda] sm:$0xff]
      %v865 = vld [vmem:[#allocation2 + $0xe2] sm:$0xff]
      %v866 = vld [vmem:[#allocation2 + $0xf2] sm:$0xff]
      %v867 = vld [vmem:[#allocation2 + $0xfa] sm:$0xff]
      %v868 = vld [vmem:[#allocation2 + $0x10a] sm:$0xff]
      %v869 = vld [vmem:[#allocation2 + $0x112] sm:$0xff]
      %v870 = vld [vmem:[#allocation2 + $0x122] sm:$0xff]
      %v871 = vld [vmem:[#allocation2 + $0x12a] sm:$0xff]
      %v872 = vld [vmem:[#allocation2 + $0x13a] sm:$0xff]
      %v873 = vld [vmem:[#allocation2 + $0x142] sm:$0xff]
      %v874 = vld [vmem:[#allocation2 + $0x152] sm:$0xff]
      %v875 = vld [vmem:[#allocation2 + $0x15a] sm:$0xff]
      %v876 = vld [vmem:[#allocation2 + $0x16a] sm:$0xff]
      %v877 = vld [vmem:[#allocation2 + $0x172] sm:$0xff]
      %v878 = vld [vmem:[#allocation2 + $0x3] sm:$0xff]
      %v879 = vld [vmem:[#allocation2 + $0xb] sm:$0xff]
      %v880 = vld [vmem:[#allocation2 + $0x1b] sm:$0xff]
      %v881 = vld [vmem:[#allocation2 + $0x23] sm:$0xff]
      %v882 = vld [vmem:[#allocation2 + $0x33] sm:$0xff]
      %v883 = vld [vmem:[#allocation2 + $0x3b] sm:$0xff]
      %v884 = vld [vmem:[#allocation2 + $0x4b] sm:$0xff]
      %v885 = vld [vmem:[#allocation2 + $0x53] sm:$0xff]
      %v886 = vld [vmem:[#allocation2 + $0x63] sm:$0xff]
      %v887 = vld [vmem:[#allocation2 + $0x6b] sm:$0xff]
      %v888 = vld [vmem:[#allocation2 + $0x7b] sm:$0xff]
      %v889 = vld [vmem:[#allocation2 + $0x83] sm:$0xff]
      %v890 = vld [vmem:[#allocation2 + $0x93] sm:$0xff]
      %v891 = vld [vmem:[#allocation2 + $0x9b] sm:$0xff]
      %v892 = vld [vmem:[#allocation2 + $0xab] sm:$0xff]
      %v893 = vld [vmem:[#allocation2 + $0xb3] sm:$0xff]
      %v894 = vld [vmem:[#allocation2 + $0xc3] sm:$0xff]
      %v895 = vld [vmem:[#allocation2 + $0xcb] sm:$0xff]
      %v896 = vld [vmem:[#allocation2 + $0xdb] sm:$0xff]
      %v897 = vld [vmem:[#allocation2 + $0xe3] sm:$0xff]
      %v898 = vld [vmem:[#allocation2 + $0xf3] sm:$0xff]
      %v899 = vld [vmem:[#allocation2 + $0xfb] sm:$0xff]
      %v900 = vld [vmem:[#allocation2 + $0x10b] sm:$0xff]
      %v901 = vld [vmem:[#allocation2 + $0x113] sm:$0xff]
      %v902 = vld [vmem:[#allocation2 + $0x123] sm:$0xff]
      %v903 = vld [vmem:[#allocation2 + $0x12b] sm:$0xff]
      %v904 = vld [vmem:[#allocation2 + $0x13b] sm:$0xff]
      %v905 = vld [vmem:[#allocation2 + $0x143] sm:$0xff]
      %v906 = vld [vmem:[#allocation2 + $0x153] sm:$0xff]
      %v907 = vld [vmem:[#allocation2 + $0x15b] sm:$0xff]
      %v908 = vld [vmem:[#allocation2 + $0x16b] sm:$0xff]
      %v909 = vld [vmem:[#allocation2 + $0x173] sm:$0xff]
      %v910 = vld [vmem:[#allocation2 + $0x4] sm:$0xff]
      %v911 = vld [vmem:[#allocation2 + $0xc] sm:$0xff]
      %v912 = vld [vmem:[#allocation2 + $0x1c] sm:$0xff]
      %v913 = vld [vmem:[#allocation2 + $0x24] sm:$0xff]
      %v914 = vld [vmem:[#allocation2 + $0x34] sm:$0xff]
      %v915 = vld [vmem:[#allocation2 + $0x3c] sm:$0xff]
      %v916 = vld [vmem:[#allocation2 + $0x4c] sm:$0xff]
      %v917 = vld [vmem:[#allocation2 + $0x54] sm:$0xff]
      %v918 = vld [vmem:[#allocation2 + $0x64] sm:$0xff]
      %v919 = vld [vmem:[#allocation2 + $0x6c] sm:$0xff]
      %v920 = vld [vmem:[#allocation2 + $0x7c] sm:$0xff]
      %v921 = vld [vmem:[#allocation2 + $0x84] sm:$0xff]
      %v922 = vld [vmem:[#allocation2 + $0x94] sm:$0xff]
      %v923 = vld [vmem:[#allocation2 + $0x9c] sm:$0xff]
      %v924 = vld [vmem:[#allocation2 + $0xac] sm:$0xff]
      %v925 = vld [vmem:[#allocation2 + $0xb4] sm:$0xff]
      %v926 = vld [vmem:[#allocation2 + $0xc4] sm:$0xff]
      %v927 = vld [vmem:[#allocation2 + $0xcc] sm:$0xff]
      %v928 = vld [vmem:[#allocation2 + $0xdc] sm:$0xff]
      %v929 = vld [vmem:[#allocation2 + $0xe4] sm:$0xff]
      %v930 = vld [vmem:[#allocation2 + $0xf4] sm:$0xff]
      %v931 = vld [vmem:[#allocation2 + $0xfc] sm:$0xff]
      %v932 = vld [vmem:[#allocation2 + $0x10c] sm:$0xff]
      %v933 = vld [vmem:[#allocation2 + $0x114] sm:$0xff]
      %v934 = vld [vmem:[#allocation2 + $0x124] sm:$0xff]
      %v935 = vld [vmem:[#allocation2 + $0x12c] sm:$0xff]
      %v936 = vld [vmem:[#allocation2 + $0x13c] sm:$0xff]
      %v937 = vld [vmem:[#allocation2 + $0x144] sm:$0xff]
      %v938 = vld [vmem:[#allocation2 + $0x154] sm:$0xff]
      %v939 = vld [vmem:[#allocation2 + $0x15c] sm:$0xff]
      %v940 = vld [vmem:[#allocation2 + $0x16c] sm:$0xff]
      %v941 = vld [vmem:[#allocation2 + $0x174] sm:$0xff]
      %s942 = scalar_lea.vmem [#allocation2], 24
      %v943 = vld [vmem:[%s942] sm:$0xff]
      %v944 = vld [vmem:[%s942 + $0x8] sm:$0xff]
      %v945 = vld [vmem:[%s942 + $0x18] sm:$0xff]
      %v946 = vld [vmem:[%s942 + $0x20] sm:$0xff]
      %v947 = vld [vmem:[%s942 + $0x30] sm:$0xff]
      %v948 = vld [vmem:[%s942 + $0x38] sm:$0xff]
      %v949 = vld [vmem:[%s942 + $0x48] sm:$0xff]
      %v950 = vld [vmem:[%s942 + $0x50] sm:$0xff]
      %v951 = vld [vmem:[%s942 + $0x60] sm:$0xff]
      %v952 = vld [vmem:[%s942 + $0x68] sm:$0xff]
      %v953 = vld [vmem:[%s942 + $0x78] sm:$0xff]
      %v954 = vld [vmem:[%s942 + $0x80] sm:$0xff]
      %v955 = vld [vmem:[%s942 + $0x90] sm:$0xff]
      %v956 = vld [vmem:[%s942 + $0x98] sm:$0xff]
      %v957 = vld [vmem:[%s942 + $0xa8] sm:$0xff]
      %v958 = vld [vmem:[%s942 + $0xb0] sm:$0xff]
      %v959 = vld [vmem:[%s942 + $0xc0] sm:$0xff]
      %v960 = vld [vmem:[%s942 + $0xc8] sm:$0xff]
      %v961 = vld [vmem:[%s942 + $0xd8] sm:$0xff]
      %v962 = vld [vmem:[%s942 + $0xe0] sm:$0xff]
      %v963 = vld [vmem:[%s942 + $0xf0] sm:$0xff]
      %v964 = vld [vmem:[%s942 + $0xf8] sm:$0xff]
      %v965 = vld [vmem:[%s942 + $0x108] sm:$0xff]
      %v966 = vld [vmem:[%s942 + $0x110] sm:$0xff]
      %v967 = vld [vmem:[%s942 + $0x120] sm:$0xff]
      %v968 = vld [vmem:[%s942 + $0x128] sm:$0xff]
      %v969 = vld [vmem:[%s942 + $0x138] sm:$0xff]
      %v970 = vld [vmem:[%s942 + $0x140] sm:$0xff]
      %v971 = vld [vmem:[%s942 + $0x150] sm:$0xff]
      %v972 = vld [vmem:[%s942 + $0x158] sm:$0xff]
      %v973 = vld [vmem:[%s942 + $0x168] sm:$0xff]
      %v974 = vld [vmem:[%s942 + $0x170] sm:$0xff]
      %v975 = vld [vmem:[%s942 + $0x1] sm:$0xff]
      %v976 = vld [vmem:[%s942 + $0x9] sm:$0xff]
      %v977 = vld [vmem:[%s942 + $0x19] sm:$0xff]
      %v978 = vld [vmem:[%s942 + $0x21] sm:$0xff]
      %v979 = vld [vmem:[%s942 + $0x31] sm:$0xff]
      %v980 = vld [vmem:[%s942 + $0x39] sm:$0xff]
      %v981 = vld [vmem:[%s942 + $0x49] sm:$0xff]
      %v982 = vld [vmem:[%s942 + $0x51] sm:$0xff]
      %v983 = vld [vmem:[%s942 + $0x61] sm:$0xff]
      %v984 = vld [vmem:[%s942 + $0x69] sm:$0xff]
      %v985 = vld [vmem:[%s942 + $0x79] sm:$0xff]
      %v986 = vld [vmem:[%s942 + $0x81] sm:$0xff]
      %v987 = vld [vmem:[%s942 + $0x91] sm:$0xff]
      %v988 = vld [vmem:[%s942 + $0x99] sm:$0xff]
      %v989 = vld [vmem:[%s942 + $0xa9] sm:$0xff]
      %v990 = vld [vmem:[%s942 + $0xb1] sm:$0xff]
      %v991 = vld [vmem:[%s942 + $0xc1] sm:$0xff]
      %v992 = vld [vmem:[%s942 + $0xc9] sm:$0xff]
      %v993 = vld [vmem:[%s942 + $0xd9] sm:$0xff]
      %v994 = vld [vmem:[%s942 + $0xe1] sm:$0xff]
      %v995 = vld [vmem:[%s942 + $0xf1] sm:$0xff]
      %v996 = vld [vmem:[%s942 + $0xf9] sm:$0xff]
      %v997 = vld [vmem:[%s942 + $0x109] sm:$0xff]
      %v998 = vld [vmem:[%s942 + $0x111] sm:$0xff]
      %v999 = vld [vmem:[%s942 + $0x121] sm:$0xff]
      %v1000 = vld [vmem:[%s942 + $0x129] sm:$0xff]
      %v1001 = vld [vmem:[%s942 + $0x139] sm:$0xff]
      %v1002 = vld [vmem:[%s942 + $0x141] sm:$0xff]
      %v1003 = vld [vmem:[%s942 + $0x151] sm:$0xff]
      %v1004 = vld [vmem:[%s942 + $0x159] sm:$0xff]
      %v1005 = vld [vmem:[%s942 + $0x169] sm:$0xff]
      %v1006 = vld [vmem:[%s942 + $0x171] sm:$0xff]
      %v1007 = vld [vmem:[%s942 + $0x2] sm:$0xff]
      %v1008 = vld [vmem:[%s942 + $0xa] sm:$0xff]
      %v1009 = vld [vmem:[%s942 + $0x1a] sm:$0xff]
      %v1010 = vld [vmem:[%s942 + $0x22] sm:$0xff]
      %v1011 = vld [vmem:[%s942 + $0x32] sm:$0xff]
      %v1012 = vld [vmem:[%s942 + $0x3a] sm:$0xff]
      %v1013 = vld [vmem:[%s942 + $0x4a] sm:$0xff]
      %v1014 = vld [vmem:[%s942 + $0x52] sm:$0xff]
      %v1015 = vld [vmem:[%s942 + $0x62] sm:$0xff]
      %v1016 = vld [vmem:[%s942 + $0x6a] sm:$0xff]
      %v1017 = vld [vmem:[%s942 + $0x7a] sm:$0xff]
      %v1018 = vld [vmem:[%s942 + $0x82] sm:$0xff]
      %v1019 = vld [vmem:[%s942 + $0x92] sm:$0xff]
      %v1020 = vld [vmem:[%s942 + $0x9a] sm:$0xff]
      %v1021 = vld [vmem:[%s942 + $0xaa] sm:$0xff]
      %v1022 = vld [vmem:[%s942 + $0xb2] sm:$0xff]
      %v1023 = vld [vmem:[%s942 + $0xc2] sm:$0xff]
      %v1024 = vld [vmem:[%s942 + $0xca] sm:$0xff]
      %v1025 = vld [vmem:[%s942 + $0xda] sm:$0xff]
      %v1026 = vld [vmem:[%s942 + $0xe2] sm:$0xff]
      %v1027 = vld [vmem:[%s942 + $0xf2] sm:$0xff]
      %v1028 = vld [vmem:[%s942 + $0xfa] sm:$0xff]
      %v1029 = vld [vmem:[%s942 + $0x10a] sm:$0xff]
      %v1030 = vld [vmem:[%s942 + $0x112] sm:$0xff]
      %v1031 = vld [vmem:[%s942 + $0x122] sm:$0xff]
      %v1032 = vld [vmem:[%s942 + $0x12a] sm:$0xff]
      %v1033 = vld [vmem:[%s942 + $0x13a] sm:$0xff]
      %v1034 = vld [vmem:[%s942 + $0x142] sm:$0xff]
      %v1035 = vld [vmem:[%s942 + $0x152] sm:$0xff]
      %v1036 = vld [vmem:[%s942 + $0x15a] sm:$0xff]
      %v1037 = vld [vmem:[%s942 + $0x16a] sm:$0xff]
      %v1038 = vld [vmem:[%s942 + $0x172] sm:$0xff]
      %v1039 = vld [vmem:[%s942 + $0x3] sm:$0xff]
      %v1040 = vld [vmem:[%s942 + $0xb] sm:$0xff]
      %v1041 = vld [vmem:[%s942 + $0x1b] sm:$0xff]
      %v1042 = vld [vmem:[%s942 + $0x23] sm:$0xff]
      %v1043 = vld [vmem:[%s942 + $0x33] sm:$0xff]
      %v1044 = vld [vmem:[%s942 + $0x3b] sm:$0xff]
      %v1045 = vld [vmem:[%s942 + $0x4b] sm:$0xff]
      %v1046 = vld [vmem:[%s942 + $0x53] sm:$0xff]
      %v1047 = vld [vmem:[%s942 + $0x63] sm:$0xff]
      %v1048 = vld [vmem:[%s942 + $0x6b] sm:$0xff]
      %v1049 = vld [vmem:[%s942 + $0x7b] sm:$0xff]
      %v1050 = vld [vmem:[%s942 + $0x83] sm:$0xff]
      %v1051 = vld [vmem:[%s942 + $0x93] sm:$0xff]
      %v1052 = vld [vmem:[%s942 + $0x9b] sm:$0xff]
      %v1053 = vld [vmem:[%s942 + $0xab] sm:$0xff]
      %v1054 = vld [vmem:[%s942 + $0xb3] sm:$0xff]
      %v1055 = vld [vmem:[%s942 + $0xc3] sm:$0xff]
      %v1056 = vld [vmem:[%s942 + $0xcb] sm:$0xff]
      %v1057 = vld [vmem:[%s942 + $0xdb] sm:$0xff]
      %v1058 = vld [vmem:[%s942 + $0xe3] sm:$0xff]
      %v1059 = vld [vmem:[%s942 + $0xf3] sm:$0xff]
      %v1060 = vld [vmem:[%s942 + $0xfb] sm:$0xff]
      %v1061 = vld [vmem:[%s942 + $0x10b] sm:$0xff]
      %v1062 = vld [vmem:[%s942 + $0x113] sm:$0xff]
      %v1063 = vld [vmem:[%s942 + $0x123] sm:$0xff]
      %v1064 = vld [vmem:[%s942 + $0x12b] sm:$0xff]
      %v1065 = vld [vmem:[%s942 + $0x13b] sm:$0xff]
      %v1066 = vld [vmem:[%s942 + $0x143] sm:$0xff]
      %v1067 = vld [vmem:[%s942 + $0x153] sm:$0xff]
      %v1068 = vld [vmem:[%s942 + $0x15b] sm:$0xff]
      %v1069 = vld [vmem:[%s942 + $0x16b] sm:$0xff]
      %v1070 = vld [vmem:[%s942 + $0x173] sm:$0xff]
      %v1071 = vld [vmem:[%s942 + $0x4] sm:$0xff]
      %v1072 = vld [vmem:[%s942 + $0xc] sm:$0xff]
      %v1073 = vld [vmem:[%s942 + $0x1c] sm:$0xff]
      %v1074 = vld [vmem:[%s942 + $0x24] sm:$0xff]
      %v1075 = vld [vmem:[%s942 + $0x34] sm:$0xff]
      %v1076 = vld [vmem:[%s942 + $0x3c] sm:$0xff]
      %v1077 = vld [vmem:[%s942 + $0x4c] sm:$0xff]
      %v1078 = vld [vmem:[%s942 + $0x54] sm:$0xff]
      %v1079 = vld [vmem:[%s942 + $0x64] sm:$0xff]
      %v1080 = vld [vmem:[%s942 + $0x6c] sm:$0xff]
      %v1081 = vld [vmem:[%s942 + $0x7c] sm:$0xff]
      %v1082 = vld [vmem:[%s942 + $0x84] sm:$0xff]
      %v1083 = vld [vmem:[%s942 + $0x94] sm:$0xff]
      %v1084 = vld [vmem:[%s942 + $0x9c] sm:$0xff]
      %v1085 = vld [vmem:[%s942 + $0xac] sm:$0xff]
      %v1086 = vld [vmem:[%s942 + $0xb4] sm:$0xff]
      %v1087 = vld [vmem:[%s942 + $0xc4] sm:$0xff]
      %v1088 = vld [vmem:[%s942 + $0xcc] sm:$0xff]
      %v1089 = vld [vmem:[%s942 + $0xdc] sm:$0xff]
      %v1090 = vld [vmem:[%s942 + $0xe4] sm:$0xff]
      %v1091 = vld [vmem:[%s942 + $0xf4] sm:$0xff]
      %v1092 = vld [vmem:[%s942 + $0xfc] sm:$0xff]
      %v1093 = vld [vmem:[%s942 + $0x10c] sm:$0xff]
      %v1094 = vld [vmem:[%s942 + $0x114] sm:$0xff]
      %v1095 = vld [vmem:[%s942 + $0x124] sm:$0xff]
      %v1096 = vld [vmem:[%s942 + $0x12c] sm:$0xff]
      %v1097 = vld [vmem:[%s942 + $0x13c] sm:$0xff]
      %v1098 = vld [vmem:[%s942 + $0x144] sm:$0xff]
      %v1099 = vld [vmem:[%s942 + $0x154] sm:$0xff]
      %v1100 = vld [vmem:[%s942 + $0x15c] sm:$0xff]
      %v1101 = vld [vmem:[%s942 + $0x16c] sm:$0xff]
      %v1102 = vld [vmem:[%s942 + $0x174] sm:$0xff]
      %v1103 = vld [vmem:[%s749] sm:$0xff]
      %v1104 = vld [vmem:[%s749 + $0x8] sm:$0xff]
      %v1105 = vld [vmem:[%s749 + $0x18] sm:$0xff]
      %v1106 = vld [vmem:[%s749 + $0x20] sm:$0xff]
      %v1107 = vld [vmem:[%s749 + $0x30] sm:$0xff]
      %v1108 = vld [vmem:[%s749 + $0x38] sm:$0xff]
      %v1109 = vld [vmem:[%s749 + $0x48] sm:$0xff]
      %v1110 = vld [vmem:[%s749 + $0x50] sm:$0xff]
      %v1111 = vld [vmem:[%s749 + $0x60] sm:$0xff]
      %v1112 = vld [vmem:[%s749 + $0x68] sm:$0xff]
      %v1113 = vld [vmem:[%s749 + $0x78] sm:$0xff]
      %v1114 = vld [vmem:[%s749 + $0x80] sm:$0xff]
      %v1115 = vld [vmem:[%s749 + $0x90] sm:$0xff]
      %v1116 = vld [vmem:[%s749 + $0x98] sm:$0xff]
      %v1117 = vld [vmem:[%s749 + $0xa8] sm:$0xff]
      %v1118 = vld [vmem:[%s749 + $0xb0] sm:$0xff]
      %v1119 = vld [vmem:[%s749 + $0xc0] sm:$0xff]
      %v1120 = vld [vmem:[%s749 + $0xc8] sm:$0xff]
      %v1121 = vld [vmem:[%s749 + $0xd8] sm:$0xff]
      %v1122 = vld [vmem:[%s749 + $0xe0] sm:$0xff]
      %v1123 = vld [vmem:[%s749 + $0xf0] sm:$0xff]
      %v1124 = vld [vmem:[%s749 + $0xf8] sm:$0xff]
      %v1125 = vld [vmem:[%s749 + $0x108] sm:$0xff]
      %v1126 = vld [vmem:[%s749 + $0x110] sm:$0xff]
      %v1127 = vld [vmem:[%s749 + $0x120] sm:$0xff]
      %v1128 = vld [vmem:[%s749 + $0x128] sm:$0xff]
      %v1129 = vld [vmem:[%s749 + $0x138] sm:$0xff]
      %v1130 = vld [vmem:[%s749 + $0x140] sm:$0xff]
      %v1131 = vld [vmem:[%s749 + $0x150] sm:$0xff]
      %v1132 = vld [vmem:[%s749 + $0x158] sm:$0xff]
      %v1133 = vld [vmem:[%s749 + $0x168] sm:$0xff]
      %v1134 = vld [vmem:[%s749 + $0x170] sm:$0xff]
      %v1135 = vld [vmem:[%s749 + $0x1] sm:$0xff]
      %v1136 = vld [vmem:[%s749 + $0x9] sm:$0xff]
      %v1137 = vld [vmem:[%s749 + $0x19] sm:$0xff]
      %v1138 = vld [vmem:[%s749 + $0x21] sm:$0xff]
      %v1139 = vld [vmem:[%s749 + $0x31] sm:$0xff]
      %v1140 = vld [vmem:[%s749 + $0x39] sm:$0xff]
      %v1141 = vld [vmem:[%s749 + $0x49] sm:$0xff]
      %v1142 = vld [vmem:[%s749 + $0x51] sm:$0xff]
      %v1143 = vld [vmem:[%s749 + $0x61] sm:$0xff]
      %v1144 = vld [vmem:[%s749 + $0x69] sm:$0xff]
      %v1145 = vld [vmem:[%s749 + $0x79] sm:$0xff]
      %v1146 = vld [vmem:[%s749 + $0x81] sm:$0xff]
      %v1147 = vld [vmem:[%s749 + $0x91] sm:$0xff]
      %v1148 = vld [vmem:[%s749 + $0x99] sm:$0xff]
      %v1149 = vld [vmem:[%s749 + $0xa9] sm:$0xff]
      %v1150 = vld [vmem:[%s749 + $0xb1] sm:$0xff]
      %v1151 = vld [vmem:[%s749 + $0xc1] sm:$0xff]
      %v1152 = vld [vmem:[%s749 + $0xc9] sm:$0xff]
      %v1153 = vld [vmem:[%s749 + $0xd9] sm:$0xff]
      %v1154 = vld [vmem:[%s749 + $0xe1] sm:$0xff]
      %v1155 = vld [vmem:[%s749 + $0xf1] sm:$0xff]
      %v1156 = vld [vmem:[%s749 + $0xf9] sm:$0xff]
      %v1157 = vld [vmem:[%s749 + $0x109] sm:$0xff]
      %v1158 = vld [vmem:[%s749 + $0x111] sm:$0xff]
      %v1159 = vld [vmem:[%s749 + $0x121] sm:$0xff]
      %v1160 = vld [vmem:[%s749 + $0x129] sm:$0xff]
      %v1161 = vld [vmem:[%s749 + $0x139] sm:$0xff]
      %v1162 = vld [vmem:[%s749 + $0x141] sm:$0xff]
      %v1163 = vld [vmem:[%s749 + $0x151] sm:$0xff]
      %v1164 = vld [vmem:[%s749 + $0x159] sm:$0xff]
      %v1165 = vld [vmem:[%s749 + $0x169] sm:$0xff]
      %v1166 = vld [vmem:[%s749 + $0x171] sm:$0xff]
      %v1167 = vld [vmem:[%s749 + $0x2] sm:$0xff]
      %v1168 = vld [vmem:[%s749 + $0xa] sm:$0xff]
      %v1169 = vld [vmem:[%s749 + $0x1a] sm:$0xff]
      %v1170 = vld [vmem:[%s749 + $0x22] sm:$0xff]
      %v1171 = vld [vmem:[%s749 + $0x32] sm:$0xff]
      %v1172 = vld [vmem:[%s749 + $0x3a] sm:$0xff]
      %v1173 = vld [vmem:[%s749 + $0x4a] sm:$0xff]
      %v1174 = vld [vmem:[%s749 + $0x52] sm:$0xff]
      %v1175 = vld [vmem:[%s749 + $0x62] sm:$0xff]
      %v1176 = vld [vmem:[%s749 + $0x6a] sm:$0xff]
      %v1177 = vld [vmem:[%s749 + $0x7a] sm:$0xff]
      %v1178 = vld [vmem:[%s749 + $0x82] sm:$0xff]
      %v1179 = vld [vmem:[%s749 + $0x92] sm:$0xff]
      %v1180 = vld [vmem:[%s749 + $0x9a] sm:$0xff]
      %v1181 = vld [vmem:[%s749 + $0xaa] sm:$0xff]
      %v1182 = vld [vmem:[%s749 + $0xb2] sm:$0xff]
      %v1183 = vld [vmem:[%s749 + $0xc2] sm:$0xff]
      %v1184 = vld [vmem:[%s749 + $0xca] sm:$0xff]
      %v1185 = vld [vmem:[%s749 + $0xda] sm:$0xff]
      %v1186 = vld [vmem:[%s749 + $0xe2] sm:$0xff]
      %v1187 = vld [vmem:[%s749 + $0xf2] sm:$0xff]
      %v1188 = vld [vmem:[%s749 + $0xfa] sm:$0xff]
      %v1189 = vld [vmem:[%s749 + $0x10a] sm:$0xff]
      %v1190 = vld [vmem:[%s749 + $0x112] sm:$0xff]
      %v1191 = vld [vmem:[%s749 + $0x122] sm:$0xff]
      %v1192 = vld [vmem:[%s749 + $0x12a] sm:$0xff]
      %v1193 = vld [vmem:[%s749 + $0x13a] sm:$0xff]
      %v1194 = vld [vmem:[%s749 + $0x142] sm:$0xff]
      %v1195 = vld [vmem:[%s749 + $0x152] sm:$0xff]
      %v1196 = vld [vmem:[%s749 + $0x15a] sm:$0xff]
      %v1197 = vld [vmem:[%s749 + $0x16a] sm:$0xff]
      %v1198 = vld [vmem:[%s749 + $0x172] sm:$0xff]
      %v1199 = vld [vmem:[%s749 + $0x3] sm:$0xff]
      %v1200 = vld [vmem:[%s749 + $0xb] sm:$0xff]
      %v1201 = vld [vmem:[%s749 + $0x1b] sm:$0xff]
      %v1202 = vld [vmem:[%s749 + $0x23] sm:$0xff]
      %v1203 = vld [vmem:[%s749 + $0x33] sm:$0xff]
      %v1204 = vld [vmem:[%s749 + $0x3b] sm:$0xff]
      %v1205 = vld [vmem:[%s749 + $0x4b] sm:$0xff]
      %v1206 = vld [vmem:[%s749 + $0x53] sm:$0xff]
      %v1207 = vld [vmem:[%s749 + $0x63] sm:$0xff]
      %v1208 = vld [vmem:[%s749 + $0x6b] sm:$0xff]
      %v1209 = vld [vmem:[%s749 + $0x7b] sm:$0xff]
      %v1210 = vld [vmem:[%s749 + $0x83] sm:$0xff]
      %v1211 = vld [vmem:[%s749 + $0x93] sm:$0xff]
      %v1212 = vld [vmem:[%s749 + $0x9b] sm:$0xff]
      %v1213 = vld [vmem:[%s749 + $0xab] sm:$0xff]
      %v1214 = vld [vmem:[%s749 + $0xb3] sm:$0xff]
      %v1215 = vld [vmem:[%s749 + $0xc3] sm:$0xff]
      %v1216 = vld [vmem:[%s749 + $0xcb] sm:$0xff]
      %v1217 = vld [vmem:[%s749 + $0xdb] sm:$0xff]
      %v1218 = vld [vmem:[%s749 + $0xe3] sm:$0xff]
      %v1219 = vld [vmem:[%s749 + $0xf3] sm:$0xff]
      %v1220 = vld [vmem:[%s749 + $0xfb] sm:$0xff]
      %v1221 = vld [vmem:[%s749 + $0x10b] sm:$0xff]
      %v1222 = vld [vmem:[%s749 + $0x113] sm:$0xff]
      %v1223 = vld [vmem:[%s749 + $0x123] sm:$0xff]
      %v1224 = vld [vmem:[%s749 + $0x12b] sm:$0xff]
      %v1225 = vld [vmem:[%s749 + $0x13b] sm:$0xff]
      %v1226 = vld [vmem:[%s749 + $0x143] sm:$0xff]
      %v1227 = vld [vmem:[%s749 + $0x153] sm:$0xff]
      %v1228 = vld [vmem:[%s749 + $0x15b] sm:$0xff]
      %v1229 = vld [vmem:[%s749 + $0x16b] sm:$0xff]
      %v1230 = vld [vmem:[%s749 + $0x173] sm:$0xff]
      %v1231 = vld [vmem:[%s749 + $0x4] sm:$0xff]
      %v1232 = vld [vmem:[%s749 + $0xc] sm:$0xff]
      %v1233 = vld [vmem:[%s749 + $0x1c] sm:$0xff]
      %v1234 = vld [vmem:[%s749 + $0x24] sm:$0xff]
      %v1235 = vld [vmem:[%s749 + $0x34] sm:$0xff]
      %v1236 = vld [vmem:[%s749 + $0x3c] sm:$0xff]
      %v1237 = vld [vmem:[%s749 + $0x4c] sm:$0xff]
      %v1238 = vld [vmem:[%s749 + $0x54] sm:$0xff]
      %v1239 = vld [vmem:[%s749 + $0x64] sm:$0xff]
      %v1240 = vld [vmem:[%s749 + $0x6c] sm:$0xff]
      %v1241 = vld [vmem:[%s749 + $0x7c] sm:$0xff]
      %v1242 = vld [vmem:[%s749 + $0x84] sm:$0xff]
      %v1243 = vld [vmem:[%s749 + $0x94] sm:$0xff]
      %v1244 = vld [vmem:[%s749 + $0x9c] sm:$0xff]
      %v1245 = vld [vmem:[%s749 + $0xac] sm:$0xff]
      %v1246 = vld [vmem:[%s749 + $0xb4] sm:$0xff]
      %v1247 = vld [vmem:[%s749 + $0xc4] sm:$0xff]
      %v1248 = vld [vmem:[%s749 + $0xcc] sm:$0xff]
      %v1249 = vld [vmem:[%s749 + $0xdc] sm:$0xff]
      %v1250 = vld [vmem:[%s749 + $0xe4] sm:$0xff]
      %v1251 = vld [vmem:[%s749 + $0xf4] sm:$0xff]
      %v1252 = vld [vmem:[%s749 + $0xfc] sm:$0xff]
      %v1253 = vld [vmem:[%s749 + $0x10c] sm:$0xff]
      %v1254 = vld [vmem:[%s749 + $0x114] sm:$0xff]
      %v1255 = vld [vmem:[%s749 + $0x124] sm:$0xff]
      %v1256 = vld [vmem:[%s749 + $0x12c] sm:$0xff]
      %v1257 = vld [vmem:[%s749 + $0x13c] sm:$0xff]
      %v1258 = vld [vmem:[%s749 + $0x144] sm:$0xff]
      %v1259 = vld [vmem:[%s749 + $0x154] sm:$0xff]
      %v1260 = vld [vmem:[%s749 + $0x15c] sm:$0xff]
      %v1261 = vld [vmem:[%s749 + $0x16c] sm:$0xff]
      %v1262 = vld [vmem:[%s749 + $0x174] sm:$0xff]
      %s1263 = scalar_lea.vmem [#allocation2], 72
      %v1264 = vld [vmem:[%s1263] sm:$0xff]
      %v1265 = vld [vmem:[%s1263 + $0x8] sm:$0xff]
      %v1266 = vld [vmem:[%s1263 + $0x18] sm:$0xff]
      %v1267 = vld [vmem:[%s1263 + $0x20] sm:$0xff]
      %v1268 = vld [vmem:[%s1263 + $0x30] sm:$0xff]
      %v1269 = vld [vmem:[%s1263 + $0x38] sm:$0xff]
      %v1270 = vld [vmem:[%s1263 + $0x48] sm:$0xff]
      %v1271 = vld [vmem:[%s1263 + $0x50] sm:$0xff]
      %v1272 = vld [vmem:[%s1263 + $0x60] sm:$0xff]
      %v1273 = vld [vmem:[%s1263 + $0x68] sm:$0xff]
      %v1274 = vld [vmem:[%s1263 + $0x78] sm:$0xff]
      %v1275 = vld [vmem:[%s1263 + $0x80] sm:$0xff]
      %v1276 = vld [vmem:[%s1263 + $0x90] sm:$0xff]
      %v1277 = vld [vmem:[%s1263 + $0x98] sm:$0xff]
      %v1278 = vld [vmem:[%s1263 + $0xa8] sm:$0xff]
      %v1279 = vld [vmem:[%s1263 + $0xb0] sm:$0xff]
      %v1280 = vld [vmem:[%s1263 + $0xc0] sm:$0xff]
      %v1281 = vld [vmem:[%s1263 + $0xc8] sm:$0xff]
      %v1282 = vld [vmem:[%s1263 + $0xd8] sm:$0xff]
      %v1283 = vld [vmem:[%s1263 + $0xe0] sm:$0xff]
      %v1284 = vld [vmem:[%s1263 + $0xf0] sm:$0xff]
      %v1285 = vld [vmem:[%s1263 + $0xf8] sm:$0xff]
      %v1286 = vld [vmem:[%s1263 + $0x108] sm:$0xff]
      %v1287 = vld [vmem:[%s1263 + $0x110] sm:$0xff]
      %v1288 = vld [vmem:[%s1263 + $0x120] sm:$0xff]
      %v1289 = vld [vmem:[%s1263 + $0x128] sm:$0xff]
      %v1290 = vld [vmem:[%s1263 + $0x138] sm:$0xff]
      %v1291 = vld [vmem:[%s1263 + $0x140] sm:$0xff]
      %v1292 = vld [vmem:[%s1263 + $0x150] sm:$0xff]
      %v1293 = vld [vmem:[%s1263 + $0x158] sm:$0xff]
      %v1294 = vld [vmem:[%s1263 + $0x168] sm:$0xff]
      %v1295 = vld [vmem:[%s1263 + $0x170] sm:$0xff]
      %v1296 = vld [vmem:[%s1263 + $0x1] sm:$0xff]
      %v1297 = vld [vmem:[%s1263 + $0x9] sm:$0xff]
      %v1298 = vld [vmem:[%s1263 + $0x19] sm:$0xff]
      %v1299 = vld [vmem:[%s1263 + $0x21] sm:$0xff]
      %v1300 = vld [vmem:[%s1263 + $0x31] sm:$0xff]
      %v1301 = vld [vmem:[%s1263 + $0x39] sm:$0xff]
      %v1302 = vld [vmem:[%s1263 + $0x49] sm:$0xff]
      %v1303 = vld [vmem:[%s1263 + $0x51] sm:$0xff]
      %v1304 = vld [vmem:[%s1263 + $0x61] sm:$0xff]
      %v1305 = vld [vmem:[%s1263 + $0x69] sm:$0xff]
      %v1306 = vld [vmem:[%s1263 + $0x79] sm:$0xff]
      %v1307 = vld [vmem:[%s1263 + $0x81] sm:$0xff]
      %v1308 = vld [vmem:[%s1263 + $0x91] sm:$0xff]
      %v1309 = vld [vmem:[%s1263 + $0x99] sm:$0xff]
      %v1310 = vld [vmem:[%s1263 + $0xa9] sm:$0xff]
      %v1311 = vld [vmem:[%s1263 + $0xb1] sm:$0xff]
      %v1312 = vld [vmem:[%s1263 + $0xc1] sm:$0xff]
      %v1313 = vld [vmem:[%s1263 + $0xc9] sm:$0xff]
      %v1314 = vld [vmem:[%s1263 + $0xd9] sm:$0xff]
      %v1315 = vld [vmem:[%s1263 + $0xe1] sm:$0xff]
      %v1316 = vld [vmem:[%s1263 + $0xf1] sm:$0xff]
      %v1317 = vld [vmem:[%s1263 + $0xf9] sm:$0xff]
      %v1318 = vld [vmem:[%s1263 + $0x109] sm:$0xff]
      %v1319 = vld [vmem:[%s1263 + $0x111] sm:$0xff]
      %v1320 = vld [vmem:[%s1263 + $0x121] sm:$0xff]
      %v1321 = vld [vmem:[%s1263 + $0x129] sm:$0xff]
      %v1322 = vld [vmem:[%s1263 + $0x139] sm:$0xff]
      %v1323 = vld [vmem:[%s1263 + $0x141] sm:$0xff]
      %v1324 = vld [vmem:[%s1263 + $0x151] sm:$0xff]
      %v1325 = vld [vmem:[%s1263 + $0x159] sm:$0xff]
      %v1326 = vld [vmem:[%s1263 + $0x169] sm:$0xff]
      %v1327 = vld [vmem:[%s1263 + $0x171] sm:$0xff]
      %v1328 = vld [vmem:[%s1263 + $0x2] sm:$0xff]
      %v1329 = vld [vmem:[%s1263 + $0xa] sm:$0xff]
      %v1330 = vld [vmem:[%s1263 + $0x1a] sm:$0xff]
      %v1331 = vld [vmem:[%s1263 + $0x22] sm:$0xff]
      %v1332 = vld [vmem:[%s1263 + $0x32] sm:$0xff]
      %v1333 = vld [vmem:[%s1263 + $0x3a] sm:$0xff]
      %v1334 = vld [vmem:[%s1263 + $0x4a] sm:$0xff]
      %v1335 = vld [vmem:[%s1263 + $0x52] sm:$0xff]
      %v1336 = vld [vmem:[%s1263 + $0x62] sm:$0xff]
      %v1337 = vld [vmem:[%s1263 + $0x6a] sm:$0xff]
      %v1338 = vld [vmem:[%s1263 + $0x7a] sm:$0xff]
      %v1339 = vld [vmem:[%s1263 + $0x82] sm:$0xff]
      %v1340 = vld [vmem:[%s1263 + $0x92] sm:$0xff]
      %v1341 = vld [vmem:[%s1263 + $0x9a] sm:$0xff]
      %v1342 = vld [vmem:[%s1263 + $0xaa] sm:$0xff]
      %v1343 = vld [vmem:[%s1263 + $0xb2] sm:$0xff]
      %v1344 = vld [vmem:[%s1263 + $0xc2] sm:$0xff]
      %v1345 = vld [vmem:[%s1263 + $0xca] sm:$0xff]
      %v1346 = vld [vmem:[%s1263 + $0xda] sm:$0xff]
      %v1347 = vld [vmem:[%s1263 + $0xe2] sm:$0xff]
      %v1348 = vld [vmem:[%s1263 + $0xf2] sm:$0xff]
      %v1349 = vld [vmem:[%s1263 + $0xfa] sm:$0xff]
      %v1350 = vld [vmem:[%s1263 + $0x10a] sm:$0xff]
      %v1351 = vld [vmem:[%s1263 + $0x112] sm:$0xff]
      %v1352 = vld [vmem:[%s1263 + $0x122] sm:$0xff]
      %v1353 = vld [vmem:[%s1263 + $0x12a] sm:$0xff]
      %v1354 = vld [vmem:[%s1263 + $0x13a] sm:$0xff]
      %v1355 = vld [vmem:[%s1263 + $0x142] sm:$0xff]
      %v1356 = vld [vmem:[%s1263 + $0x152] sm:$0xff]
      %v1357 = vld [vmem:[%s1263 + $0x15a] sm:$0xff]
      %v1358 = vld [vmem:[%s1263 + $0x16a] sm:$0xff]
      %v1359 = vld [vmem:[%s1263 + $0x172] sm:$0xff]
      %v1360 = vld [vmem:[%s1263 + $0x3] sm:$0xff]
      %v1361 = vld [vmem:[%s1263 + $0xb] sm:$0xff]
      %v1362 = vld [vmem:[%s1263 + $0x1b] sm:$0xff]
      %v1363 = vld [vmem:[%s1263 + $0x23] sm:$0xff]
      %v1364 = vld [vmem:[%s1263 + $0x33] sm:$0xff]
      %v1365 = vld [vmem:[%s1263 + $0x3b] sm:$0xff]
      %v1366 = vld [vmem:[%s1263 + $0x4b] sm:$0xff]
      %v1367 = vld [vmem:[%s1263 + $0x53] sm:$0xff]
      %v1368 = vld [vmem:[%s1263 + $0x63] sm:$0xff]
      %v1369 = vld [vmem:[%s1263 + $0x6b] sm:$0xff]
      %v1370 = vld [vmem:[%s1263 + $0x7b] sm:$0xff]
      %v1371 = vld [vmem:[%s1263 + $0x83] sm:$0xff]
      %v1372 = vld [vmem:[%s1263 + $0x93] sm:$0xff]
      %v1373 = vld [vmem:[%s1263 + $0x9b] sm:$0xff]
      %v1374 = vld [vmem:[%s1263 + $0xab] sm:$0xff]
      %v1375 = vld [vmem:[%s1263 + $0xb3] sm:$0xff]
      %v1376 = vld [vmem:[%s1263 + $0xc3] sm:$0xff]
      %v1377 = vld [vmem:[%s1263 + $0xcb] sm:$0xff]
      %v1378 = vld [vmem:[%s1263 + $0xdb] sm:$0xff]
      %v1379 = vld [vmem:[%s1263 + $0xe3] sm:$0xff]
      %v1380 = vld [vmem:[%s1263 + $0xf3] sm:$0xff]
      %v1381 = vld [vmem:[%s1263 + $0xfb] sm:$0xff]
      %v1382 = vld [vmem:[%s1263 + $0x10b] sm:$0xff]
      %v1383 = vld [vmem:[%s1263 + $0x113] sm:$0xff]
      %v1384 = vld [vmem:[%s1263 + $0x123] sm:$0xff]
      %v1385 = vld [vmem:[%s1263 + $0x12b] sm:$0xff]
      %v1386 = vld [vmem:[%s1263 + $0x13b] sm:$0xff]
      %v1387 = vld [vmem:[%s1263 + $0x143] sm:$0xff]
      %v1388 = vld [vmem:[%s1263 + $0x153] sm:$0xff]
      %v1389 = vld [vmem:[%s1263 + $0x15b] sm:$0xff]
      %v1390 = vld [vmem:[%s1263 + $0x16b] sm:$0xff]
      %v1391 = vld [vmem:[%s1263 + $0x173] sm:$0xff]
      %v1392 = vld [vmem:[%s1263 + $0x4] sm:$0xff]
      %v1393 = vld [vmem:[%s1263 + $0xc] sm:$0xff]
      %v1394 = vld [vmem:[%s1263 + $0x1c] sm:$0xff]
      %v1395 = vld [vmem:[%s1263 + $0x24] sm:$0xff]
      %v1396 = vld [vmem:[%s1263 + $0x34] sm:$0xff]
      %v1397 = vld [vmem:[%s1263 + $0x3c] sm:$0xff]
      %v1398 = vld [vmem:[%s1263 + $0x4c] sm:$0xff]
      %v1399 = vld [vmem:[%s1263 + $0x54] sm:$0xff]
      %v1400 = vld [vmem:[%s1263 + $0x64] sm:$0xff]
      %v1401 = vld [vmem:[%s1263 + $0x6c] sm:$0xff]
      %v1402 = vld [vmem:[%s1263 + $0x7c] sm:$0xff]
      %v1403 = vld [vmem:[%s1263 + $0x84] sm:$0xff]
      %v1404 = vld [vmem:[%s1263 + $0x94] sm:$0xff]
      %v1405 = vld [vmem:[%s1263 + $0x9c] sm:$0xff]
      %v1406 = vld [vmem:[%s1263 + $0xac] sm:$0xff]
      %v1407 = vld [vmem:[%s1263 + $0xb4] sm:$0xff]
      %v1408 = vld [vmem:[%s1263 + $0xc4] sm:$0xff]
      %v1409 = vld [vmem:[%s1263 + $0xcc] sm:$0xff]
      %v1410 = vld [vmem:[%s1263 + $0xdc] sm:$0xff]
      %v1411 = vld [vmem:[%s1263 + $0xe4] sm:$0xff]
      %v1412 = vld [vmem:[%s1263 + $0xf4] sm:$0xff]
      %v1413 = vld [vmem:[%s1263 + $0xfc] sm:$0xff]
      %v1414 = vld [vmem:[%s1263 + $0x10c] sm:$0xff]
      %v1415 = vld [vmem:[%s1263 + $0x114] sm:$0xff]
      %v1416 = vld [vmem:[%s1263 + $0x124] sm:$0xff]
      %v1417 = vld [vmem:[%s1263 + $0x12c] sm:$0xff]
      %v1418 = vld [vmem:[%s1263 + $0x13c] sm:$0xff]
      %v1419 = vld [vmem:[%s1263 + $0x144] sm:$0xff]
      %v1420 = vld [vmem:[%s1263 + $0x154] sm:$0xff]
      %v1421 = vld [vmem:[%s1263 + $0x15c] sm:$0xff]
      %v1422 = vld [vmem:[%s1263 + $0x16c] sm:$0xff]
      %v1423 = vld [vmem:[%s1263 + $0x174] sm:$0xff]
      %s1424 = scalar_lea.vmem [#allocation2], 96
      %v1425 = vld [vmem:[%s1424] sm:$0xff]
      %v1426 = vld [vmem:[%s1424 + $0x8] sm:$0xff]
      %v1427 = vld [vmem:[%s1424 + $0x18] sm:$0xff]
      %v1428 = vld [vmem:[%s1424 + $0x20] sm:$0xff]
      %v1429 = vld [vmem:[%s1424 + $0x30] sm:$0xff]
      %v1430 = vld [vmem:[%s1424 + $0x38] sm:$0xff]
      %v1431 = vld [vmem:[%s1424 + $0x48] sm:$0xff]
      %v1432 = vld [vmem:[%s1424 + $0x50] sm:$0xff]
      %v1433 = vld [vmem:[%s1424 + $0x60] sm:$0xff]
      %v1434 = vld [vmem:[%s1424 + $0x68] sm:$0xff]
      %v1435 = vld [vmem:[%s1424 + $0x78] sm:$0xff]
      %v1436 = vld [vmem:[%s1424 + $0x80] sm:$0xff]
      %v1437 = vld [vmem:[%s1424 + $0x90] sm:$0xff]
      %v1438 = vld [vmem:[%s1424 + $0x98] sm:$0xff]
      %v1439 = vld [vmem:[%s1424 + $0xa8] sm:$0xff]
      %v1440 = vld [vmem:[%s1424 + $0xb0] sm:$0xff]
      %v1441 = vld [vmem:[%s1424 + $0xc0] sm:$0xff]
      %v1442 = vld [vmem:[%s1424 + $0xc8] sm:$0xff]
      %v1443 = vld [vmem:[%s1424 + $0xd8] sm:$0xff]
      %v1444 = vld [vmem:[%s1424 + $0xe0] sm:$0xff]
      %v1445 = vld [vmem:[%s1424 + $0xf0] sm:$0xff]
      %v1446 = vld [vmem:[%s1424 + $0xf8] sm:$0xff]
      %v1447 = vld [vmem:[%s1424 + $0x108] sm:$0xff]
      %v1448 = vld [vmem:[%s1424 + $0x110] sm:$0xff]
      %v1449 = vld [vmem:[%s1424 + $0x120] sm:$0xff]
      %v1450 = vld [vmem:[%s1424 + $0x128] sm:$0xff]
      %v1451 = vld [vmem:[%s1424 + $0x138] sm:$0xff]
      %v1452 = vld [vmem:[%s1424 + $0x140] sm:$0xff]
      %v1453 = vld [vmem:[%s1424 + $0x150] sm:$0xff]
      %v1454 = vld [vmem:[%s1424 + $0x158] sm:$0xff]
      %v1455 = vld [vmem:[%s1424 + $0x168] sm:$0xff]
      %v1456 = vld [vmem:[%s1424 + $0x170] sm:$0xff]
      %v1457 = vld [vmem:[%s1424 + $0x1] sm:$0xff]
      %v1458 = vld [vmem:[%s1424 + $0x9] sm:$0xff]
      %v1459 = vld [vmem:[%s1424 + $0x19] sm:$0xff]
      %v1460 = vld [vmem:[%s1424 + $0x21] sm:$0xff]
      %v1461 = vld [vmem:[%s1424 + $0x31] sm:$0xff]
      %v1462 = vld [vmem:[%s1424 + $0x39] sm:$0xff]
      %v1463 = vld [vmem:[%s1424 + $0x49] sm:$0xff]
      %v1464 = vld [vmem:[%s1424 + $0x51] sm:$0xff]
      %v1465 = vld [vmem:[%s1424 + $0x61] sm:$0xff]
      %v1466 = vld [vmem:[%s1424 + $0x69] sm:$0xff]
      %v1467 = vld [vmem:[%s1424 + $0x79] sm:$0xff]
      %v1468 = vld [vmem:[%s1424 + $0x81] sm:$0xff]
      %v1469 = vld [vmem:[%s1424 + $0x91] sm:$0xff]
      %v1470 = vld [vmem:[%s1424 + $0x99] sm:$0xff]
      %v1471 = vld [vmem:[%s1424 + $0xa9] sm:$0xff]
      %v1472 = vld [vmem:[%s1424 + $0xb1] sm:$0xff]
      %v1473 = vld [vmem:[%s1424 + $0xc1] sm:$0xff]
      %v1474 = vld [vmem:[%s1424 + $0xc9] sm:$0xff]
      %v1475 = vld [vmem:[%s1424 + $0xd9] sm:$0xff]
      %v1476 = vld [vmem:[%s1424 + $0xe1] sm:$0xff]
      %v1477 = vld [vmem:[%s1424 + $0xf1] sm:$0xff]
      %v1478 = vld [vmem:[%s1424 + $0xf9] sm:$0xff]
      %v1479 = vld [vmem:[%s1424 + $0x109] sm:$0xff]
      %v1480 = vld [vmem:[%s1424 + $0x111] sm:$0xff]
      %v1481 = vld [vmem:[%s1424 + $0x121] sm:$0xff]
      %v1482 = vld [vmem:[%s1424 + $0x129] sm:$0xff]
      %v1483 = vld [vmem:[%s1424 + $0x139] sm:$0xff]
      %v1484 = vld [vmem:[%s1424 + $0x141] sm:$0xff]
      %v1485 = vld [vmem:[%s1424 + $0x151] sm:$0xff]
      %v1486 = vld [vmem:[%s1424 + $0x159] sm:$0xff]
      %v1487 = vld [vmem:[%s1424 + $0x169] sm:$0xff]
      %v1488 = vld [vmem:[%s1424 + $0x171] sm:$0xff]
      %v1489 = vld [vmem:[%s1424 + $0x2] sm:$0xff]
      %v1490 = vld [vmem:[%s1424 + $0xa] sm:$0xff]
      %v1491 = vld [vmem:[%s1424 + $0x1a] sm:$0xff]
      %v1492 = vld [vmem:[%s1424 + $0x22] sm:$0xff]
      %v1493 = vld [vmem:[%s1424 + $0x32] sm:$0xff]
      %v1494 = vld [vmem:[%s1424 + $0x3a] sm:$0xff]
      %v1495 = vld [vmem:[%s1424 + $0x4a] sm:$0xff]
      %v1496 = vld [vmem:[%s1424 + $0x52] sm:$0xff]
      %v1497 = vld [vmem:[%s1424 + $0x62] sm:$0xff]
      %v1498 = vld [vmem:[%s1424 + $0x6a] sm:$0xff]
      %v1499 = vld [vmem:[%s1424 + $0x7a] sm:$0xff]
      %v1500 = vld [vmem:[%s1424 + $0x82] sm:$0xff]
      %v1501 = vld [vmem:[%s1424 + $0x92] sm:$0xff]
      %v1502 = vld [vmem:[%s1424 + $0x9a] sm:$0xff]
      %v1503 = vld [vmem:[%s1424 + $0xaa] sm:$0xff]
      %v1504 = vld [vmem:[%s1424 + $0xb2] sm:$0xff]
      %v1505 = vld [vmem:[%s1424 + $0xc2] sm:$0xff]
      %v1506 = vld [vmem:[%s1424 + $0xca] sm:$0xff]
      %v1507 = vld [vmem:[%s1424 + $0xda] sm:$0xff]
      %v1508 = vld [vmem:[%s1424 + $0xe2] sm:$0xff]
      %v1509 = vld [vmem:[%s1424 + $0xf2] sm:$0xff]
      %v1510 = vld [vmem:[%s1424 + $0xfa] sm:$0xff]
      %v1511 = vld [vmem:[%s1424 + $0x10a] sm:$0xff]
      %v1512 = vld [vmem:[%s1424 + $0x112] sm:$0xff]
      %v1513 = vld [vmem:[%s1424 + $0x122] sm:$0xff]
      %v1514 = vld [vmem:[%s1424 + $0x12a] sm:$0xff]
      %v1515 = vld [vmem:[%s1424 + $0x13a] sm:$0xff]
      %v1516 = vld [vmem:[%s1424 + $0x142] sm:$0xff]
      %v1517 = vld [vmem:[%s1424 + $0x152] sm:$0xff]
      %v1518 = vld [vmem:[%s1424 + $0x15a] sm:$0xff]
      %v1519 = vld [vmem:[%s1424 + $0x16a] sm:$0xff]
      %v1520 = vld [vmem:[%s1424 + $0x172] sm:$0xff]
      %v1521 = vld [vmem:[%s1424 + $0x3] sm:$0xff]
      %v1522 = vld [vmem:[%s1424 + $0xb] sm:$0xff]
      %v1523 = vld [vmem:[%s1424 + $0x1b] sm:$0xff]
      %v1524 = vld [vmem:[%s1424 + $0x23] sm:$0xff]
      %v1525 = vld [vmem:[%s1424 + $0x33] sm:$0xff]
      %v1526 = vld [vmem:[%s1424 + $0x3b] sm:$0xff]
      %v1527 = vld [vmem:[%s1424 + $0x4b] sm:$0xff]
      %v1528 = vld [vmem:[%s1424 + $0x53] sm:$0xff]
      %v1529 = vld [vmem:[%s1424 + $0x63] sm:$0xff]
      %v1530 = vld [vmem:[%s1424 + $0x6b] sm:$0xff]
      %v1531 = vld [vmem:[%s1424 + $0x7b] sm:$0xff]
      %v1532 = vld [vmem:[%s1424 + $0x83] sm:$0xff]
      %v1533 = vld [vmem:[%s1424 + $0x93] sm:$0xff]
      %v1534 = vld [vmem:[%s1424 + $0x9b] sm:$0xff]
      %v1535 = vld [vmem:[%s1424 + $0xab] sm:$0xff]
      %v1536 = vld [vmem:[%s1424 + $0xb3] sm:$0xff]
      %v1537 = vld [vmem:[%s1424 + $0xc3] sm:$0xff]
      %v1538 = vld [vmem:[%s1424 + $0xcb] sm:$0xff]
      %v1539 = vld [vmem:[%s1424 + $0xdb] sm:$0xff]
      %v1540 = vld [vmem:[%s1424 + $0xe3] sm:$0xff]
      %v1541 = vld [vmem:[%s1424 + $0xf3] sm:$0xff]
      %v1542 = vld [vmem:[%s1424 + $0xfb] sm:$0xff]
      %v1543 = vld [vmem:[%s1424 + $0x10b] sm:$0xff]
      %v1544 = vld [vmem:[%s1424 + $0x113] sm:$0xff]
      %v1545 = vld [vmem:[%s1424 + $0x123] sm:$0xff]
      %v1546 = vld [vmem:[%s1424 + $0x12b] sm:$0xff]
      %v1547 = vld [vmem:[%s1424 + $0x13b] sm:$0xff]
      %v1548 = vld [vmem:[%s1424 + $0x143] sm:$0xff]
      %v1549 = vld [vmem:[%s1424 + $0x153] sm:$0xff]
      %v1550 = vld [vmem:[%s1424 + $0x15b] sm:$0xff]
      %v1551 = vld [vmem:[%s1424 + $0x16b] sm:$0xff]
      %v1552 = vld [vmem:[%s1424 + $0x173] sm:$0xff]
      %v1553 = vld [vmem:[%s1424 + $0x4] sm:$0xff]
      %v1554 = vld [vmem:[%s1424 + $0xc] sm:$0xff]
      %v1555 = vld [vmem:[%s1424 + $0x1c] sm:$0xff]
      %v1556 = vld [vmem:[%s1424 + $0x24] sm:$0xff]
      %v1557 = vld [vmem:[%s1424 + $0x34] sm:$0xff]
      %v1558 = vld [vmem:[%s1424 + $0x3c] sm:$0xff]
      %v1559 = vld [vmem:[%s1424 + $0x4c] sm:$0xff]
      %v1560 = vld [vmem:[%s1424 + $0x54] sm:$0xff]
      %v1561 = vld [vmem:[%s1424 + $0x64] sm:$0xff]
      %v1562 = vld [vmem:[%s1424 + $0x6c] sm:$0xff]
      %v1563 = vld [vmem:[%s1424 + $0x7c] sm:$0xff]
      %v1564 = vld [vmem:[%s1424 + $0x84] sm:$0xff]
      %v1565 = vld [vmem:[%s1424 + $0x94] sm:$0xff]
      %v1566 = vld [vmem:[%s1424 + $0x9c] sm:$0xff]
      %v1567 = vld [vmem:[%s1424 + $0xac] sm:$0xff]
      %v1568 = vld [vmem:[%s1424 + $0xb4] sm:$0xff]
      %v1569 = vld [vmem:[%s1424 + $0xc4] sm:$0xff]
      %v1570 = vld [vmem:[%s1424 + $0xcc] sm:$0xff]
      %v1571 = vld [vmem:[%s1424 + $0xdc] sm:$0xff]
      %v1572 = vld [vmem:[%s1424 + $0xe4] sm:$0xff]
      %v1573 = vld [vmem:[%s1424 + $0xf4] sm:$0xff]
      %v1574 = vld [vmem:[%s1424 + $0xfc] sm:$0xff]
      %v1575 = vld [vmem:[%s1424 + $0x10c] sm:$0xff]
      %v1576 = vld [vmem:[%s1424 + $0x114] sm:$0xff]
      %v1577 = vld [vmem:[%s1424 + $0x124] sm:$0xff]
      %v1578 = vld [vmem:[%s1424 + $0x12c] sm:$0xff]
      %v1579 = vld [vmem:[%s1424 + $0x13c] sm:$0xff]
      %v1580 = vld [vmem:[%s1424 + $0x144] sm:$0xff]
      %v1581 = vld [vmem:[%s1424 + $0x154] sm:$0xff]
      %v1582 = vld [vmem:[%s1424 + $0x15c] sm:$0xff]
      %v1583 = vld [vmem:[%s1424 + $0x16c] sm:$0xff]
      %v1584 = vld [vmem:[%s1424 + $0x174] sm:$0xff]
      %v1585 = vld [vmem:[%s3] sm:$0xff]
      %v1586 = vld [vmem:[%s3 + $0x8] sm:$0xff]
      %v1587 = vld [vmem:[%s3 + $0x10] sm:$0xff]
      %v1588 = vld [vmem:[%s3 + $0x18] sm:$0xff]
      %v1589 = vld [vmem:[%s3 + $0x20] sm:$0xff]
      %v1590 = vld [vmem:[%s3 + $0x28] sm:$0xff]
      %v1591 = vld [vmem:[%s3 + $0x30] sm:$0xff]
      %v1592 = vld [vmem:[%s3 + $0x38] sm:$0xff]
      %v1593 = vld [vmem:[%s3 + $0x40] sm:$0xff]
      %v1594 = vld [vmem:[%s3 + $0x48] sm:$0xff]
      %v1595 = vld [vmem:[%s3 + $0x50] sm:$0xff]
      %v1596 = vld [vmem:[%s3 + $0x58] sm:$0xff]
      %v1597 = vld [vmem:[%s3 + $0x60] sm:$0xff]
      %v1598 = vld [vmem:[%s3 + $0x68] sm:$0xff]
      %v1599 = vld [vmem:[%s3 + $0x70] sm:$0xff]
      %v1600 = vld [vmem:[%s3 + $0x78] sm:$0xff]
      %v1601 = vld [vmem:[%s3 + $0x80] sm:$0xff]
      %v1602 = vld [vmem:[%s3 + $0x88] sm:$0xff]
      %v1603 = vld [vmem:[%s3 + $0x90] sm:$0xff]
      %v1604 = vld [vmem:[%s3 + $0x98] sm:$0xff]
      %v1605 = vld [vmem:[%s3 + $0xa0] sm:$0xff]
      %v1606 = vld [vmem:[%s3 + $0xa8] sm:$0xff]
      %v1607 = vld [vmem:[%s3 + $0xb0] sm:$0xff]
      %v1608 = vld [vmem:[%s3 + $0xb8] sm:$0xff]
      %v1609 = vld [vmem:[%s3 + $0xc0] sm:$0xff]
      %v1610 = vld [vmem:[%s3 + $0xc8] sm:$0xff]
      %v1611 = vld [vmem:[%s3 + $0xd0] sm:$0xff]
      %v1612 = vld [vmem:[%s3 + $0xd8] sm:$0xff]
      %v1613 = vld [vmem:[%s3 + $0xe0] sm:$0xff]
      %v1614 = vld [vmem:[%s3 + $0xe8] sm:$0xff]
      %v1615 = vld [vmem:[%s3 + $0xf0] sm:$0xff]
      %v1616 = vld [vmem:[%s3 + $0xf8] sm:$0xff]
      %v1617 = vld [vmem:[%s3 + $0x100] sm:$0xff]
      %v1618 = vld [vmem:[%s3 + $0x108] sm:$0xff]
      %v1619 = vld [vmem:[%s3 + $0x110] sm:$0xff]
      %v1620 = vld [vmem:[%s3 + $0x118] sm:$0xff]
      %v1621 = vld [vmem:[%s3 + $0x120] sm:$0xff]
      %v1622 = vld [vmem:[%s3 + $0x128] sm:$0xff]
      %v1623 = vld [vmem:[%s3 + $0x130] sm:$0xff]
      %v1624 = vld [vmem:[%s3 + $0x138] sm:$0xff]
      %v1625 = vld [vmem:[%s3 + $0x140] sm:$0xff]
      %v1626 = vld [vmem:[%s3 + $0x148] sm:$0xff]
      %v1627 = vld [vmem:[%s3 + $0x150] sm:$0xff]
      %v1628 = vld [vmem:[%s3 + $0x158] sm:$0xff]
      %v1629 = vld [vmem:[%s3 + $0x160] sm:$0xff]
      %v1630 = vld [vmem:[%s3 + $0x168] sm:$0xff]
      %v1631 = vld [vmem:[%s3 + $0x170] sm:$0xff]
      %v1632 = vld [vmem:[%s3 + $0x178] sm:$0xff]
      %v1633 = vld [vmem:[%s3 + $0x180] sm:$0xff]
      %v1634 = vld [vmem:[%s3 + $0x188] sm:$0xff]
      %v1635 = vld [vmem:[%s3 + $0x190] sm:$0xff]
      %v1636 = vld [vmem:[%s3 + $0x198] sm:$0xff]
      %v1637 = vld [vmem:[%s3 + $0x1a0] sm:$0xff]
      %v1638 = vld [vmem:[%s3 + $0x1a8] sm:$0xff]
      %v1639 = vld [vmem:[%s3 + $0x1b0] sm:$0xff]
      %v1640 = vld [vmem:[%s3 + $0x1b8] sm:$0xff]
      %v1641 = vld [vmem:[%s3 + $0x1c0] sm:$0xff]
      %v1642 = vld [vmem:[%s3 + $0x1c8] sm:$0xff]
      %v1643 = vld [vmem:[%s3 + $0x1d0] sm:$0xff]
      %v1644 = vld [vmem:[%s3 + $0x1d8] sm:$0xff]
      %v1645 = vld [vmem:[%s3 + $0x1e0] sm:$0xff]
      %v1646 = vld [vmem:[%s3 + $0x1e8] sm:$0xff]
      %v1647 = vld [vmem:[%s3 + $0x1f0] sm:$0xff]
      %v1648 = vld [vmem:[%s3 + $0x1f8] sm:$0xff]
      %v1649 = vld [vmem:[%s3 + $0x200] sm:$0xff]
      %v1650 = vld [vmem:[%s3 + $0x208] sm:$0xff]
      %v1651 = vld [vmem:[%s3 + $0x210] sm:$0xff]
      %v1652 = vld [vmem:[%s3 + $0x218] sm:$0xff]
      %v1653 = vld [vmem:[%s3 + $0x220] sm:$0xff]
      %v1654 = vld [vmem:[%s3 + $0x228] sm:$0xff]
      %v1655 = vld [vmem:[%s3 + $0x230] sm:$0xff]
      %v1656 = vld [vmem:[%s3 + $0x238] sm:$0xff]
      %v1657 = vld [vmem:[%s3 + $0x240] sm:$0xff]
      %v1658 = vld [vmem:[%s3 + $0x248] sm:$0xff]
      %v1659 = vld [vmem:[%s3 + $0x250] sm:$0xff]
      %v1660 = vld [vmem:[%s3 + $0x258] sm:$0xff]
      %v1661 = vld [vmem:[%s3 + $0x260] sm:$0xff]
      %v1662 = vld [vmem:[%s3 + $0x268] sm:$0xff]
      %v1663 = vld [vmem:[%s3 + $0x270] sm:$0xff]
      %v1664 = vld [vmem:[%s3 + $0x278] sm:$0xff]
      %v1665 = vld [vmem:[%s3 + $0x280] sm:$0xff]
      %v1666 = vld [vmem:[%s3 + $0x288] sm:$0xff]
      %v1667 = vld [vmem:[%s3 + $0x290] sm:$0xff]
      %v1668 = vld [vmem:[%s3 + $0x298] sm:$0xff]
      %v1669 = vld [vmem:[%s3 + $0x2a0] sm:$0xff]
      %v1670 = vld [vmem:[%s3 + $0x2a8] sm:$0xff]
      %v1671 = vld [vmem:[%s3 + $0x2b0] sm:$0xff]
      %v1672 = vld [vmem:[%s3 + $0x2b8] sm:$0xff]
      %v1673 = vld [vmem:[%s3 + $0x2c0] sm:$0xff]
      %v1674 = vld [vmem:[%s3 + $0x2c8] sm:$0xff]
      %v1675 = vld [vmem:[%s3 + $0x2d0] sm:$0xff]
      %v1676 = vld [vmem:[%s3 + $0x2d8] sm:$0xff]
      %v1677 = vld [vmem:[%s3 + $0x2e0] sm:$0xff]
      %v1678 = vld [vmem:[%s3 + $0x2e8] sm:$0xff]
      %v1679 = vld [vmem:[%s3 + $0x2f0] sm:$0xff]
      %v1680 = vld [vmem:[%s3 + $0x2f8] sm:$0xff]
      %v1681 = vld [vmem:[%s3 + $0x300] sm:$0xff]
      %v1682 = vld [vmem:[%s3 + $0x308] sm:$0xff]
      %v1683 = vld [vmem:[%s3 + $0x310] sm:$0xff]
      %v1684 = vld [vmem:[%s3 + $0x318] sm:$0xff]
      %v1685 = vld [vmem:[%s3 + $0x320] sm:$0xff]
      %v1686 = vld [vmem:[%s3 + $0x328] sm:$0xff]
      %v1687 = vld [vmem:[%s3 + $0x330] sm:$0xff]
      %v1688 = vld [vmem:[%s3 + $0x338] sm:$0xff]
      %v1689 = vld [vmem:[%s3 + $0x340] sm:$0xff]
      %v1690 = vld [vmem:[%s3 + $0x348] sm:$0xff]
      %v1691 = vld [vmem:[%s3 + $0x350] sm:$0xff]
      %v1692 = vld [vmem:[%s3 + $0x358] sm:$0xff]
      %v1693 = vld [vmem:[%s3 + $0x360] sm:$0xff]
      %v1694 = vld [vmem:[%s3 + $0x368] sm:$0xff]
      %v1695 = vld [vmem:[%s3 + $0x370] sm:$0xff]
      %v1696 = vld [vmem:[%s3 + $0x378] sm:$0xff]
      %v1697 = vld [vmem:[%s3 + $0x380] sm:$0xff]
      %v1698 = vld [vmem:[%s3 + $0x388] sm:$0xff]
      %v1699 = vld [vmem:[%s3 + $0x390] sm:$0xff]
      %v1700 = vld [vmem:[%s3 + $0x398] sm:$0xff]
      %v1701 = vld [vmem:[%s3 + $0x3a0] sm:$0xff]
      %v1702 = vld [vmem:[%s3 + $0x3a8] sm:$0xff]
      %v1703 = vld [vmem:[%s3 + $0x3b0] sm:$0xff]
      %v1704 = vld [vmem:[%s3 + $0x3b8] sm:$0xff]
      %v1705 = vld [vmem:[%s3 + $0x3c0] sm:$0xff]
      %v1706 = vld [vmem:[%s3 + $0x3c8] sm:$0xff]
      %v1707 = vld [vmem:[%s3 + $0x3d0] sm:$0xff]
      %v1708 = vld [vmem:[%s3 + $0x3d8] sm:$0xff]
      %v1709 = vld [vmem:[%s3 + $0x3e0] sm:$0xff]
      %v1710 = vld [vmem:[%s3 + $0x3e8] sm:$0xff]
      %v1711 = vld [vmem:[%s3 + $0x3f0] sm:$0xff]
      %v1712 = vld [vmem:[%s3 + $0x3f8] sm:$0xff]
      %v1713 = vld [vmem:[%s3 + $0x400] sm:$0xff]
      %v1714 = vld [vmem:[%s3 + $0x408] sm:$0xff]
      %v1715 = vld [vmem:[%s3 + $0x410] sm:$0xff]
      %v1716 = vld [vmem:[%s3 + $0x418] sm:$0xff]
      %v1717 = vld [vmem:[%s3 + $0x420] sm:$0xff]
      %v1718 = vld [vmem:[%s3 + $0x428] sm:$0xff]
      %v1719 = vld [vmem:[%s3 + $0x430] sm:$0xff]
      %v1720 = vld [vmem:[%s3 + $0x438] sm:$0xff]
      %v1721 = vld [vmem:[%s3 + $0x440] sm:$0xff]
      %v1722 = vld [vmem:[%s3 + $0x448] sm:$0xff]
      %v1723 = vld [vmem:[%s3 + $0x450] sm:$0xff]
      %v1724 = vld [vmem:[%s3 + $0x458] sm:$0xff]
      %v1725 = vld [vmem:[%s3 + $0x460] sm:$0xff]
      %v1726 = vld [vmem:[%s3 + $0x468] sm:$0xff]
      %v1727 = vld [vmem:[%s3 + $0x470] sm:$0xff]
      %v1728 = vld [vmem:[%s3 + $0x478] sm:$0xff]
      %v1729 = vld [vmem:[%s3 + $0x480] sm:$0xff]
      %v1730 = vld [vmem:[%s3 + $0x488] sm:$0xff]
      %v1731 = vld [vmem:[%s3 + $0x490] sm:$0xff]
      %v1732 = vld [vmem:[%s3 + $0x498] sm:$0xff]
      %v1733 = vld [vmem:[%s3 + $0x4a0] sm:$0xff]
      %v1734 = vld [vmem:[%s3 + $0x4a8] sm:$0xff]
      %v1735 = vld [vmem:[%s3 + $0x4b0] sm:$0xff]
      %v1736 = vld [vmem:[%s3 + $0x4b8] sm:$0xff]
      %v1737 = vld [vmem:[%s3 + $0x4c0] sm:$0xff]
      %v1738 = vld [vmem:[%s3 + $0x4c8] sm:$0xff]
      %v1739 = vld [vmem:[%s3 + $0x4d0] sm:$0xff]
      %v1740 = vld [vmem:[%s3 + $0x4d8] sm:$0xff]
      %v1741 = vld [vmem:[%s3 + $0x4e0] sm:$0xff]
      %v1742 = vld [vmem:[%s3 + $0x4e8] sm:$0xff]
      %v1743 = vld [vmem:[%s3 + $0x4f0] sm:$0xff]
      %v1744 = vld [vmem:[%s3 + $0x4f8] sm:$0xff]
      %v1745 = vld [vmem:[%s3 + $0x500] sm:$0xff]
      %v1746 = vld [vmem:[%s3 + $0x508] sm:$0xff]
      %v1747 = vld [vmem:[%s3 + $0x510] sm:$0xff]
      %v1748 = vld [vmem:[%s3 + $0x518] sm:$0xff]
      %v1749 = vld [vmem:[%s3 + $0x520] sm:$0xff]
      %v1750 = vld [vmem:[%s3 + $0x528] sm:$0xff]
      %v1751 = vld [vmem:[%s3 + $0x530] sm:$0xff]
      %v1752 = vld [vmem:[%s3 + $0x538] sm:$0xff]
      %v1753 = vld [vmem:[%s3 + $0x540] sm:$0xff]
      %v1754 = vld [vmem:[%s3 + $0x548] sm:$0xff]
      %v1755 = vld [vmem:[%s3 + $0x550] sm:$0xff]
      %v1756 = vld [vmem:[%s3 + $0x558] sm:$0xff]
      %v1757 = vld [vmem:[%s3 + $0x560] sm:$0xff]
      %v1758 = vld [vmem:[%s3 + $0x568] sm:$0xff]
      %v1759 = vld [vmem:[%s3 + $0x570] sm:$0xff]
      %v1760 = vld [vmem:[%s3 + $0x578] sm:$0xff]
      %v1761 = vld [vmem:[%s3 + $0x580] sm:$0xff]
      %v1762 = vld [vmem:[%s3 + $0x588] sm:$0xff]
      %v1763 = vld [vmem:[%s3 + $0x590] sm:$0xff]
      %v1764 = vld [vmem:[%s3 + $0x598] sm:$0xff]
      %v1765 = vld [vmem:[%s3 + $0x5a0] sm:$0xff]
      %v1766 = vld [vmem:[%s3 + $0x5a8] sm:$0xff]
      %v1767 = vld [vmem:[%s3 + $0x5b0] sm:$0xff]
      %v1768 = vld [vmem:[%s3 + $0x5b8] sm:$0xff]
      %v1769 = vld [vmem:[%s3 + $0x5c0] sm:$0xff]
      %v1770 = vld [vmem:[%s3 + $0x5c8] sm:$0xff]
      %v1771 = vld [vmem:[%s3 + $0x5d0] sm:$0xff]
      %v1772 = vld [vmem:[%s3 + $0x5d8] sm:$0xff]
      %v1773 = vld [vmem:[%s3 + $0x5e0] sm:$0xff]
      %v1774 = vld [vmem:[%s3 + $0x5e8] sm:$0xff]
      %v1775 = vld [vmem:[%s3 + $0x5f0] sm:$0xff]
      %v1776 = vld [vmem:[%s3 + $0x5f8] sm:$0xff]
      %v1777 = vld [vmem:[%s3 + $0x600] sm:$0xff]
      %v1778 = vld [vmem:[%s3 + $0x608] sm:$0xff]
      %v1779 = vld [vmem:[%s3 + $0x610] sm:$0xff]
      %v1780 = vld [vmem:[%s3 + $0x618] sm:$0xff]
      %v1781 = vld [vmem:[%s3 + $0x620] sm:$0xff]
      %v1782 = vld [vmem:[%s3 + $0x628] sm:$0xff]
      %v1783 = vld [vmem:[%s3 + $0x630] sm:$0xff]
      %v1784 = vld [vmem:[%s3 + $0x638] sm:$0xff]
      %v1785 = vld [vmem:[%s3 + $0x640] sm:$0xff]
      %v1786 = vld [vmem:[%s3 + $0x648] sm:$0xff]
      %v1787 = vld [vmem:[%s3 + $0x650] sm:$0xff]
      %v1788 = vld [vmem:[%s3 + $0x658] sm:$0xff]
      %v1789 = vld [vmem:[%s3 + $0x660] sm:$0xff]
      %v1790 = vld [vmem:[%s3 + $0x668] sm:$0xff]
      %v1791 = vld [vmem:[%s3 + $0x670] sm:$0xff]
      %v1792 = vld [vmem:[%s3 + $0x678] sm:$0xff]
      %v1793 = vld [vmem:[%s3 + $0x680] sm:$0xff]
      %v1794 = vld [vmem:[%s3 + $0x688] sm:$0xff]
      %v1795 = vld [vmem:[%s3 + $0x690] sm:$0xff]
      %v1796 = vld [vmem:[%s3 + $0x698] sm:$0xff]
      %v1797 = vld [vmem:[%s3 + $0x6a0] sm:$0xff]
      %v1798 = vld [vmem:[%s3 + $0x6a8] sm:$0xff]
      %v1799 = vld [vmem:[%s3 + $0x6b0] sm:$0xff]
      %v1800 = vld [vmem:[%s3 + $0x6b8] sm:$0xff]
      %v1801 = vld [vmem:[%s3 + $0x6c0] sm:$0xff]
      %v1802 = vld [vmem:[%s3 + $0x6c8] sm:$0xff]
      %v1803 = vld [vmem:[%s3 + $0x6d0] sm:$0xff]
      %v1804 = vld [vmem:[%s3 + $0x6d8] sm:$0xff]
      %v1805 = vld [vmem:[%s3 + $0x6e0] sm:$0xff]
      %v1806 = vld [vmem:[%s3 + $0x6e8] sm:$0xff]
      %v1807 = vld [vmem:[%s3 + $0x6f0] sm:$0xff]
      %v1808 = vld [vmem:[%s3 + $0x6f8] sm:$0xff]
      %v1809 = vld [vmem:[%s3 + $0x700] sm:$0xff]
      %v1810 = vld [vmem:[%s3 + $0x708] sm:$0xff]
      %v1811 = vld [vmem:[%s3 + $0x710] sm:$0xff]
      %v1812 = vld [vmem:[%s3 + $0x718] sm:$0xff]
      %v1813 = vld [vmem:[%s3 + $0x720] sm:$0xff]
      %v1814 = vld [vmem:[%s3 + $0x728] sm:$0xff]
      %v1815 = vld [vmem:[%s3 + $0x730] sm:$0xff]
      %v1816 = vld [vmem:[%s3 + $0x738] sm:$0xff]
      %v1817 = vld [vmem:[%s3 + $0x740] sm:$0xff]
      %v1818 = vld [vmem:[%s3 + $0x748] sm:$0xff]
      %v1819 = vld [vmem:[%s3 + $0x750] sm:$0xff]
      %v1820 = vld [vmem:[%s3 + $0x758] sm:$0xff]
      %v1821 = vld [vmem:[%s3 + $0x760] sm:$0xff]
      %v1822 = vld [vmem:[%s3 + $0x768] sm:$0xff]
      %v1823 = vld [vmem:[%s3 + $0x770] sm:$0xff]
      %v1824 = vld [vmem:[%s3 + $0x778] sm:$0xff]
      %v1825 = vld [vmem:[%s3 + $0x780] sm:$0xff]
      %v1826 = vld [vmem:[%s3 + $0x788] sm:$0xff]
      %v1827 = vld [vmem:[%s3 + $0x790] sm:$0xff]
      %v1828 = vld [vmem:[%s3 + $0x798] sm:$0xff]
      %v1829 = vld [vmem:[%s3 + $0x7a0] sm:$0xff]
      %v1830 = vld [vmem:[%s3 + $0x7a8] sm:$0xff]
      %v1831 = vld [vmem:[%s3 + $0x7b0] sm:$0xff]
      %v1832 = vld [vmem:[%s3 + $0x7b8] sm:$0xff]
      %v1833 = vld [vmem:[%s3 + $0x7c0] sm:$0xff]
      %v1834 = vld [vmem:[%s3 + $0x7c8] sm:$0xff]
      %v1835 = vld [vmem:[%s3 + $0x7d0] sm:$0xff]
      %v1836 = vld [vmem:[%s3 + $0x7d8] sm:$0xff]
      %v1837 = vld [vmem:[%s3 + $0x7e0] sm:$0xff]
      %v1838 = vld [vmem:[%s3 + $0x7e8] sm:$0xff]
      %v1839 = vld [vmem:[%s3 + $0x7f0] sm:$0xff]
      %v1840 = vld [vmem:[%s3 + $0x7f8] sm:$0xff]
      %v1841 = vld [vmem:[%s3 + $0x800] sm:$0xff]
      %v1842 = vld [vmem:[%s3 + $0x808] sm:$0xff]
      %v1843 = vld [vmem:[%s3 + $0x810] sm:$0xff]
      %v1844 = vld [vmem:[%s3 + $0x818] sm:$0xff]
      %v1845 = vld [vmem:[%s3 + $0x820] sm:$0xff]
      %v1846 = vld [vmem:[%s3 + $0x828] sm:$0xff]
      %v1847 = vld [vmem:[%s3 + $0x830] sm:$0xff]
      %v1848 = vld [vmem:[%s3 + $0x838] sm:$0xff]
      %v1849 = vld [vmem:[%s3 + $0x840] sm:$0xff]
      %v1850 = vld [vmem:[%s3 + $0x848] sm:$0xff]
      %v1851 = vld [vmem:[%s3 + $0x850] sm:$0xff]
      %v1852 = vld [vmem:[%s3 + $0x858] sm:$0xff]
      %v1853 = vld [vmem:[%s3 + $0x860] sm:$0xff]
      %v1854 = vld [vmem:[%s3 + $0x868] sm:$0xff]
      %v1855 = vld [vmem:[%s3 + $0x870] sm:$0xff]
      %v1856 = vld [vmem:[%s3 + $0x878] sm:$0xff]
      %v1857 = vld [vmem:[%s3 + $0x880] sm:$0xff]
      %v1858 = vld [vmem:[%s3 + $0x888] sm:$0xff]
      %v1859 = vld [vmem:[%s3 + $0x890] sm:$0xff]
      %v1860 = vld [vmem:[%s3 + $0x898] sm:$0xff]
      %v1861 = vld [vmem:[%s3 + $0x8a0] sm:$0xff]
      %v1862 = vld [vmem:[%s3 + $0x8a8] sm:$0xff]
      %v1863 = vld [vmem:[%s3 + $0x8b0] sm:$0xff]
      %v1864 = vld [vmem:[%s3 + $0x8b8] sm:$0xff]
      %v1865 = vld [vmem:[%s3 + $0x8c0] sm:$0xff]
      %v1866 = vld [vmem:[%s3 + $0x8c8] sm:$0xff]
      %v1867 = vld [vmem:[%s3 + $0x8d0] sm:$0xff]
      %v1868 = vld [vmem:[%s3 + $0x8d8] sm:$0xff]
      %v1869 = vld [vmem:[%s3 + $0x8e0] sm:$0xff]
      %v1870 = vld [vmem:[%s3 + $0x8e8] sm:$0xff]
      %v1871 = vld [vmem:[%s3 + $0x8f0] sm:$0xff]
      %v1872 = vld [vmem:[%s3 + $0x8f8] sm:$0xff]
      %v1873 = vld [vmem:[%s3 + $0x900] sm:$0xff]
      %v1874 = vld [vmem:[%s3 + $0x908] sm:$0xff]
      %v1875 = vld [vmem:[%s3 + $0x910] sm:$0xff]
      %v1876 = vld [vmem:[%s3 + $0x918] sm:$0xff]
      %v1877 = vld [vmem:[%s3 + $0x920] sm:$0xff]
      %v1878 = vld [vmem:[%s3 + $0x928] sm:$0xff]
      %v1879 = vld [vmem:[%s3 + $0x930] sm:$0xff]
      %v1880 = vld [vmem:[%s3 + $0x938] sm:$0xff]
      %v1881 = vld [vmem:[%s3 + $0x940] sm:$0xff]
      %v1882 = vld [vmem:[%s3 + $0x948] sm:$0xff]
      %v1883 = vld [vmem:[%s3 + $0x950] sm:$0xff]
      %v1884 = vld [vmem:[%s3 + $0x958] sm:$0xff]
      %v1885 = vld [vmem:[%s3 + $0x960] sm:$0xff]
      %v1886 = vld [vmem:[%s3 + $0x968] sm:$0xff]
      %v1887 = vld [vmem:[%s3 + $0x970] sm:$0xff]
      %v1888 = vld [vmem:[%s3 + $0x978] sm:$0xff]
      %v1889 = vld [vmem:[%s3 + $0x980] sm:$0xff]
      %v1890 = vld [vmem:[%s3 + $0x988] sm:$0xff]
      %v1891 = vld [vmem:[%s3 + $0x990] sm:$0xff]
      %v1892 = vld [vmem:[%s3 + $0x998] sm:$0xff]
      %v1893 = vld [vmem:[%s3 + $0x9a0] sm:$0xff]
      %v1894 = vld [vmem:[%s3 + $0x9a8] sm:$0xff]
      %v1895 = vld [vmem:[%s3 + $0x9b0] sm:$0xff]
      %v1896 = vld [vmem:[%s3 + $0x9b8] sm:$0xff]
      %v1897 = vld [vmem:[%s3 + $0x9c0] sm:$0xff]
      %v1898 = vld [vmem:[%s3 + $0x9c8] sm:$0xff]
      %v1899 = vld [vmem:[%s3 + $0x9d0] sm:$0xff]
      %v1900 = vld [vmem:[%s3 + $0x9d8] sm:$0xff]
      %v1901 = vld [vmem:[%s3 + $0x9e0] sm:$0xff]
      %v1902 = vld [vmem:[%s3 + $0x9e8] sm:$0xff]
      %v1903 = vld [vmem:[%s3 + $0x9f0] sm:$0xff]
      %v1904 = vld [vmem:[%s3 + $0x9f8] sm:$0xff]
      %v1905 = vld [vmem:[%s3 + $0xa00] sm:$0xff]
      %v1906 = vld [vmem:[%s3 + $0xa08] sm:$0xff]
      %v1907 = vld [vmem:[%s3 + $0xa10] sm:$0xff]
      %v1908 = vld [vmem:[%s3 + $0xa18] sm:$0xff]
      %v1909 = vld [vmem:[%s3 + $0xa20] sm:$0xff]
      %v1910 = vld [vmem:[%s3 + $0xa28] sm:$0xff]
      %v1911 = vld [vmem:[%s3 + $0xa30] sm:$0xff]
      %v1912 = vld [vmem:[%s3 + $0xa38] sm:$0xff]
      %v1913 = vld [vmem:[%s3 + $0xa40] sm:$0xff]
      %v1914 = vld [vmem:[%s3 + $0xa48] sm:$0xff]
      %v1915 = vld [vmem:[%s3 + $0xa50] sm:$0xff]
      %v1916 = vld [vmem:[%s3 + $0xa58] sm:$0xff]
      %v1917 = vld [vmem:[%s3 + $0xa60] sm:$0xff]
      %v1918 = vld [vmem:[%s3 + $0xa68] sm:$0xff]
      %v1919 = vld [vmem:[%s3 + $0xa70] sm:$0xff]
      %v1920 = vld [vmem:[%s3 + $0xa78] sm:$0xff]
      %v1921 = vld [vmem:[%s3 + $0xa80] sm:$0xff]
      %v1922 = vld [vmem:[%s3 + $0xa88] sm:$0xff]
      %v1923 = vld [vmem:[%s3 + $0xa90] sm:$0xff]
      %v1924 = vld [vmem:[%s3 + $0xa98] sm:$0xff]
      %v1925 = vld [vmem:[%s3 + $0xaa0] sm:$0xff]
      %v1926 = vld [vmem:[%s3 + $0xaa8] sm:$0xff]
      %v1927 = vld [vmem:[%s3 + $0xab0] sm:$0xff]
      %v1928 = vld [vmem:[%s3 + $0xab8] sm:$0xff]
      %v1929 = vld [vmem:[%s3 + $0xac0] sm:$0xff]
      %v1930 = vld [vmem:[%s3 + $0xac8] sm:$0xff]
      %v1931 = vld [vmem:[%s3 + $0xad0] sm:$0xff]
      %v1932 = vld [vmem:[%s3 + $0xad8] sm:$0xff]
      %v1933 = vld [vmem:[%s3 + $0xae0] sm:$0xff]
      %v1934 = vld [vmem:[%s3 + $0xae8] sm:$0xff]
      %v1935 = vld [vmem:[%s3 + $0xaf0] sm:$0xff]
      %v1936 = vld [vmem:[%s3 + $0xaf8] sm:$0xff]
      %v1937 = vld [vmem:[%s3 + $0xb00] sm:$0xff]
      %v1938 = vld [vmem:[%s3 + $0xb08] sm:$0xff]
      %v1939 = vld [vmem:[%s3 + $0xb10] sm:$0xff]
      %v1940 = vld [vmem:[%s3 + $0xb18] sm:$0xff]
      %v1941 = vld [vmem:[%s3 + $0xb20] sm:$0xff]
      %v1942 = vld [vmem:[%s3 + $0xb28] sm:$0xff]
      %v1943 = vld [vmem:[%s3 + $0xb30] sm:$0xff]
      %v1944 = vld [vmem:[%s3 + $0xb38] sm:$0xff]
      %v1945 = vld [vmem:[%s3 + $0xb40] sm:$0xff]
      %v1946 = vld [vmem:[%s3 + $0xb48] sm:$0xff]
      %v1947 = vld [vmem:[%s3 + $0xb50] sm:$0xff]
      %v1948 = vld [vmem:[%s3 + $0xb58] sm:$0xff]
      %v1949 = vld [vmem:[%s3 + $0xb60] sm:$0xff]
      %v1950 = vld [vmem:[%s3 + $0xb68] sm:$0xff]
      %v1951 = vld [vmem:[%s3 + $0xb70] sm:$0xff]
      %v1952 = vld [vmem:[%s3 + $0xb78] sm:$0xff]
      %v1953 = vld [vmem:[%s3 + $0xb80] sm:$0xff]
      %v1954 = vld [vmem:[%s3 + $0xb88] sm:$0xff]
      %v1955 = vld [vmem:[%s3 + $0xb90] sm:$0xff]
      %v1956 = vld [vmem:[%s3 + $0xb98] sm:$0xff]
      %v1957 = vld [vmem:[%s3 + $0xba0] sm:$0xff]
      %v1958 = vld [vmem:[%s3 + $0xba8] sm:$0xff]
      %v1959 = vld [vmem:[%s3 + $0xbb0] sm:$0xff]
      %v1960 = vld [vmem:[%s3 + $0xbb8] sm:$0xff]
      %v1961 = vld [vmem:[%s3 + $0xbc0] sm:$0xff]
      %v1962 = vld [vmem:[%s3 + $0xbc8] sm:$0xff]
      %v1963 = vld [vmem:[%s3 + $0xbd0] sm:$0xff]
      %v1964 = vld [vmem:[%s3 + $0xbd8] sm:$0xff]
      %v1965 = vld [vmem:[%s3 + $0xbe0] sm:$0xff]
      %v1966 = vld [vmem:[%s3 + $0xbe8] sm:$0xff]
      %v1967 = vld [vmem:[%s3 + $0xbf0] sm:$0xff]
      %v1968 = vld [vmem:[%s3 + $0xbf8] sm:$0xff]
      %v1969 = vld [vmem:[%s3 + $0xc00] sm:$0xff]
      %v1970 = vld [vmem:[%s3 + $0xc08] sm:$0xff]
      %v1971 = vld [vmem:[%s3 + $0xc10] sm:$0xff]
      %v1972 = vld [vmem:[%s3 + $0xc18] sm:$0xff]
      %v1973 = vld [vmem:[%s3 + $0xc20] sm:$0xff]
      %v1974 = vld [vmem:[%s3 + $0xc28] sm:$0xff]
      %v1975 = vld [vmem:[%s3 + $0xc30] sm:$0xff]
      %v1976 = vld [vmem:[%s3 + $0xc38] sm:$0xff]
      %v1977 = vld [vmem:[%s3 + $0xc40] sm:$0xff]
      %v1978 = vld [vmem:[%s3 + $0xc48] sm:$0xff]
      %v1979 = vld [vmem:[%s3 + $0xc50] sm:$0xff]
      %v1980 = vld [vmem:[%s3 + $0xc58] sm:$0xff]
      %v1981 = vld [vmem:[%s3 + $0xc60] sm:$0xff]
      %v1982 = vld [vmem:[%s3 + $0xc68] sm:$0xff]
      %v1983 = vld [vmem:[%s3 + $0xc70] sm:$0xff]
      %v1984 = vld [vmem:[%s3 + $0xc78] sm:$0xff]
      %v1985 = vld [vmem:[%s4] sm:$0x1]
      %v1987 = vlaneseq
      %v1988 = vshrl.u32 %v1987, 7
      %v1989 = vsub.s32 0, %v1988
      %v1990 = vrot.slane %v1985, %v1989
      %1992 = vmatprep.subr.mxu0 0.0
      %1993 = vmatpush1.msra.mxu0 %v1585
      %1994 = vmatprep.subr.mxu0 0.0
      %1995 = vmatpush1.msra.mxu0 %v1586
      %1996 = vmatprep.subr.mxu0 0.0
      %1997 = vmatpush1.msra.mxu0 %v1587
      %1998 = vmatprep.subr.mxu0 0.0
      %1999 = vmatpush1.msra.mxu0 %v1588
      %2000 = vmatprep.subr.mxu0 0.0
      %2001 = vmatpush1.msra.mxu0 %v1589
      %2002 = vmatprep.subr.mxu0 0.0
      %2003 = vmatpush1.msra.mxu0 %v1590
      %2004 = vmatprep.subr.mxu0 0.0
      %2005 = vmatpush1.msra.mxu0 %v1591
      %2006 = vmatprep.subr.mxu0 0.0
      %2007 = vmatpush1.msra.mxu0 %v1592
      %2008 = vmatprep.subr.mxu0 0.0
      %2009 = vmatpush1.msra.mxu0 %v1593
      %2010 = vmatprep.subr.mxu0 0.0
      %2011 = vmatpush1.msra.mxu0 %v1594
      %2012 = vmatprep.subr.mxu0 0.0
      %2013 = vmatpush1.msra.mxu0 %v1595
      %2014 = vmatprep.subr.mxu0 0.0
      %2015 = vmatpush1.msra.mxu0 %v1596
      %2016 = vmatprep.subr.mxu0 0.0
      %2017 = vmatpush1.msra.mxu0 %v1597
      %2018 = vmatprep.subr.mxu0 0.0
      %2019 = vmatpush1.msra.mxu0 %v1598
      %2020 = vmatprep.subr.mxu0 0.0
      %2021 = vmatpush1.msra.mxu0 %v1599
      %2022 = vmatprep.subr.mxu0 0.0
      %2023 = vmatpush1.msra.mxu0 %v1600
      %2024 = vmatprep.subr.mxu0 0.0
      %2025 = vmatpush1.msra.mxu0 %v1601
      %2026 = vmatprep.subr.mxu0 0.0
      %2027 = vmatpush1.msra.mxu0 %v1602
      %2028 = vmatprep.subr.mxu0 0.0
      %2029 = vmatpush1.msra.mxu0 %v1603
      %2030 = vmatprep.subr.mxu0 0.0
      %2031 = vmatpush1.msra.mxu0 %v1604
      %2032 = vmatprep.subr.mxu0 0.0
      %2033 = vmatpush1.msra.mxu0 %v1605
      %2034 = vmatprep.subr.mxu0 0.0
      %2035 = vmatpush1.msra.mxu0 %v1606
      %2036 = vmatprep.subr.mxu0 0.0
      %2037 = vmatpush1.msra.mxu0 %v1607
      %2038 = vmatprep.subr.mxu0 0.0
      %2039 = vmatpush1.msra.mxu0 %v1608
      %2040 = vmatprep.subr.mxu0 0.0
      %2041 = vmatpush1.msra.mxu0 %v1609
      %2042 = vmatprep.subr.mxu0 0.0
      %2043 = vmatpush1.msra.mxu0 %v1610
      %2044 = vmatprep.subr.mxu0 0.0
      %2045 = vmatpush1.msra.mxu0 %v1611
      %2046 = vmatprep.subr.mxu0 0.0
      %2047 = vmatpush1.msra.mxu0 %v1612
      %2048 = vmatprep.subr.mxu0 0.0
      %2049 = vmatpush1.msra.mxu0 %v1613
      %2050 = vmatprep.subr.mxu0 0.0
      %2051 = vmatpush1.msra.mxu0 %v1614
      %2052 = vmatprep.subr.mxu0 0.0
      %2053 = vmatpush1.msra.mxu0 %v1615
      %2054 = vmatprep.subr.mxu0 0.0
      %2055 = vmatpush1.msra.mxu0 %v1616
      %2056 = vmatprep.mubr.f32.mxu0 %v814
      %2057 = vmatmul.mubr.f32.gmra.mrb[0].mxu0 %v782
      %v2058 = vpop.f32.mrb[0].mxu0
      %v2059 = vadd.f32 %v1990, %v2058
      %v2060 = vpop.f32.mrb[0].mxu0
      %2061 = vmatprep.mubr.f32.mxu0 %v815
      %2062 = vmatmul.mubr.f32.gmra.mrb[0].mxu0 %v783
      %v2063 = vpop.f32.mrb[0].mxu0
      %v2064 = vadd.f32 %v1990, %v2063
      %v2065 = vpop.f32.mrb[0].mxu0
      %2066 = vmatprep.mubr.f32.mxu0 %v816
      %2067 = vmatmul.mubr.f32.gmra.mrb[0].mxu0 %v784
      %v2068 = vpop.f32.mrb[0].mxu0
      %v2069 = vadd.f32 %v1990, %v2068
      %v2070 = vpop.f32.mrb[0].mxu0
      %2071 = vmatprep.mubr.f32.mxu0 %v817
      %2072 = vmatmul.mubr.f32.gmra.mrb[0].mxu0 %v785
      %v2073 = vpop.f32.mrb[0].mxu0
      %v2074 = vadd.f32 %v1990, %v2073
      %v2075 = vpop.f32.mrb[0].mxu0
      %2076 = vmatprep.mubr.f32.mxu0 %v818
      %2077 = vmatmul.mubr.f32.gmra.mrb[0].mxu0 %v786
      %v2078 = vpop.f32.mrb[0].mxu0
      %v2079 = vadd.f32 %v1990, %v2078
      %v2080 = vpop.f32.mrb[0].mxu0
      %2081 = vmatprep.mubr.f32.mxu0 %v819
      %2082 = vmatmul.mubr.f32.gmra.mrb[0].mxu0 %v787
      %v2083 = vpop.f32.mrb[0].mxu0
      %v2084 = vadd.f32 %v1990, %v2083
      %v2085 = vpop.f32.mrb[0].mxu0
      %2086 = vmatprep.mubr.f32.mxu0 %v820
      %2087 = vmatmul.mubr.f32.gmra.mrb[0].mxu0 %v788
      %v2088 = vpop.f32.mrb[0].mxu0
      %v2089 = vadd.f32 %v1990, %v2088
      %v2090 = vpop.f32.mrb[0].mxu0
      %2091 = vmatprep.mubr.f32.mxu0 %v821
      %2092 = vmatmul.mubr.f32.gmra.mrb[0].mxu0 %v789
      %v2093 = vpop.f32.mrb[0].mxu0
      %v2094 = vadd.f32 %v1990, %v2093
      %v2095 = vpop.f32.mrb[0].mxu0
      %2096 = vmatprep.mubr.f32.mxu0 %v822
      %2097 = vmatmul.mubr.f32.gmra.mrb[0].mxu0 %v790
      %v2098 = vpop.f32.mrb[0].mxu0
      %v2099 = vadd.f32 %v1990, %v2098
      %v2100 = vpop.f32.mrb[0].mxu0
      %2101 = vmatprep.mubr.f32.mxu0 %v823
      %2102 = vmatmul.mubr.f32.gmra.mrb[0].mxu0 %v791
      %v2103 = vpop.f32.mrb[0].mxu0
      %v2104 = vadd.f32 %v1990, %v2103
      %v2105 = vpop.f32.mrb[0].mxu0
      %2106 = vmatprep.mubr.f32.mxu0 %v824
      %2107 = vmatmul.mubr.f32.gmra.mrb[0].mxu0 %v792
      %v2108 = vpop.f32.mrb[0].mxu0
      %v2109 = vadd.f32 %v1990, %v2108
      %v2110 = vpop.f32.mrb[0].mxu0
      %2111 = vmatprep.mubr.f32.mxu0 %v825
      %2112 = vmatmul.mubr.f32.gmra.mrb[0].mxu0 %v793
      %v2113 = vpop.f32.mrb[0].mxu0
      %v2114 = vadd.f32 %v1990, %v2113
      %v2115 = vpop.f32.mrb[0].mxu0
      %2116 = vmatprep.mubr.f32.mxu0 %v826
      %2117 = vmatmul.mubr.f32.gmra.mrb[0].mxu0 %v794
      %v2118 = vpop.f32.mrb[0].mxu0
      %v2119 = vadd.f32 %v1990, %v2118
      %v2120 = vpop.f32.mrb[0].mxu0
      %2121 = vmatprep.mubr.f32.mxu0 %v827
      %2122 = vmatmul.mubr.f32.gmra.mrb[0].mxu0 %v795
      %v2123 = vpop.f32.mrb[0].mxu0
      %v2124 = vadd.f32 %v1990, %v2123
      %v2125 = vpop.f32.mrb[0].mxu0
      %2126 = vmatprep.mubr.f32.mxu0 %v828
      %2127 = vmatmul.mubr.f32.gmra.mrb[0].mxu0 %v796
      %v2128 = vpop.f32.mrb[0].mxu0
      %v2129 = vadd.f32 %v1990, %v2128
      %v2130 = vpop.f32.mrb[0].mxu0
      %2131 = vmatprep.mubr.f32.mxu0 %v829
      %2132 = vmatmul.mubr.f32.gmra.mrb[0].mxu0 %v797
      %v2133 = vpop.f32.mrb[0].mxu0
      %v2134 = vadd.f32 %v1990, %v2133
      %v2135 = vpop.f32.mrb[0].mxu0
      %2136 = vmatprep.mubr.f32.mxu0 %v830
      %2137 = vmatmul.mubr.f32.gmra.mrb[0].mxu0 %v798
      %v2138 = vpop.f32.mrb[0].mxu0
      %v2139 = vadd.f32 %v1990, %v2138
      %v2140 = vpop.f32.mrb[0].mxu0
      %2141 = vmatprep.mubr.f32.mxu0 %v831
      %2142 = vmatmul.mubr.f32.gmra.mrb[0].mxu0 %v799
      %v2143 = vpop.f32.mrb[0].mxu0
      %v2144 = vadd.f32 %v1990, %v2143
      %v2145 = vpop.f32.mrb[0].mxu0
      %2146 = vmatprep.mubr.f32.mxu0 %v832
      %2147 = vmatmul.mubr.f32.gmra.mrb[0].mxu0 %v800
      %v2148 = vpop.f32.mrb[0].mxu0
      %v2149 = vadd.f32 %v1990, %v2148
      %v2150 = vpop.f32.mrb[0].mxu0
      %2151 = vmatprep.mubr.f32.mxu0 %v833
      %2152 = vmatmul.mubr.f32.gmra.mrb[0].mxu0 %v801
      %v2153 = vpop.f32.mrb[0].mxu0
      %v2154 = vadd.f32 %v1990, %v2153
      %v2155 = vpop.f32.mrb[0].mxu0
      %2156 = vmatprep.mubr.f32.mxu0 %v834
      %2157 = vmatmul.mubr.f32.gmra.mrb[0].mxu0 %v802
      %v2158 = vpop.f32.mrb[0].mxu0
      %v2159 = vadd.f32 %v1990, %v2158
      %v2160 = vpop.f32.mrb[0].mxu0
      %2161 = vmatprep.mubr.f32.mxu0 %v835
      %2162 = vmatmul.mubr.f32.gmra.mrb[0].mxu0 %v803
      %v2163 = vpop.f32.mrb[0].mxu0
      %v2164 = vadd.f32 %v1990, %v2163
      %v2165 = vpop.f32.mrb[0].mxu0
      %2166 = vmatprep.mubr.f32.mxu0 %v836
      %2167 = vmatmul.mubr.f32.gmra.mrb[0].mxu0 %v804
      %v2168 = vpop.f32.mrb[0].mxu0
      %v2169 = vadd.f32 %v1990, %v2168
      %v2170 = vpop.f32.mrb[0].mxu0
      %2171 = vmatprep.mubr.f32.mxu0 %v837
      %2172 = vmatmul.mubr.f32.gmra.mrb[0].mxu0 %v805
      %v2173 = vpop.f32.mrb[0].mxu0
      %v2174 = vadd.f32 %v1990, %v2173
      %v2175 = vpop.f32.mrb[0].mxu0
      %2176 = vmatprep.mubr.f32.mxu0 %v838
      %2177 = vmatmul.mubr.f32.gmra.mrb[0].mxu0 %v806
      %v2178 = vpop.f32.mrb[0].mxu0
      %v2179 = vadd.f32 %v1990, %v2178
      %v2180 = vpop.f32.mrb[0].mxu0
      %2181 = vmatprep.mubr.f32.mxu0 %v839
      %2182 = vmatmul.mubr.f32.gmra.mrb[0].mxu0 %v807
      %v2183 = vpop.f32.mrb[0].mxu0
      %v2184 = vadd.f32 %v1990, %v2183
      %v2185 = vpop.f32.mrb[0].mxu0
      %2186 = vmatprep.mubr.f32.mxu0 %v840
      %2187 = vmatmul.mubr.f32.gmra.mrb[0].mxu0 %v808
      %v2188 = vpop.f32.mrb[0].mxu0
      %v2189 = vadd.f32 %v1990, %v2188
      %v2190 = vpop.f32.mrb[0].mxu0
      %2191 = vmatprep.mubr.f32.mxu0 %v841
      %2192 = vmatmul.mubr.f32.gmra.mrb[0].mxu0 %v809
      %v2193 = vpop.f32.mrb[0].mxu0
      %v2194 = vadd.f32 %v1990, %v2193
      %v2195 = vpop.f32.mrb[0].mxu0
      %2196 = vmatprep.mubr.f32.mxu0 %v842
      %2197 = vmatmul.mubr.f32.gmra.mrb[0].mxu0 %v810
      %v2198 = vpop.f32.mrb[0].mxu0
      %v2199 = vadd.f32 %v1990, %v2198
      %v2200 = vpop.f32.mrb[0].mxu0
      %2201 = vmatprep.mubr.f32.mxu0 %v843
      %2202 = vmatmul.mubr.f32.gmra.mrb[0].mxu0 %v811
      %v2203 = vpop.f32.mrb[0].mxu0
      %v2204 = vadd.f32 %v1990, %v2203
      %v2205 = vpop.f32.mrb[0].mxu0
      %2206 = vmatprep.mubr.f32.mxu0 %v844
      %2207 = vmatmul.mubr.f32.gmra.mrb[0].mxu0 %v812
      %v2208 = vpop.f32.mrb[0].mxu0
      %v2209 = vadd.f32 %v1990, %v2208
      %v2210 = vpop.f32.mrb[0].mxu0
      %2211 = vmatprep.mubr.f32.mxu0 %v845
      %2212 = vmatmul.mubr.f32.gmra.mrb[0].mxu0 %v813
      %v2213 = vpop.f32.mrb[0].mxu0
      %v2214 = vadd.f32 %v1990, %v2213
      %v2215 = vpop.f32.mrb[0].mxu0
      %2216 = vdwg.mxu0
      %2217 = vmatprep.subr.mxu0 0.0
      %2218 = vmatpush1.msra.mxu0 %v1617
      %2219 = vmatprep.subr.mxu0 0.0
      %2220 = vmatpush1.msra.mxu0 %v1618
      %2221 = vmatprep.subr.mxu0 0.0
      %2222 = vmatpush1.msra.mxu0 %v1619
      %2223 = vmatprep.subr.mxu0 0.0
      %2224 = vmatpush1.msra.mxu0 %v1620
      %2225 = vmatprep.subr.mxu0 0.0
      %2226 = vmatpush1.msra.mxu0 %v1621
      %2227 = vmatprep.subr.mxu0 0.0
      %2228 = vmatpush1.msra.mxu0 %v1622
      %2229 = vmatprep.subr.mxu0 0.0
      %2230 = vmatpush1.msra.mxu0 %v1623
      %2231 = vmatprep.subr.mxu0 0.0
      %2232 = vmatpush1.msra.mxu0 %v1624
      %2233 = vmatprep.subr.mxu0 0.0
      %2234 = vmatpush1.msra.mxu0 %v1625
      %2235 = vmatprep.subr.mxu0 0.0
      %2236 = vmatpush1.msra.mxu0 %v1626
      %2237 = vmatprep.subr.mxu0 0.0
      %2238 = vmatpush1.msra.mxu0 %v1627
      %2239 = vmatprep.subr.mxu0 0.0
      %2240 = vmatpush1.msra.mxu0 %v1628
      %2241 = vmatprep.subr.mxu0 0.0
      %2242 = vmatpush1.msra.mxu0 %v1629
      %2243 = vmatprep.subr.mxu0 0.0
      %2244 = vmatpush1.msra.mxu0 %v1630
      %2245 = vmatprep.subr.mxu0 0.0
      %2246 = vmatpush1.msra.mxu0 %v1631
      %2247 = vmatprep.subr.mxu0 0.0
      %2248 = vmatpush1.msra.mxu0 %v1632
      %2249 = vmatprep.subr.mxu0 0.0
      %2250 = vmatpush1.msra.mxu0 %v1633
      %2251 = vmatprep.subr.mxu0 0.0
      %2252 = vmatpush1.msra.mxu0 %v1634
      %2253 = vmatprep.subr.mxu0 0.0
      %2254 = vmatpush1.msra.mxu0 %v1635
      %2255 = vmatprep.subr.mxu0 0.0
      %2256 = vmatpush1.msra.mxu0 %v1636
      %2257 = vmatprep.subr.mxu0 0.0
      %2258 = vmatpush1.msra.mxu0 %v1637
      %2259 = vmatprep.subr.mxu0 0.0
      %2260 = vmatpush1.msra.mxu0 %v1638
      %2261 = vmatprep.subr.mxu0 0.0
      %2262 = vmatpush1.msra.mxu0 %v1639
      %2263 = vmatprep.subr.mxu0 0.0
      %2264 = vmatpush1.msra.mxu0 %v1640
      %2265 = vmatprep.subr.mxu0 0.0
      %2266 = vmatpush1.msra.mxu0 %v1641
      %2267 = vmatprep.subr.mxu0 0.0
      %2268 = vmatpush1.msra.mxu0 %v1642
      %2269 = vmatprep.subr.mxu0 0.0
      %2270 = vmatpush1.msra.mxu0 %v1643
      %2271 = vmatprep.subr.mxu0 0.0
      %2272 = vmatpush1.msra.mxu0 %v1644
      %2273 = vmatprep.subr.mxu0 0.0
      %2274 = vmatpush1.msra.mxu0 %v1645
      %2275 = vmatprep.subr.mxu0 0.0
      %2276 = vmatpush1.msra.mxu0 %v1646
      %2277 = vmatprep.subr.mxu0 0.0
      %2278 = vmatpush1.msra.mxu0 %v1647
      %2279 = vmatprep.subr.mxu0 0.0
      %2280 = vmatpush1.msra.mxu0 %v1648
      %2281 = vmatprep.mubr.f32.mxu0 %v878
      %2282 = vmatmul.mubr.f32.gmra.mrb[0].mxu0 %v846
      %v2283 = vpop.f32.mrb[0].mxu0
      %v2284 = vadd.f32 %v2059, %v2283
      %v2285 = vpop.f32.mrb[0].mxu0
      %2286 = vmatprep.mubr.f32.mxu0 %v879
      %2287 = vmatmul.mubr.f32.gmra.mrb[0].mxu0 %v847
      %v2288 = vpop.f32.mrb[0].mxu0
      %v2289 = vadd.f32 %v2064, %v2288
      %v2290 = vpop.f32.mrb[0].mxu0
      %2291 = vmatprep.mubr.f32.mxu0 %v880
      %2292 = vmatmul.mubr.f32.gmra.mrb[0].mxu0 %v848
      %v2293 = vpop.f32.mrb[0].mxu0
      %v2294 = vadd.f32 %v2069, %v2293
      %v2295 = vpop.f32.mrb[0].mxu0
      %2296 = vmatprep.mubr.f32.mxu0 %v881
      %2297 = vmatmul.mubr.f32.gmra.mrb[0].mxu0 %v849
      %v2298 = vpop.f32.mrb[0].mxu0
      %v2299 = vadd.f32 %v2074, %v2298
      %v2300 = vpop.f32.mrb[0].mxu0
      %2301 = vmatprep.mubr.f32.mxu0 %v882
      %2302 = vmatmul.mubr.f32.gmra.mrb[0].mxu0 %v850
      %v2303 = vpop.f32.mrb[0].mxu0
      %v2304 = vadd.f32 %v2079, %v2303
      %v2305 = vpop.f32.mrb[0].mxu0
      %2306 = vmatprep.mubr.f32.mxu0 %v883
      %2307 = vmatmul.mubr.f32.gmra.mrb[0].mxu0 %v851
      %v2308 = vpop.f32.mrb[0].mxu0
      %v2309 = vadd.f32 %v2084, %v2308
      %v2310 = vpop.f32.mrb[0].mxu0
      %2311 = vmatprep.mubr.f32.mxu0 %v884
      %2312 = vmatmul.mubr.f32.gmra.mrb[0].mxu0 %v852
      %v2313 = vpop.f32.mrb[0].mxu0
      %v2314 = vadd.f32 %v2089, %v2313
      %v2315 = vpop.f32.mrb[0].mxu0
      %2316 = vmatprep.mubr.f32.mxu0 %v885
      %2317 = vmatmul.mubr.f32.gmra.mrb[0].mxu0 %v853
      %v2318 = vpop.f32.mrb[0].mxu0
      %v2319 = vadd.f32 %v2094, %v2318
      %v2320 = vpop.f32.mrb[0].mxu0
      %2321 = vmatprep.mubr.f32.mxu0 %v886
      %2322 = vmatmul.mubr.f32.gmra.mrb[0].mxu0 %v854
      %v2323 = vpop.f32.mrb[0].mxu0
      %v2324 = vadd.f32 %v2099, %v2323
      %v2325 = vpop.f32.mrb[0].mxu0
      %2326 = vmatprep.mubr.f32.mxu0 %v887
      %2327 = vmatmul.mubr.f32.gmra.mrb[0].mxu0 %v855
      %v2328 = vpop.f32.mrb[0].mxu0
      %v2329 = vadd.f32 %v2104, %v2328
      %v2330 = vpop.f32.mrb[0].mxu0
      %2331 = vmatprep.mubr.f32.mxu0 %v888
      %2332 = vmatmul.mubr.f32.gmra.mrb[0].mxu0 %v856
      %v2333 = vpop.f32.mrb[0].mxu0
      %v2334 = vadd.f32 %v2109, %v2333
      %v2335 = vpop.f32.mrb[0].mxu0
      %2336 = vmatprep.mubr.f32.mxu0 %v889
      %2337 = vmatmul.mubr.f32.gmra.mrb[0].mxu0 %v857
      %v2338 = vpop.f32.mrb[0].mxu0
      %v2339 = vadd.f32 %v2114, %v2338
      %v2340 = vpop.f32.mrb[0].mxu0
      %2341 = vmatprep.mubr.f32.mxu0 %v890
      %2342 = vmatmul.mubr.f32.gmra.mrb[0].mxu0 %v858
      %v2343 = vpop.f32.mrb[0].mxu0
      %v2344 = vadd.f32 %v2119, %v2343
      %v2345 = vpop.f32.mrb[0].mxu0
      %2346 = vmatprep.mubr.f32.mxu0 %v891
      %2347 = vmatmul.mubr.f32.gmra.mrb[0].mxu0 %v859
      %v2348 = vpop.f32.mrb[0].mxu0
      %v2349 = vadd.f32 %v2124, %v2348
      %v2350 = vpop.f32.mrb[0].mxu0
      %2351 = vmatprep.mubr.f32.mxu0 %v892
      %2352 = vmatmul.mubr.f32.gmra.mrb[0].mxu0 %v860
      %v2353 = vpop.f32.mrb[0].mxu0
      %v2354 = vadd.f32 %v2129, %v2353
      %v2355 = vpop.f32.mrb[0].mxu0
      %2356 = vmatprep.mubr.f32.mxu0 %v893
      %2357 = vmatmul.mubr.f32.gmra.mrb[0].mxu0 %v861
      %v2358 = vpop.f32.mrb[0].mxu0
      %v2359 = vadd.f32 %v2134, %v2358
      %v2360 = vpop.f32.mrb[0].mxu0
      %2361 = vmatprep.mubr.f32.mxu0 %v894
      %2362 = vmatmul.mubr.f32.gmra.mrb[0].mxu0 %v862
      %v2363 = vpop.f32.mrb[0].mxu0
      %v2364 = vadd.f32 %v2139, %v2363
      %v2365 = vpop.f32.mrb[0].mxu0
      %2366 = vmatprep.mubr.f32.mxu0 %v895
      %2367 = vmatmul.mubr.f32.gmra.mrb[0].mxu0 %v863
      %v2368 = vpop.f32.mrb[0].mxu0
      %v2369 = vadd.f32 %v2144, %v2368
      %v2370 = vpop.f32.mrb[0].mxu0
      %2371 = vmatprep.mubr.f32.mxu0 %v896
      %2372 = vmatmul.mubr.f32.gmra.mrb[0].mxu0 %v864
      %v2373 = vpop.f32.mrb[0].mxu0
      %v2374 = vadd.f32 %v2149, %v2373
      %v2375 = vpop.f32.mrb[0].mxu0
      %2376 = vmatprep.mubr.f32.mxu0 %v897
      %2377 = vmatmul.mubr.f32.gmra.mrb[0].mxu0 %v865
      %v2378 = vpop.f32.mrb[0].mxu0
      %v2379 = vadd.f32 %v2154, %v2378
      %v2380 = vpop.f32.mrb[0].mxu0
      %2381 = vmatprep.mubr.f32.mxu0 %v898
      %2382 = vmatmul.mubr.f32.gmra.mrb[0].mxu0 %v866
      %v2383 = vpop.f32.mrb[0].mxu0
      %v2384 = vadd.f32 %v2159, %v2383
      %v2385 = vpop.f32.mrb[0].mxu0
      %2386 = vmatprep.mubr.f32.mxu0 %v899
      %2387 = vmatmul.mubr.f32.gmra.mrb[0].mxu0 %v867
      %v2388 = vpop.f32.mrb[0].mxu0
      %v2389 = vadd.f32 %v2164, %v2388
      %v2390 = vpop.f32.mrb[0].mxu0
      %2391 = vmatprep.mubr.f32.mxu0 %v900
      %2392 = vmatmul.mubr.f32.gmra.mrb[0].mxu0 %v868
      %v2393 = vpop.f32.mrb[0].mxu0
      %v2394 = vadd.f32 %v2169, %v2393
      %v2395 = vpop.f32.mrb[0].mxu0
      %2396 = vmatprep.mubr.f32.mxu0 %v901
      %2397 = vmatmul.mubr.f32.gmra.mrb[0].mxu0 %v869
      %v2398 = vpop.f32.mrb[0].mxu0
      %v2399 = vadd.f32 %v2174, %v2398
      %v2400 = vpop.f32.mrb[0].mxu0
      %2401 = vmatprep.mubr.f32.mxu0 %v902
      %2402 = vmatmul.mubr.f32.gmra.mrb[0].mxu0 %v870
      %v2403 = vpop.f32.mrb[0].mxu0
      %v2404 = vadd.f32 %v2179, %v2403
      %v2405 = vpop.f32.mrb[0].mxu0
      %2406 = vmatprep.mubr.f32.mxu0 %v903
      %2407 = vmatmul.mubr.f32.gmra.mrb[0].mxu0 %v871
      %v2408 = vpop.f32.mrb[0].mxu0
      %v2409 = vadd.f32 %v2184, %v2408
      %v2410 = vpop.f32.mrb[0].mxu0
      %2411 = vmatprep.mubr.f32.mxu0 %v904
      %2412 = vmatmul.mubr.f32.gmra.mrb[0].mxu0 %v872
      %v2413 = vpop.f32.mrb[0].mxu0
      %v2414 = vadd.f32 %v2189, %v2413
      %v2415 = vpop.f32.mrb[0].mxu0
      %2416 = vmatprep.mubr.f32.mxu0 %v905
      %2417 = vmatmul.mubr.f32.gmra.mrb[0].mxu0 %v873
      %v2418 = vpop.f32.mrb[0].mxu0
      %v2419 = vadd.f32 %v2194, %v2418
      %v2420 = vpop.f32.mrb[0].mxu0
      %2421 = vmatprep.mubr.f32.mxu0 %v906
      %2422 = vmatmul.mubr.f32.gmra.mrb[0].mxu0 %v874
      %v2423 = vpop.f32.mrb[0].mxu0
      %v2424 = vadd.f32 %v2199, %v2423
      %v2425 = vpop.f32.mrb[0].mxu0
      %2426 = vmatprep.mubr.f32.mxu0 %v907
      %2427 = vmatmul.mubr.f32.gmra.mrb[0].mxu0 %v875
      %v2428 = vpop.f32.mrb[0].mxu0
      %v2429 = vadd.f32 %v2204, %v2428
      %v2430 = vpop.f32.mrb[0].mxu0
      %2431 = vmatprep.mubr.f32.mxu0 %v908
      %2432 = vmatmul.mubr.f32.gmra.mrb[0].mxu0 %v876
      %v2433 = vpop.f32.mrb[0].mxu0
      %v2434 = vadd.f32 %v2209, %v2433
      %v2435 = vpop.f32.mrb[0].mxu0
      %2436 = vmatprep.mubr.f32.mxu0 %v909
      %2437 = vmatmul.mubr.f32.gmra.mrb[0].mxu0 %v877
      %v2438 = vpop.f32.mrb[0].mxu0
      %v2439 = vadd.f32 %v2214, %v2438
      %v2440 = vpop.f32.mrb[0].mxu0
      %2441 = vdwg.mxu0
      %2442 = vmatprep.subr.mxu0 0.0
      %2443 = vmatpush1.msra.mxu0 %v1649
      %2444 = vmatprep.subr.mxu0 0.0
      %2445 = vmatpush1.msra.mxu0 %v1650
      %2446 = vmatprep.subr.mxu0 0.0
      %2447 = vmatpush1.msra.mxu0 %v1651
      %2448 = vmatprep.subr.mxu0 0.0
      %2449 = vmatpush1.msra.mxu0 %v1652
      %2450 = vmatprep.subr.mxu0 0.0
      %2451 = vmatpush1.msra.mxu0 %v1653
      %2452 = vmatprep.subr.mxu0 0.0
      %2453 = vmatpush1.msra.mxu0 %v1654
      %2454 = vmatprep.subr.mxu0 0.0
      %2455 = vmatpush1.msra.mxu0 %v1655
      %2456 = vmatprep.subr.mxu0 0.0
      %2457 = vmatpush1.msra.mxu0 %v1656
      %2458 = vmatprep.subr.mxu0 0.0
      %2459 = vmatpush1.msra.mxu0 %v1657
      %2460 = vmatprep.subr.mxu0 0.0
      %2461 = vmatpush1.msra.mxu0 %v1658
      %2462 = vmatprep.subr.mxu0 0.0
      %2463 = vmatpush1.msra.mxu0 %v1659
      %2464 = vmatprep.subr.mxu0 0.0
      %2465 = vmatpush1.msra.mxu0 %v1660
      %2466 = vmatprep.subr.mxu0 0.0
      %2467 = vmatpush1.msra.mxu0 %v1661
      %2468 = vmatprep.subr.mxu0 0.0
      %2469 = vmatpush1.msra.mxu0 %v1662
      %2470 = vmatprep.subr.mxu0 0.0
      %2471 = vmatpush1.msra.mxu0 %v1663
      %2472 = vmatprep.subr.mxu0 0.0
      %2473 = vmatpush1.msra.mxu0 %v1664
      %2474 = vmatprep.subr.mxu0 0.0
      %2475 = vmatpush1.msra.mxu0 %v1665
      %2476 = vmatprep.subr.mxu0 0.0
      %2477 = vmatpush1.msra.mxu0 %v1666
      %2478 = vmatprep.subr.mxu0 0.0
      %2479 = vmatpush1.msra.mxu0 %v1667
      %2480 = vmatprep.subr.mxu0 0.0
      %2481 = vmatpush1.msra.mxu0 %v1668
      %2482 = vmatprep.subr.mxu0 0.0
      %2483 = vmatpush1.msra.mxu0 %v1669
      %2484 = vmatprep.subr.mxu0 0.0
      %2485 = vmatpush1.msra.mxu0 %v1670
      %2486 = vmatprep.subr.mxu0 0.0
      %2487 = vmatpush1.msra.mxu0 %v1671
      %2488 = vmatprep.subr.mxu0 0.0
      %2489 = vmatpush1.msra.mxu0 %v1672
      %2490 = vmatprep.subr.mxu0 0.0
      %2491 = vmatpush1.msra.mxu0 %v1673
      %2492 = vmatprep.subr.mxu0 0.0
      %2493 = vmatpush1.msra.mxu0 %v1674
      %2494 = vmatprep.subr.mxu0 0.0
      %2495 = vmatpush1.msra.mxu0 %v1675
      %2496 = vmatprep.subr.mxu0 0.0
      %2497 = vmatpush1.msra.mxu0 %v1676
      %2498 = vmatprep.subr.mxu0 0.0
      %2499 = vmatpush1.msra.mxu0 %v1677
      %2500 = vmatprep.subr.mxu0 0.0
      %2501 = vmatpush1.msra.mxu0 %v1678
      %2502 = vmatprep.subr.mxu0 0.0
      %2503 = vmatpush1.msra.mxu0 %v1679
      %2504 = vmatprep.subr.mxu0 0.0
      %2505 = vmatpush1.msra.mxu0 %v1680
      %2506 = vmatprep.mubr.f32.mxu0 %v943
      %2507 = vmatmul.mubr.f32.gmra.mrb[0].mxu0 %v910
      %v2508 = vpop.f32.mrb[0].mxu0
      %v2509 = vadd.f32 %v2284, %v2508
      %v2510 = vpop.f32.mrb[0].mxu0
      %2511 = vmatprep.mubr.f32.mxu0 %v944
      %2512 = vmatmul.mubr.f32.gmra.mrb[0].mxu0 %v911
      %v2513 = vpop.f32.mrb[0].mxu0
      %v2514 = vadd.f32 %v2289, %v2513
      %v2515 = vpop.f32.mrb[0].mxu0
      %2516 = vmatprep.mubr.f32.mxu0 %v945
      %2517 = vmatmul.mubr.f32.gmra.mrb[0].mxu0 %v912
      %v2518 = vpop.f32.mrb[0].mxu0
      %v2519 = vadd.f32 %v2294, %v2518
      %v2520 = vpop.f32.mrb[0].mxu0
      %2521 = vmatprep.mubr.f32.mxu0 %v946
      %2522 = vmatmul.mubr.f32.gmra.mrb[0].mxu0 %v913
      %v2523 = vpop.f32.mrb[0].mxu0
      %v2524 = vadd.f32 %v2299, %v2523
      %v2525 = vpop.f32.mrb[0].mxu0
      %2526 = vmatprep.mubr.f32.mxu0 %v947
      %2527 = vmatmul.mubr.f32.gmra.mrb[0].mxu0 %v914
      %v2528 = vpop.f32.mrb[0].mxu0
      %v2529 = vadd.f32 %v2304, %v2528
      %v2530 = vpop.f32.mrb[0].mxu0
      %2531 = vmatprep.mubr.f32.mxu0 %v948
      %2532 = vmatmul.mubr.f32.gmra.mrb[0].mxu0 %v915
      %v2533 = vpop.f32.mrb[0].mxu0
      %v2534 = vadd.f32 %v2309, %v2533
      %v2535 = vpop.f32.mrb[0].mxu0
      %2536 = vmatprep.mubr.f32.mxu0 %v949
      %2537 = vmatmul.mubr.f32.gmra.mrb[0].mxu0 %v916
      %v2538 = vpop.f32.mrb[0].mxu0
      %v2539 = vadd.f32 %v2314, %v2538
      %v2540 = vpop.f32.mrb[0].mxu0
      %2541 = vmatprep.mubr.f32.mxu0 %v950
      %2542 = vmatmul.mubr.f32.gmra.mrb[0].mxu0 %v917
      %v2543 = vpop.f32.mrb[0].mxu0
      %v2544 = vadd.f32 %v2319, %v2543
      %v2545 = vpop.f32.mrb[0].mxu0
      %2546 = vmatprep.mubr.f32.mxu0 %v951
      %2547 = vmatmul.mubr.f32.gmra.mrb[0].mxu0 %v918
      %v2548 = vpop.f32.mrb[0].mxu0
      %v2549 = vadd.f32 %v2324, %v2548
      %v2550 = vpop.f32.mrb[0].mxu0
      %2551 = vmatprep.mubr.f32.mxu0 %v952
      %2552 = vmatmul.mubr.f32.gmra.mrb[0].mxu0 %v919
      %v2553 = vpop.f32.mrb[0].mxu0
      %v2554 = vadd.f32 %v2329, %v2553
      %v2555 = vpop.f32.mrb[0].mxu0
      %2556 = vmatprep.mubr.f32.mxu0 %v953
      %2557 = vmatmul.mubr.f32.gmra.mrb[0].mxu0 %v920
      %v2558 = vpop.f32.mrb[0].mxu0
      %v2559 = vadd.f32 %v2334, %v2558
      %v2560 = vpop.f32.mrb[0].mxu0
      %2561 = vmatprep.mubr.f32.mxu0 %v954
      %2562 = vmatmul.mubr.f32.gmra.mrb[0].mxu0 %v921
      %v2563 = vpop.f32.mrb[0].mxu0
      %v2564 = vadd.f32 %v2339, %v2563
      %v2565 = vpop.f32.mrb[0].mxu0
      %2566 = vmatprep.mubr.f32.mxu0 %v955
      %2567 = vmatmul.mubr.f32.gmra.mrb[0].mxu0 %v922
      %v2568 = vpop.f32.mrb[0].mxu0
      %v2569 = vadd.f32 %v2344, %v2568
      %v2570 = vpop.f32.mrb[0].mxu0
      %2571 = vmatprep.mubr.f32.mxu0 %v956
      %2572 = vmatmul.mubr.f32.gmra.mrb[0].mxu0 %v923
      %v2573 = vpop.f32.mrb[0].mxu0
      %v2574 = vadd.f32 %v2349, %v2573
      %v2575 = vpop.f32.mrb[0].mxu0
      %2576 = vmatprep.mubr.f32.mxu0 %v957
      %2577 = vmatmul.mubr.f32.gmra.mrb[0].mxu0 %v924
      %v2578 = vpop.f32.mrb[0].mxu0
      %v2579 = vadd.f32 %v2354, %v2578
      %v2580 = vpop.f32.mrb[0].mxu0
      %2581 = vmatprep.mubr.f32.mxu0 %v958
      %2582 = vmatmul.mubr.f32.gmra.mrb[0].mxu0 %v925
      %v2583 = vpop.f32.mrb[0].mxu0
      %v2584 = vadd.f32 %v2359, %v2583
      %v2585 = vpop.f32.mrb[0].mxu0
      %2586 = vmatprep.mubr.f32.mxu0 %v959
      %2587 = vmatmul.mubr.f32.gmra.mrb[0].mxu0 %v926
      %v2588 = vpop.f32.mrb[0].mxu0
      %v2589 = vadd.f32 %v2364, %v2588
      %v2590 = vpop.f32.mrb[0].mxu0
      %2591 = vmatprep.mubr.f32.mxu0 %v960
      %2592 = vmatmul.mubr.f32.gmra.mrb[0].mxu0 %v927
      %v2593 = vpop.f32.mrb[0].mxu0
      %v2594 = vadd.f32 %v2369, %v2593
      %v2595 = vpop.f32.mrb[0].mxu0
      %2596 = vmatprep.mubr.f32.mxu0 %v961
      %2597 = vmatmul.mubr.f32.gmra.mrb[0].mxu0 %v928
      %v2598 = vpop.f32.mrb[0].mxu0
      %v2599 = vadd.f32 %v2374, %v2598
      %v2600 = vpop.f32.mrb[0].mxu0
      %2601 = vmatprep.mubr.f32.mxu0 %v962
      %2602 = vmatmul.mubr.f32.gmra.mrb[0].mxu0 %v929
      %v2603 = vpop.f32.mrb[0].mxu0
      %v2604 = vadd.f32 %v2379, %v2603
      %v2605 = vpop.f32.mrb[0].mxu0
      %2606 = vmatprep.mubr.f32.mxu0 %v963
      %2607 = vmatmul.mubr.f32.gmra.mrb[0].mxu0 %v930
      %v2608 = vpop.f32.mrb[0].mxu0
      %v2609 = vadd.f32 %v2384, %v2608
      %v2610 = vpop.f32.mrb[0].mxu0
      %2611 = vmatprep.mubr.f32.mxu0 %v964
      %2612 = vmatmul.mubr.f32.gmra.mrb[0].mxu0 %v931
      %v2613 = vpop.f32.mrb[0].mxu0
      %v2614 = vadd.f32 %v2389, %v2613
      %v2615 = vpop.f32.mrb[0].mxu0
      %2616 = vmatprep.mubr.f32.mxu0 %v965
      %2617 = vmatmul.mubr.f32.gmra.mrb[0].mxu0 %v932
      %v2618 = vpop.f32.mrb[0].mxu0
      %v2619 = vadd.f32 %v2394, %v2618
      %v2620 = vpop.f32.mrb[0].mxu0
      %2621 = vmatprep.mubr.f32.mxu0 %v966
      %2622 = vmatmul.mubr.f32.gmra.mrb[0].mxu0 %v933
      %v2623 = vpop.f32.mrb[0].mxu0
      %v2624 = vadd.f32 %v2399, %v2623
      %v2625 = vpop.f32.mrb[0].mxu0
      %2626 = vmatprep.mubr.f32.mxu0 %v967
      %2627 = vmatmul.mubr.f32.gmra.mrb[0].mxu0 %v934
      %v2628 = vpop.f32.mrb[0].mxu0
      %v2629 = vadd.f32 %v2404, %v2628
      %v2630 = vpop.f32.mrb[0].mxu0
      %2631 = vmatprep.mubr.f32.mxu0 %v968
      %2632 = vmatmul.mubr.f32.gmra.mrb[0].mxu0 %v935
      %v2633 = vpop.f32.mrb[0].mxu0
      %v2634 = vadd.f32 %v2409, %v2633
      %v2635 = vpop.f32.mrb[0].mxu0
      %2636 = vmatprep.mubr.f32.mxu0 %v969
      %2637 = vmatmul.mubr.f32.gmra.mrb[0].mxu0 %v936
      %v2638 = vpop.f32.mrb[0].mxu0
      %v2639 = vadd.f32 %v2414, %v2638
      %v2640 = vpop.f32.mrb[0].mxu0
      %2641 = vmatprep.mubr.f32.mxu0 %v970
      %2642 = vmatmul.mubr.f32.gmra.mrb[0].mxu0 %v937
      %v2643 = vpop.f32.mrb[0].mxu0
      %v2644 = vadd.f32 %v2419, %v2643
      %v2645 = vpop.f32.mrb[0].mxu0
      %2646 = vmatprep.mubr.f32.mxu0 %v971
      %2647 = vmatmul.mubr.f32.gmra.mrb[0].mxu0 %v938
      %v2648 = vpop.f32.mrb[0].mxu0
      %v2649 = vadd.f32 %v2424, %v2648
      %v2650 = vpop.f32.mrb[0].mxu0
      %2651 = vmatprep.mubr.f32.mxu0 %v972
      %2652 = vmatmul.mubr.f32.gmra.mrb[0].mxu0 %v939
      %v2653 = vpop.f32.mrb[0].mxu0
      %v2654 = vadd.f32 %v2429, %v2653
      %v2655 = vpop.f32.mrb[0].mxu0
      %2656 = vmatprep.mubr.f32.mxu0 %v973
      %2657 = vmatmul.mubr.f32.gmra.mrb[0].mxu0 %v940
      %v2658 = vpop.f32.mrb[0].mxu0
      %v2659 = vadd.f32 %v2434, %v2658
      %v2660 = vpop.f32.mrb[0].mxu0
      %2661 = vmatprep.mubr.f32.mxu0 %v974
      %2662 = vmatmul.mubr.f32.gmra.mrb[0].mxu0 %v941
      %v2663 = vpop.f32.mrb[0].mxu0
      %v2664 = vadd.f32 %v2439, %v2663
      %v2665 = vpop.f32.mrb[0].mxu0
      %2666 = vdwg.mxu0
      %2667 = vmatprep.subr.mxu0 0.0
      %2668 = vmatpush1.msra.mxu0 %v1681
      %2669 = vmatprep.subr.mxu0 0.0
      %2670 = vmatpush1.msra.mxu0 %v1682
      %2671 = vmatprep.subr.mxu0 0.0
      %2672 = vmatpush1.msra.mxu0 %v1683
      %2673 = vmatprep.subr.mxu0 0.0
      %2674 = vmatpush1.msra.mxu0 %v1684
      %2675 = vmatprep.subr.mxu0 0.0
      %2676 = vmatpush1.msra.mxu0 %v1685
      %2677 = vmatprep.subr.mxu0 0.0
      %2678 = vmatpush1.msra.mxu0 %v1686
      %2679 = vmatprep.subr.mxu0 0.0
      %2680 = vmatpush1.msra.mxu0 %v1687
      %2681 = vmatprep.subr.mxu0 0.0
      %2682 = vmatpush1.msra.mxu0 %v1688
      %2683 = vmatprep.subr.mxu0 0.0
      %2684 = vmatpush1.msra.mxu0 %v1689
      %2685 = vmatprep.subr.mxu0 0.0
      %2686 = vmatpush1.msra.mxu0 %v1690
      %2687 = vmatprep.subr.mxu0 0.0
      %2688 = vmatpush1.msra.mxu0 %v1691
      %2689 = vmatprep.subr.mxu0 0.0
      %2690 = vmatpush1.msra.mxu0 %v1692
      %2691 = vmatprep.subr.mxu0 0.0
      %2692 = vmatpush1.msra.mxu0 %v1693
      %2693 = vmatprep.subr.mxu0 0.0
      %2694 = vmatpush1.msra.mxu0 %v1694
      %2695 = vmatprep.subr.mxu0 0.0
      %2696 = vmatpush1.msra.mxu0 %v1695
      %2697 = vmatprep.subr.mxu0 0.0
      %2698 = vmatpush1.msra.mxu0 %v1696
      %2699 = vmatprep.subr.mxu0 0.0
      %2700 = vmatpush1.msra.mxu0 %v1697
      %2701 = vmatprep.subr.mxu0 0.0
      %2702 = vmatpush1.msra.mxu0 %v1698
      %2703 = vmatprep.subr.mxu0 0.0
      %2704 = vmatpush1.msra.mxu0 %v1699
      %2705 = vmatprep.subr.mxu0 0.0
      %2706 = vmatpush1.msra.mxu0 %v1700
      %2707 = vmatprep.subr.mxu0 0.0
      %2708 = vmatpush1.msra.mxu0 %v1701
      %2709 = vmatprep.subr.mxu0 0.0
      %2710 = vmatpush1.msra.mxu0 %v1702
      %2711 = vmatprep.subr.mxu0 0.0
      %2712 = vmatpush1.msra.mxu0 %v1703
      %2713 = vmatprep.subr.mxu0 0.0
      %2714 = vmatpush1.msra.mxu0 %v1704
      %2715 = vmatprep.subr.mxu0 0.0
      %2716 = vmatpush1.msra.mxu0 %v1705
      %2717 = vmatprep.subr.mxu0 0.0
      %2718 = vmatpush1.msra.mxu0 %v1706
      %2719 = vmatprep.subr.mxu0 0.0
      %2720 = vmatpush1.msra.mxu0 %v1707
      %2721 = vmatprep.subr.mxu0 0.0
      %2722 = vmatpush1.msra.mxu0 %v1708
      %2723 = vmatprep.subr.mxu0 0.0
      %2724 = vmatpush1.msra.mxu0 %v1709
      %2725 = vmatprep.subr.mxu0 0.0
      %2726 = vmatpush1.msra.mxu0 %v1710
      %2727 = vmatprep.subr.mxu0 0.0
      %2728 = vmatpush1.msra.mxu0 %v1711
      %2729 = vmatprep.subr.mxu0 0.0
      %2730 = vmatpush1.msra.mxu0 %v1712
      %2731 = vmatprep.mubr.f32.mxu0 %v1007
      %2732 = vmatmul.mubr.f32.gmra.mrb[0].mxu0 %v975
      %v2733 = vpop.f32.mrb[0].mxu0
      %v2734 = vadd.f32 %v2509, %v2733
      %v2735 = vpop.f32.mrb[0].mxu0
      %2736 = vmatprep.mubr.f32.mxu0 %v1008
      %2737 = vmatmul.mubr.f32.gmra.mrb[0].mxu0 %v976
      %v2738 = vpop.f32.mrb[0].mxu0
      %v2739 = vadd.f32 %v2514, %v2738
      %v2740 = vpop.f32.mrb[0].mxu0
      %2741 = vmatprep.mubr.f32.mxu0 %v1009
      %2742 = vmatmul.mubr.f32.gmra.mrb[0].mxu0 %v977
      %v2743 = vpop.f32.mrb[0].mxu0
      %v2744 = vadd.f32 %v2519, %v2743
      %v2745 = vpop.f32.mrb[0].mxu0
      %2746 = vmatprep.mubr.f32.mxu0 %v1010
      %2747 = vmatmul.mubr.f32.gmra.mrb[0].mxu0 %v978
      %v2748 = vpop.f32.mrb[0].mxu0
      %v2749 = vadd.f32 %v2524, %v2748
      %v2750 = vpop.f32.mrb[0].mxu0
      %2751 = vmatprep.mubr.f32.mxu0 %v1011
      %2752 = vmatmul.mubr.f32.gmra.mrb[0].mxu0 %v979
      %v2753 = vpop.f32.mrb[0].mxu0
      %v2754 = vadd.f32 %v2529, %v2753
      %v2755 = vpop.f32.mrb[0].mxu0
      %2756 = vmatprep.mubr.f32.mxu0 %v1012
      %2757 = vmatmul.mubr.f32.gmra.mrb[0].mxu0 %v980
      %v2758 = vpop.f32.mrb[0].mxu0
      %v2759 = vadd.f32 %v2534, %v2758
      %v2760 = vpop.f32.mrb[0].mxu0
      %2761 = vmatprep.mubr.f32.mxu0 %v1013
      %2762 = vmatmul.mubr.f32.gmra.mrb[0].mxu0 %v981
      %v2763 = vpop.f32.mrb[0].mxu0
      %v2764 = vadd.f32 %v2539, %v2763
      %v2765 = vpop.f32.mrb[0].mxu0
      %2766 = vmatprep.mubr.f32.mxu0 %v1014
      %2767 = vmatmul.mubr.f32.gmra.mrb[0].mxu0 %v982
      %v2768 = vpop.f32.mrb[0].mxu0
      %v2769 = vadd.f32 %v2544, %v2768
      %v2770 = vpop.f32.mrb[0].mxu0
      %2771 = vmatprep.mubr.f32.mxu0 %v1015
      %2772 = vmatmul.mubr.f32.gmra.mrb[0].mxu0 %v983
      %v2773 = vpop.f32.mrb[0].mxu0
      %v2774 = vadd.f32 %v2549, %v2773
      %v2775 = vpop.f32.mrb[0].mxu0
      %2776 = vmatprep.mubr.f32.mxu0 %v1016
      %2777 = vmatmul.mubr.f32.gmra.mrb[0].mxu0 %v984
      %v2778 = vpop.f32.mrb[0].mxu0
      %v2779 = vadd.f32 %v2554, %v2778
      %v2780 = vpop.f32.mrb[0].mxu0
      %2781 = vmatprep.mubr.f32.mxu0 %v1017
      %2782 = vmatmul.mubr.f32.gmra.mrb[0].mxu0 %v985
      %v2783 = vpop.f32.mrb[0].mxu0
      %v2784 = vadd.f32 %v2559, %v2783
      %v2785 = vpop.f32.mrb[0].mxu0
      %2786 = vmatprep.mubr.f32.mxu0 %v1018
      %2787 = vmatmul.mubr.f32.gmra.mrb[0].mxu0 %v986
      %v2788 = vpop.f32.mrb[0].mxu0
      %v2789 = vadd.f32 %v2564, %v2788
      %v2790 = vpop.f32.mrb[0].mxu0
      %2791 = vmatprep.mubr.f32.mxu0 %v1019
      %2792 = vmatmul.mubr.f32.gmra.mrb[0].mxu0 %v987
      %v2793 = vpop.f32.mrb[0].mxu0
      %v2794 = vadd.f32 %v2569, %v2793
      %v2795 = vpop.f32.mrb[0].mxu0
      %2796 = vmatprep.mubr.f32.mxu0 %v1020
      %2797 = vmatmul.mubr.f32.gmra.mrb[0].mxu0 %v988
      %v2798 = vpop.f32.mrb[0].mxu0
      %v2799 = vadd.f32 %v2574, %v2798
      %v2800 = vpop.f32.mrb[0].mxu0
      %2801 = vmatprep.mubr.f32.mxu0 %v1021
      %2802 = vmatmul.mubr.f32.gmra.mrb[0].mxu0 %v989
      %v2803 = vpop.f32.mrb[0].mxu0
      %v2804 = vadd.f32 %v2579, %v2803
      %v2805 = vpop.f32.mrb[0].mxu0
      %2806 = vmatprep.mubr.f32.mxu0 %v1022
      %2807 = vmatmul.mubr.f32.gmra.mrb[0].mxu0 %v990
      %v2808 = vpop.f32.mrb[0].mxu0
      %v2809 = vadd.f32 %v2584, %v2808
      %v2810 = vpop.f32.mrb[0].mxu0
      %2811 = vmatprep.mubr.f32.mxu0 %v1023
      %2812 = vmatmul.mubr.f32.gmra.mrb[0].mxu0 %v991
      %v2813 = vpop.f32.mrb[0].mxu0
      %v2814 = vadd.f32 %v2589, %v2813
      %v2815 = vpop.f32.mrb[0].mxu0
      %2816 = vmatprep.mubr.f32.mxu0 %v1024
      %2817 = vmatmul.mubr.f32.gmra.mrb[0].mxu0 %v992
      %v2818 = vpop.f32.mrb[0].mxu0
      %v2819 = vadd.f32 %v2594, %v2818
      %v2820 = vpop.f32.mrb[0].mxu0
      %2821 = vmatprep.mubr.f32.mxu0 %v1025
      %2822 = vmatmul.mubr.f32.gmra.mrb[0].mxu0 %v993
      %v2823 = vpop.f32.mrb[0].mxu0
      %v2824 = vadd.f32 %v2599, %v2823
      %v2825 = vpop.f32.mrb[0].mxu0
      %2826 = vmatprep.mubr.f32.mxu0 %v1026
      %2827 = vmatmul.mubr.f32.gmra.mrb[0].mxu0 %v994
      %v2828 = vpop.f32.mrb[0].mxu0
      %v2829 = vadd.f32 %v2604, %v2828
      %v2830 = vpop.f32.mrb[0].mxu0
      %2831 = vmatprep.mubr.f32.mxu0 %v1027
      %2832 = vmatmul.mubr.f32.gmra.mrb[0].mxu0 %v995
      %v2833 = vpop.f32.mrb[0].mxu0
      %v2834 = vadd.f32 %v2609, %v2833
      %v2835 = vpop.f32.mrb[0].mxu0
      %2836 = vmatprep.mubr.f32.mxu0 %v1028
      %2837 = vmatmul.mubr.f32.gmra.mrb[0].mxu0 %v996
      %v2838 = vpop.f32.mrb[0].mxu0
      %v2839 = vadd.f32 %v2614, %v2838
      %v2840 = vpop.f32.mrb[0].mxu0
      %2841 = vmatprep.mubr.f32.mxu0 %v1029
      %2842 = vmatmul.mubr.f32.gmra.mrb[0].mxu0 %v997
      %v2843 = vpop.f32.mrb[0].mxu0
      %v2844 = vadd.f32 %v2619, %v2843
      %v2845 = vpop.f32.mrb[0].mxu0
      %2846 = vmatprep.mubr.f32.mxu0 %v1030
      %2847 = vmatmul.mubr.f32.gmra.mrb[0].mxu0 %v998
      %v2848 = vpop.f32.mrb[0].mxu0
      %v2849 = vadd.f32 %v2624, %v2848
      %v2850 = vpop.f32.mrb[0].mxu0
      %2851 = vmatprep.mubr.f32.mxu0 %v1031
      %2852 = vmatmul.mubr.f32.gmra.mrb[0].mxu0 %v999
      %v2853 = vpop.f32.mrb[0].mxu0
      %v2854 = vadd.f32 %v2629, %v2853
      %v2855 = vpop.f32.mrb[0].mxu0
      %2856 = vmatprep.mubr.f32.mxu0 %v1032
      %2857 = vmatmul.mubr.f32.gmra.mrb[0].mxu0 %v1000
      %v2858 = vpop.f32.mrb[0].mxu0
      %v2859 = vadd.f32 %v2634, %v2858
      %v2860 = vpop.f32.mrb[0].mxu0
      %2861 = vmatprep.mubr.f32.mxu0 %v1033
      %2862 = vmatmul.mubr.f32.gmra.mrb[0].mxu0 %v1001
      %v2863 = vpop.f32.mrb[0].mxu0
      %v2864 = vadd.f32 %v2639, %v2863
      %v2865 = vpop.f32.mrb[0].mxu0
      %2866 = vmatprep.mubr.f32.mxu0 %v1034
      %2867 = vmatmul.mubr.f32.gmra.mrb[0].mxu0 %v1002
      %v2868 = vpop.f32.mrb[0].mxu0
      %v2869 = vadd.f32 %v2644, %v2868
      %v2870 = vpop.f32.mrb[0].mxu0
      %2871 = vmatprep.mubr.f32.mxu0 %v1035
      %2872 = vmatmul.mubr.f32.gmra.mrb[0].mxu0 %v1003
      %v2873 = vpop.f32.mrb[0].mxu0
      %v2874 = vadd.f32 %v2649, %v2873
      %v2875 = vpop.f32.mrb[0].mxu0
      %2876 = vmatprep.mubr.f32.mxu0 %v1036
      %2877 = vmatmul.mubr.f32.gmra.mrb[0].mxu0 %v1004
      %v2878 = vpop.f32.mrb[0].mxu0
      %v2879 = vadd.f32 %v2654, %v2878
      %v2880 = vpop.f32.mrb[0].mxu0
      %2881 = vmatprep.mubr.f32.mxu0 %v1037
      %2882 = vmatmul.mubr.f32.gmra.mrb[0].mxu0 %v1005
      %v2883 = vpop.f32.mrb[0].mxu0
      %v2884 = vadd.f32 %v2659, %v2883
      %v2885 = vpop.f32.mrb[0].mxu0
      %2886 = vmatprep.mubr.f32.mxu0 %v1038
      %2887 = vmatmul.mubr.f32.gmra.mrb[0].mxu0 %v1006
      %v2888 = vpop.f32.mrb[0].mxu0
      %v2889 = vadd.f32 %v2664, %v2888
      %v2890 = vpop.f32.mrb[0].mxu0
      %2891 = vdwg.mxu0
      %2892 = vmatprep.subr.mxu0 0.0
      %2893 = vmatpush1.msra.mxu0 %v1713
      %2894 = vmatprep.subr.mxu0 0.0
      %2895 = vmatpush1.msra.mxu0 %v1714
      %2896 = vmatprep.subr.mxu0 0.0
      %2897 = vmatpush1.msra.mxu0 %v1715
      %2898 = vmatprep.subr.mxu0 0.0
      %2899 = vmatpush1.msra.mxu0 %v1716
      %2900 = vmatprep.subr.mxu0 0.0
      %2901 = vmatpush1.msra.mxu0 %v1717
      %2902 = vmatprep.subr.mxu0 0.0
      %2903 = vmatpush1.msra.mxu0 %v1718
      %2904 = vmatprep.subr.mxu0 0.0
      %2905 = vmatpush1.msra.mxu0 %v1719
      %2906 = vmatprep.subr.mxu0 0.0
      %2907 = vmatpush1.msra.mxu0 %v1720
      %2908 = vmatprep.subr.mxu0 0.0
      %2909 = vmatpush1.msra.mxu0 %v1721
      %2910 = vmatprep.subr.mxu0 0.0
      %2911 = vmatpush1.msra.mxu0 %v1722
      %2912 = vmatprep.subr.mxu0 0.0
      %2913 = vmatpush1.msra.mxu0 %v1723
      %2914 = vmatprep.subr.mxu0 0.0
      %2915 = vmatpush1.msra.mxu0 %v1724
      %2916 = vmatprep.subr.mxu0 0.0
      %2917 = vmatpush1.msra.mxu0 %v1725
      %2918 = vmatprep.subr.mxu0 0.0
      %2919 = vmatpush1.msra.mxu0 %v1726
      %2920 = vmatprep.subr.mxu0 0.0
      %2921 = vmatpush1.msra.mxu0 %v1727
      %2922 = vmatprep.subr.mxu0 0.0
      %2923 = vmatpush1.msra.mxu0 %v1728
      %2924 = vmatprep.subr.mxu0 0.0
      %2925 = vmatpush1.msra.mxu0 %v1729
      %2926 = vmatprep.subr.mxu0 0.0
      %2927 = vmatpush1.msra.mxu0 %v1730
      %2928 = vmatprep.subr.mxu0 0.0
      %2929 = vmatpush1.msra.mxu0 %v1731
      %2930 = vmatprep.subr.mxu0 0.0
      %2931 = vmatpush1.msra.mxu0 %v1732
      %2932 = vmatprep.subr.mxu0 0.0
      %2933 = vmatpush1.msra.mxu0 %v1733
      %2934 = vmatprep.subr.mxu0 0.0
      %2935 = vmatpush1.msra.mxu0 %v1734
      %2936 = vmatprep.subr.mxu0 0.0
      %2937 = vmatpush1.msra.mxu0 %v1735
      %2938 = vmatprep.subr.mxu0 0.0
      %2939 = vmatpush1.msra.mxu0 %v1736
      %2940 = vmatprep.subr.mxu0 0.0
      %2941 = vmatpush1.msra.mxu0 %v1737
      %2942 = vmatprep.subr.mxu0 0.0
      %2943 = vmatpush1.msra.mxu0 %v1738
      %2944 = vmatprep.subr.mxu0 0.0
      %2945 = vmatpush1.msra.mxu0 %v1739
      %2946 = vmatprep.subr.mxu0 0.0
      %2947 = vmatpush1.msra.mxu0 %v1740
      %2948 = vmatprep.subr.mxu0 0.0
      %2949 = vmatpush1.msra.mxu0 %v1741
      %2950 = vmatprep.subr.mxu0 0.0
      %2951 = vmatpush1.msra.mxu0 %v1742
      %2952 = vmatprep.subr.mxu0 0.0
      %2953 = vmatpush1.msra.mxu0 %v1743
      %2954 = vmatprep.subr.mxu0 0.0
      %2955 = vmatpush1.msra.mxu0 %v1744
      %2956 = vmatprep.mubr.f32.mxu0 %v1071
      %2957 = vmatmul.mubr.f32.gmra.mrb[0].mxu0 %v1039
      %v2958 = vpop.f32.mrb[0].mxu0
      %v2959 = vadd.f32 %v2734, %v2958
      %v2960 = vpop.f32.mrb[0].mxu0
      %2961 = vmatprep.mubr.f32.mxu0 %v1072
      %2962 = vmatmul.mubr.f32.gmra.mrb[0].mxu0 %v1040
      %v2963 = vpop.f32.mrb[0].mxu0
      %v2964 = vadd.f32 %v2739, %v2963
      %v2965 = vpop.f32.mrb[0].mxu0
      %2966 = vmatprep.mubr.f32.mxu0 %v1073
      %2967 = vmatmul.mubr.f32.gmra.mrb[0].mxu0 %v1041
      %v2968 = vpop.f32.mrb[0].mxu0
      %v2969 = vadd.f32 %v2744, %v2968
      %v2970 = vpop.f32.mrb[0].mxu0
      %2971 = vmatprep.mubr.f32.mxu0 %v1074
      %2972 = vmatmul.mubr.f32.gmra.mrb[0].mxu0 %v1042
      %v2973 = vpop.f32.mrb[0].mxu0
      %v2974 = vadd.f32 %v2749, %v2973
      %v2975 = vpop.f32.mrb[0].mxu0
      %2976 = vmatprep.mubr.f32.mxu0 %v1075
      %2977 = vmatmul.mubr.f32.gmra.mrb[0].mxu0 %v1043
      %v2978 = vpop.f32.mrb[0].mxu0
      %v2979 = vadd.f32 %v2754, %v2978
      %v2980 = vpop.f32.mrb[0].mxu0
      %2981 = vmatprep.mubr.f32.mxu0 %v1076
      %2982 = vmatmul.mubr.f32.gmra.mrb[0].mxu0 %v1044
      %v2983 = vpop.f32.mrb[0].mxu0
      %v2984 = vadd.f32 %v2759, %v2983
      %v2985 = vpop.f32.mrb[0].mxu0
      %2986 = vmatprep.mubr.f32.mxu0 %v1077
      %2987 = vmatmul.mubr.f32.gmra.mrb[0].mxu0 %v1045
      %v2988 = vpop.f32.mrb[0].mxu0
      %v2989 = vadd.f32 %v2764, %v2988
      %v2990 = vpop.f32.mrb[0].mxu0
      %2991 = vmatprep.mubr.f32.mxu0 %v1078
      %2992 = vmatmul.mubr.f32.gmra.mrb[0].mxu0 %v1046
      %v2993 = vpop.f32.mrb[0].mxu0
      %v2994 = vadd.f32 %v2769, %v2993
      %v2995 = vpop.f32.mrb[0].mxu0
      %2996 = vmatprep.mubr.f32.mxu0 %v1079
      %2997 = vmatmul.mubr.f32.gmra.mrb[0].mxu0 %v1047
      %v2998 = vpop.f32.mrb[0].mxu0
      %v2999 = vadd.f32 %v2774, %v2998
      %v3000 = vpop.f32.mrb[0].mxu0
      %3001 = vmatprep.mubr.f32.mxu0 %v1080
      %3002 = vmatmul.mubr.f32.gmra.mrb[0].mxu0 %v1048
      %v3003 = vpop.f32.mrb[0].mxu0
      %v3004 = vadd.f32 %v2779, %v3003
      %v3005 = vpop.f32.mrb[0].mxu0
      %3006 = vmatprep.mubr.f32.mxu0 %v1081
      %3007 = vmatmul.mubr.f32.gmra.mrb[0].mxu0 %v1049
      %v3008 = vpop.f32.mrb[0].mxu0
      %v3009 = vadd.f32 %v2784, %v3008
      %v3010 = vpop.f32.mrb[0].mxu0
      %3011 = vmatprep.mubr.f32.mxu0 %v1082
      %3012 = vmatmul.mubr.f32.gmra.mrb[0].mxu0 %v1050
      %v3013 = vpop.f32.mrb[0].mxu0
      %v3014 = vadd.f32 %v2789, %v3013
      %v3015 = vpop.f32.mrb[0].mxu0
      %3016 = vmatprep.mubr.f32.mxu0 %v1083
      %3017 = vmatmul.mubr.f32.gmra.mrb[0].mxu0 %v1051
      %v3018 = vpop.f32.mrb[0].mxu0
      %v3019 = vadd.f32 %v2794, %v3018
      %v3020 = vpop.f32.mrb[0].mxu0
      %3021 = vmatprep.mubr.f32.mxu0 %v1084
      %3022 = vmatmul.mubr.f32.gmra.mrb[0].mxu0 %v1052
      %v3023 = vpop.f32.mrb[0].mxu0
      %v3024 = vadd.f32 %v2799, %v3023
      %v3025 = vpop.f32.mrb[0].mxu0
      %3026 = vmatprep.mubr.f32.mxu0 %v1085
      %3027 = vmatmul.mubr.f32.gmra.mrb[0].mxu0 %v1053
      %v3028 = vpop.f32.mrb[0].mxu0
      %v3029 = vadd.f32 %v2804, %v3028
      %v3030 = vpop.f32.mrb[0].mxu0
      %3031 = vmatprep.mubr.f32.mxu0 %v1086
      %3032 = vmatmul.mubr.f32.gmra.mrb[0].mxu0 %v1054
      %v3033 = vpop.f32.mrb[0].mxu0
      %v3034 = vadd.f32 %v2809, %v3033
      %v3035 = vpop.f32.mrb[0].mxu0
      %3036 = vmatprep.mubr.f32.mxu0 %v1087
      %3037 = vmatmul.mubr.f32.gmra.mrb[0].mxu0 %v1055
      %v3038 = vpop.f32.mrb[0].mxu0
      %v3039 = vadd.f32 %v2814, %v3038
      %v3040 = vpop.f32.mrb[0].mxu0
      %3041 = vmatprep.mubr.f32.mxu0 %v1088
      %3042 = vmatmul.mubr.f32.gmra.mrb[0].mxu0 %v1056
      %v3043 = vpop.f32.mrb[0].mxu0
      %v3044 = vadd.f32 %v2819, %v3043
      %v3045 = vpop.f32.mrb[0].mxu0
      %3046 = vmatprep.mubr.f32.mxu0 %v1089
      %3047 = vmatmul.mubr.f32.gmra.mrb[0].mxu0 %v1057
      %v3048 = vpop.f32.mrb[0].mxu0
      %v3049 = vadd.f32 %v2824, %v3048
      %v3050 = vpop.f32.mrb[0].mxu0
      %3051 = vmatprep.mubr.f32.mxu0 %v1090
      %3052 = vmatmul.mubr.f32.gmra.mrb[0].mxu0 %v1058
      %v3053 = vpop.f32.mrb[0].mxu0
      %v3054 = vadd.f32 %v2829, %v3053
      %v3055 = vpop.f32.mrb[0].mxu0
      %3056 = vmatprep.mubr.f32.mxu0 %v1091
      %3057 = vmatmul.mubr.f32.gmra.mrb[0].mxu0 %v1059
      %v3058 = vpop.f32.mrb[0].mxu0
      %v3059 = vadd.f32 %v2834, %v3058
      %v3060 = vpop.f32.mrb[0].mxu0
      %3061 = vmatprep.mubr.f32.mxu0 %v1092
      %3062 = vmatmul.mubr.f32.gmra.mrb[0].mxu0 %v1060
      %v3063 = vpop.f32.mrb[0].mxu0
      %v3064 = vadd.f32 %v2839, %v3063
      %v3065 = vpop.f32.mrb[0].mxu0
      %3066 = vmatprep.mubr.f32.mxu0 %v1093
      %3067 = vmatmul.mubr.f32.gmra.mrb[0].mxu0 %v1061
      %v3068 = vpop.f32.mrb[0].mxu0
      %v3069 = vadd.f32 %v2844, %v3068
      %v3070 = vpop.f32.mrb[0].mxu0
      %3071 = vmatprep.mubr.f32.mxu0 %v1094
      %3072 = vmatmul.mubr.f32.gmra.mrb[0].mxu0 %v1062
      %v3073 = vpop.f32.mrb[0].mxu0
      %v3074 = vadd.f32 %v2849, %v3073
      %v3075 = vpop.f32.mrb[0].mxu0
      %3076 = vmatprep.mubr.f32.mxu0 %v1095
      %3077 = vmatmul.mubr.f32.gmra.mrb[0].mxu0 %v1063
      %v3078 = vpop.f32.mrb[0].mxu0
      %v3079 = vadd.f32 %v2854, %v3078
      %v3080 = vpop.f32.mrb[0].mxu0
      %3081 = vmatprep.mubr.f32.mxu0 %v1096
      %3082 = vmatmul.mubr.f32.gmra.mrb[0].mxu0 %v1064
      %v3083 = vpop.f32.mrb[0].mxu0
      %v3084 = vadd.f32 %v2859, %v3083
      %v3085 = vpop.f32.mrb[0].mxu0
      %3086 = vmatprep.mubr.f32.mxu0 %v1097
      %3087 = vmatmul.mubr.f32.gmra.mrb[0].mxu0 %v1065
      %v3088 = vpop.f32.mrb[0].mxu0
      %v3089 = vadd.f32 %v2864, %v3088
      %v3090 = vpop.f32.mrb[0].mxu0
      %3091 = vmatprep.mubr.f32.mxu0 %v1098
      %3092 = vmatmul.mubr.f32.gmra.mrb[0].mxu0 %v1066
      %v3093 = vpop.f32.mrb[0].mxu0
      %v3094 = vadd.f32 %v2869, %v3093
      %v3095 = vpop.f32.mrb[0].mxu0
      %3096 = vmatprep.mubr.f32.mxu0 %v1099
      %3097 = vmatmul.mubr.f32.gmra.mrb[0].mxu0 %v1067
      %v3098 = vpop.f32.mrb[0].mxu0
      %v3099 = vadd.f32 %v2874, %v3098
      %v3100 = vpop.f32.mrb[0].mxu0
      %3101 = vmatprep.mubr.f32.mxu0 %v1100
      %3102 = vmatmul.mubr.f32.gmra.mrb[0].mxu0 %v1068
      %v3103 = vpop.f32.mrb[0].mxu0
      %v3104 = vadd.f32 %v2879, %v3103
      %v3105 = vpop.f32.mrb[0].mxu0
      %3106 = vmatprep.mubr.f32.mxu0 %v1101
      %3107 = vmatmul.mubr.f32.gmra.mrb[0].mxu0 %v1069
      %v3108 = vpop.f32.mrb[0].mxu0
      %v3109 = vadd.f32 %v2884, %v3108
      %v3110 = vpop.f32.mrb[0].mxu0
      %3111 = vmatprep.mubr.f32.mxu0 %v1102
      %3112 = vmatmul.mubr.f32.gmra.mrb[0].mxu0 %v1070
      %v3113 = vpop.f32.mrb[0].mxu0
      %v3114 = vadd.f32 %v2889, %v3113
      %v3115 = vpop.f32.mrb[0].mxu0
      %3116 = vdwg.mxu0
      %3117 = vmatprep.subr.mxu0 0.0
      %3118 = vmatpush1.msra.mxu0 %v1745
      %3119 = vmatprep.subr.mxu0 0.0
      %3120 = vmatpush1.msra.mxu0 %v1746
      %3121 = vmatprep.subr.mxu0 0.0
      %3122 = vmatpush1.msra.mxu0 %v1747
      %3123 = vmatprep.subr.mxu0 0.0
      %3124 = vmatpush1.msra.mxu0 %v1748
      %3125 = vmatprep.subr.mxu0 0.0
      %3126 = vmatpush1.msra.mxu0 %v1749
      %3127 = vmatprep.subr.mxu0 0.0
      %3128 = vmatpush1.msra.mxu0 %v1750
      %3129 = vmatprep.subr.mxu0 0.0
      %3130 = vmatpush1.msra.mxu0 %v1751
      %3131 = vmatprep.subr.mxu0 0.0
      %3132 = vmatpush1.msra.mxu0 %v1752
      %3133 = vmatprep.subr.mxu0 0.0
      %3134 = vmatpush1.msra.mxu0 %v1753
      %3135 = vmatprep.subr.mxu0 0.0
      %3136 = vmatpush1.msra.mxu0 %v1754
      %3137 = vmatprep.subr.mxu0 0.0
      %3138 = vmatpush1.msra.mxu0 %v1755
      %3139 = vmatprep.subr.mxu0 0.0
      %3140 = vmatpush1.msra.mxu0 %v1756
      %3141 = vmatprep.subr.mxu0 0.0
      %3142 = vmatpush1.msra.mxu0 %v1757
      %3143 = vmatprep.subr.mxu0 0.0
      %3144 = vmatpush1.msra.mxu0 %v1758
      %3145 = vmatprep.subr.mxu0 0.0
      %3146 = vmatpush1.msra.mxu0 %v1759
      %3147 = vmatprep.subr.mxu0 0.0
      %3148 = vmatpush1.msra.mxu0 %v1760
      %3149 = vmatprep.subr.mxu0 0.0
      %3150 = vmatpush1.msra.mxu0 %v1761
      %3151 = vmatprep.subr.mxu0 0.0
      %3152 = vmatpush1.msra.mxu0 %v1762
      %3153 = vmatprep.subr.mxu0 0.0
      %3154 = vmatpush1.msra.mxu0 %v1763
      %3155 = vmatprep.subr.mxu0 0.0
      %3156 = vmatpush1.msra.mxu0 %v1764
      %3157 = vmatprep.subr.mxu0 0.0
      %3158 = vmatpush1.msra.mxu0 %v1765
      %3159 = vmatprep.subr.mxu0 0.0
      %3160 = vmatpush1.msra.mxu0 %v1766
      %3161 = vmatprep.subr.mxu0 0.0
      %3162 = vmatpush1.msra.mxu0 %v1767
      %3163 = vmatprep.subr.mxu0 0.0
      %3164 = vmatpush1.msra.mxu0 %v1768
      %3165 = vmatprep.subr.mxu0 0.0
      %3166 = vmatpush1.msra.mxu0 %v1769
      %3167 = vmatprep.subr.mxu0 0.0
      %3168 = vmatpush1.msra.mxu0 %v1770
      %3169 = vmatprep.subr.mxu0 0.0
      %3170 = vmatpush1.msra.mxu0 %v1771
      %3171 = vmatprep.subr.mxu0 0.0
      %3172 = vmatpush1.msra.mxu0 %v1772
      %3173 = vmatprep.subr.mxu0 0.0
      %3174 = vmatpush1.msra.mxu0 %v1773
      %3175 = vmatprep.subr.mxu0 0.0
      %3176 = vmatpush1.msra.mxu0 %v1774
      %3177 = vmatprep.subr.mxu0 0.0
      %3178 = vmatpush1.msra.mxu0 %v1775
      %3179 = vmatprep.subr.mxu0 0.0
      %3180 = vmatpush1.msra.mxu0 %v1776
      %3181 = vmatprep.mubr.f32.mxu0 %v1135
      %3182 = vmatmul.mubr.f32.gmra.mrb[0].mxu0 %v1103
      %v3183 = vpop.f32.mrb[0].mxu0
      %v3184 = vadd.f32 %v2959, %v3183
      %v3185 = vpop.f32.mrb[0].mxu0
      %3186 = vmatprep.mubr.f32.mxu0 %v1136
      %3187 = vmatmul.mubr.f32.gmra.mrb[0].mxu0 %v1104
      %v3188 = vpop.f32.mrb[0].mxu0
      %v3189 = vadd.f32 %v2964, %v3188
      %v3190 = vpop.f32.mrb[0].mxu0
      %3191 = vmatprep.mubr.f32.mxu0 %v1137
      %3192 = vmatmul.mubr.f32.gmra.mrb[0].mxu0 %v1105
      %v3193 = vpop.f32.mrb[0].mxu0
      %v3194 = vadd.f32 %v2969, %v3193
      %v3195 = vpop.f32.mrb[0].mxu0
      %3196 = vmatprep.mubr.f32.mxu0 %v1138
      %3197 = vmatmul.mubr.f32.gmra.mrb[0].mxu0 %v1106
      %v3198 = vpop.f32.mrb[0].mxu0
      %v3199 = vadd.f32 %v2974, %v3198
      %v3200 = vpop.f32.mrb[0].mxu0
      %3201 = vmatprep.mubr.f32.mxu0 %v1139
      %3202 = vmatmul.mubr.f32.gmra.mrb[0].mxu0 %v1107
      %v3203 = vpop.f32.mrb[0].mxu0
      %v3204 = vadd.f32 %v2979, %v3203
      %v3205 = vpop.f32.mrb[0].mxu0
      %3206 = vmatprep.mubr.f32.mxu0 %v1140
      %3207 = vmatmul.mubr.f32.gmra.mrb[0].mxu0 %v1108
      %v3208 = vpop.f32.mrb[0].mxu0
      %v3209 = vadd.f32 %v2984, %v3208
      %v3210 = vpop.f32.mrb[0].mxu0
      %3211 = vmatprep.mubr.f32.mxu0 %v1141
      %3212 = vmatmul.mubr.f32.gmra.mrb[0].mxu0 %v1109
      %v3213 = vpop.f32.mrb[0].mxu0
      %v3214 = vadd.f32 %v2989, %v3213
      %v3215 = vpop.f32.mrb[0].mxu0
      %3216 = vmatprep.mubr.f32.mxu0 %v1142
      %3217 = vmatmul.mubr.f32.gmra.mrb[0].mxu0 %v1110
      %v3218 = vpop.f32.mrb[0].mxu0
      %v3219 = vadd.f32 %v2994, %v3218
      %v3220 = vpop.f32.mrb[0].mxu0
      %3221 = vmatprep.mubr.f32.mxu0 %v1143
      %3222 = vmatmul.mubr.f32.gmra.mrb[0].mxu0 %v1111
      %v3223 = vpop.f32.mrb[0].mxu0
      %v3224 = vadd.f32 %v2999, %v3223
      %v3225 = vpop.f32.mrb[0].mxu0
      %3226 = vmatprep.mubr.f32.mxu0 %v1144
      %3227 = vmatmul.mubr.f32.gmra.mrb[0].mxu0 %v1112
      %v3228 = vpop.f32.mrb[0].mxu0
      %v3229 = vadd.f32 %v3004, %v3228
      %v3230 = vpop.f32.mrb[0].mxu0
      %3231 = vmatprep.mubr.f32.mxu0 %v1145
      %3232 = vmatmul.mubr.f32.gmra.mrb[0].mxu0 %v1113
      %v3233 = vpop.f32.mrb[0].mxu0
      %v3234 = vadd.f32 %v3009, %v3233
      %v3235 = vpop.f32.mrb[0].mxu0
      %3236 = vmatprep.mubr.f32.mxu0 %v1146
      %3237 = vmatmul.mubr.f32.gmra.mrb[0].mxu0 %v1114
      %v3238 = vpop.f32.mrb[0].mxu0
      %v3239 = vadd.f32 %v3014, %v3238
      %v3240 = vpop.f32.mrb[0].mxu0
      %3241 = vmatprep.mubr.f32.mxu0 %v1147
      %3242 = vmatmul.mubr.f32.gmra.mrb[0].mxu0 %v1115
      %v3243 = vpop.f32.mrb[0].mxu0
      %v3244 = vadd.f32 %v3019, %v3243
      %v3245 = vpop.f32.mrb[0].mxu0
      %3246 = vmatprep.mubr.f32.mxu0 %v1148
      %3247 = vmatmul.mubr.f32.gmra.mrb[0].mxu0 %v1116
      %v3248 = vpop.f32.mrb[0].mxu0
      %v3249 = vadd.f32 %v3024, %v3248
      %v3250 = vpop.f32.mrb[0].mxu0
      %3251 = vmatprep.mubr.f32.mxu0 %v1149
      %3252 = vmatmul.mubr.f32.gmra.mrb[0].mxu0 %v1117
      %v3253 = vpop.f32.mrb[0].mxu0
      %v3254 = vadd.f32 %v3029, %v3253
      %v3255 = vpop.f32.mrb[0].mxu0
      %3256 = vmatprep.mubr.f32.mxu0 %v1150
      %3257 = vmatmul.mubr.f32.gmra.mrb[0].mxu0 %v1118
      %v3258 = vpop.f32.mrb[0].mxu0
      %v3259 = vadd.f32 %v3034, %v3258
      %v3260 = vpop.f32.mrb[0].mxu0
      %3261 = vmatprep.mubr.f32.mxu0 %v1151
      %3262 = vmatmul.mubr.f32.gmra.mrb[0].mxu0 %v1119
      %v3263 = vpop.f32.mrb[0].mxu0
      %v3264 = vadd.f32 %v3039, %v3263
      %v3265 = vpop.f32.mrb[0].mxu0
      %3266 = vmatprep.mubr.f32.mxu0 %v1152
      %3267 = vmatmul.mubr.f32.gmra.mrb[0].mxu0 %v1120
      %v3268 = vpop.f32.mrb[0].mxu0
      %v3269 = vadd.f32 %v3044, %v3268
      %v3270 = vpop.f32.mrb[0].mxu0
      %3271 = vmatprep.mubr.f32.mxu0 %v1153
      %3272 = vmatmul.mubr.f32.gmra.mrb[0].mxu0 %v1121
      %v3273 = vpop.f32.mrb[0].mxu0
      %v3274 = vadd.f32 %v3049, %v3273
      %v3275 = vpop.f32.mrb[0].mxu0
      %3276 = vmatprep.mubr.f32.mxu0 %v1154
      %3277 = vmatmul.mubr.f32.gmra.mrb[0].mxu0 %v1122
      %v3278 = vpop.f32.mrb[0].mxu0
      %v3279 = vadd.f32 %v3054, %v3278
      %v3280 = vpop.f32.mrb[0].mxu0
      %3281 = vmatprep.mubr.f32.mxu0 %v1155
      %3282 = vmatmul.mubr.f32.gmra.mrb[0].mxu0 %v1123
      %v3283 = vpop.f32.mrb[0].mxu0
      %v3284 = vadd.f32 %v3059, %v3283
      %v3285 = vpop.f32.mrb[0].mxu0
      %3286 = vmatprep.mubr.f32.mxu0 %v1156
      %3287 = vmatmul.mubr.f32.gmra.mrb[0].mxu0 %v1124
      %v3288 = vpop.f32.mrb[0].mxu0
      %v3289 = vadd.f32 %v3064, %v3288
      %v3290 = vpop.f32.mrb[0].mxu0
      %3291 = vmatprep.mubr.f32.mxu0 %v1157
      %3292 = vmatmul.mubr.f32.gmra.mrb[0].mxu0 %v1125
      %v3293 = vpop.f32.mrb[0].mxu0
      %v3294 = vadd.f32 %v3069, %v3293
      %v3295 = vpop.f32.mrb[0].mxu0
      %3296 = vmatprep.mubr.f32.mxu0 %v1158
      %3297 = vmatmul.mubr.f32.gmra.mrb[0].mxu0 %v1126
      %v3298 = vpop.f32.mrb[0].mxu0
      %v3299 = vadd.f32 %v3074, %v3298
      %v3300 = vpop.f32.mrb[0].mxu0
      %3301 = vmatprep.mubr.f32.mxu0 %v1159
      %3302 = vmatmul.mubr.f32.gmra.mrb[0].mxu0 %v1127
      %v3303 = vpop.f32.mrb[0].mxu0
      %v3304 = vadd.f32 %v3079, %v3303
      %v3305 = vpop.f32.mrb[0].mxu0
      %3306 = vmatprep.mubr.f32.mxu0 %v1160
      %3307 = vmatmul.mubr.f32.gmra.mrb[0].mxu0 %v1128
      %v3308 = vpop.f32.mrb[0].mxu0
      %v3309 = vadd.f32 %v3084, %v3308
      %v3310 = vpop.f32.mrb[0].mxu0
      %3311 = vmatprep.mubr.f32.mxu0 %v1161
      %3312 = vmatmul.mubr.f32.gmra.mrb[0].mxu0 %v1129
      %v3313 = vpop.f32.mrb[0].mxu0
      %v3314 = vadd.f32 %v3089, %v3313
      %v3315 = vpop.f32.mrb[0].mxu0
      %3316 = vmatprep.mubr.f32.mxu0 %v1162
      %3317 = vmatmul.mubr.f32.gmra.mrb[0].mxu0 %v1130
      %v3318 = vpop.f32.mrb[0].mxu0
      %v3319 = vadd.f32 %v3094, %v3318
      %v3320 = vpop.f32.mrb[0].mxu0
      %3321 = vmatprep.mubr.f32.mxu0 %v1163
      %3322 = vmatmul.mubr.f32.gmra.mrb[0].mxu0 %v1131
      %v3323 = vpop.f32.mrb[0].mxu0
      %v3324 = vadd.f32 %v3099, %v3323
      %v3325 = vpop.f32.mrb[0].mxu0
      %3326 = vmatprep.mubr.f32.mxu0 %v1164
      %3327 = vmatmul.mubr.f32.gmra.mrb[0].mxu0 %v1132
      %v3328 = vpop.f32.mrb[0].mxu0
      %v3329 = vadd.f32 %v3104, %v3328
      %v3330 = vpop.f32.mrb[0].mxu0
      %3331 = vmatprep.mubr.f32.mxu0 %v1165
      %3332 = vmatmul.mubr.f32.gmra.mrb[0].mxu0 %v1133
      %v3333 = vpop.f32.mrb[0].mxu0
      %v3334 = vadd.f32 %v3109, %v3333
      %v3335 = vpop.f32.mrb[0].mxu0
      %3336 = vmatprep.mubr.f32.mxu0 %v1166
      %3337 = vmatmul.mubr.f32.gmra.mrb[0].mxu0 %v1134
      %v3338 = vpop.f32.mrb[0].mxu0
      %v3339 = vadd.f32 %v3114, %v3338
      %v3340 = vpop.f32.mrb[0].mxu0
      %3341 = vdwg.mxu0
      %3342 = vmatprep.subr.mxu0 0.0
      %3343 = vmatpush1.msra.mxu0 %v1777
      %3344 = vmatprep.subr.mxu0 0.0
      %3345 = vmatpush1.msra.mxu0 %v1778
      %3346 = vmatprep.subr.mxu0 0.0
      %3347 = vmatpush1.msra.mxu0 %v1779
      %3348 = vmatprep.subr.mxu0 0.0
      %3349 = vmatpush1.msra.mxu0 %v1780
      %3350 = vmatprep.subr.mxu0 0.0
      %3351 = vmatpush1.msra.mxu0 %v1781
      %3352 = vmatprep.subr.mxu0 0.0
      %3353 = vmatpush1.msra.mxu0 %v1782
      %3354 = vmatprep.subr.mxu0 0.0
      %3355 = vmatpush1.msra.mxu0 %v1783
      %3356 = vmatprep.subr.mxu0 0.0
      %3357 = vmatpush1.msra.mxu0 %v1784
      %3358 = vmatprep.subr.mxu0 0.0
      %3359 = vmatpush1.msra.mxu0 %v1785
      %3360 = vmatprep.subr.mxu0 0.0
      %3361 = vmatpush1.msra.mxu0 %v1786
      %3362 = vmatprep.subr.mxu0 0.0
      %3363 = vmatpush1.msra.mxu0 %v1787
      %3364 = vmatprep.subr.mxu0 0.0
      %3365 = vmatpush1.msra.mxu0 %v1788
      %3366 = vmatprep.subr.mxu0 0.0
      %3367 = vmatpush1.msra.mxu0 %v1789
      %3368 = vmatprep.subr.mxu0 0.0
      %3369 = vmatpush1.msra.mxu0 %v1790
      %3370 = vmatprep.subr.mxu0 0.0
      %3371 = vmatpush1.msra.mxu0 %v1791
      %3372 = vmatprep.subr.mxu0 0.0
      %3373 = vmatpush1.msra.mxu0 %v1792
      %3374 = vmatprep.subr.mxu0 0.0
      %3375 = vmatpush1.msra.mxu0 %v1793
      %3376 = vmatprep.subr.mxu0 0.0
      %3377 = vmatpush1.msra.mxu0 %v1794
      %3378 = vmatprep.subr.mxu0 0.0
      %3379 = vmatpush1.msra.mxu0 %v1795
      %3380 = vmatprep.subr.mxu0 0.0
      %3381 = vmatpush1.msra.mxu0 %v1796
      %3382 = vmatprep.subr.mxu0 0.0
      %3383 = vmatpush1.msra.mxu0 %v1797
      %3384 = vmatprep.subr.mxu0 0.0
      %3385 = vmatpush1.msra.mxu0 %v1798
      %3386 = vmatprep.subr.mxu0 0.0
      %3387 = vmatpush1.msra.mxu0 %v1799
      %3388 = vmatprep.subr.mxu0 0.0
      %3389 = vmatpush1.msra.mxu0 %v1800
      %3390 = vmatprep.subr.mxu0 0.0
      %3391 = vmatpush1.msra.mxu0 %v1801
      %3392 = vmatprep.subr.mxu0 0.0
      %3393 = vmatpush1.msra.mxu0 %v1802
      %3394 = vmatprep.subr.mxu0 0.0
      %3395 = vmatpush1.msra.mxu0 %v1803
      %3396 = vmatprep.subr.mxu0 0.0
      %3397 = vmatpush1.msra.mxu0 %v1804
      %3398 = vmatprep.subr.mxu0 0.0
      %3399 = vmatpush1.msra.mxu0 %v1805
      %3400 = vmatprep.subr.mxu0 0.0
      %3401 = vmatpush1.msra.mxu0 %v1806
      %3402 = vmatprep.subr.mxu0 0.0
      %3403 = vmatpush1.msra.mxu0 %v1807
      %3404 = vmatprep.subr.mxu0 0.0
      %3405 = vmatpush1.msra.mxu0 %v1808
      %3406 = vmatprep.mubr.f32.mxu0 %v1199
      %3407 = vmatmul.mubr.f32.gmra.mrb[0].mxu0 %v1167
      %v3408 = vpop.f32.mrb[0].mxu0
      %v3409 = vadd.f32 %v3184, %v3408
      %v3410 = vpop.f32.mrb[0].mxu0
      %3411 = vmatprep.mubr.f32.mxu0 %v1200
      %3412 = vmatmul.mubr.f32.gmra.mrb[0].mxu0 %v1168
      %v3413 = vpop.f32.mrb[0].mxu0
      %v3414 = vadd.f32 %v3189, %v3413
      %v3415 = vpop.f32.mrb[0].mxu0
      %3416 = vmatprep.mubr.f32.mxu0 %v1201
      %3417 = vmatmul.mubr.f32.gmra.mrb[0].mxu0 %v1169
      %v3418 = vpop.f32.mrb[0].mxu0
      %v3419 = vadd.f32 %v3194, %v3418
      %v3420 = vpop.f32.mrb[0].mxu0
      %3421 = vmatprep.mubr.f32.mxu0 %v1202
      %3422 = vmatmul.mubr.f32.gmra.mrb[0].mxu0 %v1170
      %v3423 = vpop.f32.mrb[0].mxu0
      %v3424 = vadd.f32 %v3199, %v3423
      %v3425 = vpop.f32.mrb[0].mxu0
      %3426 = vmatprep.mubr.f32.mxu0 %v1203
      %3427 = vmatmul.mubr.f32.gmra.mrb[0].mxu0 %v1171
      %v3428 = vpop.f32.mrb[0].mxu0
      %v3429 = vadd.f32 %v3204, %v3428
      %v3430 = vpop.f32.mrb[0].mxu0
      %3431 = vmatprep.mubr.f32.mxu0 %v1204
      %3432 = vmatmul.mubr.f32.gmra.mrb[0].mxu0 %v1172
      %v3433 = vpop.f32.mrb[0].mxu0
      %v3434 = vadd.f32 %v3209, %v3433
      %v3435 = vpop.f32.mrb[0].mxu0
      %3436 = vmatprep.mubr.f32.mxu0 %v1205
      %3437 = vmatmul.mubr.f32.gmra.mrb[0].mxu0 %v1173
      %v3438 = vpop.f32.mrb[0].mxu0
      %v3439 = vadd.f32 %v3214, %v3438
      %v3440 = vpop.f32.mrb[0].mxu0
      %3441 = vmatprep.mubr.f32.mxu0 %v1206
      %3442 = vmatmul.mubr.f32.gmra.mrb[0].mxu0 %v1174
      %v3443 = vpop.f32.mrb[0].mxu0
      %v3444 = vadd.f32 %v3219, %v3443
      %v3445 = vpop.f32.mrb[0].mxu0
      %3446 = vmatprep.mubr.f32.mxu0 %v1207
      %3447 = vmatmul.mubr.f32.gmra.mrb[0].mxu0 %v1175
      %v3448 = vpop.f32.mrb[0].mxu0
      %v3449 = vadd.f32 %v3224, %v3448
      %v3450 = vpop.f32.mrb[0].mxu0
      %3451 = vmatprep.mubr.f32.mxu0 %v1208
      %3452 = vmatmul.mubr.f32.gmra.mrb[0].mxu0 %v1176
      %v3453 = vpop.f32.mrb[0].mxu0
      %v3454 = vadd.f32 %v3229, %v3453
      %v3455 = vpop.f32.mrb[0].mxu0
      %3456 = vmatprep.mubr.f32.mxu0 %v1209
      %3457 = vmatmul.mubr.f32.gmra.mrb[0].mxu0 %v1177
      %v3458 = vpop.f32.mrb[0].mxu0
      %v3459 = vadd.f32 %v3234, %v3458
      %v3460 = vpop.f32.mrb[0].mxu0
      %3461 = vmatprep.mubr.f32.mxu0 %v1210
      %3462 = vmatmul.mubr.f32.gmra.mrb[0].mxu0 %v1178
      %v3463 = vpop.f32.mrb[0].mxu0
      %v3464 = vadd.f32 %v3239, %v3463
      %v3465 = vpop.f32.mrb[0].mxu0
      %3466 = vmatprep.mubr.f32.mxu0 %v1211
      %3467 = vmatmul.mubr.f32.gmra.mrb[0].mxu0 %v1179
      %v3468 = vpop.f32.mrb[0].mxu0
      %v3469 = vadd.f32 %v3244, %v3468
      %v3470 = vpop.f32.mrb[0].mxu0
      %3471 = vmatprep.mubr.f32.mxu0 %v1212
      %3472 = vmatmul.mubr.f32.gmra.mrb[0].mxu0 %v1180
      %v3473 = vpop.f32.mrb[0].mxu0
      %v3474 = vadd.f32 %v3249, %v3473
      %v3475 = vpop.f32.mrb[0].mxu0
      %3476 = vmatprep.mubr.f32.mxu0 %v1213
      %3477 = vmatmul.mubr.f32.gmra.mrb[0].mxu0 %v1181
      %v3478 = vpop.f32.mrb[0].mxu0
      %v3479 = vadd.f32 %v3254, %v3478
      %v3480 = vpop.f32.mrb[0].mxu0
      %3481 = vmatprep.mubr.f32.mxu0 %v1214
      %3482 = vmatmul.mubr.f32.gmra.mrb[0].mxu0 %v1182
      %v3483 = vpop.f32.mrb[0].mxu0
      %v3484 = vadd.f32 %v3259, %v3483
      %v3485 = vpop.f32.mrb[0].mxu0
      %3486 = vmatprep.mubr.f32.mxu0 %v1215
      %3487 = vmatmul.mubr.f32.gmra.mrb[0].mxu0 %v1183
      %v3488 = vpop.f32.mrb[0].mxu0
      %v3489 = vadd.f32 %v3264, %v3488
      %v3490 = vpop.f32.mrb[0].mxu0
      %3491 = vmatprep.mubr.f32.mxu0 %v1216
      %3492 = vmatmul.mubr.f32.gmra.mrb[0].mxu0 %v1184
      %v3493 = vpop.f32.mrb[0].mxu0
      %v3494 = vadd.f32 %v3269, %v3493
      %v3495 = vpop.f32.mrb[0].mxu0
      %3496 = vmatprep.mubr.f32.mxu0 %v1217
      %3497 = vmatmul.mubr.f32.gmra.mrb[0].mxu0 %v1185
      %v3498 = vpop.f32.mrb[0].mxu0
      %v3499 = vadd.f32 %v3274, %v3498
      %v3500 = vpop.f32.mrb[0].mxu0
      %3501 = vmatprep.mubr.f32.mxu0 %v1218
      %3502 = vmatmul.mubr.f32.gmra.mrb[0].mxu0 %v1186
      %v3503 = vpop.f32.mrb[0].mxu0
      %v3504 = vadd.f32 %v3279, %v3503
      %v3505 = vpop.f32.mrb[0].mxu0
      %3506 = vmatprep.mubr.f32.mxu0 %v1219
      %3507 = vmatmul.mubr.f32.gmra.mrb[0].mxu0 %v1187
      %v3508 = vpop.f32.mrb[0].mxu0
      %v3509 = vadd.f32 %v3284, %v3508
      %v3510 = vpop.f32.mrb[0].mxu0
      %3511 = vmatprep.mubr.f32.mxu0 %v1220
      %3512 = vmatmul.mubr.f32.gmra.mrb[0].mxu0 %v1188
      %v3513 = vpop.f32.mrb[0].mxu0
      %v3514 = vadd.f32 %v3289, %v3513
      %v3515 = vpop.f32.mrb[0].mxu0
      %3516 = vmatprep.mubr.f32.mxu0 %v1221
      %3517 = vmatmul.mubr.f32.gmra.mrb[0].mxu0 %v1189
      %v3518 = vpop.f32.mrb[0].mxu0
      %v3519 = vadd.f32 %v3294, %v3518
      %v3520 = vpop.f32.mrb[0].mxu0
      %3521 = vmatprep.mubr.f32.mxu0 %v1222
      %3522 = vmatmul.mubr.f32.gmra.mrb[0].mxu0 %v1190
      %v3523 = vpop.f32.mrb[0].mxu0
      %v3524 = vadd.f32 %v3299, %v3523
      %v3525 = vpop.f32.mrb[0].mxu0
      %3526 = vmatprep.mubr.f32.mxu0 %v1223
      %3527 = vmatmul.mubr.f32.gmra.mrb[0].mxu0 %v1191
      %v3528 = vpop.f32.mrb[0].mxu0
      %v3529 = vadd.f32 %v3304, %v3528
      %v3530 = vpop.f32.mrb[0].mxu0
      %3531 = vmatprep.mubr.f32.mxu0 %v1224
      %3532 = vmatmul.mubr.f32.gmra.mrb[0].mxu0 %v1192
      %v3533 = vpop.f32.mrb[0].mxu0
      %v3534 = vadd.f32 %v3309, %v3533
      %v3535 = vpop.f32.mrb[0].mxu0
      %3536 = vmatprep.mubr.f32.mxu0 %v1225
      %3537 = vmatmul.mubr.f32.gmra.mrb[0].mxu0 %v1193
      %v3538 = vpop.f32.mrb[0].mxu0
      %v3539 = vadd.f32 %v3314, %v3538
      %v3540 = vpop.f32.mrb[0].mxu0
      %3541 = vmatprep.mubr.f32.mxu0 %v1226
      %3542 = vmatmul.mubr.f32.gmra.mrb[0].mxu0 %v1194
      %v3543 = vpop.f32.mrb[0].mxu0
      %v3544 = vadd.f32 %v3319, %v3543
      %v3545 = vpop.f32.mrb[0].mxu0
      %3546 = vmatprep.mubr.f32.mxu0 %v1227
      %3547 = vmatmul.mubr.f32.gmra.mrb[0].mxu0 %v1195
      %v3548 = vpop.f32.mrb[0].mxu0
      %v3549 = vadd.f32 %v3324, %v3548
      %v3550 = vpop.f32.mrb[0].mxu0
      %3551 = vmatprep.mubr.f32.mxu0 %v1228
      %3552 = vmatmul.mubr.f32.gmra.mrb[0].mxu0 %v1196
      %v3553 = vpop.f32.mrb[0].mxu0
      %v3554 = vadd.f32 %v3329, %v3553
      %v3555 = vpop.f32.mrb[0].mxu0
      %3556 = vmatprep.mubr.f32.mxu0 %v1229
      %3557 = vmatmul.mubr.f32.gmra.mrb[0].mxu0 %v1197
      %v3558 = vpop.f32.mrb[0].mxu0
      %v3559 = vadd.f32 %v3334, %v3558
      %v3560 = vpop.f32.mrb[0].mxu0
      %3561 = vmatprep.mubr.f32.mxu0 %v1230
      %3562 = vmatmul.mubr.f32.gmra.mrb[0].mxu0 %v1198
      %v3563 = vpop.f32.mrb[0].mxu0
      %v3564 = vadd.f32 %v3339, %v3563
      %v3565 = vpop.f32.mrb[0].mxu0
      %3566 = vdwg.mxu0
      %3567 = vmatprep.subr.mxu0 0.0
      %3568 = vmatpush1.msra.mxu0 %v1809
      %3569 = vmatprep.subr.mxu0 0.0
      %3570 = vmatpush1.msra.mxu0 %v1810
      %3571 = vmatprep.subr.mxu0 0.0
      %3572 = vmatpush1.msra.mxu0 %v1811
      %3573 = vmatprep.subr.mxu0 0.0
      %3574 = vmatpush1.msra.mxu0 %v1812
      %3575 = vmatprep.subr.mxu0 0.0
      %3576 = vmatpush1.msra.mxu0 %v1813
      %3577 = vmatprep.subr.mxu0 0.0
      %3578 = vmatpush1.msra.mxu0 %v1814
      %3579 = vmatprep.subr.mxu0 0.0
      %3580 = vmatpush1.msra.mxu0 %v1815
      %3581 = vmatprep.subr.mxu0 0.0
      %3582 = vmatpush1.msra.mxu0 %v1816
      %3583 = vmatprep.subr.mxu0 0.0
      %3584 = vmatpush1.msra.mxu0 %v1817
      %3585 = vmatprep.subr.mxu0 0.0
      %3586 = vmatpush1.msra.mxu0 %v1818
      %3587 = vmatprep.subr.mxu0 0.0
      %3588 = vmatpush1.msra.mxu0 %v1819
      %3589 = vmatprep.subr.mxu0 0.0
      %3590 = vmatpush1.msra.mxu0 %v1820
      %3591 = vmatprep.subr.mxu0 0.0
      %3592 = vmatpush1.msra.mxu0 %v1821
      %3593 = vmatprep.subr.mxu0 0.0
      %3594 = vmatpush1.msra.mxu0 %v1822
      %3595 = vmatprep.subr.mxu0 0.0
      %3596 = vmatpush1.msra.mxu0 %v1823
      %3597 = vmatprep.subr.mxu0 0.0
      %3598 = vmatpush1.msra.mxu0 %v1824
      %3599 = vmatprep.subr.mxu0 0.0
      %3600 = vmatpush1.msra.mxu0 %v1825
      %3601 = vmatprep.subr.mxu0 0.0
      %3602 = vmatpush1.msra.mxu0 %v1826
      %3603 = vmatprep.subr.mxu0 0.0
      %3604 = vmatpush1.msra.mxu0 %v1827
      %3605 = vmatprep.subr.mxu0 0.0
      %3606 = vmatpush1.msra.mxu0 %v1828
      %3607 = vmatprep.subr.mxu0 0.0
      %3608 = vmatpush1.msra.mxu0 %v1829
      %3609 = vmatprep.subr.mxu0 0.0
      %3610 = vmatpush1.msra.mxu0 %v1830
      %3611 = vmatprep.subr.mxu0 0.0
      %3612 = vmatpush1.msra.mxu0 %v1831
      %3613 = vmatprep.subr.mxu0 0.0
      %3614 = vmatpush1.msra.mxu0 %v1832
      %3615 = vmatprep.subr.mxu0 0.0
      %3616 = vmatpush1.msra.mxu0 %v1833
      %3617 = vmatprep.subr.mxu0 0.0
      %3618 = vmatpush1.msra.mxu0 %v1834
      %3619 = vmatprep.subr.mxu0 0.0
      %3620 = vmatpush1.msra.mxu0 %v1835
      %3621 = vmatprep.subr.mxu0 0.0
      %3622 = vmatpush1.msra.mxu0 %v1836
      %3623 = vmatprep.subr.mxu0 0.0
      %3624 = vmatpush1.msra.mxu0 %v1837
      %3625 = vmatprep.subr.mxu0 0.0
      %3626 = vmatpush1.msra.mxu0 %v1838
      %3627 = vmatprep.subr.mxu0 0.0
      %3628 = vmatpush1.msra.mxu0 %v1839
      %3629 = vmatprep.subr.mxu0 0.0
      %3630 = vmatpush1.msra.mxu0 %v1840
      %3631 = vmatprep.mubr.f32.mxu0 %v1264
      %3632 = vmatmul.mubr.f32.gmra.mrb[0].mxu0 %v1231
      %v3633 = vpop.f32.mrb[0].mxu0
      %v3634 = vadd.f32 %v3409, %v3633
      %v3635 = vpop.f32.mrb[0].mxu0
      %3636 = vmatprep.mubr.f32.mxu0 %v1265
      %3637 = vmatmul.mubr.f32.gmra.mrb[0].mxu0 %v1232
      %v3638 = vpop.f32.mrb[0].mxu0
      %v3639 = vadd.f32 %v3414, %v3638
      %v3640 = vpop.f32.mrb[0].mxu0
      %3641 = vmatprep.mubr.f32.mxu0 %v1266
      %3642 = vmatmul.mubr.f32.gmra.mrb[0].mxu0 %v1233
      %v3643 = vpop.f32.mrb[0].mxu0
      %v3644 = vadd.f32 %v3419, %v3643
      %v3645 = vpop.f32.mrb[0].mxu0
      %3646 = vmatprep.mubr.f32.mxu0 %v1267
      %3647 = vmatmul.mubr.f32.gmra.mrb[0].mxu0 %v1234
      %v3648 = vpop.f32.mrb[0].mxu0
      %v3649 = vadd.f32 %v3424, %v3648
      %v3650 = vpop.f32.mrb[0].mxu0
      %3651 = vmatprep.mubr.f32.mxu0 %v1268
      %3652 = vmatmul.mubr.f32.gmra.mrb[0].mxu0 %v1235
      %v3653 = vpop.f32.mrb[0].mxu0
      %v3654 = vadd.f32 %v3429, %v3653
      %v3655 = vpop.f32.mrb[0].mxu0
      %3656 = vmatprep.mubr.f32.mxu0 %v1269
      %3657 = vmatmul.mubr.f32.gmra.mrb[0].mxu0 %v1236
      %v3658 = vpop.f32.mrb[0].mxu0
      %v3659 = vadd.f32 %v3434, %v3658
      %v3660 = vpop.f32.mrb[0].mxu0
      %3661 = vmatprep.mubr.f32.mxu0 %v1270
      %3662 = vmatmul.mubr.f32.gmra.mrb[0].mxu0 %v1237
      %v3663 = vpop.f32.mrb[0].mxu0
      %v3664 = vadd.f32 %v3439, %v3663
      %v3665 = vpop.f32.mrb[0].mxu0
      %3666 = vmatprep.mubr.f32.mxu0 %v1271
      %3667 = vmatmul.mubr.f32.gmra.mrb[0].mxu0 %v1238
      %v3668 = vpop.f32.mrb[0].mxu0
      %v3669 = vadd.f32 %v3444, %v3668
      %v3670 = vpop.f32.mrb[0].mxu0
      %3671 = vmatprep.mubr.f32.mxu0 %v1272
      %3672 = vmatmul.mubr.f32.gmra.mrb[0].mxu0 %v1239
      %v3673 = vpop.f32.mrb[0].mxu0
      %v3674 = vadd.f32 %v3449, %v3673
      %v3675 = vpop.f32.mrb[0].mxu0
      %3676 = vmatprep.mubr.f32.mxu0 %v1273
      %3677 = vmatmul.mubr.f32.gmra.mrb[0].mxu0 %v1240
      %v3678 = vpop.f32.mrb[0].mxu0
      %v3679 = vadd.f32 %v3454, %v3678
      %v3680 = vpop.f32.mrb[0].mxu0
      %3681 = vmatprep.mubr.f32.mxu0 %v1274
      %3682 = vmatmul.mubr.f32.gmra.mrb[0].mxu0 %v1241
      %v3683 = vpop.f32.mrb[0].mxu0
      %v3684 = vadd.f32 %v3459, %v3683
      %v3685 = vpop.f32.mrb[0].mxu0
      %3686 = vmatprep.mubr.f32.mxu0 %v1275
      %3687 = vmatmul.mubr.f32.gmra.mrb[0].mxu0 %v1242
      %v3688 = vpop.f32.mrb[0].mxu0
      %v3689 = vadd.f32 %v3464, %v3688
      %v3690 = vpop.f32.mrb[0].mxu0
      %3691 = vmatprep.mubr.f32.mxu0 %v1276
      %3692 = vmatmul.mubr.f32.gmra.mrb[0].mxu0 %v1243
      %v3693 = vpop.f32.mrb[0].mxu0
      %v3694 = vadd.f32 %v3469, %v3693
      %v3695 = vpop.f32.mrb[0].mxu0
      %3696 = vmatprep.mubr.f32.mxu0 %v1277
      %3697 = vmatmul.mubr.f32.gmra.mrb[0].mxu0 %v1244
      %v3698 = vpop.f32.mrb[0].mxu0
      %v3699 = vadd.f32 %v3474, %v3698
      %v3700 = vpop.f32.mrb[0].mxu0
      %3701 = vmatprep.mubr.f32.mxu0 %v1278
      %3702 = vmatmul.mubr.f32.gmra.mrb[0].mxu0 %v1245
      %v3703 = vpop.f32.mrb[0].mxu0
      %v3704 = vadd.f32 %v3479, %v3703
      %v3705 = vpop.f32.mrb[0].mxu0
      %3706 = vmatprep.mubr.f32.mxu0 %v1279
      %3707 = vmatmul.mubr.f32.gmra.mrb[0].mxu0 %v1246
      %v3708 = vpop.f32.mrb[0].mxu0
      %v3709 = vadd.f32 %v3484, %v3708
      %v3710 = vpop.f32.mrb[0].mxu0
      %3711 = vmatprep.mubr.f32.mxu0 %v1280
      %3712 = vmatmul.mubr.f32.gmra.mrb[0].mxu0 %v1247
      %v3713 = vpop.f32.mrb[0].mxu0
      %v3714 = vadd.f32 %v3489, %v3713
      %v3715 = vpop.f32.mrb[0].mxu0
      %3716 = vmatprep.mubr.f32.mxu0 %v1281
      %3717 = vmatmul.mubr.f32.gmra.mrb[0].mxu0 %v1248
      %v3718 = vpop.f32.mrb[0].mxu0
      %v3719 = vadd.f32 %v3494, %v3718
      %v3720 = vpop.f32.mrb[0].mxu0
      %3721 = vmatprep.mubr.f32.mxu0 %v1282
      %3722 = vmatmul.mubr.f32.gmra.mrb[0].mxu0 %v1249
      %v3723 = vpop.f32.mrb[0].mxu0
      %v3724 = vadd.f32 %v3499, %v3723
      %v3725 = vpop.f32.mrb[0].mxu0
      %3726 = vmatprep.mubr.f32.mxu0 %v1283
      %3727 = vmatmul.mubr.f32.gmra.mrb[0].mxu0 %v1250
      %v3728 = vpop.f32.mrb[0].mxu0
      %v3729 = vadd.f32 %v3504, %v3728
      %v3730 = vpop.f32.mrb[0].mxu0
      %3731 = vmatprep.mubr.f32.mxu0 %v1284
      %3732 = vmatmul.mubr.f32.gmra.mrb[0].mxu0 %v1251
      %v3733 = vpop.f32.mrb[0].mxu0
      %v3734 = vadd.f32 %v3509, %v3733
      %v3735 = vpop.f32.mrb[0].mxu0
      %3736 = vmatprep.mubr.f32.mxu0 %v1285
      %3737 = vmatmul.mubr.f32.gmra.mrb[0].mxu0 %v1252
      %v3738 = vpop.f32.mrb[0].mxu0
      %v3739 = vadd.f32 %v3514, %v3738
      %v3740 = vpop.f32.mrb[0].mxu0
      %3741 = vmatprep.mubr.f32.mxu0 %v1286
      %3742 = vmatmul.mubr.f32.gmra.mrb[0].mxu0 %v1253
      %v3743 = vpop.f32.mrb[0].mxu0
      %v3744 = vadd.f32 %v3519, %v3743
      %v3745 = vpop.f32.mrb[0].mxu0
      %3746 = vmatprep.mubr.f32.mxu0 %v1287
      %3747 = vmatmul.mubr.f32.gmra.mrb[0].mxu0 %v1254
      %v3748 = vpop.f32.mrb[0].mxu0
      %v3749 = vadd.f32 %v3524, %v3748
      %v3750 = vpop.f32.mrb[0].mxu0
      %3751 = vmatprep.mubr.f32.mxu0 %v1288
      %3752 = vmatmul.mubr.f32.gmra.mrb[0].mxu0 %v1255
      %v3753 = vpop.f32.mrb[0].mxu0
      %v3754 = vadd.f32 %v3529, %v3753
      %v3755 = vpop.f32.mrb[0].mxu0
      %3756 = vmatprep.mubr.f32.mxu0 %v1289
      %3757 = vmatmul.mubr.f32.gmra.mrb[0].mxu0 %v1256
      %v3758 = vpop.f32.mrb[0].mxu0
      %v3759 = vadd.f32 %v3534, %v3758
      %v3760 = vpop.f32.mrb[0].mxu0
      %3761 = vmatprep.mubr.f32.mxu0 %v1290
      %3762 = vmatmul.mubr.f32.gmra.mrb[0].mxu0 %v1257
      %v3763 = vpop.f32.mrb[0].mxu0
      %v3764 = vadd.f32 %v3539, %v3763
      %v3765 = vpop.f32.mrb[0].mxu0
      %3766 = vmatprep.mubr.f32.mxu0 %v1291
      %3767 = vmatmul.mubr.f32.gmra.mrb[0].mxu0 %v1258
      %v3768 = vpop.f32.mrb[0].mxu0
      %v3769 = vadd.f32 %v3544, %v3768
      %v3770 = vpop.f32.mrb[0].mxu0
      %3771 = vmatprep.mubr.f32.mxu0 %v1292
      %3772 = vmatmul.mubr.f32.gmra.mrb[0].mxu0 %v1259
      %v3773 = vpop.f32.mrb[0].mxu0
      %v3774 = vadd.f32 %v3549, %v3773
      %v3775 = vpop.f32.mrb[0].mxu0
      %3776 = vmatprep.mubr.f32.mxu0 %v1293
      %3777 = vmatmul.mubr.f32.gmra.mrb[0].mxu0 %v1260
      %v3778 = vpop.f32.mrb[0].mxu0
      %v3779 = vadd.f32 %v3554, %v3778
      %v3780 = vpop.f32.mrb[0].mxu0
      %3781 = vmatprep.mubr.f32.mxu0 %v1294
      %3782 = vmatmul.mubr.f32.gmra.mrb[0].mxu0 %v1261
      %v3783 = vpop.f32.mrb[0].mxu0
      %v3784 = vadd.f32 %v3559, %v3783
      %v3785 = vpop.f32.mrb[0].mxu0
      %3786 = vmatprep.mubr.f32.mxu0 %v1295
      %3787 = vmatmul.mubr.f32.gmra.mrb[0].mxu0 %v1262
      %v3788 = vpop.f32.mrb[0].mxu0
      %v3789 = vadd.f32 %v3564, %v3788
      %v3790 = vpop.f32.mrb[0].mxu0
      %3791 = vdwg.mxu0
      %3792 = vmatprep.subr.mxu0 0.0
      %3793 = vmatpush1.msra.mxu0 %v1841
      %3794 = vmatprep.subr.mxu0 0.0
      %3795 = vmatpush1.msra.mxu0 %v1842
      %3796 = vmatprep.subr.mxu0 0.0
      %3797 = vmatpush1.msra.mxu0 %v1843
      %3798 = vmatprep.subr.mxu0 0.0
      %3799 = vmatpush1.msra.mxu0 %v1844
      %3800 = vmatprep.subr.mxu0 0.0
      %3801 = vmatpush1.msra.mxu0 %v1845
      %3802 = vmatprep.subr.mxu0 0.0
      %3803 = vmatpush1.msra.mxu0 %v1846
      %3804 = vmatprep.subr.mxu0 0.0
      %3805 = vmatpush1.msra.mxu0 %v1847
      %3806 = vmatprep.subr.mxu0 0.0
      %3807 = vmatpush1.msra.mxu0 %v1848
      %3808 = vmatprep.subr.mxu0 0.0
      %3809 = vmatpush1.msra.mxu0 %v1849
      %3810 = vmatprep.subr.mxu0 0.0
      %3811 = vmatpush1.msra.mxu0 %v1850
      %3812 = vmatprep.subr.mxu0 0.0
      %3813 = vmatpush1.msra.mxu0 %v1851
      %3814 = vmatprep.subr.mxu0 0.0
      %3815 = vmatpush1.msra.mxu0 %v1852
      %3816 = vmatprep.subr.mxu0 0.0
      %3817 = vmatpush1.msra.mxu0 %v1853
      %3818 = vmatprep.subr.mxu0 0.0
      %3819 = vmatpush1.msra.mxu0 %v1854
      %3820 = vmatprep.subr.mxu0 0.0
      %3821 = vmatpush1.msra.mxu0 %v1855
      %3822 = vmatprep.subr.mxu0 0.0
      %3823 = vmatpush1.msra.mxu0 %v1856
      %3824 = vmatprep.subr.mxu0 0.0
      %3825 = vmatpush1.msra.mxu0 %v1857
      %3826 = vmatprep.subr.mxu0 0.0
      %3827 = vmatpush1.msra.mxu0 %v1858
      %3828 = vmatprep.subr.mxu0 0.0
      %3829 = vmatpush1.msra.mxu0 %v1859
      %3830 = vmatprep.subr.mxu0 0.0
      %3831 = vmatpush1.msra.mxu0 %v1860
      %3832 = vmatprep.subr.mxu0 0.0
      %3833 = vmatpush1.msra.mxu0 %v1861
      %3834 = vmatprep.subr.mxu0 0.0
      %3835 = vmatpush1.msra.mxu0 %v1862
      %3836 = vmatprep.subr.mxu0 0.0
      %3837 = vmatpush1.msra.mxu0 %v1863
      %3838 = vmatprep.subr.mxu0 0.0
      %3839 = vmatpush1.msra.mxu0 %v1864
      %3840 = vmatprep.subr.mxu0 0.0
      %3841 = vmatpush1.msra.mxu0 %v1865
      %3842 = vmatprep.subr.mxu0 0.0
      %3843 = vmatpush1.msra.mxu0 %v1866
      %3844 = vmatprep.subr.mxu0 0.0
      %3845 = vmatpush1.msra.mxu0 %v1867
      %3846 = vmatprep.subr.mxu0 0.0
      %3847 = vmatpush1.msra.mxu0 %v1868
      %3848 = vmatprep.subr.mxu0 0.0
      %3849 = vmatpush1.msra.mxu0 %v1869
      %3850 = vmatprep.subr.mxu0 0.0
      %3851 = vmatpush1.msra.mxu0 %v1870
      %3852 = vmatprep.subr.mxu0 0.0
      %3853 = vmatpush1.msra.mxu0 %v1871
      %3854 = vmatprep.subr.mxu0 0.0
      %3855 = vmatpush1.msra.mxu0 %v1872
      %3856 = vmatprep.mubr.f32.mxu0 %v1328
      %3857 = vmatmul.mubr.f32.gmra.mrb[0].mxu0 %v1296
      %v3858 = vpop.f32.mrb[0].mxu0
      %v3859 = vadd.f32 %v3634, %v3858
      %v3860 = vpop.f32.mrb[0].mxu0
      %3861 = vmatprep.mubr.f32.mxu0 %v1329
      %3862 = vmatmul.mubr.f32.gmra.mrb[0].mxu0 %v1297
      %v3863 = vpop.f32.mrb[0].mxu0
      %v3864 = vadd.f32 %v3639, %v3863
      %v3865 = vpop.f32.mrb[0].mxu0
      %3866 = vmatprep.mubr.f32.mxu0 %v1330
      %3867 = vmatmul.mubr.f32.gmra.mrb[0].mxu0 %v1298
      %v3868 = vpop.f32.mrb[0].mxu0
      %v3869 = vadd.f32 %v3644, %v3868
      %v3870 = vpop.f32.mrb[0].mxu0
      %3871 = vmatprep.mubr.f32.mxu0 %v1331
      %3872 = vmatmul.mubr.f32.gmra.mrb[0].mxu0 %v1299
      %v3873 = vpop.f32.mrb[0].mxu0
      %v3874 = vadd.f32 %v3649, %v3873
      %v3875 = vpop.f32.mrb[0].mxu0
      %3876 = vmatprep.mubr.f32.mxu0 %v1332
      %3877 = vmatmul.mubr.f32.gmra.mrb[0].mxu0 %v1300
      %v3878 = vpop.f32.mrb[0].mxu0
      %v3879 = vadd.f32 %v3654, %v3878
      %v3880 = vpop.f32.mrb[0].mxu0
      %3881 = vmatprep.mubr.f32.mxu0 %v1333
      %3882 = vmatmul.mubr.f32.gmra.mrb[0].mxu0 %v1301
      %v3883 = vpop.f32.mrb[0].mxu0
      %v3884 = vadd.f32 %v3659, %v3883
      %v3885 = vpop.f32.mrb[0].mxu0
      %3886 = vmatprep.mubr.f32.mxu0 %v1334
      %3887 = vmatmul.mubr.f32.gmra.mrb[0].mxu0 %v1302
      %v3888 = vpop.f32.mrb[0].mxu0
      %v3889 = vadd.f32 %v3664, %v3888
      %v3890 = vpop.f32.mrb[0].mxu0
      %3891 = vmatprep.mubr.f32.mxu0 %v1335
      %3892 = vmatmul.mubr.f32.gmra.mrb[0].mxu0 %v1303
      %v3893 = vpop.f32.mrb[0].mxu0
      %v3894 = vadd.f32 %v3669, %v3893
      %v3895 = vpop.f32.mrb[0].mxu0
      %3896 = vmatprep.mubr.f32.mxu0 %v1336
      %3897 = vmatmul.mubr.f32.gmra.mrb[0].mxu0 %v1304
      %v3898 = vpop.f32.mrb[0].mxu0
      %v3899 = vadd.f32 %v3674, %v3898
      %v3900 = vpop.f32.mrb[0].mxu0
      %3901 = vmatprep.mubr.f32.mxu0 %v1337
      %3902 = vmatmul.mubr.f32.gmra.mrb[0].mxu0 %v1305
      %v3903 = vpop.f32.mrb[0].mxu0
      %v3904 = vadd.f32 %v3679, %v3903
      %v3905 = vpop.f32.mrb[0].mxu0
      %3906 = vmatprep.mubr.f32.mxu0 %v1338
      %3907 = vmatmul.mubr.f32.gmra.mrb[0].mxu0 %v1306
      %v3908 = vpop.f32.mrb[0].mxu0
      %v3909 = vadd.f32 %v3684, %v3908
      %v3910 = vpop.f32.mrb[0].mxu0
      %3911 = vmatprep.mubr.f32.mxu0 %v1339
      %3912 = vmatmul.mubr.f32.gmra.mrb[0].mxu0 %v1307
      %v3913 = vpop.f32.mrb[0].mxu0
      %v3914 = vadd.f32 %v3689, %v3913
      %v3915 = vpop.f32.mrb[0].mxu0
      %3916 = vmatprep.mubr.f32.mxu0 %v1340
      %3917 = vmatmul.mubr.f32.gmra.mrb[0].mxu0 %v1308
      %v3918 = vpop.f32.mrb[0].mxu0
      %v3919 = vadd.f32 %v3694, %v3918
      %v3920 = vpop.f32.mrb[0].mxu0
      %3921 = vmatprep.mubr.f32.mxu0 %v1341
      %3922 = vmatmul.mubr.f32.gmra.mrb[0].mxu0 %v1309
      %v3923 = vpop.f32.mrb[0].mxu0
      %v3924 = vadd.f32 %v3699, %v3923
      %v3925 = vpop.f32.mrb[0].mxu0
      %3926 = vmatprep.mubr.f32.mxu0 %v1342
      %3927 = vmatmul.mubr.f32.gmra.mrb[0].mxu0 %v1310
      %v3928 = vpop.f32.mrb[0].mxu0
      %v3929 = vadd.f32 %v3704, %v3928
      %v3930 = vpop.f32.mrb[0].mxu0
      %3931 = vmatprep.mubr.f32.mxu0 %v1343
      %3932 = vmatmul.mubr.f32.gmra.mrb[0].mxu0 %v1311
      %v3933 = vpop.f32.mrb[0].mxu0
      %v3934 = vadd.f32 %v3709, %v3933
      %v3935 = vpop.f32.mrb[0].mxu0
      %3936 = vmatprep.mubr.f32.mxu0 %v1344
      %3937 = vmatmul.mubr.f32.gmra.mrb[0].mxu0 %v1312
      %v3938 = vpop.f32.mrb[0].mxu0
      %v3939 = vadd.f32 %v3714, %v3938
      %v3940 = vpop.f32.mrb[0].mxu0
      %3941 = vmatprep.mubr.f32.mxu0 %v1345
      %3942 = vmatmul.mubr.f32.gmra.mrb[0].mxu0 %v1313
      %v3943 = vpop.f32.mrb[0].mxu0
      %v3944 = vadd.f32 %v3719, %v3943
      %v3945 = vpop.f32.mrb[0].mxu0
      %3946 = vmatprep.mubr.f32.mxu0 %v1346
      %3947 = vmatmul.mubr.f32.gmra.mrb[0].mxu0 %v1314
      %v3948 = vpop.f32.mrb[0].mxu0
      %v3949 = vadd.f32 %v3724, %v3948
      %v3950 = vpop.f32.mrb[0].mxu0
      %3951 = vmatprep.mubr.f32.mxu0 %v1347
      %3952 = vmatmul.mubr.f32.gmra.mrb[0].mxu0 %v1315
      %v3953 = vpop.f32.mrb[0].mxu0
      %v3954 = vadd.f32 %v3729, %v3953
      %v3955 = vpop.f32.mrb[0].mxu0
      %3956 = vmatprep.mubr.f32.mxu0 %v1348
      %3957 = vmatmul.mubr.f32.gmra.mrb[0].mxu0 %v1316
      %v3958 = vpop.f32.mrb[0].mxu0
      %v3959 = vadd.f32 %v3734, %v3958
      %v3960 = vpop.f32.mrb[0].mxu0
      %3961 = vmatprep.mubr.f32.mxu0 %v1349
      %3962 = vmatmul.mubr.f32.gmra.mrb[0].mxu0 %v1317
      %v3963 = vpop.f32.mrb[0].mxu0
      %v3964 = vadd.f32 %v3739, %v3963
      %v3965 = vpop.f32.mrb[0].mxu0
      %3966 = vmatprep.mubr.f32.mxu0 %v1350
      %3967 = vmatmul.mubr.f32.gmra.mrb[0].mxu0 %v1318
      %v3968 = vpop.f32.mrb[0].mxu0
      %v3969 = vadd.f32 %v3744, %v3968
      %v3970 = vpop.f32.mrb[0].mxu0
      %3971 = vmatprep.mubr.f32.mxu0 %v1351
      %3972 = vmatmul.mubr.f32.gmra.mrb[0].mxu0 %v1319
      %v3973 = vpop.f32.mrb[0].mxu0
      %v3974 = vadd.f32 %v3749, %v3973
      %v3975 = vpop.f32.mrb[0].mxu0
      %3976 = vmatprep.mubr.f32.mxu0 %v1352
      %3977 = vmatmul.mubr.f32.gmra.mrb[0].mxu0 %v1320
      %v3978 = vpop.f32.mrb[0].mxu0
      %v3979 = vadd.f32 %v3754, %v3978
      %v3980 = vpop.f32.mrb[0].mxu0
      %3981 = vmatprep.mubr.f32.mxu0 %v1353
      %3982 = vmatmul.mubr.f32.gmra.mrb[0].mxu0 %v1321
      %v3983 = vpop.f32.mrb[0].mxu0
      %v3984 = vadd.f32 %v3759, %v3983
      %v3985 = vpop.f32.mrb[0].mxu0
      %3986 = vmatprep.mubr.f32.mxu0 %v1354
      %3987 = vmatmul.mubr.f32.gmra.mrb[0].mxu0 %v1322
      %v3988 = vpop.f32.mrb[0].mxu0
      %v3989 = vadd.f32 %v3764, %v3988
      %v3990 = vpop.f32.mrb[0].mxu0
      %3991 = vmatprep.mubr.f32.mxu0 %v1355
      %3992 = vmatmul.mubr.f32.gmra.mrb[0].mxu0 %v1323
      %v3993 = vpop.f32.mrb[0].mxu0
      %v3994 = vadd.f32 %v3769, %v3993
      %v3995 = vpop.f32.mrb[0].mxu0
      %3996 = vmatprep.mubr.f32.mxu0 %v1356
      %3997 = vmatmul.mubr.f32.gmra.mrb[0].mxu0 %v1324
      %v3998 = vpop.f32.mrb[0].mxu0
      %v3999 = vadd.f32 %v3774, %v3998
      %v4000 = vpop.f32.mrb[0].mxu0
      %4001 = vmatprep.mubr.f32.mxu0 %v1357
      %4002 = vmatmul.mubr.f32.gmra.mrb[0].mxu0 %v1325
      %v4003 = vpop.f32.mrb[0].mxu0
      %v4004 = vadd.f32 %v3779, %v4003
      %v4005 = vpop.f32.mrb[0].mxu0
      %4006 = vmatprep.mubr.f32.mxu0 %v1358
      %4007 = vmatmul.mubr.f32.gmra.mrb[0].mxu0 %v1326
      %v4008 = vpop.f32.mrb[0].mxu0
      %v4009 = vadd.f32 %v3784, %v4008
      %v4010 = vpop.f32.mrb[0].mxu0
      %4011 = vmatprep.mubr.f32.mxu0 %v1359
      %4012 = vmatmul.mubr.f32.gmra.mrb[0].mxu0 %v1327
      %v4013 = vpop.f32.mrb[0].mxu0
      %v4014 = vadd.f32 %v3789, %v4013
      %v4015 = vpop.f32.mrb[0].mxu0
      %4016 = vdwg.mxu0
      %4017 = vmatprep.subr.mxu0 0.0
      %4018 = vmatpush1.msra.mxu0 %v1873
      %4019 = vmatprep.subr.mxu0 0.0
      %4020 = vmatpush1.msra.mxu0 %v1874
      %4021 = vmatprep.subr.mxu0 0.0
      %4022 = vmatpush1.msra.mxu0 %v1875
      %4023 = vmatprep.subr.mxu0 0.0
      %4024 = vmatpush1.msra.mxu0 %v1876
      %4025 = vmatprep.subr.mxu0 0.0
      %4026 = vmatpush1.msra.mxu0 %v1877
      %4027 = vmatprep.subr.mxu0 0.0
      %4028 = vmatpush1.msra.mxu0 %v1878
      %4029 = vmatprep.subr.mxu0 0.0
      %4030 = vmatpush1.msra.mxu0 %v1879
      %4031 = vmatprep.subr.mxu0 0.0
      %4032 = vmatpush1.msra.mxu0 %v1880
      %4033 = vmatprep.subr.mxu0 0.0
      %4034 = vmatpush1.msra.mxu0 %v1881
      %4035 = vmatprep.subr.mxu0 0.0
      %4036 = vmatpush1.msra.mxu0 %v1882
      %4037 = vmatprep.subr.mxu0 0.0
      %4038 = vmatpush1.msra.mxu0 %v1883
      %4039 = vmatprep.subr.mxu0 0.0
      %4040 = vmatpush1.msra.mxu0 %v1884
      %4041 = vmatprep.subr.mxu0 0.0
      %4042 = vmatpush1.msra.mxu0 %v1885
      %4043 = vmatprep.subr.mxu0 0.0
      %4044 = vmatpush1.msra.mxu0 %v1886
      %4045 = vmatprep.subr.mxu0 0.0
      %4046 = vmatpush1.msra.mxu0 %v1887
      %4047 = vmatprep.subr.mxu0 0.0
      %4048 = vmatpush1.msra.mxu0 %v1888
      %4049 = vmatprep.subr.mxu0 0.0
      %4050 = vmatpush1.msra.mxu0 %v1889
      %4051 = vmatprep.subr.mxu0 0.0
      %4052 = vmatpush1.msra.mxu0 %v1890
      %4053 = vmatprep.subr.mxu0 0.0
      %4054 = vmatpush1.msra.mxu0 %v1891
      %4055 = vmatprep.subr.mxu0 0.0
      %4056 = vmatpush1.msra.mxu0 %v1892
      %4057 = vmatprep.subr.mxu0 0.0
      %4058 = vmatpush1.msra.mxu0 %v1893
      %4059 = vmatprep.subr.mxu0 0.0
      %4060 = vmatpush1.msra.mxu0 %v1894
      %4061 = vmatprep.subr.mxu0 0.0
      %4062 = vmatpush1.msra.mxu0 %v1895
      %4063 = vmatprep.subr.mxu0 0.0
      %4064 = vmatpush1.msra.mxu0 %v1896
      %4065 = vmatprep.subr.mxu0 0.0
      %4066 = vmatpush1.msra.mxu0 %v1897
      %4067 = vmatprep.subr.mxu0 0.0
      %4068 = vmatpush1.msra.mxu0 %v1898
      %4069 = vmatprep.subr.mxu0 0.0
      %4070 = vmatpush1.msra.mxu0 %v1899
      %4071 = vmatprep.subr.mxu0 0.0
      %4072 = vmatpush1.msra.mxu0 %v1900
      %4073 = vmatprep.subr.mxu0 0.0
      %4074 = vmatpush1.msra.mxu0 %v1901
      %4075 = vmatprep.subr.mxu0 0.0
      %4076 = vmatpush1.msra.mxu0 %v1902
      %4077 = vmatprep.subr.mxu0 0.0
      %4078 = vmatpush1.msra.mxu0 %v1903
      %4079 = vmatprep.subr.mxu0 0.0
      %4080 = vmatpush1.msra.mxu0 %v1904
      %4081 = vmatprep.mubr.f32.mxu0 %v1392
      %4082 = vmatmul.mubr.f32.gmra.mrb[0].mxu0 %v1360
      %v4083 = vpop.f32.mrb[0].mxu0
      %v4084 = vadd.f32 %v3859, %v4083
      %v4085 = vpop.f32.mrb[0].mxu0
      %4086 = vmatprep.mubr.f32.mxu0 %v1393
      %4087 = vmatmul.mubr.f32.gmra.mrb[0].mxu0 %v1361
      %v4088 = vpop.f32.mrb[0].mxu0
      %v4089 = vadd.f32 %v3864, %v4088
      %v4090 = vpop.f32.mrb[0].mxu0
      %4091 = vmatprep.mubr.f32.mxu0 %v1394
      %4092 = vmatmul.mubr.f32.gmra.mrb[0].mxu0 %v1362
      %v4093 = vpop.f32.mrb[0].mxu0
      %v4094 = vadd.f32 %v3869, %v4093
      %v4095 = vpop.f32.mrb[0].mxu0
      %4096 = vmatprep.mubr.f32.mxu0 %v1395
      %4097 = vmatmul.mubr.f32.gmra.mrb[0].mxu0 %v1363
      %v4098 = vpop.f32.mrb[0].mxu0
      %v4099 = vadd.f32 %v3874, %v4098
      %v4100 = vpop.f32.mrb[0].mxu0
      %4101 = vmatprep.mubr.f32.mxu0 %v1396
      %4102 = vmatmul.mubr.f32.gmra.mrb[0].mxu0 %v1364
      %v4103 = vpop.f32.mrb[0].mxu0
      %v4104 = vadd.f32 %v3879, %v4103
      %v4105 = vpop.f32.mrb[0].mxu0
      %4106 = vmatprep.mubr.f32.mxu0 %v1397
      %4107 = vmatmul.mubr.f32.gmra.mrb[0].mxu0 %v1365
      %v4108 = vpop.f32.mrb[0].mxu0
      %v4109 = vadd.f32 %v3884, %v4108
      %v4110 = vpop.f32.mrb[0].mxu0
      %4111 = vmatprep.mubr.f32.mxu0 %v1398
      %4112 = vmatmul.mubr.f32.gmra.mrb[0].mxu0 %v1366
      %v4113 = vpop.f32.mrb[0].mxu0
      %v4114 = vadd.f32 %v3889, %v4113
      %v4115 = vpop.f32.mrb[0].mxu0
      %4116 = vmatprep.mubr.f32.mxu0 %v1399
      %4117 = vmatmul.mubr.f32.gmra.mrb[0].mxu0 %v1367
      %v4118 = vpop.f32.mrb[0].mxu0
      %v4119 = vadd.f32 %v3894, %v4118
      %v4120 = vpop.f32.mrb[0].mxu0
      %4121 = vmatprep.mubr.f32.mxu0 %v1400
      %4122 = vmatmul.mubr.f32.gmra.mrb[0].mxu0 %v1368
      %v4123 = vpop.f32.mrb[0].mxu0
      %v4124 = vadd.f32 %v3899, %v4123
      %v4125 = vpop.f32.mrb[0].mxu0
      %4126 = vmatprep.mubr.f32.mxu0 %v1401
      %4127 = vmatmul.mubr.f32.gmra.mrb[0].mxu0 %v1369
      %v4128 = vpop.f32.mrb[0].mxu0
      %v4129 = vadd.f32 %v3904, %v4128
      %v4130 = vpop.f32.mrb[0].mxu0
      %4131 = vmatprep.mubr.f32.mxu0 %v1402
      %4132 = vmatmul.mubr.f32.gmra.mrb[0].mxu0 %v1370
      %v4133 = vpop.f32.mrb[0].mxu0
      %v4134 = vadd.f32 %v3909, %v4133
      %v4135 = vpop.f32.mrb[0].mxu0
      %4136 = vmatprep.mubr.f32.mxu0 %v1403
      %4137 = vmatmul.mubr.f32.gmra.mrb[0].mxu0 %v1371
      %v4138 = vpop.f32.mrb[0].mxu0
      %v4139 = vadd.f32 %v3914, %v4138
      %v4140 = vpop.f32.mrb[0].mxu0
      %4141 = vmatprep.mubr.f32.mxu0 %v1404
      %4142 = vmatmul.mubr.f32.gmra.mrb[0].mxu0 %v1372
      %v4143 = vpop.f32.mrb[0].mxu0
      %v4144 = vadd.f32 %v3919, %v4143
      %v4145 = vpop.f32.mrb[0].mxu0
      %4146 = vmatprep.mubr.f32.mxu0 %v1405
      %4147 = vmatmul.mubr.f32.gmra.mrb[0].mxu0 %v1373
      %v4148 = vpop.f32.mrb[0].mxu0
      %v4149 = vadd.f32 %v3924, %v4148
      %v4150 = vpop.f32.mrb[0].mxu0
      %4151 = vmatprep.mubr.f32.mxu0 %v1406
      %4152 = vmatmul.mubr.f32.gmra.mrb[0].mxu0 %v1374
      %v4153 = vpop.f32.mrb[0].mxu0
      %v4154 = vadd.f32 %v3929, %v4153
      %v4155 = vpop.f32.mrb[0].mxu0
      %4156 = vmatprep.mubr.f32.mxu0 %v1407
      %4157 = vmatmul.mubr.f32.gmra.mrb[0].mxu0 %v1375
      %v4158 = vpop.f32.mrb[0].mxu0
      %v4159 = vadd.f32 %v3934, %v4158
      %v4160 = vpop.f32.mrb[0].mxu0
      %4161 = vmatprep.mubr.f32.mxu0 %v1408
      %4162 = vmatmul.mubr.f32.gmra.mrb[0].mxu0 %v1376
      %v4163 = vpop.f32.mrb[0].mxu0
      %v4164 = vadd.f32 %v3939, %v4163
      %v4165 = vpop.f32.mrb[0].mxu0
      %4166 = vmatprep.mubr.f32.mxu0 %v1409
      %4167 = vmatmul.mubr.f32.gmra.mrb[0].mxu0 %v1377
      %v4168 = vpop.f32.mrb[0].mxu0
      %v4169 = vadd.f32 %v3944, %v4168
      %v4170 = vpop.f32.mrb[0].mxu0
      %4171 = vmatprep.mubr.f32.mxu0 %v1410
      %4172 = vmatmul.mubr.f32.gmra.mrb[0].mxu0 %v1378
      %v4173 = vpop.f32.mrb[0].mxu0
      %v4174 = vadd.f32 %v3949, %v4173
      %v4175 = vpop.f32.mrb[0].mxu0
      %4176 = vmatprep.mubr.f32.mxu0 %v1411
      %4177 = vmatmul.mubr.f32.gmra.mrb[0].mxu0 %v1379
      %v4178 = vpop.f32.mrb[0].mxu0
      %v4179 = vadd.f32 %v3954, %v4178
      %v4180 = vpop.f32.mrb[0].mxu0
      %4181 = vmatprep.mubr.f32.mxu0 %v1412
      %4182 = vmatmul.mubr.f32.gmra.mrb[0].mxu0 %v1380
      %v4183 = vpop.f32.mrb[0].mxu0
      %v4184 = vadd.f32 %v3959, %v4183
      %v4185 = vpop.f32.mrb[0].mxu0
      %4186 = vmatprep.mubr.f32.mxu0 %v1413
      %4187 = vmatmul.mubr.f32.gmra.mrb[0].mxu0 %v1381
      %v4188 = vpop.f32.mrb[0].mxu0
      %v4189 = vadd.f32 %v3964, %v4188
      %v4190 = vpop.f32.mrb[0].mxu0
      %4191 = vmatprep.mubr.f32.mxu0 %v1414
      %4192 = vmatmul.mubr.f32.gmra.mrb[0].mxu0 %v1382
      %v4193 = vpop.f32.mrb[0].mxu0
      %v4194 = vadd.f32 %v3969, %v4193
      %v4195 = vpop.f32.mrb[0].mxu0
      %4196 = vmatprep.mubr.f32.mxu0 %v1415
      %4197 = vmatmul.mubr.f32.gmra.mrb[0].mxu0 %v1383
      %v4198 = vpop.f32.mrb[0].mxu0
      %v4199 = vadd.f32 %v3974, %v4198
      %v4200 = vpop.f32.mrb[0].mxu0
      %4201 = vmatprep.mubr.f32.mxu0 %v1416
      %4202 = vmatmul.mubr.f32.gmra.mrb[0].mxu0 %v1384
      %v4203 = vpop.f32.mrb[0].mxu0
      %v4204 = vadd.f32 %v3979, %v4203
      %v4205 = vpop.f32.mrb[0].mxu0
      %4206 = vmatprep.mubr.f32.mxu0 %v1417
      %4207 = vmatmul.mubr.f32.gmra.mrb[0].mxu0 %v1385
      %v4208 = vpop.f32.mrb[0].mxu0
      %v4209 = vadd.f32 %v3984, %v4208
      %v4210 = vpop.f32.mrb[0].mxu0
      %4211 = vmatprep.mubr.f32.mxu0 %v1418
      %4212 = vmatmul.mubr.f32.gmra.mrb[0].mxu0 %v1386
      %v4213 = vpop.f32.mrb[0].mxu0
      %v4214 = vadd.f32 %v3989, %v4213
      %v4215 = vpop.f32.mrb[0].mxu0
      %4216 = vmatprep.mubr.f32.mxu0 %v1419
      %4217 = vmatmul.mubr.f32.gmra.mrb[0].mxu0 %v1387
      %v4218 = vpop.f32.mrb[0].mxu0
      %v4219 = vadd.f32 %v3994, %v4218
      %v4220 = vpop.f32.mrb[0].mxu0
      %4221 = vmatprep.mubr.f32.mxu0 %v1420
      %4222 = vmatmul.mubr.f32.gmra.mrb[0].mxu0 %v1388
      %v4223 = vpop.f32.mrb[0].mxu0
      %v4224 = vadd.f32 %v3999, %v4223
      %v4225 = vpop.f32.mrb[0].mxu0
      %4226 = vmatprep.mubr.f32.mxu0 %v1421
      %4227 = vmatmul.mubr.f32.gmra.mrb[0].mxu0 %v1389
      %v4228 = vpop.f32.mrb[0].mxu0
      %v4229 = vadd.f32 %v4004, %v4228
      %v4230 = vpop.f32.mrb[0].mxu0
      %4231 = vmatprep.mubr.f32.mxu0 %v1422
      %4232 = vmatmul.mubr.f32.gmra.mrb[0].mxu0 %v1390
      %v4233 = vpop.f32.mrb[0].mxu0
      %v4234 = vadd.f32 %v4009, %v4233
      %v4235 = vpop.f32.mrb[0].mxu0
      %4236 = vmatprep.mubr.f32.mxu0 %v1423
      %4237 = vmatmul.mubr.f32.gmra.mrb[0].mxu0 %v1391
      %v4238 = vpop.f32.mrb[0].mxu0
      %v4239 = vadd.f32 %v4014, %v4238
      %v4240 = vpop.f32.mrb[0].mxu0
      %4241 = vdwg.mxu0
      %4242 = vmatprep.subr.mxu0 0.0
      %4243 = vmatpush1.msra.mxu0 %v1905
      %4244 = vmatprep.subr.mxu0 0.0
      %4245 = vmatpush1.msra.mxu0 %v1906
      %4246 = vmatprep.subr.mxu0 0.0
      %4247 = vmatpush1.msra.mxu0 %v1907
      %4248 = vmatprep.subr.mxu0 0.0
      %4249 = vmatpush1.msra.mxu0 %v1908
      %4250 = vmatprep.subr.mxu0 0.0
      %4251 = vmatpush1.msra.mxu0 %v1909
      %4252 = vmatprep.subr.mxu0 0.0
      %4253 = vmatpush1.msra.mxu0 %v1910
      %4254 = vmatprep.subr.mxu0 0.0
      %4255 = vmatpush1.msra.mxu0 %v1911
      %4256 = vmatprep.subr.mxu0 0.0
      %4257 = vmatpush1.msra.mxu0 %v1912
      %4258 = vmatprep.subr.mxu0 0.0
      %4259 = vmatpush1.msra.mxu0 %v1913
      %4260 = vmatprep.subr.mxu0 0.0
      %4261 = vmatpush1.msra.mxu0 %v1914
      %4262 = vmatprep.subr.mxu0 0.0
      %4263 = vmatpush1.msra.mxu0 %v1915
      %4264 = vmatprep.subr.mxu0 0.0
      %4265 = vmatpush1.msra.mxu0 %v1916
      %4266 = vmatprep.subr.mxu0 0.0
      %4267 = vmatpush1.msra.mxu0 %v1917
      %4268 = vmatprep.subr.mxu0 0.0
      %4269 = vmatpush1.msra.mxu0 %v1918
      %4270 = vmatprep.subr.mxu0 0.0
      %4271 = vmatpush1.msra.mxu0 %v1919
      %4272 = vmatprep.subr.mxu0 0.0
      %4273 = vmatpush1.msra.mxu0 %v1920
      %4274 = vmatprep.subr.mxu0 0.0
      %4275 = vmatpush1.msra.mxu0 %v1921
      %4276 = vmatprep.subr.mxu0 0.0
      %4277 = vmatpush1.msra.mxu0 %v1922
      %4278 = vmatprep.subr.mxu0 0.0
      %4279 = vmatpush1.msra.mxu0 %v1923
      %4280 = vmatprep.subr.mxu0 0.0
      %4281 = vmatpush1.msra.mxu0 %v1924
      %4282 = vmatprep.subr.mxu0 0.0
      %4283 = vmatpush1.msra.mxu0 %v1925
      %4284 = vmatprep.subr.mxu0 0.0
      %4285 = vmatpush1.msra.mxu0 %v1926
      %4286 = vmatprep.subr.mxu0 0.0
      %4287 = vmatpush1.msra.mxu0 %v1927
      %4288 = vmatprep.subr.mxu0 0.0
      %4289 = vmatpush1.msra.mxu0 %v1928
      %4290 = vmatprep.subr.mxu0 0.0
      %4291 = vmatpush1.msra.mxu0 %v1929
      %4292 = vmatprep.subr.mxu0 0.0
      %4293 = vmatpush1.msra.mxu0 %v1930
      %4294 = vmatprep.subr.mxu0 0.0
      %4295 = vmatpush1.msra.mxu0 %v1931
      %4296 = vmatprep.subr.mxu0 0.0
      %4297 = vmatpush1.msra.mxu0 %v1932
      %4298 = vmatprep.subr.mxu0 0.0
      %4299 = vmatpush1.msra.mxu0 %v1933
      %4300 = vmatprep.subr.mxu0 0.0
      %4301 = vmatpush1.msra.mxu0 %v1934
      %4302 = vmatprep.subr.mxu0 0.0
      %4303 = vmatpush1.msra.mxu0 %v1935
      %4304 = vmatprep.subr.mxu0 0.0
      %4305 = vmatpush1.msra.mxu0 %v1936
      %4306 = vmatprep.mubr.f32.mxu0 %v1457
      %4307 = vmatmul.mubr.f32.gmra.mrb[0].mxu0 %v1425
      %v4308 = vpop.f32.mrb[0].mxu0
      %v4309 = vadd.f32 %v4084, %v4308
      %v4310 = vpop.f32.mrb[0].mxu0
      %4311 = vmatprep.mubr.f32.mxu0 %v1458
      %4312 = vmatmul.mubr.f32.gmra.mrb[0].mxu0 %v1426
      %v4313 = vpop.f32.mrb[0].mxu0
      %v4314 = vadd.f32 %v4089, %v4313
      %v4315 = vpop.f32.mrb[0].mxu0
      %4316 = vmatprep.mubr.f32.mxu0 %v1459
      %4317 = vmatmul.mubr.f32.gmra.mrb[0].mxu0 %v1427
      %v4318 = vpop.f32.mrb[0].mxu0
      %v4319 = vadd.f32 %v4094, %v4318
      %v4320 = vpop.f32.mrb[0].mxu0
      %4321 = vmatprep.mubr.f32.mxu0 %v1460
      %4322 = vmatmul.mubr.f32.gmra.mrb[0].mxu0 %v1428
      %v4323 = vpop.f32.mrb[0].mxu0
      %v4324 = vadd.f32 %v4099, %v4323
      %v4325 = vpop.f32.mrb[0].mxu0
      %4326 = vmatprep.mubr.f32.mxu0 %v1461
      %4327 = vmatmul.mubr.f32.gmra.mrb[0].mxu0 %v1429
      %v4328 = vpop.f32.mrb[0].mxu0
      %v4329 = vadd.f32 %v4104, %v4328
      %v4330 = vpop.f32.mrb[0].mxu0
      %4331 = vmatprep.mubr.f32.mxu0 %v1462
      %4332 = vmatmul.mubr.f32.gmra.mrb[0].mxu0 %v1430
      %v4333 = vpop.f32.mrb[0].mxu0
      %v4334 = vadd.f32 %v4109, %v4333
      %v4335 = vpop.f32.mrb[0].mxu0
      %4336 = vmatprep.mubr.f32.mxu0 %v1463
      %4337 = vmatmul.mubr.f32.gmra.mrb[0].mxu0 %v1431
      %v4338 = vpop.f32.mrb[0].mxu0
      %v4339 = vadd.f32 %v4114, %v4338
      %v4340 = vpop.f32.mrb[0].mxu0
      %4341 = vmatprep.mubr.f32.mxu0 %v1464
      %4342 = vmatmul.mubr.f32.gmra.mrb[0].mxu0 %v1432
      %v4343 = vpop.f32.mrb[0].mxu0
      %v4344 = vadd.f32 %v4119, %v4343
      %v4345 = vpop.f32.mrb[0].mxu0
      %4346 = vmatprep.mubr.f32.mxu0 %v1465
      %4347 = vmatmul.mubr.f32.gmra.mrb[0].mxu0 %v1433
      %v4348 = vpop.f32.mrb[0].mxu0
      %v4349 = vadd.f32 %v4124, %v4348
      %v4350 = vpop.f32.mrb[0].mxu0
      %4351 = vmatprep.mubr.f32.mxu0 %v1466
      %4352 = vmatmul.mubr.f32.gmra.mrb[0].mxu0 %v1434
      %v4353 = vpop.f32.mrb[0].mxu0
      %v4354 = vadd.f32 %v4129, %v4353
      %v4355 = vpop.f32.mrb[0].mxu0
      %4356 = vmatprep.mubr.f32.mxu0 %v1467
      %4357 = vmatmul.mubr.f32.gmra.mrb[0].mxu0 %v1435
      %v4358 = vpop.f32.mrb[0].mxu0
      %v4359 = vadd.f32 %v4134, %v4358
      %v4360 = vpop.f32.mrb[0].mxu0
      %4361 = vmatprep.mubr.f32.mxu0 %v1468
      %4362 = vmatmul.mubr.f32.gmra.mrb[0].mxu0 %v1436
      %v4363 = vpop.f32.mrb[0].mxu0
      %v4364 = vadd.f32 %v4139, %v4363
      %v4365 = vpop.f32.mrb[0].mxu0
      %4366 = vmatprep.mubr.f32.mxu0 %v1469
      %4367 = vmatmul.mubr.f32.gmra.mrb[0].mxu0 %v1437
      %v4368 = vpop.f32.mrb[0].mxu0
      %v4369 = vadd.f32 %v4144, %v4368
      %v4370 = vpop.f32.mrb[0].mxu0
      %4371 = vmatprep.mubr.f32.mxu0 %v1470
      %4372 = vmatmul.mubr.f32.gmra.mrb[0].mxu0 %v1438
      %v4373 = vpop.f32.mrb[0].mxu0
      %v4374 = vadd.f32 %v4149, %v4373
      %v4375 = vpop.f32.mrb[0].mxu0
      %4376 = vmatprep.mubr.f32.mxu0 %v1471
      %4377 = vmatmul.mubr.f32.gmra.mrb[0].mxu0 %v1439
      %v4378 = vpop.f32.mrb[0].mxu0
      %v4379 = vadd.f32 %v4154, %v4378
      %v4380 = vpop.f32.mrb[0].mxu0
      %4381 = vmatprep.mubr.f32.mxu0 %v1472
      %4382 = vmatmul.mubr.f32.gmra.mrb[0].mxu0 %v1440
      %v4383 = vpop.f32.mrb[0].mxu0
      %v4384 = vadd.f32 %v4159, %v4383
      %v4385 = vpop.f32.mrb[0].mxu0
      %4386 = vmatprep.mubr.f32.mxu0 %v1473
      %4387 = vmatmul.mubr.f32.gmra.mrb[0].mxu0 %v1441
      %v4388 = vpop.f32.mrb[0].mxu0
      %v4389 = vadd.f32 %v4164, %v4388
      %v4390 = vpop.f32.mrb[0].mxu0
      %4391 = vmatprep.mubr.f32.mxu0 %v1474
      %4392 = vmatmul.mubr.f32.gmra.mrb[0].mxu0 %v1442
      %v4393 = vpop.f32.mrb[0].mxu0
      %v4394 = vadd.f32 %v4169, %v4393
      %v4395 = vpop.f32.mrb[0].mxu0
      %4396 = vmatprep.mubr.f32.mxu0 %v1475
      %4397 = vmatmul.mubr.f32.gmra.mrb[0].mxu0 %v1443
      %v4398 = vpop.f32.mrb[0].mxu0
      %v4399 = vadd.f32 %v4174, %v4398
      %v4400 = vpop.f32.mrb[0].mxu0
      %4401 = vmatprep.mubr.f32.mxu0 %v1476
      %4402 = vmatmul.mubr.f32.gmra.mrb[0].mxu0 %v1444
      %v4403 = vpop.f32.mrb[0].mxu0
      %v4404 = vadd.f32 %v4179, %v4403
      %v4405 = vpop.f32.mrb[0].mxu0
      %4406 = vmatprep.mubr.f32.mxu0 %v1477
      %4407 = vmatmul.mubr.f32.gmra.mrb[0].mxu0 %v1445
      %v4408 = vpop.f32.mrb[0].mxu0
      %v4409 = vadd.f32 %v4184, %v4408
      %v4410 = vpop.f32.mrb[0].mxu0
      %4411 = vmatprep.mubr.f32.mxu0 %v1478
      %4412 = vmatmul.mubr.f32.gmra.mrb[0].mxu0 %v1446
      %v4413 = vpop.f32.mrb[0].mxu0
      %v4414 = vadd.f32 %v4189, %v4413
      %v4415 = vpop.f32.mrb[0].mxu0
      %4416 = vmatprep.mubr.f32.mxu0 %v1479
      %4417 = vmatmul.mubr.f32.gmra.mrb[0].mxu0 %v1447
      %v4418 = vpop.f32.mrb[0].mxu0
      %v4419 = vadd.f32 %v4194, %v4418
      %v4420 = vpop.f32.mrb[0].mxu0
      %4421 = vmatprep.mubr.f32.mxu0 %v1480
      %4422 = vmatmul.mubr.f32.gmra.mrb[0].mxu0 %v1448
      %v4423 = vpop.f32.mrb[0].mxu0
      %v4424 = vadd.f32 %v4199, %v4423
      %v4425 = vpop.f32.mrb[0].mxu0
      %4426 = vmatprep.mubr.f32.mxu0 %v1481
      %4427 = vmatmul.mubr.f32.gmra.mrb[0].mxu0 %v1449
      %v4428 = vpop.f32.mrb[0].mxu0
      %v4429 = vadd.f32 %v4204, %v4428
      %v4430 = vpop.f32.mrb[0].mxu0
      %4431 = vmatprep.mubr.f32.mxu0 %v1482
      %4432 = vmatmul.mubr.f32.gmra.mrb[0].mxu0 %v1450
      %v4433 = vpop.f32.mrb[0].mxu0
      %v4434 = vadd.f32 %v4209, %v4433
      %v4435 = vpop.f32.mrb[0].mxu0
      %4436 = vmatprep.mubr.f32.mxu0 %v1483
      %4437 = vmatmul.mubr.f32.gmra.mrb[0].mxu0 %v1451
      %v4438 = vpop.f32.mrb[0].mxu0
      %v4439 = vadd.f32 %v4214, %v4438
      %v4440 = vpop.f32.mrb[0].mxu0
      %4441 = vmatprep.mubr.f32.mxu0 %v1484
      %4442 = vmatmul.mubr.f32.gmra.mrb[0].mxu0 %v1452
      %v4443 = vpop.f32.mrb[0].mxu0
      %v4444 = vadd.f32 %v4219, %v4443
      %v4445 = vpop.f32.mrb[0].mxu0
      %4446 = vmatprep.mubr.f32.mxu0 %v1485
      %4447 = vmatmul.mubr.f32.gmra.mrb[0].mxu0 %v1453
      %v4448 = vpop.f32.mrb[0].mxu0
      %v4449 = vadd.f32 %v4224, %v4448
      %v4450 = vpop.f32.mrb[0].mxu0
      %4451 = vmatprep.mubr.f32.mxu0 %v1486
      %4452 = vmatmul.mubr.f32.gmra.mrb[0].mxu0 %v1454
      %v4453 = vpop.f32.mrb[0].mxu0
      %v4454 = vadd.f32 %v4229, %v4453
      %v4455 = vpop.f32.mrb[0].mxu0
      %4456 = vmatprep.mubr.f32.mxu0 %v1487
      %4457 = vmatmul.mubr.f32.gmra.mrb[0].mxu0 %v1455
      %v4458 = vpop.f32.mrb[0].mxu0
      %v4459 = vadd.f32 %v4234, %v4458
      %v4460 = vpop.f32.mrb[0].mxu0
      %4461 = vmatprep.mubr.f32.mxu0 %v1488
      %4462 = vmatmul.mubr.f32.gmra.mrb[0].mxu0 %v1456
      %v4463 = vpop.f32.mrb[0].mxu0
      %v4464 = vadd.f32 %v4239, %v4463
      %v4465 = vpop.f32.mrb[0].mxu0
      %4466 = vdwg.mxu0
      %4467 = vmatprep.subr.mxu0 0.0
      %4468 = vmatpush1.msra.mxu0 %v1937
      %4469 = vmatprep.subr.mxu0 0.0
      %4470 = vmatpush1.msra.mxu0 %v1938
      %4471 = vmatprep.subr.mxu0 0.0
      %4472 = vmatpush1.msra.mxu0 %v1939
      %4473 = vmatprep.subr.mxu0 0.0
      %4474 = vmatpush1.msra.mxu0 %v1940
      %4475 = vmatprep.subr.mxu0 0.0
      %4476 = vmatpush1.msra.mxu0 %v1941
      %4477 = vmatprep.subr.mxu0 0.0
      %4478 = vmatpush1.msra.mxu0 %v1942
      %4479 = vmatprep.subr.mxu0 0.0
      %4480 = vmatpush1.msra.mxu0 %v1943
      %4481 = vmatprep.subr.mxu0 0.0
      %4482 = vmatpush1.msra.mxu0 %v1944
      %4483 = vmatprep.subr.mxu0 0.0
      %4484 = vmatpush1.msra.mxu0 %v1945
      %4485 = vmatprep.subr.mxu0 0.0
      %4486 = vmatpush1.msra.mxu0 %v1946
      %4487 = vmatprep.subr.mxu0 0.0
      %4488 = vmatpush1.msra.mxu0 %v1947
      %4489 = vmatprep.subr.mxu0 0.0
      %4490 = vmatpush1.msra.mxu0 %v1948
      %4491 = vmatprep.subr.mxu0 0.0
      %4492 = vmatpush1.msra.mxu0 %v1949
      %4493 = vmatprep.subr.mxu0 0.0
      %4494 = vmatpush1.msra.mxu0 %v1950
      %4495 = vmatprep.subr.mxu0 0.0
      %4496 = vmatpush1.msra.mxu0 %v1951
      %4497 = vmatprep.subr.mxu0 0.0
      %4498 = vmatpush1.msra.mxu0 %v1952
      %4499 = vmatprep.subr.mxu0 0.0
      %4500 = vmatpush1.msra.mxu0 %v1953
      %4501 = vmatprep.subr.mxu0 0.0
      %4502 = vmatpush1.msra.mxu0 %v1954
      %4503 = vmatprep.subr.mxu0 0.0
      %4504 = vmatpush1.msra.mxu0 %v1955
      %4505 = vmatprep.subr.mxu0 0.0
      %4506 = vmatpush1.msra.mxu0 %v1956
      %4507 = vmatprep.subr.mxu0 0.0
      %4508 = vmatpush1.msra.mxu0 %v1957
      %4509 = vmatprep.subr.mxu0 0.0
      %4510 = vmatpush1.msra.mxu0 %v1958
      %4511 = vmatprep.subr.mxu0 0.0
      %4512 = vmatpush1.msra.mxu0 %v1959
      %4513 = vmatprep.subr.mxu0 0.0
      %4514 = vmatpush1.msra.mxu0 %v1960
      %4515 = vmatprep.subr.mxu0 0.0
      %4516 = vmatpush1.msra.mxu0 %v1961
      %4517 = vmatprep.subr.mxu0 0.0
      %4518 = vmatpush1.msra.mxu0 %v1962
      %4519 = vmatprep.subr.mxu0 0.0
      %4520 = vmatpush1.msra.mxu0 %v1963
      %4521 = vmatprep.subr.mxu0 0.0
      %4522 = vmatpush1.msra.mxu0 %v1964
      %4523 = vmatprep.subr.mxu0 0.0
      %4524 = vmatpush1.msra.mxu0 %v1965
      %4525 = vmatprep.subr.mxu0 0.0
      %4526 = vmatpush1.msra.mxu0 %v1966
      %4527 = vmatprep.subr.mxu0 0.0
      %4528 = vmatpush1.msra.mxu0 %v1967
      %4529 = vmatprep.subr.mxu0 0.0
      %4530 = vmatpush1.msra.mxu0 %v1968
      %4531 = vmatprep.mubr.f32.mxu0 %v1521
      %4532 = vmatmul.mubr.f32.gmra.mrb[0].mxu0 %v1489
      %v4533 = vpop.f32.mrb[0].mxu0
      %v4534 = vadd.f32 %v4309, %v4533
      %v4535 = vpop.f32.mrb[0].mxu0
      %4536 = vmatprep.mubr.f32.mxu0 %v1522
      %4537 = vmatmul.mubr.f32.gmra.mrb[0].mxu0 %v1490
      %v4538 = vpop.f32.mrb[0].mxu0
      %v4539 = vadd.f32 %v4314, %v4538
      %v4540 = vpop.f32.mrb[0].mxu0
      %4541 = vmatprep.mubr.f32.mxu0 %v1523
      %4542 = vmatmul.mubr.f32.gmra.mrb[0].mxu0 %v1491
      %v4543 = vpop.f32.mrb[0].mxu0
      %v4544 = vadd.f32 %v4319, %v4543
      %v4545 = vpop.f32.mrb[0].mxu0
      %4546 = vmatprep.mubr.f32.mxu0 %v1524
      %4547 = vmatmul.mubr.f32.gmra.mrb[0].mxu0 %v1492
      %v4548 = vpop.f32.mrb[0].mxu0
      %v4549 = vadd.f32 %v4324, %v4548
      %v4550 = vpop.f32.mrb[0].mxu0
      %4551 = vmatprep.mubr.f32.mxu0 %v1525
      %4552 = vmatmul.mubr.f32.gmra.mrb[0].mxu0 %v1493
      %v4553 = vpop.f32.mrb[0].mxu0
      %v4554 = vadd.f32 %v4329, %v4553
      %v4555 = vpop.f32.mrb[0].mxu0
      %4556 = vmatprep.mubr.f32.mxu0 %v1526
      %4557 = vmatmul.mubr.f32.gmra.mrb[0].mxu0 %v1494
      %v4558 = vpop.f32.mrb[0].mxu0
      %v4559 = vadd.f32 %v4334, %v4558
      %v4560 = vpop.f32.mrb[0].mxu0
      %4561 = vmatprep.mubr.f32.mxu0 %v1527
      %4562 = vmatmul.mubr.f32.gmra.mrb[0].mxu0 %v1495
      %v4563 = vpop.f32.mrb[0].mxu0
      %v4564 = vadd.f32 %v4339, %v4563
      %v4565 = vpop.f32.mrb[0].mxu0
      %4566 = vmatprep.mubr.f32.mxu0 %v1528
      %4567 = vmatmul.mubr.f32.gmra.mrb[0].mxu0 %v1496
      %v4568 = vpop.f32.mrb[0].mxu0
      %v4569 = vadd.f32 %v4344, %v4568
      %v4570 = vpop.f32.mrb[0].mxu0
      %4571 = vmatprep.mubr.f32.mxu0 %v1529
      %4572 = vmatmul.mubr.f32.gmra.mrb[0].mxu0 %v1497
      %v4573 = vpop.f32.mrb[0].mxu0
      %v4574 = vadd.f32 %v4349, %v4573
      %v4575 = vpop.f32.mrb[0].mxu0
      %4576 = vmatprep.mubr.f32.mxu0 %v1530
      %4577 = vmatmul.mubr.f32.gmra.mrb[0].mxu0 %v1498
      %v4578 = vpop.f32.mrb[0].mxu0
      %v4579 = vadd.f32 %v4354, %v4578
      %v4580 = vpop.f32.mrb[0].mxu0
      %4581 = vmatprep.mubr.f32.mxu0 %v1531
      %4582 = vmatmul.mubr.f32.gmra.mrb[0].mxu0 %v1499
      %v4583 = vpop.f32.mrb[0].mxu0
      %v4584 = vadd.f32 %v4359, %v4583
      %v4585 = vpop.f32.mrb[0].mxu0
      %4586 = vmatprep.mubr.f32.mxu0 %v1532
      %4587 = vmatmul.mubr.f32.gmra.mrb[0].mxu0 %v1500
      %v4588 = vpop.f32.mrb[0].mxu0
      %v4589 = vadd.f32 %v4364, %v4588
      %v4590 = vpop.f32.mrb[0].mxu0
      %4591 = vmatprep.mubr.f32.mxu0 %v1533
      %4592 = vmatmul.mubr.f32.gmra.mrb[0].mxu0 %v1501
      %v4593 = vpop.f32.mrb[0].mxu0
      %v4594 = vadd.f32 %v4369, %v4593
      %v4595 = vpop.f32.mrb[0].mxu0
      %4596 = vmatprep.mubr.f32.mxu0 %v1534
      %4597 = vmatmul.mubr.f32.gmra.mrb[0].mxu0 %v1502
      %v4598 = vpop.f32.mrb[0].mxu0
      %v4599 = vadd.f32 %v4374, %v4598
      %v4600 = vpop.f32.mrb[0].mxu0
      %4601 = vmatprep.mubr.f32.mxu0 %v1535
      %4602 = vmatmul.mubr.f32.gmra.mrb[0].mxu0 %v1503
      %v4603 = vpop.f32.mrb[0].mxu0
      %v4604 = vadd.f32 %v4379, %v4603
      %v4605 = vpop.f32.mrb[0].mxu0
      %4606 = vmatprep.mubr.f32.mxu0 %v1536
      %4607 = vmatmul.mubr.f32.gmra.mrb[0].mxu0 %v1504
      %v4608 = vpop.f32.mrb[0].mxu0
      %v4609 = vadd.f32 %v4384, %v4608
      %v4610 = vpop.f32.mrb[0].mxu0
      %4611 = vmatprep.mubr.f32.mxu0 %v1537
      %4612 = vmatmul.mubr.f32.gmra.mrb[0].mxu0 %v1505
      %v4613 = vpop.f32.mrb[0].mxu0
      %v4614 = vadd.f32 %v4389, %v4613
      %v4615 = vpop.f32.mrb[0].mxu0
      %4616 = vmatprep.mubr.f32.mxu0 %v1538
      %4617 = vmatmul.mubr.f32.gmra.mrb[0].mxu0 %v1506
      %v4618 = vpop.f32.mrb[0].mxu0
      %v4619 = vadd.f32 %v4394, %v4618
      %v4620 = vpop.f32.mrb[0].mxu0
      %4621 = vmatprep.mubr.f32.mxu0 %v1539
      %4622 = vmatmul.mubr.f32.gmra.mrb[0].mxu0 %v1507
      %v4623 = vpop.f32.mrb[0].mxu0
      %v4624 = vadd.f32 %v4399, %v4623
      %v4625 = vpop.f32.mrb[0].mxu0
      %4626 = vmatprep.mubr.f32.mxu0 %v1540
      %4627 = vmatmul.mubr.f32.gmra.mrb[0].mxu0 %v1508
      %v4628 = vpop.f32.mrb[0].mxu0
      %v4629 = vadd.f32 %v4404, %v4628
      %v4630 = vpop.f32.mrb[0].mxu0
      %4631 = vmatprep.mubr.f32.mxu0 %v1541
      %4632 = vmatmul.mubr.f32.gmra.mrb[0].mxu0 %v1509
      %v4633 = vpop.f32.mrb[0].mxu0
      %v4634 = vadd.f32 %v4409, %v4633
      %v4635 = vpop.f32.mrb[0].mxu0
      %4636 = vmatprep.mubr.f32.mxu0 %v1542
      %4637 = vmatmul.mubr.f32.gmra.mrb[0].mxu0 %v1510
      %v4638 = vpop.f32.mrb[0].mxu0
      %v4639 = vadd.f32 %v4414, %v4638
      %v4640 = vpop.f32.mrb[0].mxu0
      %4641 = vmatprep.mubr.f32.mxu0 %v1543
      %4642 = vmatmul.mubr.f32.gmra.mrb[0].mxu0 %v1511
      %v4643 = vpop.f32.mrb[0].mxu0
      %v4644 = vadd.f32 %v4419, %v4643
      %v4645 = vpop.f32.mrb[0].mxu0
      %4646 = vmatprep.mubr.f32.mxu0 %v1544
      %4647 = vmatmul.mubr.f32.gmra.mrb[0].mxu0 %v1512
      %v4648 = vpop.f32.mrb[0].mxu0
      %v4649 = vadd.f32 %v4424, %v4648
      %v4650 = vpop.f32.mrb[0].mxu0
      %4651 = vmatprep.mubr.f32.mxu0 %v1545
      %4652 = vmatmul.mubr.f32.gmra.mrb[0].mxu0 %v1513
      %v4653 = vpop.f32.mrb[0].mxu0
      %v4654 = vadd.f32 %v4429, %v4653
      %v4655 = vpop.f32.mrb[0].mxu0
      %4656 = vmatprep.mubr.f32.mxu0 %v1546
      %4657 = vmatmul.mubr.f32.gmra.mrb[0].mxu0 %v1514
      %v4658 = vpop.f32.mrb[0].mxu0
      %v4659 = vadd.f32 %v4434, %v4658
      %v4660 = vpop.f32.mrb[0].mxu0
      %4661 = vmatprep.mubr.f32.mxu0 %v1547
      %4662 = vmatmul.mubr.f32.gmra.mrb[0].mxu0 %v1515
      %v4663 = vpop.f32.mrb[0].mxu0
      %v4664 = vadd.f32 %v4439, %v4663
      %v4665 = vpop.f32.mrb[0].mxu0
      %4666 = vmatprep.mubr.f32.mxu0 %v1548
      %4667 = vmatmul.mubr.f32.gmra.mrb[0].mxu0 %v1516
      %v4668 = vpop.f32.mrb[0].mxu0
      %v4669 = vadd.f32 %v4444, %v4668
      %v4670 = vpop.f32.mrb[0].mxu0
      %4671 = vmatprep.mubr.f32.mxu0 %v1549
      %4672 = vmatmul.mubr.f32.gmra.mrb[0].mxu0 %v1517
      %v4673 = vpop.f32.mrb[0].mxu0
      %v4674 = vadd.f32 %v4449, %v4673
      %v4675 = vpop.f32.mrb[0].mxu0
      %4676 = vmatprep.mubr.f32.mxu0 %v1550
      %4677 = vmatmul.mubr.f32.gmra.mrb[0].mxu0 %v1518
      %v4678 = vpop.f32.mrb[0].mxu0
      %v4679 = vadd.f32 %v4454, %v4678
      %v4680 = vpop.f32.mrb[0].mxu0
      %4681 = vmatprep.mubr.f32.mxu0 %v1551
      %4682 = vmatmul.mubr.f32.gmra.mrb[0].mxu0 %v1519
      %v4683 = vpop.f32.mrb[0].mxu0
      %v4684 = vadd.f32 %v4459, %v4683
      %v4685 = vpop.f32.mrb[0].mxu0
      %4686 = vmatprep.mubr.f32.mxu0 %v1552
      %4687 = vmatmul.mubr.f32.gmra.mrb[0].mxu0 %v1520
      %v4688 = vpop.f32.mrb[0].mxu0
      %v4689 = vadd.f32 %v4464, %v4688
      %v4690 = vpop.f32.mrb[0].mxu0
      %4691 = vdwg.mxu0
      %4692 = vmatprep.subr.mxu0 0.0
      %4693 = vmatpush1.msra.mxu0 %v1969
      %4694 = vmatprep.subr.mxu0 0.0
      %4695 = vmatpush1.msra.mxu0 %v1970
      %4696 = vmatprep.subr.mxu0 0.0
      %4697 = vmatpush1.msra.mxu0 %v1971
      %4698 = vmatprep.subr.mxu0 0.0
      %4699 = vmatpush1.msra.mxu0 %v1972
      %4700 = vmatprep.subr.mxu0 0.0
      %4701 = vmatpush1.msra.mxu0 %v1973
      %4702 = vmatprep.subr.mxu0 0.0
      %4703 = vmatpush1.msra.mxu0 %v1974
      %4704 = vmatprep.subr.mxu0 0.0
      %4705 = vmatpush1.msra.mxu0 %v1975
      %4706 = vmatprep.subr.mxu0 0.0
      %4707 = vmatpush1.msra.mxu0 %v1976
      %4708 = vmatprep.subr.mxu0 0.0
      %4709 = vmatpush1.msra.mxu0 %v1977
      %4710 = vmatprep.subr.mxu0 0.0
      %4711 = vmatpush1.msra.mxu0 %v1978
      %4712 = vmatprep.subr.mxu0 0.0
      %4713 = vmatpush1.msra.mxu0 %v1979
      %4714 = vmatprep.subr.mxu0 0.0
      %4715 = vmatpush1.msra.mxu0 %v1980
      %4716 = vmatprep.subr.mxu0 0.0
      %4717 = vmatpush1.msra.mxu0 %v1981
      %4718 = vmatprep.subr.mxu0 0.0
      %4719 = vmatpush1.msra.mxu0 %v1982
      %4720 = vmatprep.subr.mxu0 0.0
      %4721 = vmatpush1.msra.mxu0 %v1983
      %4722 = vmatprep.subr.mxu0 0.0
      %4723 = vmatpush1.msra.mxu0 %v1984
      %4724 = vmatprep.subr.mxu0 0.0
      %4725 = vmatpush1.msra.mxu0 0.0
      %4726 = vmatprep.subr.mxu0 0.0
      %4727 = vmatpush1.msra.mxu0 0.0
      %4728 = vmatprep.subr.mxu0 0.0
      %4729 = vmatpush1.msra.mxu0 0.0
      %4730 = vmatprep.subr.mxu0 0.0
      %4731 = vmatpush1.msra.mxu0 0.0
      %4732 = vmatprep.subr.mxu0 0.0
      %4733 = vmatpush1.msra.mxu0 0.0
      %4734 = vmatprep.subr.mxu0 0.0
      %4735 = vmatpush1.msra.mxu0 0.0
      %4736 = vmatprep.subr.mxu0 0.0
      %4737 = vmatpush1.msra.mxu0 0.0
      %4738 = vmatprep.subr.mxu0 0.0
      %4739 = vmatpush1.msra.mxu0 0.0
      %4740 = vmatprep.subr.mxu0 0.0
      %4741 = vmatpush1.msra.mxu0 0.0
      %4742 = vmatprep.subr.mxu0 0.0
      %4743 = vmatpush1.msra.mxu0 0.0
      %4744 = vmatprep.subr.mxu0 0.0
      %4745 = vmatpush1.msra.mxu0 0.0
      %4746 = vmatprep.subr.mxu0 0.0
      %4747 = vmatpush1.msra.mxu0 0.0
      %4748 = vmatprep.subr.mxu0 0.0
      %4749 = vmatpush1.msra.mxu0 0.0
      %4750 = vmatprep.subr.mxu0 0.0
      %4751 = vmatpush1.msra.mxu0 0.0
      %4752 = vmatprep.subr.mxu0 0.0
      %4753 = vmatpush1.msra.mxu0 0.0
      %4754 = vmatprep.subr.mxu0 0.0
      %4755 = vmatpush1.msra.mxu0 0.0
      %4756 = vmatprep.mubr.f32.mxu0 0.0
      %4757 = vmatmul.mubr.f32.gmra.mrb[0].mxu0 %v1553
      %v4758 = vpop.f32.mrb[0].mxu0
      %v4759 = vadd.f32 %v4534, %v4758
      %v4760 = vpop.f32.mrb[0].mxu0
      %4761 = vmatprep.mubr.f32.mxu0 0.0
      %4762 = vmatmul.mubr.f32.gmra.mrb[0].mxu0 %v1554
      %v4763 = vpop.f32.mrb[0].mxu0
      %v4764 = vadd.f32 %v4539, %v4763
      %v4765 = vpop.f32.mrb[0].mxu0
      %4766 = vmatprep.mubr.f32.mxu0 0.0
      %4767 = vmatmul.mubr.f32.gmra.mrb[0].mxu0 %v1555
      %v4768 = vpop.f32.mrb[0].mxu0
      %v4769 = vadd.f32 %v4544, %v4768
      %v4770 = vpop.f32.mrb[0].mxu0
      %4771 = vmatprep.mubr.f32.mxu0 0.0
      %4772 = vmatmul.mubr.f32.gmra.mrb[0].mxu0 %v1556
      %v4773 = vpop.f32.mrb[0].mxu0
      %v4774 = vadd.f32 %v4549, %v4773
      %v4775 = vpop.f32.mrb[0].mxu0
      %4776 = vmatprep.mubr.f32.mxu0 0.0
      %4777 = vmatmul.mubr.f32.gmra.mrb[0].mxu0 %v1557
      %v4778 = vpop.f32.mrb[0].mxu0
      %v4779 = vadd.f32 %v4554, %v4778
      %v4780 = vpop.f32.mrb[0].mxu0
      %4781 = vmatprep.mubr.f32.mxu0 0.0
      %4782 = vmatmul.mubr.f32.gmra.mrb[0].mxu0 %v1558
      %v4783 = vpop.f32.mrb[0].mxu0
      %v4784 = vadd.f32 %v4559, %v4783
      %v4785 = vpop.f32.mrb[0].mxu0
      %4786 = vmatprep.mubr.f32.mxu0 0.0
      %4787 = vmatmul.mubr.f32.gmra.mrb[0].mxu0 %v1559
      %v4788 = vpop.f32.mrb[0].mxu0
      %v4789 = vadd.f32 %v4564, %v4788
      %v4790 = vpop.f32.mrb[0].mxu0
      %4791 = vmatprep.mubr.f32.mxu0 0.0
      %4792 = vmatmul.mubr.f32.gmra.mrb[0].mxu0 %v1560
      %v4793 = vpop.f32.mrb[0].mxu0
      %v4794 = vadd.f32 %v4569, %v4793
      %v4795 = vpop.f32.mrb[0].mxu0
      %4796 = vmatprep.mubr.f32.mxu0 0.0
      %4797 = vmatmul.mubr.f32.gmra.mrb[0].mxu0 %v1561
      %v4798 = vpop.f32.mrb[0].mxu0
      %v4799 = vadd.f32 %v4574, %v4798
      %v4800 = vpop.f32.mrb[0].mxu0
      %4801 = vmatprep.mubr.f32.mxu0 0.0
      %4802 = vmatmul.mubr.f32.gmra.mrb[0].mxu0 %v1562
      %v4803 = vpop.f32.mrb[0].mxu0
      %v4804 = vadd.f32 %v4579, %v4803
      %v4805 = vpop.f32.mrb[0].mxu0
      %4806 = vmatprep.mubr.f32.mxu0 0.0
      %4807 = vmatmul.mubr.f32.gmra.mrb[0].mxu0 %v1563
      %v4808 = vpop.f32.mrb[0].mxu0
      %v4809 = vadd.f32 %v4584, %v4808
      %v4810 = vpop.f32.mrb[0].mxu0
      %4811 = vmatprep.mubr.f32.mxu0 0.0
      %4812 = vmatmul.mubr.f32.gmra.mrb[0].mxu0 %v1564
      %v4813 = vpop.f32.mrb[0].mxu0
      %v4814 = vadd.f32 %v4589, %v4813
      %v4815 = vpop.f32.mrb[0].mxu0
      %4816 = vmatprep.mubr.f32.mxu0 0.0
      %4817 = vmatmul.mubr.f32.gmra.mrb[0].mxu0 %v1565
      %v4818 = vpop.f32.mrb[0].mxu0
      %v4819 = vadd.f32 %v4594, %v4818
      %v4820 = vpop.f32.mrb[0].mxu0
      %4821 = vmatprep.mubr.f32.mxu0 0.0
      %4822 = vmatmul.mubr.f32.gmra.mrb[0].mxu0 %v1566
      %v4823 = vpop.f32.mrb[0].mxu0
      %v4824 = vadd.f32 %v4599, %v4823
      %v4825 = vpop.f32.mrb[0].mxu0
      %4826 = vmatprep.mubr.f32.mxu0 0.0
      %4827 = vmatmul.mubr.f32.gmra.mrb[0].mxu0 %v1567
      %v4828 = vpop.f32.mrb[0].mxu0
      %v4829 = vadd.f32 %v4604, %v4828
      %v4830 = vpop.f32.mrb[0].mxu0
      %4831 = vmatprep.mubr.f32.mxu0 0.0
      %4832 = vmatmul.mubr.f32.gmra.mrb[0].mxu0 %v1568
      %v4833 = vpop.f32.mrb[0].mxu0
      %v4834 = vadd.f32 %v4609, %v4833
      %v4835 = vpop.f32.mrb[0].mxu0
      %4836 = vmatprep.mubr.f32.mxu0 0.0
      %4837 = vmatmul.mubr.f32.gmra.mrb[0].mxu0 %v1569
      %v4838 = vpop.f32.mrb[0].mxu0
      %v4839 = vadd.f32 %v4614, %v4838
      %v4840 = vpop.f32.mrb[0].mxu0
      %4841 = vmatprep.mubr.f32.mxu0 0.0
      %4842 = vmatmul.mubr.f32.gmra.mrb[0].mxu0 %v1570
      %v4843 = vpop.f32.mrb[0].mxu0
      %v4844 = vadd.f32 %v4619, %v4843
      %v4845 = vpop.f32.mrb[0].mxu0
      %4846 = vmatprep.mubr.f32.mxu0 0.0
      %4847 = vmatmul.mubr.f32.gmra.mrb[0].mxu0 %v1571
      %v4848 = vpop.f32.mrb[0].mxu0
      %v4849 = vadd.f32 %v4624, %v4848
      %v4850 = vpop.f32.mrb[0].mxu0
      %4851 = vmatprep.mubr.f32.mxu0 0.0
      %4852 = vmatmul.mubr.f32.gmra.mrb[0].mxu0 %v1572
      %v4853 = vpop.f32.mrb[0].mxu0
      %v4854 = vadd.f32 %v4629, %v4853
      %v4855 = vpop.f32.mrb[0].mxu0
      %4856 = vmatprep.mubr.f32.mxu0 0.0
      %4857 = vmatmul.mubr.f32.gmra.mrb[0].mxu0 %v1573
      %v4858 = vpop.f32.mrb[0].mxu0
      %v4859 = vadd.f32 %v4634, %v4858
      %v4860 = vpop.f32.mrb[0].mxu0
      %4861 = vmatprep.mubr.f32.mxu0 0.0
      %4862 = vmatmul.mubr.f32.gmra.mrb[0].mxu0 %v1574
      %v4863 = vpop.f32.mrb[0].mxu0
      %v4864 = vadd.f32 %v4639, %v4863
      %v4865 = vpop.f32.mrb[0].mxu0
      %4866 = vmatprep.mubr.f32.mxu0 0.0
      %4867 = vmatmul.mubr.f32.gmra.mrb[0].mxu0 %v1575
      %v4868 = vpop.f32.mrb[0].mxu0
      %v4869 = vadd.f32 %v4644, %v4868
      %v4870 = vpop.f32.mrb[0].mxu0
      %4871 = vmatprep.mubr.f32.mxu0 0.0
      %4872 = vmatmul.mubr.f32.gmra.mrb[0].mxu0 %v1576
      %v4873 = vpop.f32.mrb[0].mxu0
      %v4874 = vadd.f32 %v4649, %v4873
      %v4875 = vpop.f32.mrb[0].mxu0
      %4876 = vmatprep.mubr.f32.mxu0 0.0
      %4877 = vmatmul.mubr.f32.gmra.mrb[0].mxu0 %v1577
      %v4878 = vpop.f32.mrb[0].mxu0
      %v4879 = vadd.f32 %v4654, %v4878
      %v4880 = vpop.f32.mrb[0].mxu0
      %4881 = vmatprep.mubr.f32.mxu0 0.0
      %4882 = vmatmul.mubr.f32.gmra.mrb[0].mxu0 %v1578
      %v4883 = vpop.f32.mrb[0].mxu0
      %v4884 = vadd.f32 %v4659, %v4883
      %v4885 = vpop.f32.mrb[0].mxu0
      %4886 = vmatprep.mubr.f32.mxu0 0.0
      %4887 = vmatmul.mubr.f32.gmra.mrb[0].mxu0 %v1579
      %v4888 = vpop.f32.mrb[0].mxu0
      %v4889 = vadd.f32 %v4664, %v4888
      %v4890 = vpop.f32.mrb[0].mxu0
      %4891 = vmatprep.mubr.f32.mxu0 0.0
      %4892 = vmatmul.mubr.f32.gmra.mrb[0].mxu0 %v1580
      %v4893 = vpop.f32.mrb[0].mxu0
      %v4894 = vadd.f32 %v4669, %v4893
      %v4895 = vpop.f32.mrb[0].mxu0
      %4896 = vmatprep.mubr.f32.mxu0 0.0
      %4897 = vmatmul.mubr.f32.gmra.mrb[0].mxu0 %v1581
      %v4898 = vpop.f32.mrb[0].mxu0
      %v4899 = vadd.f32 %v4674, %v4898
      %v4900 = vpop.f32.mrb[0].mxu0
      %4901 = vmatprep.mubr.f32.mxu0 0.0
      %4902 = vmatmul.mubr.f32.gmra.mrb[0].mxu0 %v1582
      %v4903 = vpop.f32.mrb[0].mxu0
      %v4904 = vadd.f32 %v4679, %v4903
      %v4905 = vpop.f32.mrb[0].mxu0
      %4906 = vmatprep.mubr.f32.mxu0 0.0
      %4907 = vmatmul.mubr.f32.gmra.mrb[0].mxu0 %v1583
      %v4908 = vpop.f32.mrb[0].mxu0
      %v4909 = vadd.f32 %v4684, %v4908
      %v4910 = vpop.f32.mrb[0].mxu0
      %4911 = vmatprep.mubr.f32.mxu0 0.0
      %4912 = vmatmul.mubr.f32.gmra.mrb[0].mxu0 %v1584
      %v4913 = vpop.f32.mrb[0].mxu0
      %v4914 = vadd.f32 %v4689, %v4913
      %v4915 = vpop.f32.mrb[0].mxu0
      %4916 = vdwg.mxu0
      %v4917 = vmax.f32 %v4759, 0.0
      %v4918 = vmax.f32 %v4764, 0.0
      %v4919 = vmax.f32 %v4769, 0.0
      %v4920 = vmax.f32 %v4774, 0.0
      %v4921 = vmax.f32 %v4779, 0.0
      %v4922 = vmax.f32 %v4784, 0.0
      %v4923 = vmax.f32 %v4789, 0.0
      %v4924 = vmax.f32 %v4794, 0.0
      %v4925 = vmax.f32 %v4799, 0.0
      %v4926 = vmax.f32 %v4804, 0.0
      %v4927 = vmax.f32 %v4809, 0.0
      %v4928 = vmax.f32 %v4814, 0.0
      %v4929 = vmax.f32 %v4819, 0.0
      %v4930 = vmax.f32 %v4824, 0.0
      %v4931 = vmax.f32 %v4829, 0.0
      %v4932 = vmax.f32 %v4834, 0.0
      %v4933 = vmax.f32 %v4839, 0.0
      %v4934 = vmax.f32 %v4844, 0.0
      %v4935 = vmax.f32 %v4849, 0.0
      %v4936 = vmax.f32 %v4854, 0.0
      %v4937 = vmax.f32 %v4859, 0.0
      %v4938 = vmax.f32 %v4864, 0.0
      %v4939 = vmax.f32 %v4869, 0.0
      %v4940 = vmax.f32 %v4874, 0.0
      %v4941 = vmax.f32 %v4879, 0.0
      %v4942 = vmax.f32 %v4884, 0.0
      %v4943 = vmax.f32 %v4889, 0.0
      %v4944 = vmax.f32 %v4894, 0.0
      %v4945 = vmax.f32 %v4899, 0.0
      %v4946 = vmax.f32 %v4904, 0.0
      %v4947 = vmax.f32 %v4909, 0.0
      %v4948 = vmax.f32 %v4914, 0.0
      %vm4949 = vcmask 523264
      %4950 = vst.msk [vmem:[#allocation3] sm:$0xff] %vm4949, 0.0
      %4951 = vst.msk [vmem:[#allocation3 + $0x8] sm:$0xff] %vm4949, 0.0
      %vm4952 = vcmask 519168
      %4953 = vst.msk [vmem:[#allocation3 + $0x10] sm:$0xf] %vm4952, 0.0
      %4954 = vst.msk [vmem:[#allocation3 + $0x18] sm:$0xff] %vm4949, 0.0
      %4955 = vst.msk [vmem:[#allocation3 + $0x20] sm:$0xff] %vm4949, 0.0
      %4956 = vst.msk [vmem:[#allocation3 + $0x28] sm:$0xf] %vm4952, 0.0
      %4957 = vst.msk [vmem:[#allocation3 + $0x30] sm:$0xff] %vm4949, 0.0
      %4958 = vst.msk [vmem:[#allocation3 + $0x38] sm:$0xff] %vm4949, 0.0
      %4959 = vst.msk [vmem:[#allocation3 + $0x40] sm:$0xf] %vm4952, 0.0
      %4960 = vst.msk [vmem:[#allocation3 + $0x48] sm:$0xff] %vm4949, 0.0
      %4961 = vst.msk [vmem:[#allocation3 + $0x50] sm:$0xff] %vm4949, 0.0
      %4962 = vst.msk [vmem:[#allocation3 + $0x58] sm:$0xf] %vm4952, 0.0
      %4963 = vst.msk [vmem:[#allocation3 + $0x60] sm:$0xff] %vm4949, 0.0
      %4964 = vst.msk [vmem:[#allocation3 + $0x68] sm:$0xff] %vm4949, 0.0
      %4965 = vst.msk [vmem:[#allocation3 + $0x70] sm:$0xf] %vm4952, 0.0
      %4966 = vst.msk [vmem:[#allocation3 + $0x78] sm:$0xff] %vm4949, 0.0
      %4967 = vst.msk [vmem:[#allocation3 + $0x80] sm:$0xff] %vm4949, 0.0
      %4968 = vst.msk [vmem:[#allocation3 + $0x88] sm:$0xf] %vm4952, 0.0
      %4969 = vst.msk [vmem:[#allocation3 + $0x90] sm:$0xff] %vm4949, 0.0
      %4970 = vst.msk [vmem:[#allocation3 + $0x98] sm:$0xff] %vm4949, 0.0
      %4971 = vst.msk [vmem:[#allocation3 + $0xa0] sm:$0xf] %vm4952, 0.0
      %4972 = vst.msk [vmem:[#allocation3 + $0xa8] sm:$0xff] %vm4949, 0.0
      %4973 = vst.msk [vmem:[#allocation3 + $0xb0] sm:$0xff] %vm4949, 0.0
      %4974 = vst.msk [vmem:[#allocation3 + $0xb8] sm:$0xf] %vm4952, 0.0
      %4975 = vst.msk [vmem:[#allocation3 + $0xc0] sm:$0xff] %vm4949, 0.0
      %4976 = vst.msk [vmem:[#allocation3 + $0xc8] sm:$0xff] %vm4949, 0.0
      %4977 = vst.msk [vmem:[#allocation3 + $0xd0] sm:$0xf] %vm4952, 0.0
      %4978 = vst.msk [vmem:[#allocation3 + $0xd8] sm:$0xff] %vm4949, 0.0
      %4979 = vst.msk [vmem:[#allocation3 + $0xe0] sm:$0xff] %vm4949, 0.0
      %4980 = vst.msk [vmem:[#allocation3 + $0xe8] sm:$0xf] %vm4952, 0.0
      %4981 = vst.msk [vmem:[#allocation3 + $0xf0] sm:$0xff] %vm4949, 0.0
      %4982 = vst.msk [vmem:[#allocation3 + $0xf8] sm:$0xff] %vm4949, 0.0
      %4983 = vst.msk [vmem:[#allocation3 + $0x100] sm:$0xf] %vm4952, 0.0
      %4984 = vst.msk [vmem:[#allocation3 + $0x108] sm:$0xff] %vm4949, 0.0
      %4985 = vst.msk [vmem:[#allocation3 + $0x110] sm:$0xff] %vm4949, 0.0
      %4986 = vst.msk [vmem:[#allocation3 + $0x118] sm:$0xf] %vm4952, 0.0
      %4987 = vst.msk [vmem:[#allocation3 + $0x120] sm:$0xff] %vm4949, 0.0
      %4988 = vst.msk [vmem:[#allocation3 + $0x128] sm:$0xff] %vm4949, 0.0
      %4989 = vst.msk [vmem:[#allocation3 + $0x130] sm:$0xf] %vm4952, 0.0
      %4990 = vst.msk [vmem:[#allocation3 + $0x138] sm:$0xff] %vm4949, 0.0
      %4991 = vst.msk [vmem:[#allocation3 + $0x140] sm:$0xff] %vm4949, 0.0
      %4992 = vst.msk [vmem:[#allocation3 + $0x148] sm:$0xf] %vm4952, 0.0
      %4993 = vst.msk [vmem:[#allocation3 + $0x150] sm:$0xff] %vm4949, 0.0
      %4994 = vst.msk [vmem:[#allocation3 + $0x158] sm:$0xff] %vm4949, 0.0
      %4995 = vst.msk [vmem:[#allocation3 + $0x160] sm:$0xf] %vm4952, 0.0
      %4996 = vst.msk [vmem:[#allocation3 + $0x168] sm:$0xff] %vm4949, 0.0
      %4997 = vst.msk [vmem:[#allocation3 + $0x170] sm:$0xff] %vm4949, 0.0
      %4998 = vst.msk [vmem:[#allocation3 + $0x178] sm:$0xf] %vm4952, 0.0
      %4999 = vst.msk [vmem:[#allocation3 + $0x180] sm:$0xff] %vm4949, 0.0
      %5000 = vst.msk [vmem:[#allocation3 + $0x188] sm:$0xff] %vm4949, 0.0
      %5001 = vst.msk [vmem:[#allocation3 + $0x190] sm:$0xf] %vm4952, 0.0
      %5002 = vst.msk [vmem:[#allocation3 + $0x198] sm:$0xff] %vm4949, 0.0
      %5003 = vst.msk [vmem:[#allocation3 + $0x1a0] sm:$0xff] %vm4949, 0.0
      %5004 = vst.msk [vmem:[#allocation3 + $0x1a8] sm:$0xf] %vm4952, 0.0
      %5005 = vst.msk [vmem:[#allocation3 + $0x1b0] sm:$0xff] %vm4949, 0.0
      %5006 = vst.msk [vmem:[#allocation3 + $0x1b8] sm:$0xff] %vm4949, 0.0
      %5007 = vst.msk [vmem:[#allocation3 + $0x1c0] sm:$0xf] %vm4952, 0.0
      %5008 = vst.msk [vmem:[#allocation3 + $0x1c8] sm:$0xff] %vm4949, 0.0
      %5009 = vst.msk [vmem:[#allocation3 + $0x1d0] sm:$0xff] %vm4949, 0.0
      %5010 = vst.msk [vmem:[#allocation3 + $0x1d8] sm:$0xf] %vm4952, 0.0
      %s5011 = scalar_lea.vmem [#allocation3], 48
      %5012 = vst.msk [vmem:[%s5011 + $0x2] sm:$0xff] %vm4949, %v4917
      %5013 = vst.msk [vmem:[%s5011 + $0xa] sm:$0xff] %vm4949, %v4918
      %5014 = vst.msk [vmem:[%s5011 + $0x1a] sm:$0xff] %vm4949, %v4919
      %5015 = vst.msk [vmem:[%s5011 + $0x22] sm:$0xff] %vm4949, %v4920
      %5016 = vst.msk [vmem:[%s5011 + $0x32] sm:$0xff] %vm4949, %v4921
      %5017 = vst.msk [vmem:[%s5011 + $0x3a] sm:$0xff] %vm4949, %v4922
      %5018 = vst.msk [vmem:[%s5011 + $0x4a] sm:$0xff] %vm4949, %v4923
      %5019 = vst.msk [vmem:[%s5011 + $0x52] sm:$0xff] %vm4949, %v4924
      %5020 = vst.msk [vmem:[%s5011 + $0x62] sm:$0xff] %vm4949, %v4925
      %5021 = vst.msk [vmem:[%s5011 + $0x6a] sm:$0xff] %vm4949, %v4926
      %5022 = vst.msk [vmem:[%s5011 + $0x7a] sm:$0xff] %vm4949, %v4927
      %5023 = vst.msk [vmem:[%s5011 + $0x82] sm:$0xff] %vm4949, %v4928
      %5024 = vst.msk [vmem:[%s5011 + $0x92] sm:$0xff] %vm4949, %v4929
      %5025 = vst.msk [vmem:[%s5011 + $0x9a] sm:$0xff] %vm4949, %v4930
      %5026 = vst.msk [vmem:[%s5011 + $0xaa] sm:$0xff] %vm4949, %v4931
      %5027 = vst.msk [vmem:[%s5011 + $0xb2] sm:$0xff] %vm4949, %v4932
      %5028 = vst.msk [vmem:[%s5011 + $0xc2] sm:$0xff] %vm4949, %v4933
      %5029 = vst.msk [vmem:[%s5011 + $0xca] sm:$0xff] %vm4949, %v4934
      %5030 = vst.msk [vmem:[%s5011 + $0xda] sm:$0xff] %vm4949, %v4935
      %5031 = vst.msk [vmem:[%s5011 + $0xe2] sm:$0xff] %vm4949, %v4936
      %5032 = vst.msk [vmem:[%s5011 + $0xf2] sm:$0xff] %vm4949, %v4937
      %5033 = vst.msk [vmem:[%s5011 + $0xfa] sm:$0xff] %vm4949, %v4938
      %5034 = vst.msk [vmem:[%s5011 + $0x10a] sm:$0xff] %vm4949, %v4939
      %5035 = vst.msk [vmem:[%s5011 + $0x112] sm:$0xff] %vm4949, %v4940
      %5036 = vst.msk [vmem:[%s5011 + $0x122] sm:$0xff] %vm4949, %v4941
      %5037 = vst.msk [vmem:[%s5011 + $0x12a] sm:$0xff] %vm4949, %v4942
      %5038 = vst.msk [vmem:[%s5011 + $0x13a] sm:$0xff] %vm4949, %v4943
      %5039 = vst.msk [vmem:[%s5011 + $0x142] sm:$0xff] %vm4949, %v4944
      %5040 = vst.msk [vmem:[%s5011 + $0x152] sm:$0xff] %vm4949, %v4945
      %5041 = vst.msk [vmem:[%s5011 + $0x15a] sm:$0xff] %vm4949, %v4946
      %5042 = vst.msk [vmem:[%s5011 + $0x16a] sm:$0xff] %vm4949, %v4947
      %5043 = vst.msk [vmem:[%s5011 + $0x172] sm:$0xff] %vm4949, %v4948
      %v5044 = vld [vmem:[#allocation3] sm:$0xff]
      %v5045 = vld [vmem:[#allocation3 + $0x8] sm:$0xff]
      %v5046 = vld [vmem:[#allocation3 + $0x18] sm:$0xff]
      %v5047 = vld [vmem:[#allocation3 + $0x20] sm:$0xff]
      %v5048 = vld [vmem:[#allocation3 + $0x30] sm:$0xff]
      %v5049 = vld [vmem:[#allocation3 + $0x38] sm:$0xff]
      %v5050 = vld [vmem:[#allocation3 + $0x48] sm:$0xff]
      %v5051 = vld [vmem:[#allocation3 + $0x50] sm:$0xff]
      %v5052 = vld [vmem:[#allocation3 + $0x60] sm:$0xff]
      %v5053 = vld [vmem:[#allocation3 + $0x68] sm:$0xff]
      %v5054 = vld [vmem:[#allocation3 + $0x78] sm:$0xff]
      %v5055 = vld [vmem:[#allocation3 + $0x80] sm:$0xff]
      %v5056 = vld [vmem:[#allocation3 + $0x90] sm:$0xff]
      %v5057 = vld [vmem:[#allocation3 + $0x98] sm:$0xff]
      %v5058 = vld [vmem:[#allocation3 + $0xa8] sm:$0xff]
      %v5059 = vld [vmem:[#allocation3 + $0xb0] sm:$0xff]
      %v5060 = vld [vmem:[#allocation3 + $0xc0] sm:$0xff]
      %v5061 = vld [vmem:[#allocation3 + $0xc8] sm:$0xff]
      %v5062 = vld [vmem:[#allocation3 + $0xd8] sm:$0xff]
      %v5063 = vld [vmem:[#allocation3 + $0xe0] sm:$0xff]
      %v5064 = vld [vmem:[#allocation3 + $0xf0] sm:$0xff]
      %v5065 = vld [vmem:[#allocation3 + $0xf8] sm:$0xff]
      %v5066 = vld [vmem:[#allocation3 + $0x108] sm:$0xff]
      %v5067 = vld [vmem:[#allocation3 + $0x110] sm:$0xff]
      %v5068 = vld [vmem:[#allocation3 + $0x120] sm:$0xff]
      %v5069 = vld [vmem:[#allocation3 + $0x128] sm:$0xff]
      %v5070 = vld [vmem:[#allocation3 + $0x138] sm:$0xff]
      %v5071 = vld [vmem:[#allocation3 + $0x140] sm:$0xff]
      %v5072 = vld [vmem:[#allocation3 + $0x150] sm:$0xff]
      %v5073 = vld [vmem:[#allocation3 + $0x158] sm:$0xff]
      %v5074 = vld [vmem:[#allocation3 + $0x168] sm:$0xff]
      %v5075 = vld [vmem:[#allocation3 + $0x170] sm:$0xff]
      %v5076 = vld [vmem:[#allocation3 + $0x1] sm:$0xff]
      %v5077 = vld [vmem:[#allocation3 + $0x9] sm:$0xff]
      %v5078 = vld [vmem:[#allocation3 + $0x19] sm:$0xff]
      %v5079 = vld [vmem:[#allocation3 + $0x21] sm:$0xff]
      %v5080 = vld [vmem:[#allocation3 + $0x31] sm:$0xff]
      %v5081 = vld [vmem:[#allocation3 + $0x39] sm:$0xff]
      %v5082 = vld [vmem:[#allocation3 + $0x49] sm:$0xff]
      %v5083 = vld [vmem:[#allocation3 + $0x51] sm:$0xff]
      %v5084 = vld [vmem:[#allocation3 + $0x61] sm:$0xff]
      %v5085 = vld [vmem:[#allocation3 + $0x69] sm:$0xff]
      %v5086 = vld [vmem:[#allocation3 + $0x79] sm:$0xff]
      %v5087 = vld [vmem:[#allocation3 + $0x81] sm:$0xff]
      %v5088 = vld [vmem:[#allocation3 + $0x91] sm:$0xff]
      %v5089 = vld [vmem:[#allocation3 + $0x99] sm:$0xff]
      %v5090 = vld [vmem:[#allocation3 + $0xa9] sm:$0xff]
      %v5091 = vld [vmem:[#allocation3 + $0xb1] sm:$0xff]
      %v5092 = vld [vmem:[#allocation3 + $0xc1] sm:$0xff]
      %v5093 = vld [vmem:[#allocation3 + $0xc9] sm:$0xff]
      %v5094 = vld [vmem:[#allocation3 + $0xd9] sm:$0xff]
      %v5095 = vld [vmem:[#allocation3 + $0xe1] sm:$0xff]
      %v5096 = vld [vmem:[#allocation3 + $0xf1] sm:$0xff]
      %v5097 = vld [vmem:[#allocation3 + $0xf9] sm:$0xff]
      %v5098 = vld [vmem:[#allocation3 + $0x109] sm:$0xff]
      %v5099 = vld [vmem:[#allocation3 + $0x111] sm:$0xff]
      %v5100 = vld [vmem:[#allocation3 + $0x121] sm:$0xff]
      %v5101 = vld [vmem:[#allocation3 + $0x129] sm:$0xff]
      %v5102 = vld [vmem:[#allocation3 + $0x139] sm:$0xff]
      %v5103 = vld [vmem:[#allocation3 + $0x141] sm:$0xff]
      %v5104 = vld [vmem:[#allocation3 + $0x151] sm:$0xff]
      %v5105 = vld [vmem:[#allocation3 + $0x159] sm:$0xff]
      %v5106 = vld [vmem:[#allocation3 + $0x169] sm:$0xff]
      %v5107 = vld [vmem:[#allocation3 + $0x171] sm:$0xff]
      %v5108 = vld [vmem:[#allocation3 + $0x2] sm:$0xff]
      %v5109 = vld [vmem:[#allocation3 + $0xa] sm:$0xff]
      %v5110 = vld [vmem:[#allocation3 + $0x1a] sm:$0xff]
      %v5111 = vld [vmem:[#allocation3 + $0x22] sm:$0xff]
      %v5112 = vld [vmem:[#allocation3 + $0x32] sm:$0xff]
      %v5113 = vld [vmem:[#allocation3 + $0x3a] sm:$0xff]
      %v5114 = vld [vmem:[#allocation3 + $0x4a] sm:$0xff]
      %v5115 = vld [vmem:[#allocation3 + $0x52] sm:$0xff]
      %v5116 = vld [vmem:[#allocation3 + $0x62] sm:$0xff]
      %v5117 = vld [vmem:[#allocation3 + $0x6a] sm:$0xff]
      %v5118 = vld [vmem:[#allocation3 + $0x7a] sm:$0xff]
      %v5119 = vld [vmem:[#allocation3 + $0x82] sm:$0xff]
      %v5120 = vld [vmem:[#allocation3 + $0x92] sm:$0xff]
      %v5121 = vld [vmem:[#allocation3 + $0x9a] sm:$0xff]
      %v5122 = vld [vmem:[#allocation3 + $0xaa] sm:$0xff]
      %v5123 = vld [vmem:[#allocation3 + $0xb2] sm:$0xff]
      %v5124 = vld [vmem:[#allocation3 + $0xc2] sm:$0xff]
      %v5125 = vld [vmem:[#allocation3 + $0xca] sm:$0xff]
      %v5126 = vld [vmem:[#allocation3 + $0xda] sm:$0xff]
      %v5127 = vld [vmem:[#allocation3 + $0xe2] sm:$0xff]
      %v5128 = vld [vmem:[#allocation3 + $0xf2] sm:$0xff]
      %v5129 = vld [vmem:[#allocation3 + $0xfa] sm:$0xff]
      %v5130 = vld [vmem:[#allocation3 + $0x10a] sm:$0xff]
      %v5131 = vld [vmem:[#allocation3 + $0x112] sm:$0xff]
      %v5132 = vld [vmem:[#allocation3 + $0x122] sm:$0xff]
      %v5133 = vld [vmem:[#allocation3 + $0x12a] sm:$0xff]
      %v5134 = vld [vmem:[#allocation3 + $0x13a] sm:$0xff]
      %v5135 = vld [vmem:[#allocation3 + $0x142] sm:$0xff]
      %v5136 = vld [vmem:[#allocation3 + $0x152] sm:$0xff]
      %v5137 = vld [vmem:[#allocation3 + $0x15a] sm:$0xff]
      %v5138 = vld [vmem:[#allocation3 + $0x16a] sm:$0xff]
      %v5139 = vld [vmem:[#allocation3 + $0x172] sm:$0xff]
      %v5140 = vld [vmem:[#allocation3 + $0x3] sm:$0xff]
      %v5141 = vld [vmem:[#allocation3 + $0xb] sm:$0xff]
      %v5142 = vld [vmem:[#allocation3 + $0x1b] sm:$0xff]
      %v5143 = vld [vmem:[#allocation3 + $0x23] sm:$0xff]
      %v5144 = vld [vmem:[#allocation3 + $0x33] sm:$0xff]
      %v5145 = vld [vmem:[#allocation3 + $0x3b] sm:$0xff]
      %v5146 = vld [vmem:[#allocation3 + $0x4b] sm:$0xff]
      %v5147 = vld [vmem:[#allocation3 + $0x53] sm:$0xff]
      %v5148 = vld [vmem:[#allocation3 + $0x63] sm:$0xff]
      %v5149 = vld [vmem:[#allocation3 + $0x6b] sm:$0xff]
      %v5150 = vld [vmem:[#allocation3 + $0x7b] sm:$0xff]
      %v5151 = vld [vmem:[#allocation3 + $0x83] sm:$0xff]
      %v5152 = vld [vmem:[#allocation3 + $0x93] sm:$0xff]
      %v5153 = vld [vmem:[#allocation3 + $0x9b] sm:$0xff]
      %v5154 = vld [vmem:[#allocation3 + $0xab] sm:$0xff]
      %v5155 = vld [vmem:[#allocation3 + $0xb3] sm:$0xff]
      %v5156 = vld [vmem:[#allocation3 + $0xc3] sm:$0xff]
      %v5157 = vld [vmem:[#allocation3 + $0xcb] sm:$0xff]
      %v5158 = vld [vmem:[#allocation3 + $0xdb] sm:$0xff]
      %v5159 = vld [vmem:[#allocation3 + $0xe3] sm:$0xff]
      %v5160 = vld [vmem:[#allocation3 + $0xf3] sm:$0xff]
      %v5161 = vld [vmem:[#allocation3 + $0xfb] sm:$0xff]
      %v5162 = vld [vmem:[#allocation3 + $0x10b] sm:$0xff]
      %v5163 = vld [vmem:[#allocation3 + $0x113] sm:$0xff]
      %v5164 = vld [vmem:[#allocation3 + $0x123] sm:$0xff]
      %v5165 = vld [vmem:[#allocation3 + $0x12b] sm:$0xff]
      %v5166 = vld [vmem:[#allocation3 + $0x13b] sm:$0xff]
      %v5167 = vld [vmem:[#allocation3 + $0x143] sm:$0xff]
      %v5168 = vld [vmem:[#allocation3 + $0x153] sm:$0xff]
      %v5169 = vld [vmem:[#allocation3 + $0x15b] sm:$0xff]
      %v5170 = vld [vmem:[#allocation3 + $0x16b] sm:$0xff]
      %v5171 = vld [vmem:[#allocation3 + $0x173] sm:$0xff]
      %v5172 = vld [vmem:[#allocation3 + $0x4] sm:$0xff]
      %v5173 = vld [vmem:[#allocation3 + $0xc] sm:$0xff]
      %v5174 = vld [vmem:[#allocation3 + $0x1c] sm:$0xff]
      %v5175 = vld [vmem:[#allocation3 + $0x24] sm:$0xff]
      %v5176 = vld [vmem:[#allocation3 + $0x34] sm:$0xff]
      %v5177 = vld [vmem:[#allocation3 + $0x3c] sm:$0xff]
      %v5178 = vld [vmem:[#allocation3 + $0x4c] sm:$0xff]
      %v5179 = vld [vmem:[#allocation3 + $0x54] sm:$0xff]
      %v5180 = vld [vmem:[#allocation3 + $0x64] sm:$0xff]
      %v5181 = vld [vmem:[#allocation3 + $0x6c] sm:$0xff]
      %v5182 = vld [vmem:[#allocation3 + $0x7c] sm:$0xff]
      %v5183 = vld [vmem:[#allocation3 + $0x84] sm:$0xff]
      %v5184 = vld [vmem:[#allocation3 + $0x94] sm:$0xff]
      %v5185 = vld [vmem:[#allocation3 + $0x9c] sm:$0xff]
      %v5186 = vld [vmem:[#allocation3 + $0xac] sm:$0xff]
      %v5187 = vld [vmem:[#allocation3 + $0xb4] sm:$0xff]
      %v5188 = vld [vmem:[#allocation3 + $0xc4] sm:$0xff]
      %v5189 = vld [vmem:[#allocation3 + $0xcc] sm:$0xff]
      %v5190 = vld [vmem:[#allocation3 + $0xdc] sm:$0xff]
      %v5191 = vld [vmem:[#allocation3 + $0xe4] sm:$0xff]
      %v5192 = vld [vmem:[#allocation3 + $0xf4] sm:$0xff]
      %v5193 = vld [vmem:[#allocation3 + $0xfc] sm:$0xff]
      %v5194 = vld [vmem:[#allocation3 + $0x10c] sm:$0xff]
      %v5195 = vld [vmem:[#allocation3 + $0x114] sm:$0xff]
      %v5196 = vld [vmem:[#allocation3 + $0x124] sm:$0xff]
      %v5197 = vld [vmem:[#allocation3 + $0x12c] sm:$0xff]
      %v5198 = vld [vmem:[#allocation3 + $0x13c] sm:$0xff]
      %v5199 = vld [vmem:[#allocation3 + $0x144] sm:$0xff]
      %v5200 = vld [vmem:[#allocation3 + $0x154] sm:$0xff]
      %v5201 = vld [vmem:[#allocation3 + $0x15c] sm:$0xff]
      %v5202 = vld [vmem:[#allocation3 + $0x16c] sm:$0xff]
      %v5203 = vld [vmem:[#allocation3 + $0x174] sm:$0xff]
      %s5204 = scalar_lea.vmem [#allocation3], 24
      %v5205 = vld [vmem:[%s5204] sm:$0xff]
      %v5206 = vld [vmem:[%s5204 + $0x8] sm:$0xff]
      %v5207 = vld [vmem:[%s5204 + $0x18] sm:$0xff]
      %v5208 = vld [vmem:[%s5204 + $0x20] sm:$0xff]
      %v5209 = vld [vmem:[%s5204 + $0x30] sm:$0xff]
      %v5210 = vld [vmem:[%s5204 + $0x38] sm:$0xff]
      %v5211 = vld [vmem:[%s5204 + $0x48] sm:$0xff]
      %v5212 = vld [vmem:[%s5204 + $0x50] sm:$0xff]
      %v5213 = vld [vmem:[%s5204 + $0x60] sm:$0xff]
      %v5214 = vld [vmem:[%s5204 + $0x68] sm:$0xff]
      %v5215 = vld [vmem:[%s5204 + $0x78] sm:$0xff]
      %v5216 = vld [vmem:[%s5204 + $0x80] sm:$0xff]
      %v5217 = vld [vmem:[%s5204 + $0x90] sm:$0xff]
      %v5218 = vld [vmem:[%s5204 + $0x98] sm:$0xff]
      %v5219 = vld [vmem:[%s5204 + $0xa8] sm:$0xff]
      %v5220 = vld [vmem:[%s5204 + $0xb0] sm:$0xff]
      %v5221 = vld [vmem:[%s5204 + $0xc0] sm:$0xff]
      %v5222 = vld [vmem:[%s5204 + $0xc8] sm:$0xff]
      %v5223 = vld [vmem:[%s5204 + $0xd8] sm:$0xff]
      %v5224 = vld [vmem:[%s5204 + $0xe0] sm:$0xff]
      %v5225 = vld [vmem:[%s5204 + $0xf0] sm:$0xff]
      %v5226 = vld [vmem:[%s5204 + $0xf8] sm:$0xff]
      %v5227 = vld [vmem:[%s5204 + $0x108] sm:$0xff]
      %v5228 = vld [vmem:[%s5204 + $0x110] sm:$0xff]
      %v5229 = vld [vmem:[%s5204 + $0x120] sm:$0xff]
      %v5230 = vld [vmem:[%s5204 + $0x128] sm:$0xff]
      %v5231 = vld [vmem:[%s5204 + $0x138] sm:$0xff]
      %v5232 = vld [vmem:[%s5204 + $0x140] sm:$0xff]
      %v5233 = vld [vmem:[%s5204 + $0x150] sm:$0xff]
      %v5234 = vld [vmem:[%s5204 + $0x158] sm:$0xff]
      %v5235 = vld [vmem:[%s5204 + $0x168] sm:$0xff]
      %v5236 = vld [vmem:[%s5204 + $0x170] sm:$0xff]
      %v5237 = vld [vmem:[%s5204 + $0x1] sm:$0xff]
      %v5238 = vld [vmem:[%s5204 + $0x9] sm:$0xff]
      %v5239 = vld [vmem:[%s5204 + $0x19] sm:$0xff]
      %v5240 = vld [vmem:[%s5204 + $0x21] sm:$0xff]
      %v5241 = vld [vmem:[%s5204 + $0x31] sm:$0xff]
      %v5242 = vld [vmem:[%s5204 + $0x39] sm:$0xff]
      %v5243 = vld [vmem:[%s5204 + $0x49] sm:$0xff]
      %v5244 = vld [vmem:[%s5204 + $0x51] sm:$0xff]
      %v5245 = vld [vmem:[%s5204 + $0x61] sm:$0xff]
      %v5246 = vld [vmem:[%s5204 + $0x69] sm:$0xff]
      %v5247 = vld [vmem:[%s5204 + $0x79] sm:$0xff]
      %v5248 = vld [vmem:[%s5204 + $0x81] sm:$0xff]
      %v5249 = vld [vmem:[%s5204 + $0x91] sm:$0xff]
      %v5250 = vld [vmem:[%s5204 + $0x99] sm:$0xff]
      %v5251 = vld [vmem:[%s5204 + $0xa9] sm:$0xff]
      %v5252 = vld [vmem:[%s5204 + $0xb1] sm:$0xff]
      %v5253 = vld [vmem:[%s5204 + $0xc1] sm:$0xff]
      %v5254 = vld [vmem:[%s5204 + $0xc9] sm:$0xff]
      %v5255 = vld [vmem:[%s5204 + $0xd9] sm:$0xff]
      %v5256 = vld [vmem:[%s5204 + $0xe1] sm:$0xff]
      %v5257 = vld [vmem:[%s5204 + $0xf1] sm:$0xff]
      %v5258 = vld [vmem:[%s5204 + $0xf9] sm:$0xff]
      %v5259 = vld [vmem:[%s5204 + $0x109] sm:$0xff]
      %v5260 = vld [vmem:[%s5204 + $0x111] sm:$0xff]
      %v5261 = vld [vmem:[%s5204 + $0x121] sm:$0xff]
      %v5262 = vld [vmem:[%s5204 + $0x129] sm:$0xff]
      %v5263 = vld [vmem:[%s5204 + $0x139] sm:$0xff]
      %v5264 = vld [vmem:[%s5204 + $0x141] sm:$0xff]
      %v5265 = vld [vmem:[%s5204 + $0x151] sm:$0xff]
      %v5266 = vld [vmem:[%s5204 + $0x159] sm:$0xff]
      %v5267 = vld [vmem:[%s5204 + $0x169] sm:$0xff]
      %v5268 = vld [vmem:[%s5204 + $0x171] sm:$0xff]
      %v5269 = vld [vmem:[%s5204 + $0x2] sm:$0xff]
      %v5270 = vld [vmem:[%s5204 + $0xa] sm:$0xff]
      %v5271 = vld [vmem:[%s5204 + $0x1a] sm:$0xff]
      %v5272 = vld [vmem:[%s5204 + $0x22] sm:$0xff]
      %v5273 = vld [vmem:[%s5204 + $0x32] sm:$0xff]
      %v5274 = vld [vmem:[%s5204 + $0x3a] sm:$0xff]
      %v5275 = vld [vmem:[%s5204 + $0x4a] sm:$0xff]
      %v5276 = vld [vmem:[%s5204 + $0x52] sm:$0xff]
      %v5277 = vld [vmem:[%s5204 + $0x62] sm:$0xff]
      %v5278 = vld [vmem:[%s5204 + $0x6a] sm:$0xff]
      %v5279 = vld [vmem:[%s5204 + $0x7a] sm:$0xff]
      %v5280 = vld [vmem:[%s5204 + $0x82] sm:$0xff]
      %v5281 = vld [vmem:[%s5204 + $0x92] sm:$0xff]
      %v5282 = vld [vmem:[%s5204 + $0x9a] sm:$0xff]
      %v5283 = vld [vmem:[%s5204 + $0xaa] sm:$0xff]
      %v5284 = vld [vmem:[%s5204 + $0xb2] sm:$0xff]
      %v5285 = vld [vmem:[%s5204 + $0xc2] sm:$0xff]
      %v5286 = vld [vmem:[%s5204 + $0xca] sm:$0xff]
      %v5287 = vld [vmem:[%s5204 + $0xda] sm:$0xff]
      %v5288 = vld [vmem:[%s5204 + $0xe2] sm:$0xff]
      %v5289 = vld [vmem:[%s5204 + $0xf2] sm:$0xff]
      %v5290 = vld [vmem:[%s5204 + $0xfa] sm:$0xff]
      %v5291 = vld [vmem:[%s5204 + $0x10a] sm:$0xff]
      %v5292 = vld [vmem:[%s5204 + $0x112] sm:$0xff]
      %v5293 = vld [vmem:[%s5204 + $0x122] sm:$0xff]
      %v5294 = vld [vmem:[%s5204 + $0x12a] sm:$0xff]
      %v5295 = vld [vmem:[%s5204 + $0x13a] sm:$0xff]
      %v5296 = vld [vmem:[%s5204 + $0x142] sm:$0xff]
      %v5297 = vld [vmem:[%s5204 + $0x152] sm:$0xff]
      %v5298 = vld [vmem:[%s5204 + $0x15a] sm:$0xff]
      %v5299 = vld [vmem:[%s5204 + $0x16a] sm:$0xff]
      %v5300 = vld [vmem:[%s5204 + $0x172] sm:$0xff]
      %v5301 = vld [vmem:[%s5204 + $0x3] sm:$0xff]
      %v5302 = vld [vmem:[%s5204 + $0xb] sm:$0xff]
      %v5303 = vld [vmem:[%s5204 + $0x1b] sm:$0xff]
      %v5304 = vld [vmem:[%s5204 + $0x23] sm:$0xff]
      %v5305 = vld [vmem:[%s5204 + $0x33] sm:$0xff]
      %v5306 = vld [vmem:[%s5204 + $0x3b] sm:$0xff]
      %v5307 = vld [vmem:[%s5204 + $0x4b] sm:$0xff]
      %v5308 = vld [vmem:[%s5204 + $0x53] sm:$0xff]
      %v5309 = vld [vmem:[%s5204 + $0x63] sm:$0xff]
      %v5310 = vld [vmem:[%s5204 + $0x6b] sm:$0xff]
      %v5311 = vld [vmem:[%s5204 + $0x7b] sm:$0xff]
      %v5312 = vld [vmem:[%s5204 + $0x83] sm:$0xff]
      %v5313 = vld [vmem:[%s5204 + $0x93] sm:$0xff]
      %v5314 = vld [vmem:[%s5204 + $0x9b] sm:$0xff]
      %v5315 = vld [vmem:[%s5204 + $0xab] sm:$0xff]
      %v5316 = vld [vmem:[%s5204 + $0xb3] sm:$0xff]
      %v5317 = vld [vmem:[%s5204 + $0xc3] sm:$0xff]
      %v5318 = vld [vmem:[%s5204 + $0xcb] sm:$0xff]
      %v5319 = vld [vmem:[%s5204 + $0xdb] sm:$0xff]
      %v5320 = vld [vmem:[%s5204 + $0xe3] sm:$0xff]
      %v5321 = vld [vmem:[%s5204 + $0xf3] sm:$0xff]
      %v5322 = vld [vmem:[%s5204 + $0xfb] sm:$0xff]
      %v5323 = vld [vmem:[%s5204 + $0x10b] sm:$0xff]
      %v5324 = vld [vmem:[%s5204 + $0x113] sm:$0xff]
      %v5325 = vld [vmem:[%s5204 + $0x123] sm:$0xff]
      %v5326 = vld [vmem:[%s5204 + $0x12b] sm:$0xff]
      %v5327 = vld [vmem:[%s5204 + $0x13b] sm:$0xff]
      %v5328 = vld [vmem:[%s5204 + $0x143] sm:$0xff]
      %v5329 = vld [vmem:[%s5204 + $0x153] sm:$0xff]
      %v5330 = vld [vmem:[%s5204 + $0x15b] sm:$0xff]
      %v5331 = vld [vmem:[%s5204 + $0x16b] sm:$0xff]
      %v5332 = vld [vmem:[%s5204 + $0x173] sm:$0xff]
      %v5333 = vld [vmem:[%s5204 + $0x4] sm:$0xff]
      %v5334 = vld [vmem:[%s5204 + $0xc] sm:$0xff]
      %v5335 = vld [vmem:[%s5204 + $0x1c] sm:$0xff]
      %v5336 = vld [vmem:[%s5204 + $0x24] sm:$0xff]
      %v5337 = vld [vmem:[%s5204 + $0x34] sm:$0xff]
      %v5338 = vld [vmem:[%s5204 + $0x3c] sm:$0xff]
      %v5339 = vld [vmem:[%s5204 + $0x4c] sm:$0xff]
      %v5340 = vld [vmem:[%s5204 + $0x54] sm:$0xff]
      %v5341 = vld [vmem:[%s5204 + $0x64] sm:$0xff]
      %v5342 = vld [vmem:[%s5204 + $0x6c] sm:$0xff]
      %v5343 = vld [vmem:[%s5204 + $0x7c] sm:$0xff]
      %v5344 = vld [vmem:[%s5204 + $0x84] sm:$0xff]
      %v5345 = vld [vmem:[%s5204 + $0x94] sm:$0xff]
      %v5346 = vld [vmem:[%s5204 + $0x9c] sm:$0xff]
      %v5347 = vld [vmem:[%s5204 + $0xac] sm:$0xff]
      %v5348 = vld [vmem:[%s5204 + $0xb4] sm:$0xff]
      %v5349 = vld [vmem:[%s5204 + $0xc4] sm:$0xff]
      %v5350 = vld [vmem:[%s5204 + $0xcc] sm:$0xff]
      %v5351 = vld [vmem:[%s5204 + $0xdc] sm:$0xff]
      %v5352 = vld [vmem:[%s5204 + $0xe4] sm:$0xff]
      %v5353 = vld [vmem:[%s5204 + $0xf4] sm:$0xff]
      %v5354 = vld [vmem:[%s5204 + $0xfc] sm:$0xff]
      %v5355 = vld [vmem:[%s5204 + $0x10c] sm:$0xff]
      %v5356 = vld [vmem:[%s5204 + $0x114] sm:$0xff]
      %v5357 = vld [vmem:[%s5204 + $0x124] sm:$0xff]
      %v5358 = vld [vmem:[%s5204 + $0x12c] sm:$0xff]
      %v5359 = vld [vmem:[%s5204 + $0x13c] sm:$0xff]
      %v5360 = vld [vmem:[%s5204 + $0x144] sm:$0xff]
      %v5361 = vld [vmem:[%s5204 + $0x154] sm:$0xff]
      %v5362 = vld [vmem:[%s5204 + $0x15c] sm:$0xff]
      %v5363 = vld [vmem:[%s5204 + $0x16c] sm:$0xff]
      %v5364 = vld [vmem:[%s5204 + $0x174] sm:$0xff]
      %v5365 = vld [vmem:[%s5011] sm:$0xff]
      %v5366 = vld [vmem:[%s5011 + $0x8] sm:$0xff]
      %v5367 = vld [vmem:[%s5011 + $0x18] sm:$0xff]
      %v5368 = vld [vmem:[%s5011 + $0x20] sm:$0xff]
      %v5369 = vld [vmem:[%s5011 + $0x30] sm:$0xff]
      %v5370 = vld [vmem:[%s5011 + $0x38] sm:$0xff]
      %v5371 = vld [vmem:[%s5011 + $0x48] sm:$0xff]
      %v5372 = vld [vmem:[%s5011 + $0x50] sm:$0xff]
      %v5373 = vld [vmem:[%s5011 + $0x60] sm:$0xff]
      %v5374 = vld [vmem:[%s5011 + $0x68] sm:$0xff]
      %v5375 = vld [vmem:[%s5011 + $0x78] sm:$0xff]
      %v5376 = vld [vmem:[%s5011 + $0x80] sm:$0xff]
      %v5377 = vld [vmem:[%s5011 + $0x90] sm:$0xff]
      %v5378 = vld [vmem:[%s5011 + $0x98] sm:$0xff]
      %v5379 = vld [vmem:[%s5011 + $0xa8] sm:$0xff]
      %v5380 = vld [vmem:[%s5011 + $0xb0] sm:$0xff]
      %v5381 = vld [vmem:[%s5011 + $0xc0] sm:$0xff]
      %v5382 = vld [vmem:[%s5011 + $0xc8] sm:$0xff]
      %v5383 = vld [vmem:[%s5011 + $0xd8] sm:$0xff]
      %v5384 = vld [vmem:[%s5011 + $0xe0] sm:$0xff]
      %v5385 = vld [vmem:[%s5011 + $0xf0] sm:$0xff]
      %v5386 = vld [vmem:[%s5011 + $0xf8] sm:$0xff]
      %v5387 = vld [vmem:[%s5011 + $0x108] sm:$0xff]
      %v5388 = vld [vmem:[%s5011 + $0x110] sm:$0xff]
      %v5389 = vld [vmem:[%s5011 + $0x120] sm:$0xff]
      %v5390 = vld [vmem:[%s5011 + $0x128] sm:$0xff]
      %v5391 = vld [vmem:[%s5011 + $0x138] sm:$0xff]
      %v5392 = vld [vmem:[%s5011 + $0x140] sm:$0xff]
      %v5393 = vld [vmem:[%s5011 + $0x150] sm:$0xff]
      %v5394 = vld [vmem:[%s5011 + $0x158] sm:$0xff]
      %v5395 = vld [vmem:[%s5011 + $0x168] sm:$0xff]
      %v5396 = vld [vmem:[%s5011 + $0x170] sm:$0xff]
      %v5397 = vld [vmem:[%s5011 + $0x1] sm:$0xff]
      %v5398 = vld [vmem:[%s5011 + $0x9] sm:$0xff]
      %v5399 = vld [vmem:[%s5011 + $0x19] sm:$0xff]
      %v5400 = vld [vmem:[%s5011 + $0x21] sm:$0xff]
      %v5401 = vld [vmem:[%s5011 + $0x31] sm:$0xff]
      %v5402 = vld [vmem:[%s5011 + $0x39] sm:$0xff]
      %v5403 = vld [vmem:[%s5011 + $0x49] sm:$0xff]
      %v5404 = vld [vmem:[%s5011 + $0x51] sm:$0xff]
      %v5405 = vld [vmem:[%s5011 + $0x61] sm:$0xff]
      %v5406 = vld [vmem:[%s5011 + $0x69] sm:$0xff]
      %v5407 = vld [vmem:[%s5011 + $0x79] sm:$0xff]
      %v5408 = vld [vmem:[%s5011 + $0x81] sm:$0xff]
      %v5409 = vld [vmem:[%s5011 + $0x91] sm:$0xff]
      %v5410 = vld [vmem:[%s5011 + $0x99] sm:$0xff]
      %v5411 = vld [vmem:[%s5011 + $0xa9] sm:$0xff]
      %v5412 = vld [vmem:[%s5011 + $0xb1] sm:$0xff]
      %v5413 = vld [vmem:[%s5011 + $0xc1] sm:$0xff]
      %v5414 = vld [vmem:[%s5011 + $0xc9] sm:$0xff]
      %v5415 = vld [vmem:[%s5011 + $0xd9] sm:$0xff]
      %v5416 = vld [vmem:[%s5011 + $0xe1] sm:$0xff]
      %v5417 = vld [vmem:[%s5011 + $0xf1] sm:$0xff]
      %v5418 = vld [vmem:[%s5011 + $0xf9] sm:$0xff]
      %v5419 = vld [vmem:[%s5011 + $0x109] sm:$0xff]
      %v5420 = vld [vmem:[%s5011 + $0x111] sm:$0xff]
      %v5421 = vld [vmem:[%s5011 + $0x121] sm:$0xff]
      %v5422 = vld [vmem:[%s5011 + $0x129] sm:$0xff]
      %v5423 = vld [vmem:[%s5011 + $0x139] sm:$0xff]
      %v5424 = vld [vmem:[%s5011 + $0x141] sm:$0xff]
      %v5425 = vld [vmem:[%s5011 + $0x151] sm:$0xff]
      %v5426 = vld [vmem:[%s5011 + $0x159] sm:$0xff]
      %v5427 = vld [vmem:[%s5011 + $0x169] sm:$0xff]
      %v5428 = vld [vmem:[%s5011 + $0x171] sm:$0xff]
      %v5429 = vld [vmem:[%s5011 + $0x2] sm:$0xff]
      %v5430 = vld [vmem:[%s5011 + $0xa] sm:$0xff]
      %v5431 = vld [vmem:[%s5011 + $0x1a] sm:$0xff]
      %v5432 = vld [vmem:[%s5011 + $0x22] sm:$0xff]
      %v5433 = vld [vmem:[%s5011 + $0x32] sm:$0xff]
      %v5434 = vld [vmem:[%s5011 + $0x3a] sm:$0xff]
      %v5435 = vld [vmem:[%s5011 + $0x4a] sm:$0xff]
      %v5436 = vld [vmem:[%s5011 + $0x52] sm:$0xff]
      %v5437 = vld [vmem:[%s5011 + $0x62] sm:$0xff]
      %v5438 = vld [vmem:[%s5011 + $0x6a] sm:$0xff]
      %v5439 = vld [vmem:[%s5011 + $0x7a] sm:$0xff]
      %v5440 = vld [vmem:[%s5011 + $0x82] sm:$0xff]
      %v5441 = vld [vmem:[%s5011 + $0x92] sm:$0xff]
      %v5442 = vld [vmem:[%s5011 + $0x9a] sm:$0xff]
      %v5443 = vld [vmem:[%s5011 + $0xaa] sm:$0xff]
      %v5444 = vld [vmem:[%s5011 + $0xb2] sm:$0xff]
      %v5445 = vld [vmem:[%s5011 + $0xc2] sm:$0xff]
      %v5446 = vld [vmem:[%s5011 + $0xca] sm:$0xff]
      %v5447 = vld [vmem:[%s5011 + $0xda] sm:$0xff]
      %v5448 = vld [vmem:[%s5011 + $0xe2] sm:$0xff]
      %v5449 = vld [vmem:[%s5011 + $0xf2] sm:$0xff]
      %v5450 = vld [vmem:[%s5011 + $0xfa] sm:$0xff]
      %v5451 = vld [vmem:[%s5011 + $0x10a] sm:$0xff]
      %v5452 = vld [vmem:[%s5011 + $0x112] sm:$0xff]
      %v5453 = vld [vmem:[%s5011 + $0x122] sm:$0xff]
      %v5454 = vld [vmem:[%s5011 + $0x12a] sm:$0xff]
      %v5455 = vld [vmem:[%s5011 + $0x13a] sm:$0xff]
      %v5456 = vld [vmem:[%s5011 + $0x142] sm:$0xff]
      %v5457 = vld [vmem:[%s5011 + $0x152] sm:$0xff]
      %v5458 = vld [vmem:[%s5011 + $0x15a] sm:$0xff]
      %v5459 = vld [vmem:[%s5011 + $0x16a] sm:$0xff]
      %v5460 = vld [vmem:[%s5011 + $0x172] sm:$0xff]
      %v5461 = vld [vmem:[%s5011 + $0x3] sm:$0xff]
      %v5462 = vld [vmem:[%s5011 + $0xb] sm:$0xff]
      %v5463 = vld [vmem:[%s5011 + $0x1b] sm:$0xff]
      %v5464 = vld [vmem:[%s5011 + $0x23] sm:$0xff]
      %v5465 = vld [vmem:[%s5011 + $0x33] sm:$0xff]
      %v5466 = vld [vmem:[%s5011 + $0x3b] sm:$0xff]
      %v5467 = vld [vmem:[%s5011 + $0x4b] sm:$0xff]
      %v5468 = vld [vmem:[%s5011 + $0x53] sm:$0xff]
      %v5469 = vld [vmem:[%s5011 + $0x63] sm:$0xff]
      %v5470 = vld [vmem:[%s5011 + $0x6b] sm:$0xff]
      %v5471 = vld [vmem:[%s5011 + $0x7b] sm:$0xff]
      %v5472 = vld [vmem:[%s5011 + $0x83] sm:$0xff]
      %v5473 = vld [vmem:[%s5011 + $0x93] sm:$0xff]
      %v5474 = vld [vmem:[%s5011 + $0x9b] sm:$0xff]
      %v5475 = vld [vmem:[%s5011 + $0xab] sm:$0xff]
      %v5476 = vld [vmem:[%s5011 + $0xb3] sm:$0xff]
      %v5477 = vld [vmem:[%s5011 + $0xc3] sm:$0xff]
      %v5478 = vld [vmem:[%s5011 + $0xcb] sm:$0xff]
      %v5479 = vld [vmem:[%s5011 + $0xdb] sm:$0xff]
      %v5480 = vld [vmem:[%s5011 + $0xe3] sm:$0xff]
      %v5481 = vld [vmem:[%s5011 + $0xf3] sm:$0xff]
      %v5482 = vld [vmem:[%s5011 + $0xfb] sm:$0xff]
      %v5483 = vld [vmem:[%s5011 + $0x10b] sm:$0xff]
      %v5484 = vld [vmem:[%s5011 + $0x113] sm:$0xff]
      %v5485 = vld [vmem:[%s5011 + $0x123] sm:$0xff]
      %v5486 = vld [vmem:[%s5011 + $0x12b] sm:$0xff]
      %v5487 = vld [vmem:[%s5011 + $0x13b] sm:$0xff]
      %v5488 = vld [vmem:[%s5011 + $0x143] sm:$0xff]
      %v5489 = vld [vmem:[%s5011 + $0x153] sm:$0xff]
      %v5490 = vld [vmem:[%s5011 + $0x15b] sm:$0xff]
      %v5491 = vld [vmem:[%s5011 + $0x16b] sm:$0xff]
      %v5492 = vld [vmem:[%s5011 + $0x173] sm:$0xff]
      %v5493 = vld [vmem:[%s5011 + $0x4] sm:$0xff]
      %v5494 = vld [vmem:[%s5011 + $0xc] sm:$0xff]
      %v5495 = vld [vmem:[%s5011 + $0x1c] sm:$0xff]
      %v5496 = vld [vmem:[%s5011 + $0x24] sm:$0xff]
      %v5497 = vld [vmem:[%s5011 + $0x34] sm:$0xff]
      %v5498 = vld [vmem:[%s5011 + $0x3c] sm:$0xff]
      %v5499 = vld [vmem:[%s5011 + $0x4c] sm:$0xff]
      %v5500 = vld [vmem:[%s5011 + $0x54] sm:$0xff]
      %v5501 = vld [vmem:[%s5011 + $0x64] sm:$0xff]
      %v5502 = vld [vmem:[%s5011 + $0x6c] sm:$0xff]
      %v5503 = vld [vmem:[%s5011 + $0x7c] sm:$0xff]
      %v5504 = vld [vmem:[%s5011 + $0x84] sm:$0xff]
      %v5505 = vld [vmem:[%s5011 + $0x94] sm:$0xff]
      %v5506 = vld [vmem:[%s5011 + $0x9c] sm:$0xff]
      %v5507 = vld [vmem:[%s5011 + $0xac] sm:$0xff]
      %v5508 = vld [vmem:[%s5011 + $0xb4] sm:$0xff]
      %v5509 = vld [vmem:[%s5011 + $0xc4] sm:$0xff]
      %v5510 = vld [vmem:[%s5011 + $0xcc] sm:$0xff]
      %v5511 = vld [vmem:[%s5011 + $0xdc] sm:$0xff]
      %v5512 = vld [vmem:[%s5011 + $0xe4] sm:$0xff]
      %v5513 = vld [vmem:[%s5011 + $0xf4] sm:$0xff]
      %v5514 = vld [vmem:[%s5011 + $0xfc] sm:$0xff]
      %v5515 = vld [vmem:[%s5011 + $0x10c] sm:$0xff]
      %v5516 = vld [vmem:[%s5011 + $0x114] sm:$0xff]
      %v5517 = vld [vmem:[%s5011 + $0x124] sm:$0xff]
      %v5518 = vld [vmem:[%s5011 + $0x12c] sm:$0xff]
      %v5519 = vld [vmem:[%s5011 + $0x13c] sm:$0xff]
      %v5520 = vld [vmem:[%s5011 + $0x144] sm:$0xff]
      %v5521 = vld [vmem:[%s5011 + $0x154] sm:$0xff]
      %v5522 = vld [vmem:[%s5011 + $0x15c] sm:$0xff]
      %v5523 = vld [vmem:[%s5011 + $0x16c] sm:$0xff]
      %v5524 = vld [vmem:[%s5011 + $0x174] sm:$0xff]
      %s5525 = scalar_lea.vmem [#allocation3], 72
      %v5526 = vld [vmem:[%s5525] sm:$0xff]
      %v5527 = vld [vmem:[%s5525 + $0x8] sm:$0xff]
      %v5528 = vld [vmem:[%s5525 + $0x18] sm:$0xff]
      %v5529 = vld [vmem:[%s5525 + $0x20] sm:$0xff]
      %v5530 = vld [vmem:[%s5525 + $0x30] sm:$0xff]
      %v5531 = vld [vmem:[%s5525 + $0x38] sm:$0xff]
      %v5532 = vld [vmem:[%s5525 + $0x48] sm:$0xff]
      %v5533 = vld [vmem:[%s5525 + $0x50] sm:$0xff]
      %v5534 = vld [vmem:[%s5525 + $0x60] sm:$0xff]
      %v5535 = vld [vmem:[%s5525 + $0x68] sm:$0xff]
      %v5536 = vld [vmem:[%s5525 + $0x78] sm:$0xff]
      %v5537 = vld [vmem:[%s5525 + $0x80] sm:$0xff]
      %v5538 = vld [vmem:[%s5525 + $0x90] sm:$0xff]
      %v5539 = vld [vmem:[%s5525 + $0x98] sm:$0xff]
      %v5540 = vld [vmem:[%s5525 + $0xa8] sm:$0xff]
      %v5541 = vld [vmem:[%s5525 + $0xb0] sm:$0xff]
      %v5542 = vld [vmem:[%s5525 + $0xc0] sm:$0xff]
      %v5543 = vld [vmem:[%s5525 + $0xc8] sm:$0xff]
      %v5544 = vld [vmem:[%s5525 + $0xd8] sm:$0xff]
      %v5545 = vld [vmem:[%s5525 + $0xe0] sm:$0xff]
      %v5546 = vld [vmem:[%s5525 + $0xf0] sm:$0xff]
      %v5547 = vld [vmem:[%s5525 + $0xf8] sm:$0xff]
      %v5548 = vld [vmem:[%s5525 + $0x108] sm:$0xff]
      %v5549 = vld [vmem:[%s5525 + $0x110] sm:$0xff]
      %v5550 = vld [vmem:[%s5525 + $0x120] sm:$0xff]
      %v5551 = vld [vmem:[%s5525 + $0x128] sm:$0xff]
      %v5552 = vld [vmem:[%s5525 + $0x138] sm:$0xff]
      %v5553 = vld [vmem:[%s5525 + $0x140] sm:$0xff]
      %v5554 = vld [vmem:[%s5525 + $0x150] sm:$0xff]
      %v5555 = vld [vmem:[%s5525 + $0x158] sm:$0xff]
      %v5556 = vld [vmem:[%s5525 + $0x168] sm:$0xff]
      %v5557 = vld [vmem:[%s5525 + $0x170] sm:$0xff]
      %v5558 = vld [vmem:[%s5525 + $0x1] sm:$0xff]
      %v5559 = vld [vmem:[%s5525 + $0x9] sm:$0xff]
      %v5560 = vld [vmem:[%s5525 + $0x19] sm:$0xff]
      %v5561 = vld [vmem:[%s5525 + $0x21] sm:$0xff]
      %v5562 = vld [vmem:[%s5525 + $0x31] sm:$0xff]
      %v5563 = vld [vmem:[%s5525 + $0x39] sm:$0xff]
      %v5564 = vld [vmem:[%s5525 + $0x49] sm:$0xff]
      %v5565 = vld [vmem:[%s5525 + $0x51] sm:$0xff]
      %v5566 = vld [vmem:[%s5525 + $0x61] sm:$0xff]
      %v5567 = vld [vmem:[%s5525 + $0x69] sm:$0xff]
      %v5568 = vld [vmem:[%s5525 + $0x79] sm:$0xff]
      %v5569 = vld [vmem:[%s5525 + $0x81] sm:$0xff]
      %v5570 = vld [vmem:[%s5525 + $0x91] sm:$0xff]
      %v5571 = vld [vmem:[%s5525 + $0x99] sm:$0xff]
      %v5572 = vld [vmem:[%s5525 + $0xa9] sm:$0xff]
      %v5573 = vld [vmem:[%s5525 + $0xb1] sm:$0xff]
      %v5574 = vld [vmem:[%s5525 + $0xc1] sm:$0xff]
      %v5575 = vld [vmem:[%s5525 + $0xc9] sm:$0xff]
      %v5576 = vld [vmem:[%s5525 + $0xd9] sm:$0xff]
      %v5577 = vld [vmem:[%s5525 + $0xe1] sm:$0xff]
      %v5578 = vld [vmem:[%s5525 + $0xf1] sm:$0xff]
      %v5579 = vld [vmem:[%s5525 + $0xf9] sm:$0xff]
      %v5580 = vld [vmem:[%s5525 + $0x109] sm:$0xff]
      %v5581 = vld [vmem:[%s5525 + $0x111] sm:$0xff]
      %v5582 = vld [vmem:[%s5525 + $0x121] sm:$0xff]
      %v5583 = vld [vmem:[%s5525 + $0x129] sm:$0xff]
      %v5584 = vld [vmem:[%s5525 + $0x139] sm:$0xff]
      %v5585 = vld [vmem:[%s5525 + $0x141] sm:$0xff]
      %v5586 = vld [vmem:[%s5525 + $0x151] sm:$0xff]
      %v5587 = vld [vmem:[%s5525 + $0x159] sm:$0xff]
      %v5588 = vld [vmem:[%s5525 + $0x169] sm:$0xff]
      %v5589 = vld [vmem:[%s5525 + $0x171] sm:$0xff]
      %v5590 = vld [vmem:[%s5525 + $0x2] sm:$0xff]
      %v5591 = vld [vmem:[%s5525 + $0xa] sm:$0xff]
      %v5592 = vld [vmem:[%s5525 + $0x1a] sm:$0xff]
      %v5593 = vld [vmem:[%s5525 + $0x22] sm:$0xff]
      %v5594 = vld [vmem:[%s5525 + $0x32] sm:$0xff]
      %v5595 = vld [vmem:[%s5525 + $0x3a] sm:$0xff]
      %v5596 = vld [vmem:[%s5525 + $0x4a] sm:$0xff]
      %v5597 = vld [vmem:[%s5525 + $0x52] sm:$0xff]
      %v5598 = vld [vmem:[%s5525 + $0x62] sm:$0xff]
      %v5599 = vld [vmem:[%s5525 + $0x6a] sm:$0xff]
      %v5600 = vld [vmem:[%s5525 + $0x7a] sm:$0xff]
      %v5601 = vld [vmem:[%s5525 + $0x82] sm:$0xff]
      %v5602 = vld [vmem:[%s5525 + $0x92] sm:$0xff]
      %v5603 = vld [vmem:[%s5525 + $0x9a] sm:$0xff]
      %v5604 = vld [vmem:[%s5525 + $0xaa] sm:$0xff]
      %v5605 = vld [vmem:[%s5525 + $0xb2] sm:$0xff]
      %v5606 = vld [vmem:[%s5525 + $0xc2] sm:$0xff]
      %v5607 = vld [vmem:[%s5525 + $0xca] sm:$0xff]
      %v5608 = vld [vmem:[%s5525 + $0xda] sm:$0xff]
      %v5609 = vld [vmem:[%s5525 + $0xe2] sm:$0xff]
      %v5610 = vld [vmem:[%s5525 + $0xf2] sm:$0xff]
      %v5611 = vld [vmem:[%s5525 + $0xfa] sm:$0xff]
      %v5612 = vld [vmem:[%s5525 + $0x10a] sm:$0xff]
      %v5613 = vld [vmem:[%s5525 + $0x112] sm:$0xff]
      %v5614 = vld [vmem:[%s5525 + $0x122] sm:$0xff]
      %v5615 = vld [vmem:[%s5525 + $0x12a] sm:$0xff]
      %v5616 = vld [vmem:[%s5525 + $0x13a] sm:$0xff]
      %v5617 = vld [vmem:[%s5525 + $0x142] sm:$0xff]
      %v5618 = vld [vmem:[%s5525 + $0x152] sm:$0xff]
      %v5619 = vld [vmem:[%s5525 + $0x15a] sm:$0xff]
      %v5620 = vld [vmem:[%s5525 + $0x16a] sm:$0xff]
      %v5621 = vld [vmem:[%s5525 + $0x172] sm:$0xff]
      %v5622 = vld [vmem:[%s5525 + $0x3] sm:$0xff]
      %v5623 = vld [vmem:[%s5525 + $0xb] sm:$0xff]
      %v5624 = vld [vmem:[%s5525 + $0x1b] sm:$0xff]
      %v5625 = vld [vmem:[%s5525 + $0x23] sm:$0xff]
      %v5626 = vld [vmem:[%s5525 + $0x33] sm:$0xff]
      %v5627 = vld [vmem:[%s5525 + $0x3b] sm:$0xff]
      %v5628 = vld [vmem:[%s5525 + $0x4b] sm:$0xff]
      %v5629 = vld [vmem:[%s5525 + $0x53] sm:$0xff]
      %v5630 = vld [vmem:[%s5525 + $0x63] sm:$0xff]
      %v5631 = vld [vmem:[%s5525 + $0x6b] sm:$0xff]
      %v5632 = vld [vmem:[%s5525 + $0x7b] sm:$0xff]
      %v5633 = vld [vmem:[%s5525 + $0x83] sm:$0xff]
      %v5634 = vld [vmem:[%s5525 + $0x93] sm:$0xff]
      %v5635 = vld [vmem:[%s5525 + $0x9b] sm:$0xff]
      %v5636 = vld [vmem:[%s5525 + $0xab] sm:$0xff]
      %v5637 = vld [vmem:[%s5525 + $0xb3] sm:$0xff]
      %v5638 = vld [vmem:[%s5525 + $0xc3] sm:$0xff]
      %v5639 = vld [vmem:[%s5525 + $0xcb] sm:$0xff]
      %v5640 = vld [vmem:[%s5525 + $0xdb] sm:$0xff]
      %v5641 = vld [vmem:[%s5525 + $0xe3] sm:$0xff]
      %v5642 = vld [vmem:[%s5525 + $0xf3] sm:$0xff]
      %v5643 = vld [vmem:[%s5525 + $0xfb] sm:$0xff]
      %v5644 = vld [vmem:[%s5525 + $0x10b] sm:$0xff]
      %v5645 = vld [vmem:[%s5525 + $0x113] sm:$0xff]
      %v5646 = vld [vmem:[%s5525 + $0x123] sm:$0xff]
      %v5647 = vld [vmem:[%s5525 + $0x12b] sm:$0xff]
      %v5648 = vld [vmem:[%s5525 + $0x13b] sm:$0xff]
      %v5649 = vld [vmem:[%s5525 + $0x143] sm:$0xff]
      %v5650 = vld [vmem:[%s5525 + $0x153] sm:$0xff]
      %v5651 = vld [vmem:[%s5525 + $0x15b] sm:$0xff]
      %v5652 = vld [vmem:[%s5525 + $0x16b] sm:$0xff]
      %v5653 = vld [vmem:[%s5525 + $0x173] sm:$0xff]
      %v5654 = vld [vmem:[%s5525 + $0x4] sm:$0xff]
      %v5655 = vld [vmem:[%s5525 + $0xc] sm:$0xff]
      %v5656 = vld [vmem:[%s5525 + $0x1c] sm:$0xff]
      %v5657 = vld [vmem:[%s5525 + $0x24] sm:$0xff]
      %v5658 = vld [vmem:[%s5525 + $0x34] sm:$0xff]
      %v5659 = vld [vmem:[%s5525 + $0x3c] sm:$0xff]
      %v5660 = vld [vmem:[%s5525 + $0x4c] sm:$0xff]
      %v5661 = vld [vmem:[%s5525 + $0x54] sm:$0xff]
      %v5662 = vld [vmem:[%s5525 + $0x64] sm:$0xff]
      %v5663 = vld [vmem:[%s5525 + $0x6c] sm:$0xff]
      %v5664 = vld [vmem:[%s5525 + $0x7c] sm:$0xff]
      %v5665 = vld [vmem:[%s5525 + $0x84] sm:$0xff]
      %v5666 = vld [vmem:[%s5525 + $0x94] sm:$0xff]
      %v5667 = vld [vmem:[%s5525 + $0x9c] sm:$0xff]
      %v5668 = vld [vmem:[%s5525 + $0xac] sm:$0xff]
      %v5669 = vld [vmem:[%s5525 + $0xb4] sm:$0xff]
      %v5670 = vld [vmem:[%s5525 + $0xc4] sm:$0xff]
      %v5671 = vld [vmem:[%s5525 + $0xcc] sm:$0xff]
      %v5672 = vld [vmem:[%s5525 + $0xdc] sm:$0xff]
      %v5673 = vld [vmem:[%s5525 + $0xe4] sm:$0xff]
      %v5674 = vld [vmem:[%s5525 + $0xf4] sm:$0xff]
      %v5675 = vld [vmem:[%s5525 + $0xfc] sm:$0xff]
      %v5676 = vld [vmem:[%s5525 + $0x10c] sm:$0xff]
      %v5677 = vld [vmem:[%s5525 + $0x114] sm:$0xff]
      %v5678 = vld [vmem:[%s5525 + $0x124] sm:$0xff]
      %v5679 = vld [vmem:[%s5525 + $0x12c] sm:$0xff]
      %v5680 = vld [vmem:[%s5525 + $0x13c] sm:$0xff]
      %v5681 = vld [vmem:[%s5525 + $0x144] sm:$0xff]
      %v5682 = vld [vmem:[%s5525 + $0x154] sm:$0xff]
      %v5683 = vld [vmem:[%s5525 + $0x15c] sm:$0xff]
      %v5684 = vld [vmem:[%s5525 + $0x16c] sm:$0xff]
      %v5685 = vld [vmem:[%s5525 + $0x174] sm:$0xff]
      %s5686 = scalar_lea.vmem [#allocation3], 96
      %v5687 = vld [vmem:[%s5686] sm:$0xff]
      %v5688 = vld [vmem:[%s5686 + $0x8] sm:$0xff]
      %v5689 = vld [vmem:[%s5686 + $0x18] sm:$0xff]
      %v5690 = vld [vmem:[%s5686 + $0x20] sm:$0xff]
      %v5691 = vld [vmem:[%s5686 + $0x30] sm:$0xff]
      %v5692 = vld [vmem:[%s5686 + $0x38] sm:$0xff]
      %v5693 = vld [vmem:[%s5686 + $0x48] sm:$0xff]
      %v5694 = vld [vmem:[%s5686 + $0x50] sm:$0xff]
      %v5695 = vld [vmem:[%s5686 + $0x60] sm:$0xff]
      %v5696 = vld [vmem:[%s5686 + $0x68] sm:$0xff]
      %v5697 = vld [vmem:[%s5686 + $0x78] sm:$0xff]
      %v5698 = vld [vmem:[%s5686 + $0x80] sm:$0xff]
      %v5699 = vld [vmem:[%s5686 + $0x90] sm:$0xff]
      %v5700 = vld [vmem:[%s5686 + $0x98] sm:$0xff]
      %v5701 = vld [vmem:[%s5686 + $0xa8] sm:$0xff]
      %v5702 = vld [vmem:[%s5686 + $0xb0] sm:$0xff]
      %v5703 = vld [vmem:[%s5686 + $0xc0] sm:$0xff]
      %v5704 = vld [vmem:[%s5686 + $0xc8] sm:$0xff]
      %v5705 = vld [vmem:[%s5686 + $0xd8] sm:$0xff]
      %v5706 = vld [vmem:[%s5686 + $0xe0] sm:$0xff]
      %v5707 = vld [vmem:[%s5686 + $0xf0] sm:$0xff]
      %v5708 = vld [vmem:[%s5686 + $0xf8] sm:$0xff]
      %v5709 = vld [vmem:[%s5686 + $0x108] sm:$0xff]
      %v5710 = vld [vmem:[%s5686 + $0x110] sm:$0xff]
      %v5711 = vld [vmem:[%s5686 + $0x120] sm:$0xff]
      %v5712 = vld [vmem:[%s5686 + $0x128] sm:$0xff]
      %v5713 = vld [vmem:[%s5686 + $0x138] sm:$0xff]
      %v5714 = vld [vmem:[%s5686 + $0x140] sm:$0xff]
      %v5715 = vld [vmem:[%s5686 + $0x150] sm:$0xff]
      %v5716 = vld [vmem:[%s5686 + $0x158] sm:$0xff]
      %v5717 = vld [vmem:[%s5686 + $0x168] sm:$0xff]
      %v5718 = vld [vmem:[%s5686 + $0x170] sm:$0xff]
      %v5719 = vld [vmem:[%s5686 + $0x1] sm:$0xff]
      %v5720 = vld [vmem:[%s5686 + $0x9] sm:$0xff]
      %v5721 = vld [vmem:[%s5686 + $0x19] sm:$0xff]
      %v5722 = vld [vmem:[%s5686 + $0x21] sm:$0xff]
      %v5723 = vld [vmem:[%s5686 + $0x31] sm:$0xff]
      %v5724 = vld [vmem:[%s5686 + $0x39] sm:$0xff]
      %v5725 = vld [vmem:[%s5686 + $0x49] sm:$0xff]
      %v5726 = vld [vmem:[%s5686 + $0x51] sm:$0xff]
      %v5727 = vld [vmem:[%s5686 + $0x61] sm:$0xff]
      %v5728 = vld [vmem:[%s5686 + $0x69] sm:$0xff]
      %v5729 = vld [vmem:[%s5686 + $0x79] sm:$0xff]
      %v5730 = vld [vmem:[%s5686 + $0x81] sm:$0xff]
      %v5731 = vld [vmem:[%s5686 + $0x91] sm:$0xff]
      %v5732 = vld [vmem:[%s5686 + $0x99] sm:$0xff]
      %v5733 = vld [vmem:[%s5686 + $0xa9] sm:$0xff]
      %v5734 = vld [vmem:[%s5686 + $0xb1] sm:$0xff]
      %v5735 = vld [vmem:[%s5686 + $0xc1] sm:$0xff]
      %v5736 = vld [vmem:[%s5686 + $0xc9] sm:$0xff]
      %v5737 = vld [vmem:[%s5686 + $0xd9] sm:$0xff]
      %v5738 = vld [vmem:[%s5686 + $0xe1] sm:$0xff]
      %v5739 = vld [vmem:[%s5686 + $0xf1] sm:$0xff]
      %v5740 = vld [vmem:[%s5686 + $0xf9] sm:$0xff]
      %v5741 = vld [vmem:[%s5686 + $0x109] sm:$0xff]
      %v5742 = vld [vmem:[%s5686 + $0x111] sm:$0xff]
      %v5743 = vld [vmem:[%s5686 + $0x121] sm:$0xff]
      %v5744 = vld [vmem:[%s5686 + $0x129] sm:$0xff]
      %v5745 = vld [vmem:[%s5686 + $0x139] sm:$0xff]
      %v5746 = vld [vmem:[%s5686 + $0x141] sm:$0xff]
      %v5747 = vld [vmem:[%s5686 + $0x151] sm:$0xff]
      %v5748 = vld [vmem:[%s5686 + $0x159] sm:$0xff]
      %v5749 = vld [vmem:[%s5686 + $0x169] sm:$0xff]
      %v5750 = vld [vmem:[%s5686 + $0x171] sm:$0xff]
      %v5751 = vld [vmem:[%s5686 + $0x2] sm:$0xff]
      %v5752 = vld [vmem:[%s5686 + $0xa] sm:$0xff]
      %v5753 = vld [vmem:[%s5686 + $0x1a] sm:$0xff]
      %v5754 = vld [vmem:[%s5686 + $0x22] sm:$0xff]
      %v5755 = vld [vmem:[%s5686 + $0x32] sm:$0xff]
      %v5756 = vld [vmem:[%s5686 + $0x3a] sm:$0xff]
      %v5757 = vld [vmem:[%s5686 + $0x4a] sm:$0xff]
      %v5758 = vld [vmem:[%s5686 + $0x52] sm:$0xff]
      %v5759 = vld [vmem:[%s5686 + $0x62] sm:$0xff]
      %v5760 = vld [vmem:[%s5686 + $0x6a] sm:$0xff]
      %v5761 = vld [vmem:[%s5686 + $0x7a] sm:$0xff]
      %v5762 = vld [vmem:[%s5686 + $0x82] sm:$0xff]
      %v5763 = vld [vmem:[%s5686 + $0x92] sm:$0xff]
      %v5764 = vld [vmem:[%s5686 + $0x9a] sm:$0xff]
      %v5765 = vld [vmem:[%s5686 + $0xaa] sm:$0xff]
      %v5766 = vld [vmem:[%s5686 + $0xb2] sm:$0xff]
      %v5767 = vld [vmem:[%s5686 + $0xc2] sm:$0xff]
      %v5768 = vld [vmem:[%s5686 + $0xca] sm:$0xff]
      %v5769 = vld [vmem:[%s5686 + $0xda] sm:$0xff]
      %v5770 = vld [vmem:[%s5686 + $0xe2] sm:$0xff]
      %v5771 = vld [vmem:[%s5686 + $0xf2] sm:$0xff]
      %v5772 = vld [vmem:[%s5686 + $0xfa] sm:$0xff]
      %v5773 = vld [vmem:[%s5686 + $0x10a] sm:$0xff]
      %v5774 = vld [vmem:[%s5686 + $0x112] sm:$0xff]
      %v5775 = vld [vmem:[%s5686 + $0x122] sm:$0xff]
      %v5776 = vld [vmem:[%s5686 + $0x12a] sm:$0xff]
      %v5777 = vld [vmem:[%s5686 + $0x13a] sm:$0xff]
      %v5778 = vld [vmem:[%s5686 + $0x142] sm:$0xff]
      %v5779 = vld [vmem:[%s5686 + $0x152] sm:$0xff]
      %v5780 = vld [vmem:[%s5686 + $0x15a] sm:$0xff]
      %v5781 = vld [vmem:[%s5686 + $0x16a] sm:$0xff]
      %v5782 = vld [vmem:[%s5686 + $0x172] sm:$0xff]
      %v5783 = vld [vmem:[%s5686 + $0x3] sm:$0xff]
      %v5784 = vld [vmem:[%s5686 + $0xb] sm:$0xff]
      %v5785 = vld [vmem:[%s5686 + $0x1b] sm:$0xff]
      %v5786 = vld [vmem:[%s5686 + $0x23] sm:$0xff]
      %v5787 = vld [vmem:[%s5686 + $0x33] sm:$0xff]
      %v5788 = vld [vmem:[%s5686 + $0x3b] sm:$0xff]
      %v5789 = vld [vmem:[%s5686 + $0x4b] sm:$0xff]
      %v5790 = vld [vmem:[%s5686 + $0x53] sm:$0xff]
      %v5791 = vld [vmem:[%s5686 + $0x63] sm:$0xff]
      %v5792 = vld [vmem:[%s5686 + $0x6b] sm:$0xff]
      %v5793 = vld [vmem:[%s5686 + $0x7b] sm:$0xff]
      %v5794 = vld [vmem:[%s5686 + $0x83] sm:$0xff]
      %v5795 = vld [vmem:[%s5686 + $0x93] sm:$0xff]
      %v5796 = vld [vmem:[%s5686 + $0x9b] sm:$0xff]
      %v5797 = vld [vmem:[%s5686 + $0xab] sm:$0xff]
      %v5798 = vld [vmem:[%s5686 + $0xb3] sm:$0xff]
      %v5799 = vld [vmem:[%s5686 + $0xc3] sm:$0xff]
      %v5800 = vld [vmem:[%s5686 + $0xcb] sm:$0xff]
      %v5801 = vld [vmem:[%s5686 + $0xdb] sm:$0xff]
      %v5802 = vld [vmem:[%s5686 + $0xe3] sm:$0xff]
      %v5803 = vld [vmem:[%s5686 + $0xf3] sm:$0xff]
      %v5804 = vld [vmem:[%s5686 + $0xfb] sm:$0xff]
      %v5805 = vld [vmem:[%s5686 + $0x10b] sm:$0xff]
      %v5806 = vld [vmem:[%s5686 + $0x113] sm:$0xff]
      %v5807 = vld [vmem:[%s5686 + $0x123] sm:$0xff]
      %v5808 = vld [vmem:[%s5686 + $0x12b] sm:$0xff]
      %v5809 = vld [vmem:[%s5686 + $0x13b] sm:$0xff]
      %v5810 = vld [vmem:[%s5686 + $0x143] sm:$0xff]
      %v5811 = vld [vmem:[%s5686 + $0x153] sm:$0xff]
      %v5812 = vld [vmem:[%s5686 + $0x15b] sm:$0xff]
      %v5813 = vld [vmem:[%s5686 + $0x16b] sm:$0xff]
      %v5814 = vld [vmem:[%s5686 + $0x173] sm:$0xff]
      %v5815 = vld [vmem:[%s5686 + $0x4] sm:$0xff]
      %v5816 = vld [vmem:[%s5686 + $0xc] sm:$0xff]
      %v5817 = vld [vmem:[%s5686 + $0x1c] sm:$0xff]
      %v5818 = vld [vmem:[%s5686 + $0x24] sm:$0xff]
      %v5819 = vld [vmem:[%s5686 + $0x34] sm:$0xff]
      %v5820 = vld [vmem:[%s5686 + $0x3c] sm:$0xff]
      %v5821 = vld [vmem:[%s5686 + $0x4c] sm:$0xff]
      %v5822 = vld [vmem:[%s5686 + $0x54] sm:$0xff]
      %v5823 = vld [vmem:[%s5686 + $0x64] sm:$0xff]
      %v5824 = vld [vmem:[%s5686 + $0x6c] sm:$0xff]
      %v5825 = vld [vmem:[%s5686 + $0x7c] sm:$0xff]
      %v5826 = vld [vmem:[%s5686 + $0x84] sm:$0xff]
      %v5827 = vld [vmem:[%s5686 + $0x94] sm:$0xff]
      %v5828 = vld [vmem:[%s5686 + $0x9c] sm:$0xff]
      %v5829 = vld [vmem:[%s5686 + $0xac] sm:$0xff]
      %v5830 = vld [vmem:[%s5686 + $0xb4] sm:$0xff]
      %v5831 = vld [vmem:[%s5686 + $0xc4] sm:$0xff]
      %v5832 = vld [vmem:[%s5686 + $0xcc] sm:$0xff]
      %v5833 = vld [vmem:[%s5686 + $0xdc] sm:$0xff]
      %v5834 = vld [vmem:[%s5686 + $0xe4] sm:$0xff]
      %v5835 = vld [vmem:[%s5686 + $0xf4] sm:$0xff]
      %v5836 = vld [vmem:[%s5686 + $0xfc] sm:$0xff]
      %v5837 = vld [vmem:[%s5686 + $0x10c] sm:$0xff]
      %v5838 = vld [vmem:[%s5686 + $0x114] sm:$0xff]
      %v5839 = vld [vmem:[%s5686 + $0x124] sm:$0xff]
      %v5840 = vld [vmem:[%s5686 + $0x12c] sm:$0xff]
      %v5841 = vld [vmem:[%s5686 + $0x13c] sm:$0xff]
      %v5842 = vld [vmem:[%s5686 + $0x144] sm:$0xff]
      %v5843 = vld [vmem:[%s5686 + $0x154] sm:$0xff]
      %v5844 = vld [vmem:[%s5686 + $0x15c] sm:$0xff]
      %v5845 = vld [vmem:[%s5686 + $0x16c] sm:$0xff]
      %v5846 = vld [vmem:[%s5686 + $0x174] sm:$0xff]
      %5879 = vrot.lane.b32.xlu0 %v5076, 64
      %v5880 = vpop.permute.xlu0 %5879
      %5881 = vrot.lane.b32.xlu0 %v5077, 64
      %v5882 = vpop.permute.xlu0 %5881
      %5883 = vrot.lane.b32.xlu0 %v5078, 64
      %v5884 = vpop.permute.xlu0 %5883
      %5885 = vrot.lane.b32.xlu0 %v5079, 64
      %v5886 = vpop.permute.xlu0 %5885
      %5887 = vrot.lane.b32.xlu0 %v5080, 64
      %v5888 = vpop.permute.xlu0 %5887
      %5889 = vrot.lane.b32.xlu0 %v5081, 64
      %v5890 = vpop.permute.xlu0 %5889
      %5891 = vrot.lane.b32.xlu0 %v5082, 64
      %v5892 = vpop.permute.xlu0 %5891
      %5893 = vrot.lane.b32.xlu0 %v5083, 64
      %v5894 = vpop.permute.xlu0 %5893
      %5895 = vrot.lane.b32.xlu0 %v5084, 64
      %v5896 = vpop.permute.xlu0 %5895
      %5897 = vrot.lane.b32.xlu0 %v5085, 64
      %v5898 = vpop.permute.xlu0 %5897
      %5899 = vrot.lane.b32.xlu0 %v5086, 64
      %v5900 = vpop.permute.xlu0 %5899
      %5901 = vrot.lane.b32.xlu0 %v5087, 64
      %v5902 = vpop.permute.xlu0 %5901
      %5903 = vrot.lane.b32.xlu0 %v5088, 64
      %v5904 = vpop.permute.xlu0 %5903
      %5905 = vrot.lane.b32.xlu0 %v5089, 64
      %v5906 = vpop.permute.xlu0 %5905
      %5907 = vrot.lane.b32.xlu0 %v5090, 64
      %v5908 = vpop.permute.xlu0 %5907
      %5909 = vrot.lane.b32.xlu0 %v5091, 64
      %v5910 = vpop.permute.xlu0 %5909
      %5911 = vrot.lane.b32.xlu0 %v5092, 64
      %v5912 = vpop.permute.xlu0 %5911
      %5913 = vrot.lane.b32.xlu0 %v5093, 64
      %v5914 = vpop.permute.xlu0 %5913
      %5915 = vrot.lane.b32.xlu0 %v5094, 64
      %v5916 = vpop.permute.xlu0 %5915
      %5917 = vrot.lane.b32.xlu0 %v5095, 64
      %v5918 = vpop.permute.xlu0 %5917
      %5919 = vrot.lane.b32.xlu0 %v5096, 64
      %v5920 = vpop.permute.xlu0 %5919
      %5921 = vrot.lane.b32.xlu0 %v5097, 64
      %v5922 = vpop.permute.xlu0 %5921
      %5923 = vrot.lane.b32.xlu0 %v5098, 64
      %v5924 = vpop.permute.xlu0 %5923
      %5925 = vrot.lane.b32.xlu0 %v5099, 64
      %v5926 = vpop.permute.xlu0 %5925
      %5927 = vrot.lane.b32.xlu0 %v5100, 64
      %v5928 = vpop.permute.xlu0 %5927
      %5929 = vrot.lane.b32.xlu0 %v5101, 64
      %v5930 = vpop.permute.xlu0 %5929
      %5931 = vrot.lane.b32.xlu0 %v5102, 64
      %v5932 = vpop.permute.xlu0 %5931
      %5933 = vrot.lane.b32.xlu0 %v5103, 64
      %v5934 = vpop.permute.xlu0 %5933
      %5935 = vrot.lane.b32.xlu0 %v5104, 64
      %v5936 = vpop.permute.xlu0 %5935
      %5937 = vrot.lane.b32.xlu0 %v5105, 64
      %v5938 = vpop.permute.xlu0 %5937
      %5939 = vrot.lane.b32.xlu0 %v5106, 64
      %v5940 = vpop.permute.xlu0 %5939
      %5941 = vrot.lane.b32.xlu0 %v5107, 64
      %v5942 = vpop.permute.xlu0 %5941
      %6007 = vrot.lane.b32.xlu0 %v5140, 64
      %v6008 = vpop.permute.xlu0 %6007
      %6009 = vrot.lane.b32.xlu0 %v5141, 64
      %v6010 = vpop.permute.xlu0 %6009
      %6011 = vrot.lane.b32.xlu0 %v5142, 64
      %v6012 = vpop.permute.xlu0 %6011
      %6013 = vrot.lane.b32.xlu0 %v5143, 64
      %v6014 = vpop.permute.xlu0 %6013
      %6015 = vrot.lane.b32.xlu0 %v5144, 64
      %v6016 = vpop.permute.xlu0 %6015
      %6017 = vrot.lane.b32.xlu0 %v5145, 64
      %v6018 = vpop.permute.xlu0 %6017
      %6019 = vrot.lane.b32.xlu0 %v5146, 64
      %v6020 = vpop.permute.xlu0 %6019
      %6021 = vrot.lane.b32.xlu0 %v5147, 64
      %v6022 = vpop.permute.xlu0 %6021
      %6023 = vrot.lane.b32.xlu0 %v5148, 64
      %v6024 = vpop.permute.xlu0 %6023
      %6025 = vrot.lane.b32.xlu0 %v5149, 64
      %v6026 = vpop.permute.xlu0 %6025
      %6027 = vrot.lane.b32.xlu0 %v5150, 64
      %v6028 = vpop.permute.xlu0 %6027
      %6029 = vrot.lane.b32.xlu0 %v5151, 64
      %v6030 = vpop.permute.xlu0 %6029
      %6031 = vrot.lane.b32.xlu0 %v5152, 64
      %v6032 = vpop.permute.xlu0 %6031
      %6033 = vrot.lane.b32.xlu0 %v5153, 64
      %v6034 = vpop.permute.xlu0 %6033
      %6035 = vrot.lane.b32.xlu0 %v5154, 64
      %v6036 = vpop.permute.xlu0 %6035
      %6037 = vrot.lane.b32.xlu0 %v5155, 64
      %v6038 = vpop.permute.xlu0 %6037
      %6039 = vrot.lane.b32.xlu0 %v5156, 64
      %v6040 = vpop.permute.xlu0 %6039
      %6041 = vrot.lane.b32.xlu0 %v5157, 64
      %v6042 = vpop.permute.xlu0 %6041
      %6043 = vrot.lane.b32.xlu0 %v5158, 64
      %v6044 = vpop.permute.xlu0 %6043
      %6045 = vrot.lane.b32.xlu0 %v5159, 64
      %v6046 = vpop.permute.xlu0 %6045
      %6047 = vrot.lane.b32.xlu0 %v5160, 64
      %v6048 = vpop.permute.xlu0 %6047
      %6049 = vrot.lane.b32.xlu0 %v5161, 64
      %v6050 = vpop.permute.xlu0 %6049
      %6051 = vrot.lane.b32.xlu0 %v5162, 64
      %v6052 = vpop.permute.xlu0 %6051
      %6053 = vrot.lane.b32.xlu0 %v5163, 64
      %v6054 = vpop.permute.xlu0 %6053
      %6055 = vrot.lane.b32.xlu0 %v5164, 64
      %v6056 = vpop.permute.xlu0 %6055
      %6057 = vrot.lane.b32.xlu0 %v5165, 64
      %v6058 = vpop.permute.xlu0 %6057
      %6059 = vrot.lane.b32.xlu0 %v5166, 64
      %v6060 = vpop.permute.xlu0 %6059
      %6061 = vrot.lane.b32.xlu0 %v5167, 64
      %v6062 = vpop.permute.xlu0 %6061
      %6063 = vrot.lane.b32.xlu0 %v5168, 64
      %v6064 = vpop.permute.xlu0 %6063
      %6065 = vrot.lane.b32.xlu0 %v5169, 64
      %v6066 = vpop.permute.xlu0 %6065
      %6067 = vrot.lane.b32.xlu0 %v5170, 64
      %v6068 = vpop.permute.xlu0 %6067
      %6069 = vrot.lane.b32.xlu0 %v5171, 64
      %v6070 = vpop.permute.xlu0 %6069
      %6135 = vrot.lane.b32.xlu0 %v5205, 64
      %v6136 = vpop.permute.xlu0 %6135
      %6137 = vrot.lane.b32.xlu0 %v5206, 64
      %v6138 = vpop.permute.xlu0 %6137
      %6139 = vrot.lane.b32.xlu0 %v5207, 64
      %v6140 = vpop.permute.xlu0 %6139
      %6141 = vrot.lane.b32.xlu0 %v5208, 64
      %v6142 = vpop.permute.xlu0 %6141
      %6143 = vrot.lane.b32.xlu0 %v5209, 64
      %v6144 = vpop.permute.xlu0 %6143
      %6145 = vrot.lane.b32.xlu0 %v5210, 64
      %v6146 = vpop.permute.xlu0 %6145
      %6147 = vrot.lane.b32.xlu0 %v5211, 64
      %v6148 = vpop.permute.xlu0 %6147
      %6149 = vrot.lane.b32.xlu0 %v5212, 64
      %v6150 = vpop.permute.xlu0 %6149
      %6151 = vrot.lane.b32.xlu0 %v5213, 64
      %v6152 = vpop.permute.xlu0 %6151
      %6153 = vrot.lane.b32.xlu0 %v5214, 64
      %v6154 = vpop.permute.xlu0 %6153
      %6155 = vrot.lane.b32.xlu0 %v5215, 64
      %v6156 = vpop.permute.xlu0 %6155
      %6157 = vrot.lane.b32.xlu0 %v5216, 64
      %v6158 = vpop.permute.xlu0 %6157
      %6159 = vrot.lane.b32.xlu0 %v5217, 64
      %v6160 = vpop.permute.xlu0 %6159
      %6161 = vrot.lane.b32.xlu0 %v5218, 64
      %v6162 = vpop.permute.xlu0 %6161
      %6163 = vrot.lane.b32.xlu0 %v5219, 64
      %v6164 = vpop.permute.xlu0 %6163
      %6165 = vrot.lane.b32.xlu0 %v5220, 64
      %v6166 = vpop.permute.xlu0 %6165
      %6167 = vrot.lane.b32.xlu0 %v5221, 64
      %v6168 = vpop.permute.xlu0 %6167
      %6169 = vrot.lane.b32.xlu0 %v5222, 64
      %v6170 = vpop.permute.xlu0 %6169
      %6171 = vrot.lane.b32.xlu0 %v5223, 64
      %v6172 = vpop.permute.xlu0 %6171
      %6173 = vrot.lane.b32.xlu0 %v5224, 64
      %v6174 = vpop.permute.xlu0 %6173
      %6175 = vrot.lane.b32.xlu0 %v5225, 64
      %v6176 = vpop.permute.xlu0 %6175
      %6177 = vrot.lane.b32.xlu0 %v5226, 64
      %v6178 = vpop.permute.xlu0 %6177
      %6179 = vrot.lane.b32.xlu0 %v5227, 64
      %v6180 = vpop.permute.xlu0 %6179
      %6181 = vrot.lane.b32.xlu0 %v5228, 64
      %v6182 = vpop.permute.xlu0 %6181
      %6183 = vrot.lane.b32.xlu0 %v5229, 64
      %v6184 = vpop.permute.xlu0 %6183
      %6185 = vrot.lane.b32.xlu0 %v5230, 64
      %v6186 = vpop.permute.xlu0 %6185
      %6187 = vrot.lane.b32.xlu0 %v5231, 64
      %v6188 = vpop.permute.xlu0 %6187
      %6189 = vrot.lane.b32.xlu0 %v5232, 64
      %v6190 = vpop.permute.xlu0 %6189
      %6191 = vrot.lane.b32.xlu0 %v5233, 64
      %v6192 = vpop.permute.xlu0 %6191
      %6193 = vrot.lane.b32.xlu0 %v5234, 64
      %v6194 = vpop.permute.xlu0 %6193
      %6195 = vrot.lane.b32.xlu0 %v5235, 64
      %v6196 = vpop.permute.xlu0 %6195
      %6197 = vrot.lane.b32.xlu0 %v5236, 64
      %v6198 = vpop.permute.xlu0 %6197
      %6263 = vrot.lane.b32.xlu0 %v5269, 64
      %v6264 = vpop.permute.xlu0 %6263
      %6265 = vrot.lane.b32.xlu0 %v5270, 64
      %v6266 = vpop.permute.xlu0 %6265
      %6267 = vrot.lane.b32.xlu0 %v5271, 64
      %v6268 = vpop.permute.xlu0 %6267
      %6269 = vrot.lane.b32.xlu0 %v5272, 64
      %v6270 = vpop.permute.xlu0 %6269
      %6271 = vrot.lane.b32.xlu0 %v5273, 64
      %v6272 = vpop.permute.xlu0 %6271
      %6273 = vrot.lane.b32.xlu0 %v5274, 64
      %v6274 = vpop.permute.xlu0 %6273
      %6275 = vrot.lane.b32.xlu0 %v5275, 64
      %v6276 = vpop.permute.xlu0 %6275
      %6277 = vrot.lane.b32.xlu0 %v5276, 64
      %v6278 = vpop.permute.xlu0 %6277
      %6279 = vrot.lane.b32.xlu0 %v5277, 64
      %v6280 = vpop.permute.xlu0 %6279
      %6281 = vrot.lane.b32.xlu0 %v5278, 64
      %v6282 = vpop.permute.xlu0 %6281
      %6283 = vrot.lane.b32.xlu0 %v5279, 64
      %v6284 = vpop.permute.xlu0 %6283
      %6285 = vrot.lane.b32.xlu0 %v5280, 64
      %v6286 = vpop.permute.xlu0 %6285
      %6287 = vrot.lane.b32.xlu0 %v5281, 64
      %v6288 = vpop.permute.xlu0 %6287
      %6289 = vrot.lane.b32.xlu0 %v5282, 64
      %v6290 = vpop.permute.xlu0 %6289
      %6291 = vrot.lane.b32.xlu0 %v5283, 64
      %v6292 = vpop.permute.xlu0 %6291
      %6293 = vrot.lane.b32.xlu0 %v5284, 64
      %v6294 = vpop.permute.xlu0 %6293
      %6295 = vrot.lane.b32.xlu0 %v5285, 64
      %v6296 = vpop.permute.xlu0 %6295
      %6297 = vrot.lane.b32.xlu0 %v5286, 64
      %v6298 = vpop.permute.xlu0 %6297
      %6299 = vrot.lane.b32.xlu0 %v5287, 64
      %v6300 = vpop.permute.xlu0 %6299
      %6301 = vrot.lane.b32.xlu0 %v5288, 64
      %v6302 = vpop.permute.xlu0 %6301
      %6303 = vrot.lane.b32.xlu0 %v5289, 64
      %v6304 = vpop.permute.xlu0 %6303
      %6305 = vrot.lane.b32.xlu0 %v5290, 64
      %v6306 = vpop.permute.xlu0 %6305
      %6307 = vrot.lane.b32.xlu0 %v5291, 64
      %v6308 = vpop.permute.xlu0 %6307
      %6309 = vrot.lane.b32.xlu0 %v5292, 64
      %v6310 = vpop.permute.xlu0 %6309
      %6311 = vrot.lane.b32.xlu0 %v5293, 64
      %v6312 = vpop.permute.xlu0 %6311
      %6313 = vrot.lane.b32.xlu0 %v5294, 64
      %v6314 = vpop.permute.xlu0 %6313
      %6315 = vrot.lane.b32.xlu0 %v5295, 64
      %v6316 = vpop.permute.xlu0 %6315
      %6317 = vrot.lane.b32.xlu0 %v5296, 64
      %v6318 = vpop.permute.xlu0 %6317
      %6319 = vrot.lane.b32.xlu0 %v5297, 64
      %v6320 = vpop.permute.xlu0 %6319
      %6321 = vrot.lane.b32.xlu0 %v5298, 64
      %v6322 = vpop.permute.xlu0 %6321
      %6323 = vrot.lane.b32.xlu0 %v5299, 64
      %v6324 = vpop.permute.xlu0 %6323
      %6325 = vrot.lane.b32.xlu0 %v5300, 64
      %v6326 = vpop.permute.xlu0 %6325
      %6391 = vrot.lane.b32.xlu0 %v5333, 64
      %v6392 = vpop.permute.xlu0 %6391
      %6393 = vrot.lane.b32.xlu0 %v5334, 64
      %v6394 = vpop.permute.xlu0 %6393
      %6395 = vrot.lane.b32.xlu0 %v5335, 64
      %v6396 = vpop.permute.xlu0 %6395
      %6397 = vrot.lane.b32.xlu0 %v5336, 64
      %v6398 = vpop.permute.xlu0 %6397
      %6399 = vrot.lane.b32.xlu0 %v5337, 64
      %v6400 = vpop.permute.xlu0 %6399
      %6401 = vrot.lane.b32.xlu0 %v5338, 64
      %v6402 = vpop.permute.xlu0 %6401
      %6403 = vrot.lane.b32.xlu0 %v5339, 64
      %v6404 = vpop.permute.xlu0 %6403
      %6405 = vrot.lane.b32.xlu0 %v5340, 64
      %v6406 = vpop.permute.xlu0 %6405
      %6407 = vrot.lane.b32.xlu0 %v5341, 64
      %v6408 = vpop.permute.xlu0 %6407
      %6409 = vrot.lane.b32.xlu0 %v5342, 64
      %v6410 = vpop.permute.xlu0 %6409
      %6411 = vrot.lane.b32.xlu0 %v5343, 64
      %v6412 = vpop.permute.xlu0 %6411
      %6413 = vrot.lane.b32.xlu0 %v5344, 64
      %v6414 = vpop.permute.xlu0 %6413
      %6415 = vrot.lane.b32.xlu0 %v5345, 64
      %v6416 = vpop.permute.xlu0 %6415
      %6417 = vrot.lane.b32.xlu0 %v5346, 64
      %v6418 = vpop.permute.xlu0 %6417
      %6419 = vrot.lane.b32.xlu0 %v5347, 64
      %v6420 = vpop.permute.xlu0 %6419
      %6421 = vrot.lane.b32.xlu0 %v5348, 64
      %v6422 = vpop.permute.xlu0 %6421
      %6423 = vrot.lane.b32.xlu0 %v5349, 64
      %v6424 = vpop.permute.xlu0 %6423
      %6425 = vrot.lane.b32.xlu0 %v5350, 64
      %v6426 = vpop.permute.xlu0 %6425
      %6427 = vrot.lane.b32.xlu0 %v5351, 64
      %v6428 = vpop.permute.xlu0 %6427
      %6429 = vrot.lane.b32.xlu0 %v5352, 64
      %v6430 = vpop.permute.xlu0 %6429
      %6431 = vrot.lane.b32.xlu0 %v5353, 64
      %v6432 = vpop.permute.xlu0 %6431
      %6433 = vrot.lane.b32.xlu0 %v5354, 64
      %v6434 = vpop.permute.xlu0 %6433
      %6435 = vrot.lane.b32.xlu0 %v5355, 64
      %v6436 = vpop.permute.xlu0 %6435
      %6437 = vrot.lane.b32.xlu0 %v5356, 64
      %v6438 = vpop.permute.xlu0 %6437
      %6439 = vrot.lane.b32.xlu0 %v5357, 64
      %v6440 = vpop.permute.xlu0 %6439
      %6441 = vrot.lane.b32.xlu0 %v5358, 64
      %v6442 = vpop.permute.xlu0 %6441
      %6443 = vrot.lane.b32.xlu0 %v5359, 64
      %v6444 = vpop.permute.xlu0 %6443
      %6445 = vrot.lane.b32.xlu0 %v5360, 64
      %v6446 = vpop.permute.xlu0 %6445
      %6447 = vrot.lane.b32.xlu0 %v5361, 64
      %v6448 = vpop.permute.xlu0 %6447
      %6449 = vrot.lane.b32.xlu0 %v5362, 64
      %v6450 = vpop.permute.xlu0 %6449
      %6451 = vrot.lane.b32.xlu0 %v5363, 64
      %v6452 = vpop.permute.xlu0 %6451
      %6453 = vrot.lane.b32.xlu0 %v5364, 64
      %v6454 = vpop.permute.xlu0 %6453
      %6519 = vrot.lane.b32.xlu0 %v5397, 64
      %v6520 = vpop.permute.xlu0 %6519
      %6521 = vrot.lane.b32.xlu0 %v5398, 64
      %v6522 = vpop.permute.xlu0 %6521
      %6523 = vrot.lane.b32.xlu0 %v5399, 64
      %v6524 = vpop.permute.xlu0 %6523
      %6525 = vrot.lane.b32.xlu0 %v5400, 64
      %v6526 = vpop.permute.xlu0 %6525
      %6527 = vrot.lane.b32.xlu0 %v5401, 64
      %v6528 = vpop.permute.xlu0 %6527
      %6529 = vrot.lane.b32.xlu0 %v5402, 64
      %v6530 = vpop.permute.xlu0 %6529
      %6531 = vrot.lane.b32.xlu0 %v5403, 64
      %v6532 = vpop.permute.xlu0 %6531
      %6533 = vrot.lane.b32.xlu0 %v5404, 64
      %v6534 = vpop.permute.xlu0 %6533
      %6535 = vrot.lane.b32.xlu0 %v5405, 64
      %v6536 = vpop.permute.xlu0 %6535
      %6537 = vrot.lane.b32.xlu0 %v5406, 64
      %v6538 = vpop.permute.xlu0 %6537
      %6539 = vrot.lane.b32.xlu0 %v5407, 64
      %v6540 = vpop.permute.xlu0 %6539
      %6541 = vrot.lane.b32.xlu0 %v5408, 64
      %v6542 = vpop.permute.xlu0 %6541
      %6543 = vrot.lane.b32.xlu0 %v5409, 64
      %v6544 = vpop.permute.xlu0 %6543
      %6545 = vrot.lane.b32.xlu0 %v5410, 64
      %v6546 = vpop.permute.xlu0 %6545
      %6547 = vrot.lane.b32.xlu0 %v5411, 64
      %v6548 = vpop.permute.xlu0 %6547
      %6549 = vrot.lane.b32.xlu0 %v5412, 64
      %v6550 = vpop.permute.xlu0 %6549
      %6551 = vrot.lane.b32.xlu0 %v5413, 64
      %v6552 = vpop.permute.xlu0 %6551
      %6553 = vrot.lane.b32.xlu0 %v5414, 64
      %v6554 = vpop.permute.xlu0 %6553
      %6555 = vrot.lane.b32.xlu0 %v5415, 64
      %v6556 = vpop.permute.xlu0 %6555
      %6557 = vrot.lane.b32.xlu0 %v5416, 64
      %v6558 = vpop.permute.xlu0 %6557
      %6559 = vrot.lane.b32.xlu0 %v5417, 64
      %v6560 = vpop.permute.xlu0 %6559
      %6561 = vrot.lane.b32.xlu0 %v5418, 64
      %v6562 = vpop.permute.xlu0 %6561
      %6563 = vrot.lane.b32.xlu0 %v5419, 64
      %v6564 = vpop.permute.xlu0 %6563
      %6565 = vrot.lane.b32.xlu0 %v5420, 64
      %v6566 = vpop.permute.xlu0 %6565
      %6567 = vrot.lane.b32.xlu0 %v5421, 64
      %v6568 = vpop.permute.xlu0 %6567
      %6569 = vrot.lane.b32.xlu0 %v5422, 64
      %v6570 = vpop.permute.xlu0 %6569
      %6571 = vrot.lane.b32.xlu0 %v5423, 64
      %v6572 = vpop.permute.xlu0 %6571
      %6573 = vrot.lane.b32.xlu0 %v5424, 64
      %v6574 = vpop.permute.xlu0 %6573
      %6575 = vrot.lane.b32.xlu0 %v5425, 64
      %v6576 = vpop.permute.xlu0 %6575
      %6577 = vrot.lane.b32.xlu0 %v5426, 64
      %v6578 = vpop.permute.xlu0 %6577
      %6579 = vrot.lane.b32.xlu0 %v5427, 64
      %v6580 = vpop.permute.xlu0 %6579
      %6581 = vrot.lane.b32.xlu0 %v5428, 64
      %v6582 = vpop.permute.xlu0 %6581
      %6647 = vrot.lane.b32.xlu0 %v5461, 64
      %v6648 = vpop.permute.xlu0 %6647
      %6649 = vrot.lane.b32.xlu0 %v5462, 64
      %v6650 = vpop.permute.xlu0 %6649
      %6651 = vrot.lane.b32.xlu0 %v5463, 64
      %v6652 = vpop.permute.xlu0 %6651
      %6653 = vrot.lane.b32.xlu0 %v5464, 64
      %v6654 = vpop.permute.xlu0 %6653
      %6655 = vrot.lane.b32.xlu0 %v5465, 64
      %v6656 = vpop.permute.xlu0 %6655
      %6657 = vrot.lane.b32.xlu0 %v5466, 64
      %v6658 = vpop.permute.xlu0 %6657
      %6659 = vrot.lane.b32.xlu0 %v5467, 64
      %v6660 = vpop.permute.xlu0 %6659
      %6661 = vrot.lane.b32.xlu0 %v5468, 64
      %v6662 = vpop.permute.xlu0 %6661
      %6663 = vrot.lane.b32.xlu0 %v5469, 64
      %v6664 = vpop.permute.xlu0 %6663
      %6665 = vrot.lane.b32.xlu0 %v5470, 64
      %v6666 = vpop.permute.xlu0 %6665
      %6667 = vrot.lane.b32.xlu0 %v5471, 64
      %v6668 = vpop.permute.xlu0 %6667
      %6669 = vrot.lane.b32.xlu0 %v5472, 64
      %v6670 = vpop.permute.xlu0 %6669
      %6671 = vrot.lane.b32.xlu0 %v5473, 64
      %v6672 = vpop.permute.xlu0 %6671
      %6673 = vrot.lane.b32.xlu0 %v5474, 64
      %v6674 = vpop.permute.xlu0 %6673
      %6675 = vrot.lane.b32.xlu0 %v5475, 64
      %v6676 = vpop.permute.xlu0 %6675
      %6677 = vrot.lane.b32.xlu0 %v5476, 64
      %v6678 = vpop.permute.xlu0 %6677
      %6679 = vrot.lane.b32.xlu0 %v5477, 64
      %v6680 = vpop.permute.xlu0 %6679
      %6681 = vrot.lane.b32.xlu0 %v5478, 64
      %v6682 = vpop.permute.xlu0 %6681
      %6683 = vrot.lane.b32.xlu0 %v5479, 64
      %v6684 = vpop.permute.xlu0 %6683
      %6685 = vrot.lane.b32.xlu0 %v5480, 64
      %v6686 = vpop.permute.xlu0 %6685
      %6687 = vrot.lane.b32.xlu0 %v5481, 64
      %v6688 = vpop.permute.xlu0 %6687
      %6689 = vrot.lane.b32.xlu0 %v5482, 64
      %v6690 = vpop.permute.xlu0 %6689
      %6691 = vrot.lane.b32.xlu0 %v5483, 64
      %v6692 = vpop.permute.xlu0 %6691
      %6693 = vrot.lane.b32.xlu0 %v5484, 64
      %v6694 = vpop.permute.xlu0 %6693
      %6695 = vrot.lane.b32.xlu0 %v5485, 64
      %v6696 = vpop.permute.xlu0 %6695
      %6697 = vrot.lane.b32.xlu0 %v5486, 64
      %v6698 = vpop.permute.xlu0 %6697
      %6699 = vrot.lane.b32.xlu0 %v5487, 64
      %v6700 = vpop.permute.xlu0 %6699
      %6701 = vrot.lane.b32.xlu0 %v5488, 64
      %v6702 = vpop.permute.xlu0 %6701
      %6703 = vrot.lane.b32.xlu0 %v5489, 64
      %v6704 = vpop.permute.xlu0 %6703
      %6705 = vrot.lane.b32.xlu0 %v5490, 64
      %v6706 = vpop.permute.xlu0 %6705
      %6707 = vrot.lane.b32.xlu0 %v5491, 64
      %v6708 = vpop.permute.xlu0 %6707
      %6709 = vrot.lane.b32.xlu0 %v5492, 64
      %v6710 = vpop.permute.xlu0 %6709
      %6775 = vrot.lane.b32.xlu0 %v5526, 64
      %v6776 = vpop.permute.xlu0 %6775
      %6777 = vrot.lane.b32.xlu0 %v5527, 64
      %v6778 = vpop.permute.xlu0 %6777
      %6779 = vrot.lane.b32.xlu0 %v5528, 64
      %v6780 = vpop.permute.xlu0 %6779
      %6781 = vrot.lane.b32.xlu0 %v5529, 64
      %v6782 = vpop.permute.xlu0 %6781
      %6783 = vrot.lane.b32.xlu0 %v5530, 64
      %v6784 = vpop.permute.xlu0 %6783
      %6785 = vrot.lane.b32.xlu0 %v5531, 64
      %v6786 = vpop.permute.xlu0 %6785
      %6787 = vrot.lane.b32.xlu0 %v5532, 64
      %v6788 = vpop.permute.xlu0 %6787
      %6789 = vrot.lane.b32.xlu0 %v5533, 64
      %v6790 = vpop.permute.xlu0 %6789
      %6791 = vrot.lane.b32.xlu0 %v5534, 64
      %v6792 = vpop.permute.xlu0 %6791
      %6793 = vrot.lane.b32.xlu0 %v5535, 64
      %v6794 = vpop.permute.xlu0 %6793
      %6795 = vrot.lane.b32.xlu0 %v5536, 64
      %v6796 = vpop.permute.xlu0 %6795
      %6797 = vrot.lane.b32.xlu0 %v5537, 64
      %v6798 = vpop.permute.xlu0 %6797
      %6799 = vrot.lane.b32.xlu0 %v5538, 64
      %v6800 = vpop.permute.xlu0 %6799
      %6801 = vrot.lane.b32.xlu0 %v5539, 64
      %v6802 = vpop.permute.xlu0 %6801
      %6803 = vrot.lane.b32.xlu0 %v5540, 64
      %v6804 = vpop.permute.xlu0 %6803
      %6805 = vrot.lane.b32.xlu0 %v5541, 64
      %v6806 = vpop.permute.xlu0 %6805
      %6807 = vrot.lane.b32.xlu0 %v5542, 64
      %v6808 = vpop.permute.xlu0 %6807
      %6809 = vrot.lane.b32.xlu0 %v5543, 64
      %v6810 = vpop.permute.xlu0 %6809
      %6811 = vrot.lane.b32.xlu0 %v5544, 64
      %v6812 = vpop.permute.xlu0 %6811
      %6813 = vrot.lane.b32.xlu0 %v5545, 64
      %v6814 = vpop.permute.xlu0 %6813
      %6815 = vrot.lane.b32.xlu0 %v5546, 64
      %v6816 = vpop.permute.xlu0 %6815
      %6817 = vrot.lane.b32.xlu0 %v5547, 64
      %v6818 = vpop.permute.xlu0 %6817
      %6819 = vrot.lane.b32.xlu0 %v5548, 64
      %v6820 = vpop.permute.xlu0 %6819
      %6821 = vrot.lane.b32.xlu0 %v5549, 64
      %v6822 = vpop.permute.xlu0 %6821
      %6823 = vrot.lane.b32.xlu0 %v5550, 64
      %v6824 = vpop.permute.xlu0 %6823
      %6825 = vrot.lane.b32.xlu0 %v5551, 64
      %v6826 = vpop.permute.xlu0 %6825
      %6827 = vrot.lane.b32.xlu0 %v5552, 64
      %v6828 = vpop.permute.xlu0 %6827
      %6829 = vrot.lane.b32.xlu0 %v5553, 64
      %v6830 = vpop.permute.xlu0 %6829
      %6831 = vrot.lane.b32.xlu0 %v5554, 64
      %v6832 = vpop.permute.xlu0 %6831
      %6833 = vrot.lane.b32.xlu0 %v5555, 64
      %v6834 = vpop.permute.xlu0 %6833
      %6835 = vrot.lane.b32.xlu0 %v5556, 64
      %v6836 = vpop.permute.xlu0 %6835
      %6837 = vrot.lane.b32.xlu0 %v5557, 64
      %v6838 = vpop.permute.xlu0 %6837
      %v6871 = vsel %vm4949, %v5044, %v5880
      %v6872 = vsel %vm4949, %v5045, %v5882
      %v6873 = vsel %vm4949, %v5046, %v5884
      %v6874 = vsel %vm4949, %v5047, %v5886
      %v6875 = vsel %vm4949, %v5048, %v5888
      %v6876 = vsel %vm4949, %v5049, %v5890
      %v6877 = vsel %vm4949, %v5050, %v5892
      %v6878 = vsel %vm4949, %v5051, %v5894
      %v6879 = vsel %vm4949, %v5052, %v5896
      %v6880 = vsel %vm4949, %v5053, %v5898
      %v6881 = vsel %vm4949, %v5054, %v5900
      %v6882 = vsel %vm4949, %v5055, %v5902
      %v6883 = vsel %vm4949, %v5056, %v5904
      %v6884 = vsel %vm4949, %v5057, %v5906
      %v6885 = vsel %vm4949, %v5058, %v5908
      %v6886 = vsel %vm4949, %v5059, %v5910
      %v6887 = vsel %vm4949, %v5060, %v5912
      %v6888 = vsel %vm4949, %v5061, %v5914
      %v6889 = vsel %vm4949, %v5062, %v5916
      %v6890 = vsel %vm4949, %v5063, %v5918
      %v6891 = vsel %vm4949, %v5064, %v5920
      %v6892 = vsel %vm4949, %v5065, %v5922
      %v6893 = vsel %vm4949, %v5066, %v5924
      %v6894 = vsel %vm4949, %v5067, %v5926
      %v6895 = vsel %vm4949, %v5068, %v5928
      %v6896 = vsel %vm4949, %v5069, %v5930
      %v6897 = vsel %vm4949, %v5070, %v5932
      %v6898 = vsel %vm4949, %v5071, %v5934
      %v6899 = vsel %vm4949, %v5072, %v5936
      %v6900 = vsel %vm4949, %v5073, %v5938
      %v6901 = vsel %vm4949, %v5074, %v5940
      %v6902 = vsel %vm4949, %v5075, %v5942
      %v6903 = vsel %vm4949, %v5108, %v6008
      %v6904 = vsel %vm4949, %v5109, %v6010
      %v6905 = vsel %vm4949, %v5110, %v6012
      %v6906 = vsel %vm4949, %v5111, %v6014
      %v6907 = vsel %vm4949, %v5112, %v6016
      %v6908 = vsel %vm4949, %v5113, %v6018
      %v6909 = vsel %vm4949, %v5114, %v6020
      %v6910 = vsel %vm4949, %v5115, %v6022
      %v6911 = vsel %vm4949, %v5116, %v6024
      %v6912 = vsel %vm4949, %v5117, %v6026
      %v6913 = vsel %vm4949, %v5118, %v6028
      %v6914 = vsel %vm4949, %v5119, %v6030
      %v6915 = vsel %vm4949, %v5120, %v6032
      %v6916 = vsel %vm4949, %v5121, %v6034
      %v6917 = vsel %vm4949, %v5122, %v6036
      %v6918 = vsel %vm4949, %v5123, %v6038
      %v6919 = vsel %vm4949, %v5124, %v6040
      %v6920 = vsel %vm4949, %v5125, %v6042
      %v6921 = vsel %vm4949, %v5126, %v6044
      %v6922 = vsel %vm4949, %v5127, %v6046
      %v6923 = vsel %vm4949, %v5128, %v6048
      %v6924 = vsel %vm4949, %v5129, %v6050
      %v6925 = vsel %vm4949, %v5130, %v6052
      %v6926 = vsel %vm4949, %v5131, %v6054
      %v6927 = vsel %vm4949, %v5132, %v6056
      %v6928 = vsel %vm4949, %v5133, %v6058
      %v6929 = vsel %vm4949, %v5134, %v6060
      %v6930 = vsel %vm4949, %v5135, %v6062
      %v6931 = vsel %vm4949, %v5136, %v6064
      %v6932 = vsel %vm4949, %v5137, %v6066
      %v6933 = vsel %vm4949, %v5138, %v6068
      %v6934 = vsel %vm4949, %v5139, %v6070
      %v6935 = vsel %vm4949, %v5172, %v6136
      %v6936 = vsel %vm4949, %v5173, %v6138
      %v6937 = vsel %vm4949, %v5174, %v6140
      %v6938 = vsel %vm4949, %v5175, %v6142
      %v6939 = vsel %vm4949, %v5176, %v6144
      %v6940 = vsel %vm4949, %v5177, %v6146
      %v6941 = vsel %vm4949, %v5178, %v6148
      %v6942 = vsel %vm4949, %v5179, %v6150
      %v6943 = vsel %vm4949, %v5180, %v6152
      %v6944 = vsel %vm4949, %v5181, %v6154
      %v6945 = vsel %vm4949, %v5182, %v6156
      %v6946 = vsel %vm4949, %v5183, %v6158
      %v6947 = vsel %vm4949, %v5184, %v6160
      %v6948 = vsel %vm4949, %v5185, %v6162
      %v6949 = vsel %vm4949, %v5186, %v6164
      %v6950 = vsel %vm4949, %v5187, %v6166
      %v6951 = vsel %vm4949, %v5188, %v6168
      %v6952 = vsel %vm4949, %v5189, %v6170
      %v6953 = vsel %vm4949, %v5190, %v6172
      %v6954 = vsel %vm4949, %v5191, %v6174
      %v6955 = vsel %vm4949, %v5192, %v6176
      %v6956 = vsel %vm4949, %v5193, %v6178
      %v6957 = vsel %vm4949, %v5194, %v6180
      %v6958 = vsel %vm4949, %v5195, %v6182
      %v6959 = vsel %vm4949, %v5196, %v6184
      %v6960 = vsel %vm4949, %v5197, %v6186
      %v6961 = vsel %vm4949, %v5198, %v6188
      %v6962 = vsel %vm4949, %v5199, %v6190
      %v6963 = vsel %vm4949, %v5200, %v6192
      %v6964 = vsel %vm4949, %v5201, %v6194
      %v6965 = vsel %vm4949, %v5202, %v6196
      %v6966 = vsel %vm4949, %v5203, %v6198
      %v6967 = vsel %vm4949, %v5237, %v6264
      %v6968 = vsel %vm4949, %v5238, %v6266
      %v6969 = vsel %vm4949, %v5239, %v6268
      %v6970 = vsel %vm4949, %v5240, %v6270
      %v6971 = vsel %vm4949, %v5241, %v6272
      %v6972 = vsel %vm4949, %v5242, %v6274
      %v6973 = vsel %vm4949, %v5243, %v6276
      %v6974 = vsel %vm4949, %v5244, %v6278
      %v6975 = vsel %vm4949, %v5245, %v6280
      %v6976 = vsel %vm4949, %v5246, %v6282
      %v6977 = vsel %vm4949, %v5247, %v6284
      %v6978 = vsel %vm4949, %v5248, %v6286
      %v6979 = vsel %vm4949, %v5249, %v6288
      %v6980 = vsel %vm4949, %v5250, %v6290
      %v6981 = vsel %vm4949, %v5251, %v6292
      %v6982 = vsel %vm4949, %v5252, %v6294
      %v6983 = vsel %vm4949, %v5253, %v6296
      %v6984 = vsel %vm4949, %v5254, %v6298
      %v6985 = vsel %vm4949, %v5255, %v6300
      %v6986 = vsel %vm4949, %v5256, %v6302
      %v6987 = vsel %vm4949, %v5257, %v6304
      %v6988 = vsel %vm4949, %v5258, %v6306
      %v6989 = vsel %vm4949, %v5259, %v6308
      %v6990 = vsel %vm4949, %v5260, %v6310
      %v6991 = vsel %vm4949, %v5261, %v6312
      %v6992 = vsel %vm4949, %v5262, %v6314
      %v6993 = vsel %vm4949, %v5263, %v6316
      %v6994 = vsel %vm4949, %v5264, %v6318
      %v6995 = vsel %vm4949, %v5265, %v6320
      %v6996 = vsel %vm4949, %v5266, %v6322
      %v6997 = vsel %vm4949, %v5267, %v6324
      %v6998 = vsel %vm4949, %v5268, %v6326
      %v6999 = vsel %vm4949, %v5301, %v6392
      %v7000 = vsel %vm4949, %v5302, %v6394
      %v7001 = vsel %vm4949, %v5303, %v6396
      %v7002 = vsel %vm4949, %v5304, %v6398
      %v7003 = vsel %vm4949, %v5305, %v6400
      %v7004 = vsel %vm4949, %v5306, %v6402
      %v7005 = vsel %vm4949, %v5307, %v6404
      %v7006 = vsel %vm4949, %v5308, %v6406
      %v7007 = vsel %vm4949, %v5309, %v6408
      %v7008 = vsel %vm4949, %v5310, %v6410
      %v7009 = vsel %vm4949, %v5311, %v6412
      %v7010 = vsel %vm4949, %v5312, %v6414
      %v7011 = vsel %vm4949, %v5313, %v6416
      %v7012 = vsel %vm4949, %v5314, %v6418
      %v7013 = vsel %vm4949, %v5315, %v6420
      %v7014 = vsel %vm4949, %v5316, %v6422
      %v7015 = vsel %vm4949, %v5317, %v6424
      %v7016 = vsel %vm4949, %v5318, %v6426
      %v7017 = vsel %vm4949, %v5319, %v6428
      %v7018 = vsel %vm4949, %v5320, %v6430
      %v7019 = vsel %vm4949, %v5321, %v6432
      %v7020 = vsel %vm4949, %v5322, %v6434
      %v7021 = vsel %vm4949, %v5323, %v6436
      %v7022 = vsel %vm4949, %v5324, %v6438
      %v7023 = vsel %vm4949, %v5325, %v6440
      %v7024 = vsel %vm4949, %v5326, %v6442
      %v7025 = vsel %vm4949, %v5327, %v6444
      %v7026 = vsel %vm4949, %v5328, %v6446
      %v7027 = vsel %vm4949, %v5329, %v6448
      %v7028 = vsel %vm4949, %v5330, %v6450
      %v7029 = vsel %vm4949, %v5331, %v6452
      %v7030 = vsel %vm4949, %v5332, %v6454
      %v7031 = vsel %vm4949, %v5365, %v6520
      %v7032 = vsel %vm4949, %v5366, %v6522
      %v7033 = vsel %vm4949, %v5367, %v6524
      %v7034 = vsel %vm4949, %v5368, %v6526
      %v7035 = vsel %vm4949, %v5369, %v6528
      %v7036 = vsel %vm4949, %v5370, %v6530
      %v7037 = vsel %vm4949, %v5371, %v6532
      %v7038 = vsel %vm4949, %v5372, %v6534
      %v7039 = vsel %vm4949, %v5373, %v6536
      %v7040 = vsel %vm4949, %v5374, %v6538
      %v7041 = vsel %vm4949, %v5375, %v6540
      %v7042 = vsel %vm4949, %v5376, %v6542
      %v7043 = vsel %vm4949, %v5377, %v6544
      %v7044 = vsel %vm4949, %v5378, %v6546
      %v7045 = vsel %vm4949, %v5379, %v6548
      %v7046 = vsel %vm4949, %v5380, %v6550
      %v7047 = vsel %vm4949, %v5381, %v6552
      %v7048 = vsel %vm4949, %v5382, %v6554
      %v7049 = vsel %vm4949, %v5383, %v6556
      %v7050 = vsel %vm4949, %v5384, %v6558
      %v7051 = vsel %vm4949, %v5385, %v6560
      %v7052 = vsel %vm4949, %v5386, %v6562
      %v7053 = vsel %vm4949, %v5387, %v6564
      %v7054 = vsel %vm4949, %v5388, %v6566
      %v7055 = vsel %vm4949, %v5389, %v6568
      %v7056 = vsel %vm4949, %v5390, %v6570
      %v7057 = vsel %vm4949, %v5391, %v6572
      %v7058 = vsel %vm4949, %v5392, %v6574
      %v7059 = vsel %vm4949, %v5393, %v6576
      %v7060 = vsel %vm4949, %v5394, %v6578
      %v7061 = vsel %vm4949, %v5395, %v6580
      %v7062 = vsel %vm4949, %v5396, %v6582
      %v7063 = vsel %vm4949, %v5429, %v6648
      %v7064 = vsel %vm4949, %v5430, %v6650
      %v7065 = vsel %vm4949, %v5431, %v6652
      %v7066 = vsel %vm4949, %v5432, %v6654
      %v7067 = vsel %vm4949, %v5433, %v6656
      %v7068 = vsel %vm4949, %v5434, %v6658
      %v7069 = vsel %vm4949, %v5435, %v6660
      %v7070 = vsel %vm4949, %v5436, %v6662
      %v7071 = vsel %vm4949, %v5437, %v6664
      %v7072 = vsel %vm4949, %v5438, %v6666
      %v7073 = vsel %vm4949, %v5439, %v6668
      %v7074 = vsel %vm4949, %v5440, %v6670
      %v7075 = vsel %vm4949, %v5441, %v6672
      %v7076 = vsel %vm4949, %v5442, %v6674
      %v7077 = vsel %vm4949, %v5443, %v6676
      %v7078 = vsel %vm4949, %v5444, %v6678
      %v7079 = vsel %vm4949, %v5445, %v6680
      %v7080 = vsel %vm4949, %v5446, %v6682
      %v7081 = vsel %vm4949, %v5447, %v6684
      %v7082 = vsel %vm4949, %v5448, %v6686
      %v7083 = vsel %vm4949, %v5449, %v6688
      %v7084 = vsel %vm4949, %v5450, %v6690
      %v7085 = vsel %vm4949, %v5451, %v6692
      %v7086 = vsel %vm4949, %v5452, %v6694
      %v7087 = vsel %vm4949, %v5453, %v6696
      %v7088 = vsel %vm4949, %v5454, %v6698
      %v7089 = vsel %vm4949, %v5455, %v6700
      %v7090 = vsel %vm4949, %v5456, %v6702
      %v7091 = vsel %vm4949, %v5457, %v6704
      %v7092 = vsel %vm4949, %v5458, %v6706
      %v7093 = vsel %vm4949, %v5459, %v6708
      %v7094 = vsel %vm4949, %v5460, %v6710
      %v7095 = vsel %vm4949, %v5493, %v6776
      %v7096 = vsel %vm4949, %v5494, %v6778
      %v7097 = vsel %vm4949, %v5495, %v6780
      %v7098 = vsel %vm4949, %v5496, %v6782
      %v7099 = vsel %vm4949, %v5497, %v6784
      %v7100 = vsel %vm4949, %v5498, %v6786
      %v7101 = vsel %vm4949, %v5499, %v6788
      %v7102 = vsel %vm4949, %v5500, %v6790
      %v7103 = vsel %vm4949, %v5501, %v6792
      %v7104 = vsel %vm4949, %v5502, %v6794
      %v7105 = vsel %vm4949, %v5503, %v6796
      %v7106 = vsel %vm4949, %v5504, %v6798
      %v7107 = vsel %vm4949, %v5505, %v6800
      %v7108 = vsel %vm4949, %v5506, %v6802
      %v7109 = vsel %vm4949, %v5507, %v6804
      %v7110 = vsel %vm4949, %v5508, %v6806
      %v7111 = vsel %vm4949, %v5509, %v6808
      %v7112 = vsel %vm4949, %v5510, %v6810
      %v7113 = vsel %vm4949, %v5511, %v6812
      %v7114 = vsel %vm4949, %v5512, %v6814
      %v7115 = vsel %vm4949, %v5513, %v6816
      %v7116 = vsel %vm4949, %v5514, %v6818
      %v7117 = vsel %vm4949, %v5515, %v6820
      %v7118 = vsel %vm4949, %v5516, %v6822
      %v7119 = vsel %vm4949, %v5517, %v6824
      %v7120 = vsel %vm4949, %v5518, %v6826
      %v7121 = vsel %vm4949, %v5519, %v6828
      %v7122 = vsel %vm4949, %v5520, %v6830
      %v7123 = vsel %vm4949, %v5521, %v6832
      %v7124 = vsel %vm4949, %v5522, %v6834
      %v7125 = vsel %vm4949, %v5523, %v6836
      %v7126 = vsel %vm4949, %v5524, %v6838
      %7159 = vrot.lane.b32.xlu0 %v5590, 64
      %v7160 = vpop.permute.xlu0 %7159
      %7161 = vrot.lane.b32.xlu0 %v5591, 64
      %v7162 = vpop.permute.xlu0 %7161
      %7163 = vrot.lane.b32.xlu0 %v5592, 64
      %v7164 = vpop.permute.xlu0 %7163
      %7165 = vrot.lane.b32.xlu0 %v5593, 64
      %v7166 = vpop.permute.xlu0 %7165
      %7167 = vrot.lane.b32.xlu0 %v5594, 64
      %v7168 = vpop.permute.xlu0 %7167
      %7169 = vrot.lane.b32.xlu0 %v5595, 64
      %v7170 = vpop.permute.xlu0 %7169
      %7171 = vrot.lane.b32.xlu0 %v5596, 64
      %v7172 = vpop.permute.xlu0 %7171
      %7173 = vrot.lane.b32.xlu0 %v5597, 64
      %v7174 = vpop.permute.xlu0 %7173
      %7175 = vrot.lane.b32.xlu0 %v5598, 64
      %v7176 = vpop.permute.xlu0 %7175
      %7177 = vrot.lane.b32.xlu0 %v5599, 64
      %v7178 = vpop.permute.xlu0 %7177
      %7179 = vrot.lane.b32.xlu0 %v5600, 64
      %v7180 = vpop.permute.xlu0 %7179
      %7181 = vrot.lane.b32.xlu0 %v5601, 64
      %v7182 = vpop.permute.xlu0 %7181
      %7183 = vrot.lane.b32.xlu0 %v5602, 64
      %v7184 = vpop.permute.xlu0 %7183
      %7185 = vrot.lane.b32.xlu0 %v5603, 64
      %v7186 = vpop.permute.xlu0 %7185
      %7187 = vrot.lane.b32.xlu0 %v5604, 64
      %v7188 = vpop.permute.xlu0 %7187
      %7189 = vrot.lane.b32.xlu0 %v5605, 64
      %v7190 = vpop.permute.xlu0 %7189
      %7191 = vrot.lane.b32.xlu0 %v5606, 64
      %v7192 = vpop.permute.xlu0 %7191
      %7193 = vrot.lane.b32.xlu0 %v5607, 64
      %v7194 = vpop.permute.xlu0 %7193
      %7195 = vrot.lane.b32.xlu0 %v5608, 64
      %v7196 = vpop.permute.xlu0 %7195
      %7197 = vrot.lane.b32.xlu0 %v5609, 64
      %v7198 = vpop.permute.xlu0 %7197
      %7199 = vrot.lane.b32.xlu0 %v5610, 64
      %v7200 = vpop.permute.xlu0 %7199
      %7201 = vrot.lane.b32.xlu0 %v5611, 64
      %v7202 = vpop.permute.xlu0 %7201
      %7203 = vrot.lane.b32.xlu0 %v5612, 64
      %v7204 = vpop.permute.xlu0 %7203
      %7205 = vrot.lane.b32.xlu0 %v5613, 64
      %v7206 = vpop.permute.xlu0 %7205
      %7207 = vrot.lane.b32.xlu0 %v5614, 64
      %v7208 = vpop.permute.xlu0 %7207
      %7209 = vrot.lane.b32.xlu0 %v5615, 64
      %v7210 = vpop.permute.xlu0 %7209
      %7211 = vrot.lane.b32.xlu0 %v5616, 64
      %v7212 = vpop.permute.xlu0 %7211
      %7213 = vrot.lane.b32.xlu0 %v5617, 64
      %v7214 = vpop.permute.xlu0 %7213
      %7215 = vrot.lane.b32.xlu0 %v5618, 64
      %v7216 = vpop.permute.xlu0 %7215
      %7217 = vrot.lane.b32.xlu0 %v5619, 64
      %v7218 = vpop.permute.xlu0 %7217
      %7219 = vrot.lane.b32.xlu0 %v5620, 64
      %v7220 = vpop.permute.xlu0 %7219
      %7221 = vrot.lane.b32.xlu0 %v5621, 64
      %v7222 = vpop.permute.xlu0 %7221
      %7287 = vrot.lane.b32.xlu0 %v5654, 64
      %v7288 = vpop.permute.xlu0 %7287
      %7289 = vrot.lane.b32.xlu0 %v5655, 64
      %v7290 = vpop.permute.xlu0 %7289
      %7291 = vrot.lane.b32.xlu0 %v5656, 64
      %v7292 = vpop.permute.xlu0 %7291
      %7293 = vrot.lane.b32.xlu0 %v5657, 64
      %v7294 = vpop.permute.xlu0 %7293
      %7295 = vrot.lane.b32.xlu0 %v5658, 64
      %v7296 = vpop.permute.xlu0 %7295
      %7297 = vrot.lane.b32.xlu0 %v5659, 64
      %v7298 = vpop.permute.xlu0 %7297
      %7299 = vrot.lane.b32.xlu0 %v5660, 64
      %v7300 = vpop.permute.xlu0 %7299
      %7301 = vrot.lane.b32.xlu0 %v5661, 64
      %v7302 = vpop.permute.xlu0 %7301
      %7303 = vrot.lane.b32.xlu0 %v5662, 64
      %v7304 = vpop.permute.xlu0 %7303
      %7305 = vrot.lane.b32.xlu0 %v5663, 64
      %v7306 = vpop.permute.xlu0 %7305
      %7307 = vrot.lane.b32.xlu0 %v5664, 64
      %v7308 = vpop.permute.xlu0 %7307
      %7309 = vrot.lane.b32.xlu0 %v5665, 64
      %v7310 = vpop.permute.xlu0 %7309
      %7311 = vrot.lane.b32.xlu0 %v5666, 64
      %v7312 = vpop.permute.xlu0 %7311
      %7313 = vrot.lane.b32.xlu0 %v5667, 64
      %v7314 = vpop.permute.xlu0 %7313
      %7315 = vrot.lane.b32.xlu0 %v5668, 64
      %v7316 = vpop.permute.xlu0 %7315
      %7317 = vrot.lane.b32.xlu0 %v5669, 64
      %v7318 = vpop.permute.xlu0 %7317
      %7319 = vrot.lane.b32.xlu0 %v5670, 64
      %v7320 = vpop.permute.xlu0 %7319
      %7321 = vrot.lane.b32.xlu0 %v5671, 64
      %v7322 = vpop.permute.xlu0 %7321
      %7323 = vrot.lane.b32.xlu0 %v5672, 64
      %v7324 = vpop.permute.xlu0 %7323
      %7325 = vrot.lane.b32.xlu0 %v5673, 64
      %v7326 = vpop.permute.xlu0 %7325
      %7327 = vrot.lane.b32.xlu0 %v5674, 64
      %v7328 = vpop.permute.xlu0 %7327
      %7329 = vrot.lane.b32.xlu0 %v5675, 64
      %v7330 = vpop.permute.xlu0 %7329
      %7331 = vrot.lane.b32.xlu0 %v5676, 64
      %v7332 = vpop.permute.xlu0 %7331
      %7333 = vrot.lane.b32.xlu0 %v5677, 64
      %v7334 = vpop.permute.xlu0 %7333
      %7335 = vrot.lane.b32.xlu0 %v5678, 64
      %v7336 = vpop.permute.xlu0 %7335
      %7337 = vrot.lane.b32.xlu0 %v5679, 64
      %v7338 = vpop.permute.xlu0 %7337
      %7339 = vrot.lane.b32.xlu0 %v5680, 64
      %v7340 = vpop.permute.xlu0 %7339
      %7341 = vrot.lane.b32.xlu0 %v5681, 64
      %v7342 = vpop.permute.xlu0 %7341
      %7343 = vrot.lane.b32.xlu0 %v5682, 64
      %v7344 = vpop.permute.xlu0 %7343
      %7345 = vrot.lane.b32.xlu0 %v5683, 64
      %v7346 = vpop.permute.xlu0 %7345
      %7347 = vrot.lane.b32.xlu0 %v5684, 64
      %v7348 = vpop.permute.xlu0 %7347
      %7349 = vrot.lane.b32.xlu0 %v5685, 64
      %v7350 = vpop.permute.xlu0 %7349
      %7415 = vrot.lane.b32.xlu0 %v5719, 64
      %v7416 = vpop.permute.xlu0 %7415
      %7417 = vrot.lane.b32.xlu0 %v5720, 64
      %v7418 = vpop.permute.xlu0 %7417
      %7419 = vrot.lane.b32.xlu0 %v5721, 64
      %v7420 = vpop.permute.xlu0 %7419
      %7421 = vrot.lane.b32.xlu0 %v5722, 64
      %v7422 = vpop.permute.xlu0 %7421
      %7423 = vrot.lane.b32.xlu0 %v5723, 64
      %v7424 = vpop.permute.xlu0 %7423
      %7425 = vrot.lane.b32.xlu0 %v5724, 64
      %v7426 = vpop.permute.xlu0 %7425
      %7427 = vrot.lane.b32.xlu0 %v5725, 64
      %v7428 = vpop.permute.xlu0 %7427
      %7429 = vrot.lane.b32.xlu0 %v5726, 64
      %v7430 = vpop.permute.xlu0 %7429
      %7431 = vrot.lane.b32.xlu0 %v5727, 64
      %v7432 = vpop.permute.xlu0 %7431
      %7433 = vrot.lane.b32.xlu0 %v5728, 64
      %v7434 = vpop.permute.xlu0 %7433
      %7435 = vrot.lane.b32.xlu0 %v5729, 64
      %v7436 = vpop.permute.xlu0 %7435
      %7437 = vrot.lane.b32.xlu0 %v5730, 64
      %v7438 = vpop.permute.xlu0 %7437
      %7439 = vrot.lane.b32.xlu0 %v5731, 64
      %v7440 = vpop.permute.xlu0 %7439
      %7441 = vrot.lane.b32.xlu0 %v5732, 64
      %v7442 = vpop.permute.xlu0 %7441
      %7443 = vrot.lane.b32.xlu0 %v5733, 64
      %v7444 = vpop.permute.xlu0 %7443
      %7445 = vrot.lane.b32.xlu0 %v5734, 64
      %v7446 = vpop.permute.xlu0 %7445
      %7447 = vrot.lane.b32.xlu0 %v5735, 64
      %v7448 = vpop.permute.xlu0 %7447
      %7449 = vrot.lane.b32.xlu0 %v5736, 64
      %v7450 = vpop.permute.xlu0 %7449
      %7451 = vrot.lane.b32.xlu0 %v5737, 64
      %v7452 = vpop.permute.xlu0 %7451
      %7453 = vrot.lane.b32.xlu0 %v5738, 64
      %v7454 = vpop.permute.xlu0 %7453
      %7455 = vrot.lane.b32.xlu0 %v5739, 64
      %v7456 = vpop.permute.xlu0 %7455
      %7457 = vrot.lane.b32.xlu0 %v5740, 64
      %v7458 = vpop.permute.xlu0 %7457
      %7459 = vrot.lane.b32.xlu0 %v5741, 64
      %v7460 = vpop.permute.xlu0 %7459
      %7461 = vrot.lane.b32.xlu0 %v5742, 64
      %v7462 = vpop.permute.xlu0 %7461
      %7463 = vrot.lane.b32.xlu0 %v5743, 64
      %v7464 = vpop.permute.xlu0 %7463
      %7465 = vrot.lane.b32.xlu0 %v5744, 64
      %v7466 = vpop.permute.xlu0 %7465
      %7467 = vrot.lane.b32.xlu0 %v5745, 64
      %v7468 = vpop.permute.xlu0 %7467
      %7469 = vrot.lane.b32.xlu0 %v5746, 64
      %v7470 = vpop.permute.xlu0 %7469
      %7471 = vrot.lane.b32.xlu0 %v5747, 64
      %v7472 = vpop.permute.xlu0 %7471
      %7473 = vrot.lane.b32.xlu0 %v5748, 64
      %v7474 = vpop.permute.xlu0 %7473
      %7475 = vrot.lane.b32.xlu0 %v5749, 64
      %v7476 = vpop.permute.xlu0 %7475
      %7477 = vrot.lane.b32.xlu0 %v5750, 64
      %v7478 = vpop.permute.xlu0 %7477
      %7543 = vrot.lane.b32.xlu0 %v5783, 64
      %v7544 = vpop.permute.xlu0 %7543
      %7545 = vrot.lane.b32.xlu0 %v5784, 64
      %v7546 = vpop.permute.xlu0 %7545
      %7547 = vrot.lane.b32.xlu0 %v5785, 64
      %v7548 = vpop.permute.xlu0 %7547
      %7549 = vrot.lane.b32.xlu0 %v5786, 64
      %v7550 = vpop.permute.xlu0 %7549
      %7551 = vrot.lane.b32.xlu0 %v5787, 64
      %v7552 = vpop.permute.xlu0 %7551
      %7553 = vrot.lane.b32.xlu0 %v5788, 64
      %v7554 = vpop.permute.xlu0 %7553
      %7555 = vrot.lane.b32.xlu0 %v5789, 64
      %v7556 = vpop.permute.xlu0 %7555
      %7557 = vrot.lane.b32.xlu0 %v5790, 64
      %v7558 = vpop.permute.xlu0 %7557
      %7559 = vrot.lane.b32.xlu0 %v5791, 64
      %v7560 = vpop.permute.xlu0 %7559
      %7561 = vrot.lane.b32.xlu0 %v5792, 64
      %v7562 = vpop.permute.xlu0 %7561
      %7563 = vrot.lane.b32.xlu0 %v5793, 64
      %v7564 = vpop.permute.xlu0 %7563
      %7565 = vrot.lane.b32.xlu0 %v5794, 64
      %v7566 = vpop.permute.xlu0 %7565
      %7567 = vrot.lane.b32.xlu0 %v5795, 64
      %v7568 = vpop.permute.xlu0 %7567
      %7569 = vrot.lane.b32.xlu0 %v5796, 64
      %v7570 = vpop.permute.xlu0 %7569
      %7571 = vrot.lane.b32.xlu0 %v5797, 64
      %v7572 = vpop.permute.xlu0 %7571
      %7573 = vrot.lane.b32.xlu0 %v5798, 64
      %v7574 = vpop.permute.xlu0 %7573
      %7575 = vrot.lane.b32.xlu0 %v5799, 64
      %v7576 = vpop.permute.xlu0 %7575
      %7577 = vrot.lane.b32.xlu0 %v5800, 64
      %v7578 = vpop.permute.xlu0 %7577
      %7579 = vrot.lane.b32.xlu0 %v5801, 64
      %v7580 = vpop.permute.xlu0 %7579
      %7581 = vrot.lane.b32.xlu0 %v5802, 64
      %v7582 = vpop.permute.xlu0 %7581
      %7583 = vrot.lane.b32.xlu0 %v5803, 64
      %v7584 = vpop.permute.xlu0 %7583
      %7585 = vrot.lane.b32.xlu0 %v5804, 64
      %v7586 = vpop.permute.xlu0 %7585
      %7587 = vrot.lane.b32.xlu0 %v5805, 64
      %v7588 = vpop.permute.xlu0 %7587
      %7589 = vrot.lane.b32.xlu0 %v5806, 64
      %v7590 = vpop.permute.xlu0 %7589
      %7591 = vrot.lane.b32.xlu0 %v5807, 64
      %v7592 = vpop.permute.xlu0 %7591
      %7593 = vrot.lane.b32.xlu0 %v5808, 64
      %v7594 = vpop.permute.xlu0 %7593
      %7595 = vrot.lane.b32.xlu0 %v5809, 64
      %v7596 = vpop.permute.xlu0 %7595
      %7597 = vrot.lane.b32.xlu0 %v5810, 64
      %v7598 = vpop.permute.xlu0 %7597
      %7599 = vrot.lane.b32.xlu0 %v5811, 64
      %v7600 = vpop.permute.xlu0 %7599
      %7601 = vrot.lane.b32.xlu0 %v5812, 64
      %v7602 = vpop.permute.xlu0 %7601
      %7603 = vrot.lane.b32.xlu0 %v5813, 64
      %v7604 = vpop.permute.xlu0 %7603
      %7605 = vrot.lane.b32.xlu0 %v5814, 64
      %v7606 = vpop.permute.xlu0 %7605
      %v7639 = vsel %vm4949, %v5558, %v7160
      %v7640 = vsel %vm4949, %v5559, %v7162
      %v7641 = vsel %vm4949, %v5560, %v7164
      %v7642 = vsel %vm4949, %v5561, %v7166
      %v7643 = vsel %vm4949, %v5562, %v7168
      %v7644 = vsel %vm4949, %v5563, %v7170
      %v7645 = vsel %vm4949, %v5564, %v7172
      %v7646 = vsel %vm4949, %v5565, %v7174
      %v7647 = vsel %vm4949, %v5566, %v7176
      %v7648 = vsel %vm4949, %v5567, %v7178
      %v7649 = vsel %vm4949, %v5568, %v7180
      %v7650 = vsel %vm4949, %v5569, %v7182
      %v7651 = vsel %vm4949, %v5570, %v7184
      %v7652 = vsel %vm4949, %v5571, %v7186
      %v7653 = vsel %vm4949, %v5572, %v7188
      %v7654 = vsel %vm4949, %v5573, %v7190
      %v7655 = vsel %vm4949, %v5574, %v7192
      %v7656 = vsel %vm4949, %v5575, %v7194
      %v7657 = vsel %vm4949, %v5576, %v7196
      %v7658 = vsel %vm4949, %v5577, %v7198
      %v7659 = vsel %vm4949, %v5578, %v7200
      %v7660 = vsel %vm4949, %v5579, %v7202
      %v7661 = vsel %vm4949, %v5580, %v7204
      %v7662 = vsel %vm4949, %v5581, %v7206
      %v7663 = vsel %vm4949, %v5582, %v7208
      %v7664 = vsel %vm4949, %v5583, %v7210
      %v7665 = vsel %vm4949, %v5584, %v7212
      %v7666 = vsel %vm4949, %v5585, %v7214
      %v7667 = vsel %vm4949, %v5586, %v7216
      %v7668 = vsel %vm4949, %v5587, %v7218
      %v7669 = vsel %vm4949, %v5588, %v7220
      %v7670 = vsel %vm4949, %v5589, %v7222
      %v7671 = vsel %vm4949, %v5622, %v7288
      %v7672 = vsel %vm4949, %v5623, %v7290
      %v7673 = vsel %vm4949, %v5624, %v7292
      %v7674 = vsel %vm4949, %v5625, %v7294
      %v7675 = vsel %vm4949, %v5626, %v7296
      %v7676 = vsel %vm4949, %v5627, %v7298
      %v7677 = vsel %vm4949, %v5628, %v7300
      %v7678 = vsel %vm4949, %v5629, %v7302
      %v7679 = vsel %vm4949, %v5630, %v7304
      %v7680 = vsel %vm4949, %v5631, %v7306
      %v7681 = vsel %vm4949, %v5632, %v7308
      %v7682 = vsel %vm4949, %v5633, %v7310
      %v7683 = vsel %vm4949, %v5634, %v7312
      %v7684 = vsel %vm4949, %v5635, %v7314
      %v7685 = vsel %vm4949, %v5636, %v7316
      %v7686 = vsel %vm4949, %v5637, %v7318
      %v7687 = vsel %vm4949, %v5638, %v7320
      %v7688 = vsel %vm4949, %v5639, %v7322
      %v7689 = vsel %vm4949, %v5640, %v7324
      %v7690 = vsel %vm4949, %v5641, %v7326
      %v7691 = vsel %vm4949, %v5642, %v7328
      %v7692 = vsel %vm4949, %v5643, %v7330
      %v7693 = vsel %vm4949, %v5644, %v7332
      %v7694 = vsel %vm4949, %v5645, %v7334
      %v7695 = vsel %vm4949, %v5646, %v7336
      %v7696 = vsel %vm4949, %v5647, %v7338
      %v7697 = vsel %vm4949, %v5648, %v7340
      %v7698 = vsel %vm4949, %v5649, %v7342
      %v7699 = vsel %vm4949, %v5650, %v7344
      %v7700 = vsel %vm4949, %v5651, %v7346
      %v7701 = vsel %vm4949, %v5652, %v7348
      %v7702 = vsel %vm4949, %v5653, %v7350
      %v7703 = vsel %vm4949, %v5687, %v7416
      %v7704 = vsel %vm4949, %v5688, %v7418
      %v7705 = vsel %vm4949, %v5689, %v7420
      %v7706 = vsel %vm4949, %v5690, %v7422
      %v7707 = vsel %vm4949, %v5691, %v7424
      %v7708 = vsel %vm4949, %v5692, %v7426
      %v7709 = vsel %vm4949, %v5693, %v7428
      %v7710 = vsel %vm4949, %v5694, %v7430
      %v7711 = vsel %vm4949, %v5695, %v7432
      %v7712 = vsel %vm4949, %v5696, %v7434
      %v7713 = vsel %vm4949, %v5697, %v7436
      %v7714 = vsel %vm4949, %v5698, %v7438
      %v7715 = vsel %vm4949, %v5699, %v7440
      %v7716 = vsel %vm4949, %v5700, %v7442
      %v7717 = vsel %vm4949, %v5701, %v7444
      %v7718 = vsel %vm4949, %v5702, %v7446
      %v7719 = vsel %vm4949, %v5703, %v7448
      %v7720 = vsel %vm4949, %v5704, %v7450
      %v7721 = vsel %vm4949, %v5705, %v7452
      %v7722 = vsel %vm4949, %v5706, %v7454
      %v7723 = vsel %vm4949, %v5707, %v7456
      %v7724 = vsel %vm4949, %v5708, %v7458
      %v7725 = vsel %vm4949, %v5709, %v7460
      %v7726 = vsel %vm4949, %v5710, %v7462
      %v7727 = vsel %vm4949, %v5711, %v7464
      %v7728 = vsel %vm4949, %v5712, %v7466
      %v7729 = vsel %vm4949, %v5713, %v7468
      %v7730 = vsel %vm4949, %v5714, %v7470
      %v7731 = vsel %vm4949, %v5715, %v7472
      %v7732 = vsel %vm4949, %v5716, %v7474
      %v7733 = vsel %vm4949, %v5717, %v7476
      %v7734 = vsel %vm4949, %v5718, %v7478
      %v7735 = vsel %vm4949, %v5751, %v7544
      %v7736 = vsel %vm4949, %v5752, %v7546
      %v7737 = vsel %vm4949, %v5753, %v7548
      %v7738 = vsel %vm4949, %v5754, %v7550
      %v7739 = vsel %vm4949, %v5755, %v7552
      %v7740 = vsel %vm4949, %v5756, %v7554
      %v7741 = vsel %vm4949, %v5757, %v7556
      %v7742 = vsel %vm4949, %v5758, %v7558
      %v7743 = vsel %vm4949, %v5759, %v7560
      %v7744 = vsel %vm4949, %v5760, %v7562
      %v7745 = vsel %vm4949, %v5761, %v7564
      %v7746 = vsel %vm4949, %v5762, %v7566
      %v7747 = vsel %vm4949, %v5763, %v7568
      %v7748 = vsel %vm4949, %v5764, %v7570
      %v7749 = vsel %vm4949, %v5765, %v7572
      %v7750 = vsel %vm4949, %v5766, %v7574
      %v7751 = vsel %vm4949, %v5767, %v7576
      %v7752 = vsel %vm4949, %v5768, %v7578
      %v7753 = vsel %vm4949, %v5769, %v7580
      %v7754 = vsel %vm4949, %v5770, %v7582
      %v7755 = vsel %vm4949, %v5771, %v7584
      %v7756 = vsel %vm4949, %v5772, %v7586
      %v7757 = vsel %vm4949, %v5773, %v7588
      %v7758 = vsel %vm4949, %v5774, %v7590
      %v7759 = vsel %vm4949, %v5775, %v7592
      %v7760 = vsel %vm4949, %v5776, %v7594
      %v7761 = vsel %vm4949, %v5777, %v7596
      %v7762 = vsel %vm4949, %v5778, %v7598
      %v7763 = vsel %vm4949, %v5779, %v7600
      %v7764 = vsel %vm4949, %v5780, %v7602
      %v7765 = vsel %vm4949, %v5781, %v7604
      %v7766 = vsel %vm4949, %v5782, %v7606
      %v7767 = vld [vmem:[%s5] sm:$0xff]
      %v7768 = vld [vmem:[%s5 + $0x8] sm:$0xff]
      %v7769 = vld [vmem:[%s5 + $0x10] sm:$0xff]
      %v7770 = vld [vmem:[%s5 + $0x18] sm:$0xff]
      %v7771 = vld [vmem:[%s5 + $0x20] sm:$0xff]
      %v7772 = vld [vmem:[%s5 + $0x28] sm:$0xff]
      %v7773 = vld [vmem:[%s5 + $0x30] sm:$0xff]
      %v7774 = vld [vmem:[%s5 + $0x38] sm:$0xff]
      %v7775 = vld [vmem:[%s5 + $0x40] sm:$0xff]
      %v7776 = vld [vmem:[%s5 + $0x48] sm:$0xff]
      %v7777 = vld [vmem:[%s5 + $0x50] sm:$0xff]
      %v7778 = vld [vmem:[%s5 + $0x58] sm:$0xff]
      %v7779 = vld [vmem:[%s5 + $0x60] sm:$0xff]
      %v7780 = vld [vmem:[%s5 + $0x68] sm:$0xff]
      %v7781 = vld [vmem:[%s5 + $0x70] sm:$0xff]
      %v7782 = vld [vmem:[%s5 + $0x78] sm:$0xff]
      %v7783 = vld [vmem:[%s5 + $0x80] sm:$0xff]
      %v7784 = vld [vmem:[%s5 + $0x88] sm:$0xff]
      %v7785 = vld [vmem:[%s5 + $0x90] sm:$0xff]
      %v7786 = vld [vmem:[%s5 + $0x98] sm:$0xff]
      %v7787 = vld [vmem:[%s5 + $0xa0] sm:$0xff]
      %v7788 = vld [vmem:[%s5 + $0xa8] sm:$0xff]
      %v7789 = vld [vmem:[%s5 + $0xb0] sm:$0xff]
      %v7790 = vld [vmem:[%s5 + $0xb8] sm:$0xff]
      %v7791 = vld [vmem:[%s5 + $0xc0] sm:$0xff]
      %v7792 = vld [vmem:[%s5 + $0xc8] sm:$0xff]
      %v7793 = vld [vmem:[%s5 + $0xd0] sm:$0xff]
      %v7794 = vld [vmem:[%s5 + $0xd8] sm:$0xff]
      %v7795 = vld [vmem:[%s5 + $0xe0] sm:$0xff]
      %v7796 = vld [vmem:[%s5 + $0xe8] sm:$0xff]
      %v7797 = vld [vmem:[%s5 + $0xf0] sm:$0xff]
      %v7798 = vld [vmem:[%s5 + $0xf8] sm:$0xff]
      %v7799 = vld [vmem:[%s5 + $0x100] sm:$0xff]
      %v7800 = vld [vmem:[%s5 + $0x108] sm:$0xff]
      %v7801 = vld [vmem:[%s5 + $0x110] sm:$0xff]
      %v7802 = vld [vmem:[%s5 + $0x118] sm:$0xff]
      %v7803 = vld [vmem:[%s5 + $0x120] sm:$0xff]
      %v7804 = vld [vmem:[%s5 + $0x128] sm:$0xff]
      %v7805 = vld [vmem:[%s5 + $0x130] sm:$0xff]
      %v7806 = vld [vmem:[%s5 + $0x138] sm:$0xff]
      %v7807 = vld [vmem:[%s5 + $0x140] sm:$0xff]
      %v7808 = vld [vmem:[%s5 + $0x148] sm:$0xff]
      %v7809 = vld [vmem:[%s5 + $0x150] sm:$0xff]
      %v7810 = vld [vmem:[%s5 + $0x158] sm:$0xff]
      %v7811 = vld [vmem:[%s5 + $0x160] sm:$0xff]
      %v7812 = vld [vmem:[%s5 + $0x168] sm:$0xff]
      %v7813 = vld [vmem:[%s5 + $0x170] sm:$0xff]
      %v7814 = vld [vmem:[%s5 + $0x178] sm:$0xff]
      %v7815 = vld [vmem:[%s5 + $0x180] sm:$0xff]
      %v7816 = vld [vmem:[%s5 + $0x188] sm:$0xff]
      %v7817 = vld [vmem:[%s5 + $0x190] sm:$0xff]
      %v7818 = vld [vmem:[%s5 + $0x198] sm:$0xff]
      %v7819 = vld [vmem:[%s5 + $0x1a0] sm:$0xff]
      %v7820 = vld [vmem:[%s5 + $0x1a8] sm:$0xff]
      %v7821 = vld [vmem:[%s5 + $0x1b0] sm:$0xff]
      %v7822 = vld [vmem:[%s5 + $0x1b8] sm:$0xff]
      %v7823 = vld [vmem:[%s5 + $0x1c0] sm:$0xff]
      %v7824 = vld [vmem:[%s5 + $0x1c8] sm:$0xff]
      %v7825 = vld [vmem:[%s5 + $0x1d0] sm:$0xff]
      %v7826 = vld [vmem:[%s5 + $0x1d8] sm:$0xff]
      %v7827 = vld [vmem:[%s5 + $0x1e0] sm:$0xff]
      %v7828 = vld [vmem:[%s5 + $0x1e8] sm:$0xff]
      %v7829 = vld [vmem:[%s5 + $0x1f0] sm:$0xff]
      %v7830 = vld [vmem:[%s5 + $0x1f8] sm:$0xff]
      %v7831 = vld [vmem:[%s5 + $0x200] sm:$0xff]
      %v7832 = vld [vmem:[%s5 + $0x208] sm:$0xff]
      %v7833 = vld [vmem:[%s5 + $0x210] sm:$0xff]
      %v7834 = vld [vmem:[%s5 + $0x218] sm:$0xff]
      %v7835 = vld [vmem:[%s5 + $0x220] sm:$0xff]
      %v7836 = vld [vmem:[%s5 + $0x228] sm:$0xff]
      %v7837 = vld [vmem:[%s5 + $0x230] sm:$0xff]
      %v7838 = vld [vmem:[%s5 + $0x238] sm:$0xff]
      %v7839 = vld [vmem:[%s5 + $0x240] sm:$0xff]
      %v7840 = vld [vmem:[%s5 + $0x248] sm:$0xff]
      %v7841 = vld [vmem:[%s5 + $0x250] sm:$0xff]
      %v7842 = vld [vmem:[%s5 + $0x258] sm:$0xff]
      %v7843 = vld [vmem:[%s5 + $0x260] sm:$0xff]
      %v7844 = vld [vmem:[%s5 + $0x268] sm:$0xff]
      %v7845 = vld [vmem:[%s5 + $0x270] sm:$0xff]
      %v7846 = vld [vmem:[%s5 + $0x278] sm:$0xff]
      %v7847 = vld [vmem:[%s5 + $0x280] sm:$0xff]
      %v7848 = vld [vmem:[%s5 + $0x288] sm:$0xff]
      %v7849 = vld [vmem:[%s5 + $0x290] sm:$0xff]
      %v7850 = vld [vmem:[%s5 + $0x298] sm:$0xff]
      %v7851 = vld [vmem:[%s5 + $0x2a0] sm:$0xff]
      %v7852 = vld [vmem:[%s5 + $0x2a8] sm:$0xff]
      %v7853 = vld [vmem:[%s5 + $0x2b0] sm:$0xff]
      %v7854 = vld [vmem:[%s5 + $0x2b8] sm:$0xff]
      %v7855 = vld [vmem:[%s5 + $0x2c0] sm:$0xff]
      %v7856 = vld [vmem:[%s5 + $0x2c8] sm:$0xff]
      %v7857 = vld [vmem:[%s5 + $0x2d0] sm:$0xff]
      %v7858 = vld [vmem:[%s5 + $0x2d8] sm:$0xff]
      %v7859 = vld [vmem:[%s5 + $0x2e0] sm:$0xff]
      %v7860 = vld [vmem:[%s5 + $0x2e8] sm:$0xff]
      %v7861 = vld [vmem:[%s5 + $0x2f0] sm:$0xff]
      %v7862 = vld [vmem:[%s5 + $0x2f8] sm:$0xff]
      %v7863 = vld [vmem:[%s5 + $0x300] sm:$0xff]
      %v7864 = vld [vmem:[%s5 + $0x308] sm:$0xff]
      %v7865 = vld [vmem:[%s5 + $0x310] sm:$0xff]
      %v7866 = vld [vmem:[%s5 + $0x318] sm:$0xff]
      %v7867 = vld [vmem:[%s5 + $0x320] sm:$0xff]
      %v7868 = vld [vmem:[%s5 + $0x328] sm:$0xff]
      %v7869 = vld [vmem:[%s5 + $0x330] sm:$0xff]
      %v7870 = vld [vmem:[%s5 + $0x338] sm:$0xff]
      %v7871 = vld [vmem:[%s5 + $0x340] sm:$0xff]
      %v7872 = vld [vmem:[%s5 + $0x348] sm:$0xff]
      %v7873 = vld [vmem:[%s5 + $0x350] sm:$0xff]
      %v7874 = vld [vmem:[%s5 + $0x358] sm:$0xff]
      %v7875 = vld [vmem:[%s5 + $0x360] sm:$0xff]
      %v7876 = vld [vmem:[%s5 + $0x368] sm:$0xff]
      %v7877 = vld [vmem:[%s5 + $0x370] sm:$0xff]
      %v7878 = vld [vmem:[%s5 + $0x378] sm:$0xff]
      %v7879 = vld [vmem:[%s5 + $0x380] sm:$0xff]
      %v7880 = vld [vmem:[%s5 + $0x388] sm:$0xff]
      %v7881 = vld [vmem:[%s5 + $0x390] sm:$0xff]
      %v7882 = vld [vmem:[%s5 + $0x398] sm:$0xff]
      %v7883 = vld [vmem:[%s5 + $0x3a0] sm:$0xff]
      %v7884 = vld [vmem:[%s5 + $0x3a8] sm:$0xff]
      %v7885 = vld [vmem:[%s5 + $0x3b0] sm:$0xff]
      %v7886 = vld [vmem:[%s5 + $0x3b8] sm:$0xff]
      %v7887 = vld [vmem:[%s5 + $0x3c0] sm:$0xff]
      %v7888 = vld [vmem:[%s5 + $0x3c8] sm:$0xff]
      %v7889 = vld [vmem:[%s5 + $0x3d0] sm:$0xff]
      %v7890 = vld [vmem:[%s5 + $0x3d8] sm:$0xff]
      %v7891 = vld [vmem:[%s5 + $0x3e0] sm:$0xff]
      %v7892 = vld [vmem:[%s5 + $0x3e8] sm:$0xff]
      %v7893 = vld [vmem:[%s5 + $0x3f0] sm:$0xff]
      %v7894 = vld [vmem:[%s5 + $0x3f8] sm:$0xff]
      %v7895 = vld [vmem:[%s5 + $0x400] sm:$0xff]
      %v7896 = vld [vmem:[%s5 + $0x408] sm:$0xff]
      %v7897 = vld [vmem:[%s5 + $0x410] sm:$0xff]
      %v7898 = vld [vmem:[%s5 + $0x418] sm:$0xff]
      %v7899 = vld [vmem:[%s5 + $0x420] sm:$0xff]
      %v7900 = vld [vmem:[%s5 + $0x428] sm:$0xff]
      %v7901 = vld [vmem:[%s5 + $0x430] sm:$0xff]
      %v7902 = vld [vmem:[%s5 + $0x438] sm:$0xff]
      %v7903 = vld [vmem:[%s5 + $0x440] sm:$0xff]
      %v7904 = vld [vmem:[%s5 + $0x448] sm:$0xff]
      %v7905 = vld [vmem:[%s5 + $0x450] sm:$0xff]
      %v7906 = vld [vmem:[%s5 + $0x458] sm:$0xff]
      %v7907 = vld [vmem:[%s5 + $0x460] sm:$0xff]
      %v7908 = vld [vmem:[%s5 + $0x468] sm:$0xff]
      %v7909 = vld [vmem:[%s5 + $0x470] sm:$0xff]
      %v7910 = vld [vmem:[%s5 + $0x478] sm:$0xff]
      %v7911 = vld [vmem:[%s5 + $0x480] sm:$0xff]
      %v7912 = vld [vmem:[%s5 + $0x488] sm:$0xff]
      %v7913 = vld [vmem:[%s5 + $0x490] sm:$0xff]
      %v7914 = vld [vmem:[%s5 + $0x498] sm:$0xff]
      %v7915 = vld [vmem:[%s5 + $0x4a0] sm:$0xff]
      %v7916 = vld [vmem:[%s5 + $0x4a8] sm:$0xff]
      %v7917 = vld [vmem:[%s5 + $0x4b0] sm:$0xff]
      %v7918 = vld [vmem:[%s5 + $0x4b8] sm:$0xff]
      %v7919 = vld [vmem:[%s5 + $0x4c0] sm:$0xff]
      %v7920 = vld [vmem:[%s5 + $0x4c8] sm:$0xff]
      %v7921 = vld [vmem:[%s5 + $0x4d0] sm:$0xff]
      %v7922 = vld [vmem:[%s5 + $0x4d8] sm:$0xff]
      %v7923 = vld [vmem:[%s5 + $0x4e0] sm:$0xff]
      %v7924 = vld [vmem:[%s5 + $0x4e8] sm:$0xff]
      %v7925 = vld [vmem:[%s5 + $0x4f0] sm:$0xff]
      %v7926 = vld [vmem:[%s5 + $0x4f8] sm:$0xff]
      %v7927 = vld [vmem:[%s5 + $0x500] sm:$0xff]
      %v7928 = vld [vmem:[%s5 + $0x508] sm:$0xff]
      %v7929 = vld [vmem:[%s5 + $0x510] sm:$0xff]
      %v7930 = vld [vmem:[%s5 + $0x518] sm:$0xff]
      %v7931 = vld [vmem:[%s5 + $0x520] sm:$0xff]
      %v7932 = vld [vmem:[%s5 + $0x528] sm:$0xff]
      %v7933 = vld [vmem:[%s5 + $0x530] sm:$0xff]
      %v7934 = vld [vmem:[%s5 + $0x538] sm:$0xff]
      %v7935 = vld [vmem:[%s5 + $0x540] sm:$0xff]
      %v7936 = vld [vmem:[%s5 + $0x548] sm:$0xff]
      %v7937 = vld [vmem:[%s5 + $0x550] sm:$0xff]
      %v7938 = vld [vmem:[%s5 + $0x558] sm:$0xff]
      %v7939 = vld [vmem:[%s5 + $0x560] sm:$0xff]
      %v7940 = vld [vmem:[%s5 + $0x568] sm:$0xff]
      %v7941 = vld [vmem:[%s5 + $0x570] sm:$0xff]
      %v7942 = vld [vmem:[%s5 + $0x578] sm:$0xff]
      %v7943 = vld [vmem:[%s5 + $0x580] sm:$0xff]
      %v7944 = vld [vmem:[%s5 + $0x588] sm:$0xff]
      %v7945 = vld [vmem:[%s5 + $0x590] sm:$0xff]
      %v7946 = vld [vmem:[%s5 + $0x598] sm:$0xff]
      %v7947 = vld [vmem:[%s5 + $0x5a0] sm:$0xff]
      %v7948 = vld [vmem:[%s5 + $0x5a8] sm:$0xff]
      %v7949 = vld [vmem:[%s5 + $0x5b0] sm:$0xff]
      %v7950 = vld [vmem:[%s5 + $0x5b8] sm:$0xff]
      %v7951 = vld [vmem:[%s5 + $0x5c0] sm:$0xff]
      %v7952 = vld [vmem:[%s5 + $0x5c8] sm:$0xff]
      %v7953 = vld [vmem:[%s5 + $0x5d0] sm:$0xff]
      %v7954 = vld [vmem:[%s5 + $0x5d8] sm:$0xff]
      %v7955 = vld [vmem:[%s5 + $0x5e0] sm:$0xff]
      %v7956 = vld [vmem:[%s5 + $0x5e8] sm:$0xff]
      %v7957 = vld [vmem:[%s5 + $0x5f0] sm:$0xff]
      %v7958 = vld [vmem:[%s5 + $0x5f8] sm:$0xff]
      %v7959 = vld [vmem:[%s5 + $0x600] sm:$0xff]
      %v7960 = vld [vmem:[%s5 + $0x608] sm:$0xff]
      %v7961 = vld [vmem:[%s5 + $0x610] sm:$0xff]
      %v7962 = vld [vmem:[%s5 + $0x618] sm:$0xff]
      %v7963 = vld [vmem:[%s5 + $0x620] sm:$0xff]
      %v7964 = vld [vmem:[%s5 + $0x628] sm:$0xff]
      %v7965 = vld [vmem:[%s5 + $0x630] sm:$0xff]
      %v7966 = vld [vmem:[%s5 + $0x638] sm:$0xff]
      %v7967 = vld [vmem:[#allocation4] sm:$0x1]
      %v7969 = vlaneseq
      %v7970 = vshrl.u32 %v7969, 7
      %v7971 = vsub.s32 0, %v7970
      %v7972 = vrot.slane %v7967, %v7971
      %v7975 = vsel %vm4949, %v5815, 0
      %v7978 = vsel %vm4949, %v5816, 0
      %v7981 = vsel %vm4949, %v5817, 0
      %v7984 = vsel %vm4949, %v5818, 0
      %v7987 = vsel %vm4949, %v5819, 0
      %v7990 = vsel %vm4949, %v5820, 0
      %v7993 = vsel %vm4949, %v5821, 0
      %v7996 = vsel %vm4949, %v5822, 0
      %v7999 = vsel %vm4949, %v5823, 0
      %v8002 = vsel %vm4949, %v5824, 0
      %v8005 = vsel %vm4949, %v5825, 0
      %v8008 = vsel %vm4949, %v5826, 0
      %v8011 = vsel %vm4949, %v5827, 0
      %v8014 = vsel %vm4949, %v5828, 0
      %v8017 = vsel %vm4949, %v5829, 0
      %v8020 = vsel %vm4949, %v5830, 0
      %v8023 = vsel %vm4949, %v5831, 0
      %v8026 = vsel %vm4949, %v5832, 0
      %v8029 = vsel %vm4949, %v5833, 0
      %v8032 = vsel %vm4949, %v5834, 0
      %v8035 = vsel %vm4949, %v5835, 0
      %v8038 = vsel %vm4949, %v5836, 0
      %v8041 = vsel %vm4949, %v5837, 0
      %v8044 = vsel %vm4949, %v5838, 0
      %v8047 = vsel %vm4949, %v5839, 0
      %v8050 = vsel %vm4949, %v5840, 0
      %v8053 = vsel %vm4949, %v5841, 0
      %v8056 = vsel %vm4949, %v5842, 0
      %v8059 = vsel %vm4949, %v5843, 0
      %v8062 = vsel %vm4949, %v5844, 0
      %v8065 = vsel %vm4949, %v5845, 0
      %v8068 = vsel %vm4949, %v5846, 0
      %8070 = vmatprep.subr.mxu0 0.0
      %8071 = vmatpush1.msra.mxu0 %v7767
      %8072 = vmatprep.subr.mxu0 0.0
      %8073 = vmatpush1.msra.mxu0 %v7768
      %8074 = vmatprep.subr.mxu0 0.0
      %8075 = vmatpush1.msra.mxu0 %v7769
      %8076 = vmatprep.subr.mxu0 0.0
      %8077 = vmatpush1.msra.mxu0 %v7770
      %8078 = vmatprep.subr.mxu0 0.0
      %8079 = vmatpush1.msra.mxu0 %v7771
      %8080 = vmatprep.subr.mxu0 0.0
      %8081 = vmatpush1.msra.mxu0 %v7772
      %8082 = vmatprep.subr.mxu0 0.0
      %8083 = vmatpush1.msra.mxu0 %v7773
      %8084 = vmatprep.subr.mxu0 0.0
      %8085 = vmatpush1.msra.mxu0 %v7774
      %8086 = vmatprep.subr.mxu0 0.0
      %8087 = vmatpush1.msra.mxu0 %v7775
      %8088 = vmatprep.subr.mxu0 0.0
      %8089 = vmatpush1.msra.mxu0 %v7776
      %8090 = vmatprep.subr.mxu0 0.0
      %8091 = vmatpush1.msra.mxu0 %v7777
      %8092 = vmatprep.subr.mxu0 0.0
      %8093 = vmatpush1.msra.mxu0 %v7778
      %8094 = vmatprep.subr.mxu0 0.0
      %8095 = vmatpush1.msra.mxu0 %v7779
      %8096 = vmatprep.subr.mxu0 0.0
      %8097 = vmatpush1.msra.mxu0 %v7780
      %8098 = vmatprep.subr.mxu0 0.0
      %8099 = vmatpush1.msra.mxu0 %v7781
      %8100 = vmatprep.subr.mxu0 0.0
      %8101 = vmatpush1.msra.mxu0 %v7782
      %8102 = vmatprep.subr.mxu0 0.0
      %8103 = vmatpush1.msra.mxu0 %v7783
      %8104 = vmatprep.subr.mxu0 0.0
      %8105 = vmatpush1.msra.mxu0 %v7784
      %8106 = vmatprep.subr.mxu0 0.0
      %8107 = vmatpush1.msra.mxu0 %v7785
      %8108 = vmatprep.subr.mxu0 0.0
      %8109 = vmatpush1.msra.mxu0 %v7786
      %8110 = vmatprep.subr.mxu0 0.0
      %8111 = vmatpush1.msra.mxu0 %v7787
      %8112 = vmatprep.subr.mxu0 0.0
      %8113 = vmatpush1.msra.mxu0 %v7788
      %8114 = vmatprep.subr.mxu0 0.0
      %8115 = vmatpush1.msra.mxu0 %v7789
      %8116 = vmatprep.subr.mxu0 0.0
      %8117 = vmatpush1.msra.mxu0 %v7790
      %8118 = vmatprep.subr.mxu0 0.0
      %8119 = vmatpush1.msra.mxu0 %v7791
      %8120 = vmatprep.subr.mxu0 0.0
      %8121 = vmatpush1.msra.mxu0 %v7792
      %8122 = vmatprep.subr.mxu0 0.0
      %8123 = vmatpush1.msra.mxu0 %v7793
      %8124 = vmatprep.subr.mxu0 0.0
      %8125 = vmatpush1.msra.mxu0 %v7794
      %8126 = vmatprep.subr.mxu0 0.0
      %8127 = vmatpush1.msra.mxu0 %v7795
      %8128 = vmatprep.subr.mxu0 0.0
      %8129 = vmatpush1.msra.mxu0 %v7796
      %8130 = vmatprep.subr.mxu0 0.0
      %8131 = vmatpush1.msra.mxu0 %v7797
      %8132 = vmatprep.subr.mxu0 0.0
      %8133 = vmatpush1.msra.mxu0 %v7798
      %8134 = vmatprep.mubr.f32.mxu0 %v6903
      %8135 = vmatmul.mubr.f32.gmra.mrb[0].mxu0 %v6871
      %v8136 = vpop.f32.mrb[0].mxu0
      %v8137 = vadd.f32 %v7972, %v8136
      %v8138 = vpop.f32.mrb[0].mxu0
      %8139 = vmatprep.mubr.f32.mxu0 %v6904
      %8140 = vmatmul.mubr.f32.gmra.mrb[0].mxu0 %v6872
      %v8141 = vpop.f32.mrb[0].mxu0
      %v8142 = vadd.f32 %v7972, %v8141
      %v8143 = vpop.f32.mrb[0].mxu0
      %8144 = vmatprep.mubr.f32.mxu0 %v6905
      %8145 = vmatmul.mubr.f32.gmra.mrb[0].mxu0 %v6873
      %v8146 = vpop.f32.mrb[0].mxu0
      %v8147 = vadd.f32 %v7972, %v8146
      %v8148 = vpop.f32.mrb[0].mxu0
      %8149 = vmatprep.mubr.f32.mxu0 %v6906
      %8150 = vmatmul.mubr.f32.gmra.mrb[0].mxu0 %v6874
      %v8151 = vpop.f32.mrb[0].mxu0
      %v8152 = vadd.f32 %v7972, %v8151
      %v8153 = vpop.f32.mrb[0].mxu0
      %8154 = vmatprep.mubr.f32.mxu0 %v6907
      %8155 = vmatmul.mubr.f32.gmra.mrb[0].mxu0 %v6875
      %v8156 = vpop.f32.mrb[0].mxu0
      %v8157 = vadd.f32 %v7972, %v8156
      %v8158 = vpop.f32.mrb[0].mxu0
      %8159 = vmatprep.mubr.f32.mxu0 %v6908
      %8160 = vmatmul.mubr.f32.gmra.mrb[0].mxu0 %v6876
      %v8161 = vpop.f32.mrb[0].mxu0
      %v8162 = vadd.f32 %v7972, %v8161
      %v8163 = vpop.f32.mrb[0].mxu0
      %8164 = vmatprep.mubr.f32.mxu0 %v6909
      %8165 = vmatmul.mubr.f32.gmra.mrb[0].mxu0 %v6877
      %v8166 = vpop.f32.mrb[0].mxu0
      %v8167 = vadd.f32 %v7972, %v8166
      %v8168 = vpop.f32.mrb[0].mxu0
      %8169 = vmatprep.mubr.f32.mxu0 %v6910
      %8170 = vmatmul.mubr.f32.gmra.mrb[0].mxu0 %v6878
      %v8171 = vpop.f32.mrb[0].mxu0
      %v8172 = vadd.f32 %v7972, %v8171
      %v8173 = vpop.f32.mrb[0].mxu0
      %8174 = vmatprep.mubr.f32.mxu0 %v6911
      %8175 = vmatmul.mubr.f32.gmra.mrb[0].mxu0 %v6879
      %v8176 = vpop.f32.mrb[0].mxu0
      %v8177 = vadd.f32 %v7972, %v8176
      %v8178 = vpop.f32.mrb[0].mxu0
      %8179 = vmatprep.mubr.f32.mxu0 %v6912
      %8180 = vmatmul.mubr.f32.gmra.mrb[0].mxu0 %v6880
      %v8181 = vpop.f32.mrb[0].mxu0
      %v8182 = vadd.f32 %v7972, %v8181
      %v8183 = vpop.f32.mrb[0].mxu0
      %8184 = vmatprep.mubr.f32.mxu0 %v6913
      %8185 = vmatmul.mubr.f32.gmra.mrb[0].mxu0 %v6881
      %v8186 = vpop.f32.mrb[0].mxu0
      %v8187 = vadd.f32 %v7972, %v8186
      %v8188 = vpop.f32.mrb[0].mxu0
      %8189 = vmatprep.mubr.f32.mxu0 %v6914
      %8190 = vmatmul.mubr.f32.gmra.mrb[0].mxu0 %v6882
      %v8191 = vpop.f32.mrb[0].mxu0
      %v8192 = vadd.f32 %v7972, %v8191
      %v8193 = vpop.f32.mrb[0].mxu0
      %8194 = vmatprep.mubr.f32.mxu0 %v6915
      %8195 = vmatmul.mubr.f32.gmra.mrb[0].mxu0 %v6883
      %v8196 = vpop.f32.mrb[0].mxu0
      %v8197 = vadd.f32 %v7972, %v8196
      %v8198 = vpop.f32.mrb[0].mxu0
      %8199 = vmatprep.mubr.f32.mxu0 %v6916
      %8200 = vmatmul.mubr.f32.gmra.mrb[0].mxu0 %v6884
      %v8201 = vpop.f32.mrb[0].mxu0
      %v8202 = vadd.f32 %v7972, %v8201
      %v8203 = vpop.f32.mrb[0].mxu0
      %8204 = vmatprep.mubr.f32.mxu0 %v6917
      %8205 = vmatmul.mubr.f32.gmra.mrb[0].mxu0 %v6885
      %v8206 = vpop.f32.mrb[0].mxu0
      %v8207 = vadd.f32 %v7972, %v8206
      %v8208 = vpop.f32.mrb[0].mxu0
      %8209 = vmatprep.mubr.f32.mxu0 %v6918
      %8210 = vmatmul.mubr.f32.gmra.mrb[0].mxu0 %v6886
      %v8211 = vpop.f32.mrb[0].mxu0
      %v8212 = vadd.f32 %v7972, %v8211
      %v8213 = vpop.f32.mrb[0].mxu0
      %8214 = vmatprep.mubr.f32.mxu0 %v6919
      %8215 = vmatmul.mubr.f32.gmra.mrb[0].mxu0 %v6887
      %v8216 = vpop.f32.mrb[0].mxu0
      %v8217 = vadd.f32 %v7972, %v8216
      %v8218 = vpop.f32.mrb[0].mxu0
      %8219 = vmatprep.mubr.f32.mxu0 %v6920
      %8220 = vmatmul.mubr.f32.gmra.mrb[0].mxu0 %v6888
      %v8221 = vpop.f32.mrb[0].mxu0
      %v8222 = vadd.f32 %v7972, %v8221
      %v8223 = vpop.f32.mrb[0].mxu0
      %8224 = vmatprep.mubr.f32.mxu0 %v6921
      %8225 = vmatmul.mubr.f32.gmra.mrb[0].mxu0 %v6889
      %v8226 = vpop.f32.mrb[0].mxu0
      %v8227 = vadd.f32 %v7972, %v8226
      %v8228 = vpop.f32.mrb[0].mxu0
      %8229 = vmatprep.mubr.f32.mxu0 %v6922
      %8230 = vmatmul.mubr.f32.gmra.mrb[0].mxu0 %v6890
      %v8231 = vpop.f32.mrb[0].mxu0
      %v8232 = vadd.f32 %v7972, %v8231
      %v8233 = vpop.f32.mrb[0].mxu0
      %8234 = vmatprep.mubr.f32.mxu0 %v6923
      %8235 = vmatmul.mubr.f32.gmra.mrb[0].mxu0 %v6891
      %v8236 = vpop.f32.mrb[0].mxu0
      %v8237 = vadd.f32 %v7972, %v8236
      %v8238 = vpop.f32.mrb[0].mxu0
      %8239 = vmatprep.mubr.f32.mxu0 %v6924
      %8240 = vmatmul.mubr.f32.gmra.mrb[0].mxu0 %v6892
      %v8241 = vpop.f32.mrb[0].mxu0
      %v8242 = vadd.f32 %v7972, %v8241
      %v8243 = vpop.f32.mrb[0].mxu0
      %8244 = vmatprep.mubr.f32.mxu0 %v6925
      %8245 = vmatmul.mubr.f32.gmra.mrb[0].mxu0 %v6893
      %v8246 = vpop.f32.mrb[0].mxu0
      %v8247 = vadd.f32 %v7972, %v8246
      %v8248 = vpop.f32.mrb[0].mxu0
      %8249 = vmatprep.mubr.f32.mxu0 %v6926
      %8250 = vmatmul.mubr.f32.gmra.mrb[0].mxu0 %v6894
      %v8251 = vpop.f32.mrb[0].mxu0
      %v8252 = vadd.f32 %v7972, %v8251
      %v8253 = vpop.f32.mrb[0].mxu0
      %8254 = vmatprep.mubr.f32.mxu0 %v6927
      %8255 = vmatmul.mubr.f32.gmra.mrb[0].mxu0 %v6895
      %v8256 = vpop.f32.mrb[0].mxu0
      %v8257 = vadd.f32 %v7972, %v8256
      %v8258 = vpop.f32.mrb[0].mxu0
      %8259 = vmatprep.mubr.f32.mxu0 %v6928
      %8260 = vmatmul.mubr.f32.gmra.mrb[0].mxu0 %v6896
      %v8261 = vpop.f32.mrb[0].mxu0
      %v8262 = vadd.f32 %v7972, %v8261
      %v8263 = vpop.f32.mrb[0].mxu0
      %8264 = vmatprep.mubr.f32.mxu0 %v6929
      %8265 = vmatmul.mubr.f32.gmra.mrb[0].mxu0 %v6897
      %v8266 = vpop.f32.mrb[0].mxu0
      %v8267 = vadd.f32 %v7972, %v8266
      %v8268 = vpop.f32.mrb[0].mxu0
      %8269 = vmatprep.mubr.f32.mxu0 %v6930
      %8270 = vmatmul.mubr.f32.gmra.mrb[0].mxu0 %v6898
      %v8271 = vpop.f32.mrb[0].mxu0
      %v8272 = vadd.f32 %v7972, %v8271
      %v8273 = vpop.f32.mrb[0].mxu0
      %8274 = vmatprep.mubr.f32.mxu0 %v6931
      %8275 = vmatmul.mubr.f32.gmra.mrb[0].mxu0 %v6899
      %v8276 = vpop.f32.mrb[0].mxu0
      %v8277 = vadd.f32 %v7972, %v8276
      %v8278 = vpop.f32.mrb[0].mxu0
      %8279 = vmatprep.mubr.f32.mxu0 %v6932
      %8280 = vmatmul.mubr.f32.gmra.mrb[0].mxu0 %v6900
      %v8281 = vpop.f32.mrb[0].mxu0
      %v8282 = vadd.f32 %v7972, %v8281
      %v8283 = vpop.f32.mrb[0].mxu0
      %8284 = vmatprep.mubr.f32.mxu0 %v6933
      %8285 = vmatmul.mubr.f32.gmra.mrb[0].mxu0 %v6901
      %v8286 = vpop.f32.mrb[0].mxu0
      %v8287 = vadd.f32 %v7972, %v8286
      %v8288 = vpop.f32.mrb[0].mxu0
      %8289 = vmatprep.mubr.f32.mxu0 %v6934
      %8290 = vmatmul.mubr.f32.gmra.mrb[0].mxu0 %v6902
      %v8291 = vpop.f32.mrb[0].mxu0
      %v8292 = vadd.f32 %v7972, %v8291
      %v8293 = vpop.f32.mrb[0].mxu0
      %8294 = vdwg.mxu0
      %8295 = vmatprep.subr.mxu0 0.0
      %8296 = vmatpush1.msra.mxu0 %v7799
      %8297 = vmatprep.subr.mxu0 0.0
      %8298 = vmatpush1.msra.mxu0 %v7800
      %8299 = vmatprep.subr.mxu0 0.0
      %8300 = vmatpush1.msra.mxu0 %v7801
      %8301 = vmatprep.subr.mxu0 0.0
      %8302 = vmatpush1.msra.mxu0 %v7802
      %8303 = vmatprep.subr.mxu0 0.0
      %8304 = vmatpush1.msra.mxu0 %v7803
      %8305 = vmatprep.subr.mxu0 0.0
      %8306 = vmatpush1.msra.mxu0 %v7804
      %8307 = vmatprep.subr.mxu0 0.0
      %8308 = vmatpush1.msra.mxu0 %v7805
      %8309 = vmatprep.subr.mxu0 0.0
      %8310 = vmatpush1.msra.mxu0 %v7806
      %8311 = vmatprep.subr.mxu0 0.0
      %8312 = vmatpush1.msra.mxu0 %v7807
      %8313 = vmatprep.subr.mxu0 0.0
      %8314 = vmatpush1.msra.mxu0 %v7808
      %8315 = vmatprep.subr.mxu0 0.0
      %8316 = vmatpush1.msra.mxu0 %v7809
      %8317 = vmatprep.subr.mxu0 0.0
      %8318 = vmatpush1.msra.mxu0 %v7810
      %8319 = vmatprep.subr.mxu0 0.0
      %8320 = vmatpush1.msra.mxu0 %v7811
      %8321 = vmatprep.subr.mxu0 0.0
      %8322 = vmatpush1.msra.mxu0 %v7812
      %8323 = vmatprep.subr.mxu0 0.0
      %8324 = vmatpush1.msra.mxu0 %v7813
      %8325 = vmatprep.subr.mxu0 0.0
      %8326 = vmatpush1.msra.mxu0 %v7814
      %8327 = vmatprep.subr.mxu0 0.0
      %8328 = vmatpush1.msra.mxu0 %v7815
      %8329 = vmatprep.subr.mxu0 0.0
      %8330 = vmatpush1.msra.mxu0 %v7816
      %8331 = vmatprep.subr.mxu0 0.0
      %8332 = vmatpush1.msra.mxu0 %v7817
      %8333 = vmatprep.subr.mxu0 0.0
      %8334 = vmatpush1.msra.mxu0 %v7818
      %8335 = vmatprep.subr.mxu0 0.0
      %8336 = vmatpush1.msra.mxu0 %v7819
      %8337 = vmatprep.subr.mxu0 0.0
      %8338 = vmatpush1.msra.mxu0 %v7820
      %8339 = vmatprep.subr.mxu0 0.0
      %8340 = vmatpush1.msra.mxu0 %v7821
      %8341 = vmatprep.subr.mxu0 0.0
      %8342 = vmatpush1.msra.mxu0 %v7822
      %8343 = vmatprep.subr.mxu0 0.0
      %8344 = vmatpush1.msra.mxu0 %v7823
      %8345 = vmatprep.subr.mxu0 0.0
      %8346 = vmatpush1.msra.mxu0 %v7824
      %8347 = vmatprep.subr.mxu0 0.0
      %8348 = vmatpush1.msra.mxu0 %v7825
      %8349 = vmatprep.subr.mxu0 0.0
      %8350 = vmatpush1.msra.mxu0 %v7826
      %8351 = vmatprep.subr.mxu0 0.0
      %8352 = vmatpush1.msra.mxu0 %v7827
      %8353 = vmatprep.subr.mxu0 0.0
      %8354 = vmatpush1.msra.mxu0 %v7828
      %8355 = vmatprep.subr.mxu0 0.0
      %8356 = vmatpush1.msra.mxu0 %v7829
      %8357 = vmatprep.subr.mxu0 0.0
      %8358 = vmatpush1.msra.mxu0 %v7830
      %8359 = vmatprep.mubr.f32.mxu0 %v6967
      %8360 = vmatmul.mubr.f32.gmra.mrb[0].mxu0 %v6935
      %v8361 = vpop.f32.mrb[0].mxu0
      %v8362 = vadd.f32 %v8137, %v8361
      %v8363 = vpop.f32.mrb[0].mxu0
      %8364 = vmatprep.mubr.f32.mxu0 %v6968
      %8365 = vmatmul.mubr.f32.gmra.mrb[0].mxu0 %v6936
      %v8366 = vpop.f32.mrb[0].mxu0
      %v8367 = vadd.f32 %v8142, %v8366
      %v8368 = vpop.f32.mrb[0].mxu0
      %8369 = vmatprep.mubr.f32.mxu0 %v6969
      %8370 = vmatmul.mubr.f32.gmra.mrb[0].mxu0 %v6937
      %v8371 = vpop.f32.mrb[0].mxu0
      %v8372 = vadd.f32 %v8147, %v8371
      %v8373 = vpop.f32.mrb[0].mxu0
      %8374 = vmatprep.mubr.f32.mxu0 %v6970
      %8375 = vmatmul.mubr.f32.gmra.mrb[0].mxu0 %v6938
      %v8376 = vpop.f32.mrb[0].mxu0
      %v8377 = vadd.f32 %v8152, %v8376
      %v8378 = vpop.f32.mrb[0].mxu0
      %8379 = vmatprep.mubr.f32.mxu0 %v6971
      %8380 = vmatmul.mubr.f32.gmra.mrb[0].mxu0 %v6939
      %v8381 = vpop.f32.mrb[0].mxu0
      %v8382 = vadd.f32 %v8157, %v8381
      %v8383 = vpop.f32.mrb[0].mxu0
      %8384 = vmatprep.mubr.f32.mxu0 %v6972
      %8385 = vmatmul.mubr.f32.gmra.mrb[0].mxu0 %v6940
      %v8386 = vpop.f32.mrb[0].mxu0
      %v8387 = vadd.f32 %v8162, %v8386
      %v8388 = vpop.f32.mrb[0].mxu0
      %8389 = vmatprep.mubr.f32.mxu0 %v6973
      %8390 = vmatmul.mubr.f32.gmra.mrb[0].mxu0 %v6941
      %v8391 = vpop.f32.mrb[0].mxu0
      %v8392 = vadd.f32 %v8167, %v8391
      %v8393 = vpop.f32.mrb[0].mxu0
      %8394 = vmatprep.mubr.f32.mxu0 %v6974
      %8395 = vmatmul.mubr.f32.gmra.mrb[0].mxu0 %v6942
      %v8396 = vpop.f32.mrb[0].mxu0
      %v8397 = vadd.f32 %v8172, %v8396
      %v8398 = vpop.f32.mrb[0].mxu0
      %8399 = vmatprep.mubr.f32.mxu0 %v6975
      %8400 = vmatmul.mubr.f32.gmra.mrb[0].mxu0 %v6943
      %v8401 = vpop.f32.mrb[0].mxu0
      %v8402 = vadd.f32 %v8177, %v8401
      %v8403 = vpop.f32.mrb[0].mxu0
      %8404 = vmatprep.mubr.f32.mxu0 %v6976
      %8405 = vmatmul.mubr.f32.gmra.mrb[0].mxu0 %v6944
      %v8406 = vpop.f32.mrb[0].mxu0
      %v8407 = vadd.f32 %v8182, %v8406
      %v8408 = vpop.f32.mrb[0].mxu0
      %8409 = vmatprep.mubr.f32.mxu0 %v6977
      %8410 = vmatmul.mubr.f32.gmra.mrb[0].mxu0 %v6945
      %v8411 = vpop.f32.mrb[0].mxu0
      %v8412 = vadd.f32 %v8187, %v8411
      %v8413 = vpop.f32.mrb[0].mxu0
      %8414 = vmatprep.mubr.f32.mxu0 %v6978
      %8415 = vmatmul.mubr.f32.gmra.mrb[0].mxu0 %v6946
      %v8416 = vpop.f32.mrb[0].mxu0
      %v8417 = vadd.f32 %v8192, %v8416
      %v8418 = vpop.f32.mrb[0].mxu0
      %8419 = vmatprep.mubr.f32.mxu0 %v6979
      %8420 = vmatmul.mubr.f32.gmra.mrb[0].mxu0 %v6947
      %v8421 = vpop.f32.mrb[0].mxu0
      %v8422 = vadd.f32 %v8197, %v8421
      %v8423 = vpop.f32.mrb[0].mxu0
      %8424 = vmatprep.mubr.f32.mxu0 %v6980
      %8425 = vmatmul.mubr.f32.gmra.mrb[0].mxu0 %v6948
      %v8426 = vpop.f32.mrb[0].mxu0
      %v8427 = vadd.f32 %v8202, %v8426
      %v8428 = vpop.f32.mrb[0].mxu0
      %8429 = vmatprep.mubr.f32.mxu0 %v6981
      %8430 = vmatmul.mubr.f32.gmra.mrb[0].mxu0 %v6949
      %v8431 = vpop.f32.mrb[0].mxu0
      %v8432 = vadd.f32 %v8207, %v8431
      %v8433 = vpop.f32.mrb[0].mxu0
      %8434 = vmatprep.mubr.f32.mxu0 %v6982
      %8435 = vmatmul.mubr.f32.gmra.mrb[0].mxu0 %v6950
      %v8436 = vpop.f32.mrb[0].mxu0
      %v8437 = vadd.f32 %v8212, %v8436
      %v8438 = vpop.f32.mrb[0].mxu0
      %8439 = vmatprep.mubr.f32.mxu0 %v6983
      %8440 = vmatmul.mubr.f32.gmra.mrb[0].mxu0 %v6951
      %v8441 = vpop.f32.mrb[0].mxu0
      %v8442 = vadd.f32 %v8217, %v8441
      %v8443 = vpop.f32.mrb[0].mxu0
      %8444 = vmatprep.mubr.f32.mxu0 %v6984
      %8445 = vmatmul.mubr.f32.gmra.mrb[0].mxu0 %v6952
      %v8446 = vpop.f32.mrb[0].mxu0
      %v8447 = vadd.f32 %v8222, %v8446
      %v8448 = vpop.f32.mrb[0].mxu0
      %8449 = vmatprep.mubr.f32.mxu0 %v6985
      %8450 = vmatmul.mubr.f32.gmra.mrb[0].mxu0 %v6953
      %v8451 = vpop.f32.mrb[0].mxu0
      %v8452 = vadd.f32 %v8227, %v8451
      %v8453 = vpop.f32.mrb[0].mxu0
      %8454 = vmatprep.mubr.f32.mxu0 %v6986
      %8455 = vmatmul.mubr.f32.gmra.mrb[0].mxu0 %v6954
      %v8456 = vpop.f32.mrb[0].mxu0
      %v8457 = vadd.f32 %v8232, %v8456
      %v8458 = vpop.f32.mrb[0].mxu0
      %8459 = vmatprep.mubr.f32.mxu0 %v6987
      %8460 = vmatmul.mubr.f32.gmra.mrb[0].mxu0 %v6955
      %v8461 = vpop.f32.mrb[0].mxu0
      %v8462 = vadd.f32 %v8237, %v8461
      %v8463 = vpop.f32.mrb[0].mxu0
      %8464 = vmatprep.mubr.f32.mxu0 %v6988
      %8465 = vmatmul.mubr.f32.gmra.mrb[0].mxu0 %v6956
      %v8466 = vpop.f32.mrb[0].mxu0
      %v8467 = vadd.f32 %v8242, %v8466
      %v8468 = vpop.f32.mrb[0].mxu0
      %8469 = vmatprep.mubr.f32.mxu0 %v6989
      %8470 = vmatmul.mubr.f32.gmra.mrb[0].mxu0 %v6957
      %v8471 = vpop.f32.mrb[0].mxu0
      %v8472 = vadd.f32 %v8247, %v8471
      %v8473 = vpop.f32.mrb[0].mxu0
      %8474 = vmatprep.mubr.f32.mxu0 %v6990
      %8475 = vmatmul.mubr.f32.gmra.mrb[0].mxu0 %v6958
      %v8476 = vpop.f32.mrb[0].mxu0
      %v8477 = vadd.f32 %v8252, %v8476
      %v8478 = vpop.f32.mrb[0].mxu0
      %8479 = vmatprep.mubr.f32.mxu0 %v6991
      %8480 = vmatmul.mubr.f32.gmra.mrb[0].mxu0 %v6959
      %v8481 = vpop.f32.mrb[0].mxu0
      %v8482 = vadd.f32 %v8257, %v8481
      %v8483 = vpop.f32.mrb[0].mxu0
      %8484 = vmatprep.mubr.f32.mxu0 %v6992
      %8485 = vmatmul.mubr.f32.gmra.mrb[0].mxu0 %v6960
      %v8486 = vpop.f32.mrb[0].mxu0
      %v8487 = vadd.f32 %v8262, %v8486
      %v8488 = vpop.f32.mrb[0].mxu0
      %8489 = vmatprep.mubr.f32.mxu0 %v6993
      %8490 = vmatmul.mubr.f32.gmra.mrb[0].mxu0 %v6961
      %v8491 = vpop.f32.mrb[0].mxu0
      %v8492 = vadd.f32 %v8267, %v8491
      %v8493 = vpop.f32.mrb[0].mxu0
      %8494 = vmatprep.mubr.f32.mxu0 %v6994
      %8495 = vmatmul.mubr.f32.gmra.mrb[0].mxu0 %v6962
      %v8496 = vpop.f32.mrb[0].mxu0
      %v8497 = vadd.f32 %v8272, %v8496
      %v8498 = vpop.f32.mrb[0].mxu0
      %8499 = vmatprep.mubr.f32.mxu0 %v6995
      %8500 = vmatmul.mubr.f32.gmra.mrb[0].mxu0 %v6963
      %v8501 = vpop.f32.mrb[0].mxu0
      %v8502 = vadd.f32 %v8277, %v8501
      %v8503 = vpop.f32.mrb[0].mxu0
      %8504 = vmatprep.mubr.f32.mxu0 %v6996
      %8505 = vmatmul.mubr.f32.gmra.mrb[0].mxu0 %v6964
      %v8506 = vpop.f32.mrb[0].mxu0
      %v8507 = vadd.f32 %v8282, %v8506
      %v8508 = vpop.f32.mrb[0].mxu0
      %8509 = vmatprep.mubr.f32.mxu0 %v6997
      %8510 = vmatmul.mubr.f32.gmra.mrb[0].mxu0 %v6965
      %v8511 = vpop.f32.mrb[0].mxu0
      %v8512 = vadd.f32 %v8287, %v8511
      %v8513 = vpop.f32.mrb[0].mxu0
      %8514 = vmatprep.mubr.f32.mxu0 %v6998
      %8515 = vmatmul.mubr.f32.gmra.mrb[0].mxu0 %v6966
      %v8516 = vpop.f32.mrb[0].mxu0
      %v8517 = vadd.f32 %v8292, %v8516
      %v8518 = vpop.f32.mrb[0].mxu0
      %8519 = vdwg.mxu0
      %8520 = vmatprep.subr.mxu0 0.0
      %8521 = vmatpush1.msra.mxu0 %v7831
      %8522 = vmatprep.subr.mxu0 0.0
      %8523 = vmatpush1.msra.mxu0 %v7832
      %8524 = vmatprep.subr.mxu0 0.0
      %8525 = vmatpush1.msra.mxu0 %v7833
      %8526 = vmatprep.subr.mxu0 0.0
      %8527 = vmatpush1.msra.mxu0 %v7834
      %8528 = vmatprep.subr.mxu0 0.0
      %8529 = vmatpush1.msra.mxu0 %v7835
      %8530 = vmatprep.subr.mxu0 0.0
      %8531 = vmatpush1.msra.mxu0 %v7836
      %8532 = vmatprep.subr.mxu0 0.0
      %8533 = vmatpush1.msra.mxu0 %v7837
      %8534 = vmatprep.subr.mxu0 0.0
      %8535 = vmatpush1.msra.mxu0 %v7838
      %8536 = vmatprep.subr.mxu0 0.0
      %8537 = vmatpush1.msra.mxu0 %v7839
      %8538 = vmatprep.subr.mxu0 0.0
      %8539 = vmatpush1.msra.mxu0 %v7840
      %8540 = vmatprep.subr.mxu0 0.0
      %8541 = vmatpush1.msra.mxu0 %v7841
      %8542 = vmatprep.subr.mxu0 0.0
      %8543 = vmatpush1.msra.mxu0 %v7842
      %8544 = vmatprep.subr.mxu0 0.0
      %8545 = vmatpush1.msra.mxu0 %v7843
      %8546 = vmatprep.subr.mxu0 0.0
      %8547 = vmatpush1.msra.mxu0 %v7844
      %8548 = vmatprep.subr.mxu0 0.0
      %8549 = vmatpush1.msra.mxu0 %v7845
      %8550 = vmatprep.subr.mxu0 0.0
      %8551 = vmatpush1.msra.mxu0 %v7846
      %8552 = vmatprep.subr.mxu0 0.0
      %8553 = vmatpush1.msra.mxu0 %v7847
      %8554 = vmatprep.subr.mxu0 0.0
      %8555 = vmatpush1.msra.mxu0 %v7848
      %8556 = vmatprep.subr.mxu0 0.0
      %8557 = vmatpush1.msra.mxu0 %v7849
      %8558 = vmatprep.subr.mxu0 0.0
      %8559 = vmatpush1.msra.mxu0 %v7850
      %8560 = vmatprep.subr.mxu0 0.0
      %8561 = vmatpush1.msra.mxu0 %v7851
      %8562 = vmatprep.subr.mxu0 0.0
      %8563 = vmatpush1.msra.mxu0 %v7852
      %8564 = vmatprep.subr.mxu0 0.0
      %8565 = vmatpush1.msra.mxu0 %v7853
      %8566 = vmatprep.subr.mxu0 0.0
      %8567 = vmatpush1.msra.mxu0 %v7854
      %8568 = vmatprep.subr.mxu0 0.0
      %8569 = vmatpush1.msra.mxu0 %v7855
      %8570 = vmatprep.subr.mxu0 0.0
      %8571 = vmatpush1.msra.mxu0 %v7856
      %8572 = vmatprep.subr.mxu0 0.0
      %8573 = vmatpush1.msra.mxu0 %v7857
      %8574 = vmatprep.subr.mxu0 0.0
      %8575 = vmatpush1.msra.mxu0 %v7858
      %8576 = vmatprep.subr.mxu0 0.0
      %8577 = vmatpush1.msra.mxu0 %v7859
      %8578 = vmatprep.subr.mxu0 0.0
      %8579 = vmatpush1.msra.mxu0 %v7860
      %8580 = vmatprep.subr.mxu0 0.0
      %8581 = vmatpush1.msra.mxu0 %v7861
      %8582 = vmatprep.subr.mxu0 0.0
      %8583 = vmatpush1.msra.mxu0 %v7862
      %8584 = vmatprep.mubr.f32.mxu0 %v7031
      %8585 = vmatmul.mubr.f32.gmra.mrb[0].mxu0 %v6999
      %v8586 = vpop.f32.mrb[0].mxu0
      %v8587 = vadd.f32 %v8362, %v8586
      %v8588 = vpop.f32.mrb[0].mxu0
      %8589 = vmatprep.mubr.f32.mxu0 %v7032
      %8590 = vmatmul.mubr.f32.gmra.mrb[0].mxu0 %v7000
      %v8591 = vpop.f32.mrb[0].mxu0
      %v8592 = vadd.f32 %v8367, %v8591
      %v8593 = vpop.f32.mrb[0].mxu0
      %8594 = vmatprep.mubr.f32.mxu0 %v7033
      %8595 = vmatmul.mubr.f32.gmra.mrb[0].mxu0 %v7001
      %v8596 = vpop.f32.mrb[0].mxu0
      %v8597 = vadd.f32 %v8372, %v8596
      %v8598 = vpop.f32.mrb[0].mxu0
      %8599 = vmatprep.mubr.f32.mxu0 %v7034
      %8600 = vmatmul.mubr.f32.gmra.mrb[0].mxu0 %v7002
      %v8601 = vpop.f32.mrb[0].mxu0
      %v8602 = vadd.f32 %v8377, %v8601
      %v8603 = vpop.f32.mrb[0].mxu0
      %8604 = vmatprep.mubr.f32.mxu0 %v7035
      %8605 = vmatmul.mubr.f32.gmra.mrb[0].mxu0 %v7003
      %v8606 = vpop.f32.mrb[0].mxu0
      %v8607 = vadd.f32 %v8382, %v8606
      %v8608 = vpop.f32.mrb[0].mxu0
      %8609 = vmatprep.mubr.f32.mxu0 %v7036
      %8610 = vmatmul.mubr.f32.gmra.mrb[0].mxu0 %v7004
      %v8611 = vpop.f32.mrb[0].mxu0
      %v8612 = vadd.f32 %v8387, %v8611
      %v8613 = vpop.f32.mrb[0].mxu0
      %8614 = vmatprep.mubr.f32.mxu0 %v7037
      %8615 = vmatmul.mubr.f32.gmra.mrb[0].mxu0 %v7005
      %v8616 = vpop.f32.mrb[0].mxu0
      %v8617 = vadd.f32 %v8392, %v8616
      %v8618 = vpop.f32.mrb[0].mxu0
      %8619 = vmatprep.mubr.f32.mxu0 %v7038
      %8620 = vmatmul.mubr.f32.gmra.mrb[0].mxu0 %v7006
      %v8621 = vpop.f32.mrb[0].mxu0
      %v8622 = vadd.f32 %v8397, %v8621
      %v8623 = vpop.f32.mrb[0].mxu0
      %8624 = vmatprep.mubr.f32.mxu0 %v7039
      %8625 = vmatmul.mubr.f32.gmra.mrb[0].mxu0 %v7007
      %v8626 = vpop.f32.mrb[0].mxu0
      %v8627 = vadd.f32 %v8402, %v8626
      %v8628 = vpop.f32.mrb[0].mxu0
      %8629 = vmatprep.mubr.f32.mxu0 %v7040
      %8630 = vmatmul.mubr.f32.gmra.mrb[0].mxu0 %v7008
      %v8631 = vpop.f32.mrb[0].mxu0
      %v8632 = vadd.f32 %v8407, %v8631
      %v8633 = vpop.f32.mrb[0].mxu0
      %8634 = vmatprep.mubr.f32.mxu0 %v7041
      %8635 = vmatmul.mubr.f32.gmra.mrb[0].mxu0 %v7009
      %v8636 = vpop.f32.mrb[0].mxu0
      %v8637 = vadd.f32 %v8412, %v8636
      %v8638 = vpop.f32.mrb[0].mxu0
      %8639 = vmatprep.mubr.f32.mxu0 %v7042
      %8640 = vmatmul.mubr.f32.gmra.mrb[0].mxu0 %v7010
      %v8641 = vpop.f32.mrb[0].mxu0
      %v8642 = vadd.f32 %v8417, %v8641
      %v8643 = vpop.f32.mrb[0].mxu0
      %8644 = vmatprep.mubr.f32.mxu0 %v7043
      %8645 = vmatmul.mubr.f32.gmra.mrb[0].mxu0 %v7011
      %v8646 = vpop.f32.mrb[0].mxu0
      %v8647 = vadd.f32 %v8422, %v8646
      %v8648 = vpop.f32.mrb[0].mxu0
      %8649 = vmatprep.mubr.f32.mxu0 %v7044
      %8650 = vmatmul.mubr.f32.gmra.mrb[0].mxu0 %v7012
      %v8651 = vpop.f32.mrb[0].mxu0
      %v8652 = vadd.f32 %v8427, %v8651
      %v8653 = vpop.f32.mrb[0].mxu0
      %8654 = vmatprep.mubr.f32.mxu0 %v7045
      %8655 = vmatmul.mubr.f32.gmra.mrb[0].mxu0 %v7013
      %v8656 = vpop.f32.mrb[0].mxu0
      %v8657 = vadd.f32 %v8432, %v8656
      %v8658 = vpop.f32.mrb[0].mxu0
      %8659 = vmatprep.mubr.f32.mxu0 %v7046
      %8660 = vmatmul.mubr.f32.gmra.mrb[0].mxu0 %v7014
      %v8661 = vpop.f32.mrb[0].mxu0
      %v8662 = vadd.f32 %v8437, %v8661
      %v8663 = vpop.f32.mrb[0].mxu0
      %8664 = vmatprep.mubr.f32.mxu0 %v7047
      %8665 = vmatmul.mubr.f32.gmra.mrb[0].mxu0 %v7015
      %v8666 = vpop.f32.mrb[0].mxu0
      %v8667 = vadd.f32 %v8442, %v8666
      %v8668 = vpop.f32.mrb[0].mxu0
      %8669 = vmatprep.mubr.f32.mxu0 %v7048
      %8670 = vmatmul.mubr.f32.gmra.mrb[0].mxu0 %v7016
      %v8671 = vpop.f32.mrb[0].mxu0
      %v8672 = vadd.f32 %v8447, %v8671
      %v8673 = vpop.f32.mrb[0].mxu0
      %8674 = vmatprep.mubr.f32.mxu0 %v7049
      %8675 = vmatmul.mubr.f32.gmra.mrb[0].mxu0 %v7017
      %v8676 = vpop.f32.mrb[0].mxu0
      %v8677 = vadd.f32 %v8452, %v8676
      %v8678 = vpop.f32.mrb[0].mxu0
      %8679 = vmatprep.mubr.f32.mxu0 %v7050
      %8680 = vmatmul.mubr.f32.gmra.mrb[0].mxu0 %v7018
      %v8681 = vpop.f32.mrb[0].mxu0
      %v8682 = vadd.f32 %v8457, %v8681
      %v8683 = vpop.f32.mrb[0].mxu0
      %8684 = vmatprep.mubr.f32.mxu0 %v7051
      %8685 = vmatmul.mubr.f32.gmra.mrb[0].mxu0 %v7019
      %v8686 = vpop.f32.mrb[0].mxu0
      %v8687 = vadd.f32 %v8462, %v8686
      %v8688 = vpop.f32.mrb[0].mxu0
      %8689 = vmatprep.mubr.f32.mxu0 %v7052
      %8690 = vmatmul.mubr.f32.gmra.mrb[0].mxu0 %v7020
      %v8691 = vpop.f32.mrb[0].mxu0
      %v8692 = vadd.f32 %v8467, %v8691
      %v8693 = vpop.f32.mrb[0].mxu0
      %8694 = vmatprep.mubr.f32.mxu0 %v7053
      %8695 = vmatmul.mubr.f32.gmra.mrb[0].mxu0 %v7021
      %v8696 = vpop.f32.mrb[0].mxu0
      %v8697 = vadd.f32 %v8472, %v8696
      %v8698 = vpop.f32.mrb[0].mxu0
      %8699 = vmatprep.mubr.f32.mxu0 %v7054
      %8700 = vmatmul.mubr.f32.gmra.mrb[0].mxu0 %v7022
      %v8701 = vpop.f32.mrb[0].mxu0
      %v8702 = vadd.f32 %v8477, %v8701
      %v8703 = vpop.f32.mrb[0].mxu0
      %8704 = vmatprep.mubr.f32.mxu0 %v7055
      %8705 = vmatmul.mubr.f32.gmra.mrb[0].mxu0 %v7023
      %v8706 = vpop.f32.mrb[0].mxu0
      %v8707 = vadd.f32 %v8482, %v8706
      %v8708 = vpop.f32.mrb[0].mxu0
      %8709 = vmatprep.mubr.f32.mxu0 %v7056
      %8710 = vmatmul.mubr.f32.gmra.mrb[0].mxu0 %v7024
      %v8711 = vpop.f32.mrb[0].mxu0
      %v8712 = vadd.f32 %v8487, %v8711
      %v8713 = vpop.f32.mrb[0].mxu0
      %8714 = vmatprep.mubr.f32.mxu0 %v7057
      %8715 = vmatmul.mubr.f32.gmra.mrb[0].mxu0 %v7025
      %v8716 = vpop.f32.mrb[0].mxu0
      %v8717 = vadd.f32 %v8492, %v8716
      %v8718 = vpop.f32.mrb[0].mxu0
      %8719 = vmatprep.mubr.f32.mxu0 %v7058
      %8720 = vmatmul.mubr.f32.gmra.mrb[0].mxu0 %v7026
      %v8721 = vpop.f32.mrb[0].mxu0
      %v8722 = vadd.f32 %v8497, %v8721
      %v8723 = vpop.f32.mrb[0].mxu0
      %8724 = vmatprep.mubr.f32.mxu0 %v7059
      %8725 = vmatmul.mubr.f32.gmra.mrb[0].mxu0 %v7027
      %v8726 = vpop.f32.mrb[0].mxu0
      %v8727 = vadd.f32 %v8502, %v8726
      %v8728 = vpop.f32.mrb[0].mxu0
      %8729 = vmatprep.mubr.f32.mxu0 %v7060
      %8730 = vmatmul.mubr.f32.gmra.mrb[0].mxu0 %v7028
      %v8731 = vpop.f32.mrb[0].mxu0
      %v8732 = vadd.f32 %v8507, %v8731
      %v8733 = vpop.f32.mrb[0].mxu0
      %8734 = vmatprep.mubr.f32.mxu0 %v7061
      %8735 = vmatmul.mubr.f32.gmra.mrb[0].mxu0 %v7029
      %v8736 = vpop.f32.mrb[0].mxu0
      %v8737 = vadd.f32 %v8512, %v8736
      %v8738 = vpop.f32.mrb[0].mxu0
      %8739 = vmatprep.mubr.f32.mxu0 %v7062
      %8740 = vmatmul.mubr.f32.gmra.mrb[0].mxu0 %v7030
      %v8741 = vpop.f32.mrb[0].mxu0
      %v8742 = vadd.f32 %v8517, %v8741
      %v8743 = vpop.f32.mrb[0].mxu0
      %8744 = vdwg.mxu0
      %8745 = vmatprep.subr.mxu0 0.0
      %8746 = vmatpush1.msra.mxu0 %v7863
      %8747 = vmatprep.subr.mxu0 0.0
      %8748 = vmatpush1.msra.mxu0 %v7864
      %8749 = vmatprep.subr.mxu0 0.0
      %8750 = vmatpush1.msra.mxu0 %v7865
      %8751 = vmatprep.subr.mxu0 0.0
      %8752 = vmatpush1.msra.mxu0 %v7866
      %8753 = vmatprep.subr.mxu0 0.0
      %8754 = vmatpush1.msra.mxu0 %v7867
      %8755 = vmatprep.subr.mxu0 0.0
      %8756 = vmatpush1.msra.mxu0 %v7868
      %8757 = vmatprep.subr.mxu0 0.0
      %8758 = vmatpush1.msra.mxu0 %v7869
      %8759 = vmatprep.subr.mxu0 0.0
      %8760 = vmatpush1.msra.mxu0 %v7870
      %8761 = vmatprep.subr.mxu0 0.0
      %8762 = vmatpush1.msra.mxu0 %v7871
      %8763 = vmatprep.subr.mxu0 0.0
      %8764 = vmatpush1.msra.mxu0 %v7872
      %8765 = vmatprep.subr.mxu0 0.0
      %8766 = vmatpush1.msra.mxu0 %v7873
      %8767 = vmatprep.subr.mxu0 0.0
      %8768 = vmatpush1.msra.mxu0 %v7874
      %8769 = vmatprep.subr.mxu0 0.0
      %8770 = vmatpush1.msra.mxu0 %v7875
      %8771 = vmatprep.subr.mxu0 0.0
      %8772 = vmatpush1.msra.mxu0 %v7876
      %8773 = vmatprep.subr.mxu0 0.0
      %8774 = vmatpush1.msra.mxu0 %v7877
      %8775 = vmatprep.subr.mxu0 0.0
      %8776 = vmatpush1.msra.mxu0 %v7878
      %8777 = vmatprep.subr.mxu0 0.0
      %8778 = vmatpush1.msra.mxu0 %v7879
      %8779 = vmatprep.subr.mxu0 0.0
      %8780 = vmatpush1.msra.mxu0 %v7880
      %8781 = vmatprep.subr.mxu0 0.0
      %8782 = vmatpush1.msra.mxu0 %v7881
      %8783 = vmatprep.subr.mxu0 0.0
      %8784 = vmatpush1.msra.mxu0 %v7882
      %8785 = vmatprep.subr.mxu0 0.0
      %8786 = vmatpush1.msra.mxu0 %v7883
      %8787 = vmatprep.subr.mxu0 0.0
      %8788 = vmatpush1.msra.mxu0 %v7884
      %8789 = vmatprep.subr.mxu0 0.0
      %8790 = vmatpush1.msra.mxu0 %v7885
      %8791 = vmatprep.subr.mxu0 0.0
      %8792 = vmatpush1.msra.mxu0 %v7886
      %8793 = vmatprep.subr.mxu0 0.0
      %8794 = vmatpush1.msra.mxu0 %v7887
      %8795 = vmatprep.subr.mxu0 0.0
      %8796 = vmatpush1.msra.mxu0 %v7888
      %8797 = vmatprep.subr.mxu0 0.0
      %8798 = vmatpush1.msra.mxu0 %v7889
      %8799 = vmatprep.subr.mxu0 0.0
      %8800 = vmatpush1.msra.mxu0 %v7890
      %8801 = vmatprep.subr.mxu0 0.0
      %8802 = vmatpush1.msra.mxu0 %v7891
      %8803 = vmatprep.subr.mxu0 0.0
      %8804 = vmatpush1.msra.mxu0 %v7892
      %8805 = vmatprep.subr.mxu0 0.0
      %8806 = vmatpush1.msra.mxu0 %v7893
      %8807 = vmatprep.subr.mxu0 0.0
      %8808 = vmatpush1.msra.mxu0 %v7894
      %8809 = vmatprep.mubr.f32.mxu0 %v7095
      %8810 = vmatmul.mubr.f32.gmra.mrb[0].mxu0 %v7063
      %v8811 = vpop.f32.mrb[0].mxu0
      %v8812 = vadd.f32 %v8587, %v8811
      %v8813 = vpop.f32.mrb[0].mxu0
      %8814 = vmatprep.mubr.f32.mxu0 %v7096
      %8815 = vmatmul.mubr.f32.gmra.mrb[0].mxu0 %v7064
      %v8816 = vpop.f32.mrb[0].mxu0
      %v8817 = vadd.f32 %v8592, %v8816
      %v8818 = vpop.f32.mrb[0].mxu0
      %8819 = vmatprep.mubr.f32.mxu0 %v7097
      %8820 = vmatmul.mubr.f32.gmra.mrb[0].mxu0 %v7065
      %v8821 = vpop.f32.mrb[0].mxu0
      %v8822 = vadd.f32 %v8597, %v8821
      %v8823 = vpop.f32.mrb[0].mxu0
      %8824 = vmatprep.mubr.f32.mxu0 %v7098
      %8825 = vmatmul.mubr.f32.gmra.mrb[0].mxu0 %v7066
      %v8826 = vpop.f32.mrb[0].mxu0
      %v8827 = vadd.f32 %v8602, %v8826
      %v8828 = vpop.f32.mrb[0].mxu0
      %8829 = vmatprep.mubr.f32.mxu0 %v7099
      %8830 = vmatmul.mubr.f32.gmra.mrb[0].mxu0 %v7067
      %v8831 = vpop.f32.mrb[0].mxu0
      %v8832 = vadd.f32 %v8607, %v8831
      %v8833 = vpop.f32.mrb[0].mxu0
      %8834 = vmatprep.mubr.f32.mxu0 %v7100
      %8835 = vmatmul.mubr.f32.gmra.mrb[0].mxu0 %v7068
      %v8836 = vpop.f32.mrb[0].mxu0
      %v8837 = vadd.f32 %v8612, %v8836
      %v8838 = vpop.f32.mrb[0].mxu0
      %8839 = vmatprep.mubr.f32.mxu0 %v7101
      %8840 = vmatmul.mubr.f32.gmra.mrb[0].mxu0 %v7069
      %v8841 = vpop.f32.mrb[0].mxu0
      %v8842 = vadd.f32 %v8617, %v8841
      %v8843 = vpop.f32.mrb[0].mxu0
      %8844 = vmatprep.mubr.f32.mxu0 %v7102
      %8845 = vmatmul.mubr.f32.gmra.mrb[0].mxu0 %v7070
      %v8846 = vpop.f32.mrb[0].mxu0
      %v8847 = vadd.f32 %v8622, %v8846
      %v8848 = vpop.f32.mrb[0].mxu0
      %8849 = vmatprep.mubr.f32.mxu0 %v7103
      %8850 = vmatmul.mubr.f32.gmra.mrb[0].mxu0 %v7071
      %v8851 = vpop.f32.mrb[0].mxu0
      %v8852 = vadd.f32 %v8627, %v8851
      %v8853 = vpop.f32.mrb[0].mxu0
      %8854 = vmatprep.mubr.f32.mxu0 %v7104
      %8855 = vmatmul.mubr.f32.gmra.mrb[0].mxu0 %v7072
      %v8856 = vpop.f32.mrb[0].mxu0
      %v8857 = vadd.f32 %v8632, %v8856
      %v8858 = vpop.f32.mrb[0].mxu0
      %8859 = vmatprep.mubr.f32.mxu0 %v7105
      %8860 = vmatmul.mubr.f32.gmra.mrb[0].mxu0 %v7073
      %v8861 = vpop.f32.mrb[0].mxu0
      %v8862 = vadd.f32 %v8637, %v8861
      %v8863 = vpop.f32.mrb[0].mxu0
      %8864 = vmatprep.mubr.f32.mxu0 %v7106
      %8865 = vmatmul.mubr.f32.gmra.mrb[0].mxu0 %v7074
      %v8866 = vpop.f32.mrb[0].mxu0
      %v8867 = vadd.f32 %v8642, %v8866
      %v8868 = vpop.f32.mrb[0].mxu0
      %8869 = vmatprep.mubr.f32.mxu0 %v7107
      %8870 = vmatmul.mubr.f32.gmra.mrb[0].mxu0 %v7075
      %v8871 = vpop.f32.mrb[0].mxu0
      %v8872 = vadd.f32 %v8647, %v8871
      %v8873 = vpop.f32.mrb[0].mxu0
      %8874 = vmatprep.mubr.f32.mxu0 %v7108
      %8875 = vmatmul.mubr.f32.gmra.mrb[0].mxu0 %v7076
      %v8876 = vpop.f32.mrb[0].mxu0
      %v8877 = vadd.f32 %v8652, %v8876
      %v8878 = vpop.f32.mrb[0].mxu0
      %8879 = vmatprep.mubr.f32.mxu0 %v7109
      %8880 = vmatmul.mubr.f32.gmra.mrb[0].mxu0 %v7077
      %v8881 = vpop.f32.mrb[0].mxu0
      %v8882 = vadd.f32 %v8657, %v8881
      %v8883 = vpop.f32.mrb[0].mxu0
      %8884 = vmatprep.mubr.f32.mxu0 %v7110
      %8885 = vmatmul.mubr.f32.gmra.mrb[0].mxu0 %v7078
      %v8886 = vpop.f32.mrb[0].mxu0
      %v8887 = vadd.f32 %v8662, %v8886
      %v8888 = vpop.f32.mrb[0].mxu0
      %8889 = vmatprep.mubr.f32.mxu0 %v7111
      %8890 = vmatmul.mubr.f32.gmra.mrb[0].mxu0 %v7079
      %v8891 = vpop.f32.mrb[0].mxu0
      %v8892 = vadd.f32 %v8667, %v8891
      %v8893 = vpop.f32.mrb[0].mxu0
      %8894 = vmatprep.mubr.f32.mxu0 %v7112
      %8895 = vmatmul.mubr.f32.gmra.mrb[0].mxu0 %v7080
      %v8896 = vpop.f32.mrb[0].mxu0
      %v8897 = vadd.f32 %v8672, %v8896
      %v8898 = vpop.f32.mrb[0].mxu0
      %8899 = vmatprep.mubr.f32.mxu0 %v7113
      %8900 = vmatmul.mubr.f32.gmra.mrb[0].mxu0 %v7081
      %v8901 = vpop.f32.mrb[0].mxu0
      %v8902 = vadd.f32 %v8677, %v8901
      %v8903 = vpop.f32.mrb[0].mxu0
      %8904 = vmatprep.mubr.f32.mxu0 %v7114
      %8905 = vmatmul.mubr.f32.gmra.mrb[0].mxu0 %v7082
      %v8906 = vpop.f32.mrb[0].mxu0
      %v8907 = vadd.f32 %v8682, %v8906
      %v8908 = vpop.f32.mrb[0].mxu0
      %8909 = vmatprep.mubr.f32.mxu0 %v7115
      %8910 = vmatmul.mubr.f32.gmra.mrb[0].mxu0 %v7083
      %v8911 = vpop.f32.mrb[0].mxu0
      %v8912 = vadd.f32 %v8687, %v8911
      %v8913 = vpop.f32.mrb[0].mxu0
      %8914 = vmatprep.mubr.f32.mxu0 %v7116
      %8915 = vmatmul.mubr.f32.gmra.mrb[0].mxu0 %v7084
      %v8916 = vpop.f32.mrb[0].mxu0
      %v8917 = vadd.f32 %v8692, %v8916
      %v8918 = vpop.f32.mrb[0].mxu0
      %8919 = vmatprep.mubr.f32.mxu0 %v7117
      %8920 = vmatmul.mubr.f32.gmra.mrb[0].mxu0 %v7085
      %v8921 = vpop.f32.mrb[0].mxu0
      %v8922 = vadd.f32 %v8697, %v8921
      %v8923 = vpop.f32.mrb[0].mxu0
      %8924 = vmatprep.mubr.f32.mxu0 %v7118
      %8925 = vmatmul.mubr.f32.gmra.mrb[0].mxu0 %v7086
      %v8926 = vpop.f32.mrb[0].mxu0
      %v8927 = vadd.f32 %v8702, %v8926
      %v8928 = vpop.f32.mrb[0].mxu0
      %8929 = vmatprep.mubr.f32.mxu0 %v7119
      %8930 = vmatmul.mubr.f32.gmra.mrb[0].mxu0 %v7087
      %v8931 = vpop.f32.mrb[0].mxu0
      %v8932 = vadd.f32 %v8707, %v8931
      %v8933 = vpop.f32.mrb[0].mxu0
      %8934 = vmatprep.mubr.f32.mxu0 %v7120
      %8935 = vmatmul.mubr.f32.gmra.mrb[0].mxu0 %v7088
      %v8936 = vpop.f32.mrb[0].mxu0
      %v8937 = vadd.f32 %v8712, %v8936
      %v8938 = vpop.f32.mrb[0].mxu0
      %8939 = vmatprep.mubr.f32.mxu0 %v7121
      %8940 = vmatmul.mubr.f32.gmra.mrb[0].mxu0 %v7089
      %v8941 = vpop.f32.mrb[0].mxu0
      %v8942 = vadd.f32 %v8717, %v8941
      %v8943 = vpop.f32.mrb[0].mxu0
      %8944 = vmatprep.mubr.f32.mxu0 %v7122
      %8945 = vmatmul.mubr.f32.gmra.mrb[0].mxu0 %v7090
      %v8946 = vpop.f32.mrb[0].mxu0
      %v8947 = vadd.f32 %v8722, %v8946
      %v8948 = vpop.f32.mrb[0].mxu0
      %8949 = vmatprep.mubr.f32.mxu0 %v7123
      %8950 = vmatmul.mubr.f32.gmra.mrb[0].mxu0 %v7091
      %v8951 = vpop.f32.mrb[0].mxu0
      %v8952 = vadd.f32 %v8727, %v8951
      %v8953 = vpop.f32.mrb[0].mxu0
      %8954 = vmatprep.mubr.f32.mxu0 %v7124
      %8955 = vmatmul.mubr.f32.gmra.mrb[0].mxu0 %v7092
      %v8956 = vpop.f32.mrb[0].mxu0
      %v8957 = vadd.f32 %v8732, %v8956
      %v8958 = vpop.f32.mrb[0].mxu0
      %8959 = vmatprep.mubr.f32.mxu0 %v7125
      %8960 = vmatmul.mubr.f32.gmra.mrb[0].mxu0 %v7093
      %v8961 = vpop.f32.mrb[0].mxu0
      %v8962 = vadd.f32 %v8737, %v8961
      %v8963 = vpop.f32.mrb[0].mxu0
      %8964 = vmatprep.mubr.f32.mxu0 %v7126
      %8965 = vmatmul.mubr.f32.gmra.mrb[0].mxu0 %v7094
      %v8966 = vpop.f32.mrb[0].mxu0
      %v8967 = vadd.f32 %v8742, %v8966
      %v8968 = vpop.f32.mrb[0].mxu0
      %8969 = vdwg.mxu0
      %8970 = vmatprep.subr.mxu0 0.0
      %8971 = vmatpush1.msra.mxu0 %v7895
      %8972 = vmatprep.subr.mxu0 0.0
      %8973 = vmatpush1.msra.mxu0 %v7896
      %8974 = vmatprep.subr.mxu0 0.0
      %8975 = vmatpush1.msra.mxu0 %v7897
      %8976 = vmatprep.subr.mxu0 0.0
      %8977 = vmatpush1.msra.mxu0 %v7898
      %8978 = vmatprep.subr.mxu0 0.0
      %8979 = vmatpush1.msra.mxu0 %v7899
      %8980 = vmatprep.subr.mxu0 0.0
      %8981 = vmatpush1.msra.mxu0 %v7900
      %8982 = vmatprep.subr.mxu0 0.0
      %8983 = vmatpush1.msra.mxu0 %v7901
      %8984 = vmatprep.subr.mxu0 0.0
      %8985 = vmatpush1.msra.mxu0 %v7902
      %8986 = vmatprep.subr.mxu0 0.0
      %8987 = vmatpush1.msra.mxu0 %v7903
      %8988 = vmatprep.subr.mxu0 0.0
      %8989 = vmatpush1.msra.mxu0 %v7904
      %8990 = vmatprep.subr.mxu0 0.0
      %8991 = vmatpush1.msra.mxu0 %v7905
      %8992 = vmatprep.subr.mxu0 0.0
      %8993 = vmatpush1.msra.mxu0 %v7906
      %8994 = vmatprep.subr.mxu0 0.0
      %8995 = vmatpush1.msra.mxu0 %v7907
      %8996 = vmatprep.subr.mxu0 0.0
      %8997 = vmatpush1.msra.mxu0 %v7908
      %8998 = vmatprep.subr.mxu0 0.0
      %8999 = vmatpush1.msra.mxu0 %v7909
      %9000 = vmatprep.subr.mxu0 0.0
      %9001 = vmatpush1.msra.mxu0 %v7910
      %9002 = vmatprep.subr.mxu0 0.0
      %9003 = vmatpush1.msra.mxu0 %v7911
      %9004 = vmatprep.subr.mxu0 0.0
      %9005 = vmatpush1.msra.mxu0 %v7912
      %9006 = vmatprep.subr.mxu0 0.0
      %9007 = vmatpush1.msra.mxu0 %v7913
      %9008 = vmatprep.subr.mxu0 0.0
      %9009 = vmatpush1.msra.mxu0 %v7914
      %9010 = vmatprep.subr.mxu0 0.0
      %9011 = vmatpush1.msra.mxu0 %v7915
      %9012 = vmatprep.subr.mxu0 0.0
      %9013 = vmatpush1.msra.mxu0 %v7916
      %9014 = vmatprep.subr.mxu0 0.0
      %9015 = vmatpush1.msra.mxu0 %v7917
      %9016 = vmatprep.subr.mxu0 0.0
      %9017 = vmatpush1.msra.mxu0 %v7918
      %9018 = vmatprep.subr.mxu0 0.0
      %9019 = vmatpush1.msra.mxu0 %v7919
      %9020 = vmatprep.subr.mxu0 0.0
      %9021 = vmatpush1.msra.mxu0 %v7920
      %9022 = vmatprep.subr.mxu0 0.0
      %9023 = vmatpush1.msra.mxu0 %v7921
      %9024 = vmatprep.subr.mxu0 0.0
      %9025 = vmatpush1.msra.mxu0 %v7922
      %9026 = vmatprep.subr.mxu0 0.0
      %9027 = vmatpush1.msra.mxu0 %v7923
      %9028 = vmatprep.subr.mxu0 0.0
      %9029 = vmatpush1.msra.mxu0 %v7924
      %9030 = vmatprep.subr.mxu0 0.0
      %9031 = vmatpush1.msra.mxu0 %v7925
      %9032 = vmatprep.subr.mxu0 0.0
      %9033 = vmatpush1.msra.mxu0 %v7926
      %9034 = vmatprep.mubr.f32.mxu0 %v7671
      %9035 = vmatmul.mubr.f32.gmra.mrb[0].mxu0 %v7639
      %v9036 = vpop.f32.mrb[0].mxu0
      %v9037 = vadd.f32 %v8812, %v9036
      %v9038 = vpop.f32.mrb[0].mxu0
      %9039 = vmatprep.mubr.f32.mxu0 %v7672
      %9040 = vmatmul.mubr.f32.gmra.mrb[0].mxu0 %v7640
      %v9041 = vpop.f32.mrb[0].mxu0
      %v9042 = vadd.f32 %v8817, %v9041
      %v9043 = vpop.f32.mrb[0].mxu0
      %9044 = vmatprep.mubr.f32.mxu0 %v7673
      %9045 = vmatmul.mubr.f32.gmra.mrb[0].mxu0 %v7641
      %v9046 = vpop.f32.mrb[0].mxu0
      %v9047 = vadd.f32 %v8822, %v9046
      %v9048 = vpop.f32.mrb[0].mxu0
      %9049 = vmatprep.mubr.f32.mxu0 %v7674
      %9050 = vmatmul.mubr.f32.gmra.mrb[0].mxu0 %v7642
      %v9051 = vpop.f32.mrb[0].mxu0
      %v9052 = vadd.f32 %v8827, %v9051
      %v9053 = vpop.f32.mrb[0].mxu0
      %9054 = vmatprep.mubr.f32.mxu0 %v7675
      %9055 = vmatmul.mubr.f32.gmra.mrb[0].mxu0 %v7643
      %v9056 = vpop.f32.mrb[0].mxu0
      %v9057 = vadd.f32 %v8832, %v9056
      %v9058 = vpop.f32.mrb[0].mxu0
      %9059 = vmatprep.mubr.f32.mxu0 %v7676
      %9060 = vmatmul.mubr.f32.gmra.mrb[0].mxu0 %v7644
      %v9061 = vpop.f32.mrb[0].mxu0
      %v9062 = vadd.f32 %v8837, %v9061
      %v9063 = vpop.f32.mrb[0].mxu0
      %9064 = vmatprep.mubr.f32.mxu0 %v7677
      %9065 = vmatmul.mubr.f32.gmra.mrb[0].mxu0 %v7645
      %v9066 = vpop.f32.mrb[0].mxu0
      %v9067 = vadd.f32 %v8842, %v9066
      %v9068 = vpop.f32.mrb[0].mxu0
      %9069 = vmatprep.mubr.f32.mxu0 %v7678
      %9070 = vmatmul.mubr.f32.gmra.mrb[0].mxu0 %v7646
      %v9071 = vpop.f32.mrb[0].mxu0
      %v9072 = vadd.f32 %v8847, %v9071
      %v9073 = vpop.f32.mrb[0].mxu0
      %9074 = vmatprep.mubr.f32.mxu0 %v7679
      %9075 = vmatmul.mubr.f32.gmra.mrb[0].mxu0 %v7647
      %v9076 = vpop.f32.mrb[0].mxu0
      %v9077 = vadd.f32 %v8852, %v9076
      %v9078 = vpop.f32.mrb[0].mxu0
      %9079 = vmatprep.mubr.f32.mxu0 %v7680
      %9080 = vmatmul.mubr.f32.gmra.mrb[0].mxu0 %v7648
      %v9081 = vpop.f32.mrb[0].mxu0
      %v9082 = vadd.f32 %v8857, %v9081
      %v9083 = vpop.f32.mrb[0].mxu0
      %9084 = vmatprep.mubr.f32.mxu0 %v7681
      %9085 = vmatmul.mubr.f32.gmra.mrb[0].mxu0 %v7649
      %v9086 = vpop.f32.mrb[0].mxu0
      %v9087 = vadd.f32 %v8862, %v9086
      %v9088 = vpop.f32.mrb[0].mxu0
      %9089 = vmatprep.mubr.f32.mxu0 %v7682
      %9090 = vmatmul.mubr.f32.gmra.mrb[0].mxu0 %v7650
      %v9091 = vpop.f32.mrb[0].mxu0
      %v9092 = vadd.f32 %v8867, %v9091
      %v9093 = vpop.f32.mrb[0].mxu0
      %9094 = vmatprep.mubr.f32.mxu0 %v7683
      %9095 = vmatmul.mubr.f32.gmra.mrb[0].mxu0 %v7651
      %v9096 = vpop.f32.mrb[0].mxu0
      %v9097 = vadd.f32 %v8872, %v9096
      %v9098 = vpop.f32.mrb[0].mxu0
      %9099 = vmatprep.mubr.f32.mxu0 %v7684
      %9100 = vmatmul.mubr.f32.gmra.mrb[0].mxu0 %v7652
      %v9101 = vpop.f32.mrb[0].mxu0
      %v9102 = vadd.f32 %v8877, %v9101
      %v9103 = vpop.f32.mrb[0].mxu0
      %9104 = vmatprep.mubr.f32.mxu0 %v7685
      %9105 = vmatmul.mubr.f32.gmra.mrb[0].mxu0 %v7653
      %v9106 = vpop.f32.mrb[0].mxu0
      %v9107 = vadd.f32 %v8882, %v9106
      %v9108 = vpop.f32.mrb[0].mxu0
      %9109 = vmatprep.mubr.f32.mxu0 %v7686
      %9110 = vmatmul.mubr.f32.gmra.mrb[0].mxu0 %v7654
      %v9111 = vpop.f32.mrb[0].mxu0
      %v9112 = vadd.f32 %v8887, %v9111
      %v9113 = vpop.f32.mrb[0].mxu0
      %9114 = vmatprep.mubr.f32.mxu0 %v7687
      %9115 = vmatmul.mubr.f32.gmra.mrb[0].mxu0 %v7655
      %v9116 = vpop.f32.mrb[0].mxu0
      %v9117 = vadd.f32 %v8892, %v9116
      %v9118 = vpop.f32.mrb[0].mxu0
      %9119 = vmatprep.mubr.f32.mxu0 %v7688
      %9120 = vmatmul.mubr.f32.gmra.mrb[0].mxu0 %v7656
      %v9121 = vpop.f32.mrb[0].mxu0
      %v9122 = vadd.f32 %v8897, %v9121
      %v9123 = vpop.f32.mrb[0].mxu0
      %9124 = vmatprep.mubr.f32.mxu0 %v7689
      %9125 = vmatmul.mubr.f32.gmra.mrb[0].mxu0 %v7657
      %v9126 = vpop.f32.mrb[0].mxu0
      %v9127 = vadd.f32 %v8902, %v9126
      %v9128 = vpop.f32.mrb[0].mxu0
      %9129 = vmatprep.mubr.f32.mxu0 %v7690
      %9130 = vmatmul.mubr.f32.gmra.mrb[0].mxu0 %v7658
      %v9131 = vpop.f32.mrb[0].mxu0
      %v9132 = vadd.f32 %v8907, %v9131
      %v9133 = vpop.f32.mrb[0].mxu0
      %9134 = vmatprep.mubr.f32.mxu0 %v7691
      %9135 = vmatmul.mubr.f32.gmra.mrb[0].mxu0 %v7659
      %v9136 = vpop.f32.mrb[0].mxu0
      %v9137 = vadd.f32 %v8912, %v9136
      %v9138 = vpop.f32.mrb[0].mxu0
      %9139 = vmatprep.mubr.f32.mxu0 %v7692
      %9140 = vmatmul.mubr.f32.gmra.mrb[0].mxu0 %v7660
      %v9141 = vpop.f32.mrb[0].mxu0
      %v9142 = vadd.f32 %v8917, %v9141
      %v9143 = vpop.f32.mrb[0].mxu0
      %9144 = vmatprep.mubr.f32.mxu0 %v7693
      %9145 = vmatmul.mubr.f32.gmra.mrb[0].mxu0 %v7661
      %v9146 = vpop.f32.mrb[0].mxu0
      %v9147 = vadd.f32 %v8922, %v9146
      %v9148 = vpop.f32.mrb[0].mxu0
      %9149 = vmatprep.mubr.f32.mxu0 %v7694
      %9150 = vmatmul.mubr.f32.gmra.mrb[0].mxu0 %v7662
      %v9151 = vpop.f32.mrb[0].mxu0
      %v9152 = vadd.f32 %v8927, %v9151
      %v9153 = vpop.f32.mrb[0].mxu0
      %9154 = vmatprep.mubr.f32.mxu0 %v7695
      %9155 = vmatmul.mubr.f32.gmra.mrb[0].mxu0 %v7663
      %v9156 = vpop.f32.mrb[0].mxu0
      %v9157 = vadd.f32 %v8932, %v9156
      %v9158 = vpop.f32.mrb[0].mxu0
      %9159 = vmatprep.mubr.f32.mxu0 %v7696
      %9160 = vmatmul.mubr.f32.gmra.mrb[0].mxu0 %v7664
      %v9161 = vpop.f32.mrb[0].mxu0
      %v9162 = vadd.f32 %v8937, %v9161
      %v9163 = vpop.f32.mrb[0].mxu0
      %9164 = vmatprep.mubr.f32.mxu0 %v7697
      %9165 = vmatmul.mubr.f32.gmra.mrb[0].mxu0 %v7665
      %v9166 = vpop.f32.mrb[0].mxu0
      %v9167 = vadd.f32 %v8942, %v9166
      %v9168 = vpop.f32.mrb[0].mxu0
      %9169 = vmatprep.mubr.f32.mxu0 %v7698
      %9170 = vmatmul.mubr.f32.gmra.mrb[0].mxu0 %v7666
      %v9171 = vpop.f32.mrb[0].mxu0
      %v9172 = vadd.f32 %v8947, %v9171
      %v9173 = vpop.f32.mrb[0].mxu0
      %9174 = vmatprep.mubr.f32.mxu0 %v7699
      %9175 = vmatmul.mubr.f32.gmra.mrb[0].mxu0 %v7667
      %v9176 = vpop.f32.mrb[0].mxu0
      %v9177 = vadd.f32 %v8952, %v9176
      %v9178 = vpop.f32.mrb[0].mxu0
      %9179 = vmatprep.mubr.f32.mxu0 %v7700
      %9180 = vmatmul.mubr.f32.gmra.mrb[0].mxu0 %v7668
      %v9181 = vpop.f32.mrb[0].mxu0
      %v9182 = vadd.f32 %v8957, %v9181
      %v9183 = vpop.f32.mrb[0].mxu0
      %9184 = vmatprep.mubr.f32.mxu0 %v7701
      %9185 = vmatmul.mubr.f32.gmra.mrb[0].mxu0 %v7669
      %v9186 = vpop.f32.mrb[0].mxu0
      %v9187 = vadd.f32 %v8962, %v9186
      %v9188 = vpop.f32.mrb[0].mxu0
      %9189 = vmatprep.mubr.f32.mxu0 %v7702
      %9190 = vmatmul.mubr.f32.gmra.mrb[0].mxu0 %v7670
      %v9191 = vpop.f32.mrb[0].mxu0
      %v9192 = vadd.f32 %v8967, %v9191
      %v9193 = vpop.f32.mrb[0].mxu0
      %9194 = vdwg.mxu0
      %9195 = vmatprep.subr.mxu0 0.0
      %9196 = vmatpush1.msra.mxu0 %v7927
      %9197 = vmatprep.subr.mxu0 0.0
      %9198 = vmatpush1.msra.mxu0 %v7928
      %9199 = vmatprep.subr.mxu0 0.0
      %9200 = vmatpush1.msra.mxu0 %v7929
      %9201 = vmatprep.subr.mxu0 0.0
      %9202 = vmatpush1.msra.mxu0 %v7930
      %9203 = vmatprep.subr.mxu0 0.0
      %9204 = vmatpush1.msra.mxu0 %v7931
      %9205 = vmatprep.subr.mxu0 0.0
      %9206 = vmatpush1.msra.mxu0 %v7932
      %9207 = vmatprep.subr.mxu0 0.0
      %9208 = vmatpush1.msra.mxu0 %v7933
      %9209 = vmatprep.subr.mxu0 0.0
      %9210 = vmatpush1.msra.mxu0 %v7934
      %9211 = vmatprep.subr.mxu0 0.0
      %9212 = vmatpush1.msra.mxu0 %v7935
      %9213 = vmatprep.subr.mxu0 0.0
      %9214 = vmatpush1.msra.mxu0 %v7936
      %9215 = vmatprep.subr.mxu0 0.0
      %9216 = vmatpush1.msra.mxu0 %v7937
      %9217 = vmatprep.subr.mxu0 0.0
      %9218 = vmatpush1.msra.mxu0 %v7938
      %9219 = vmatprep.subr.mxu0 0.0
      %9220 = vmatpush1.msra.mxu0 %v7939
      %9221 = vmatprep.subr.mxu0 0.0
      %9222 = vmatpush1.msra.mxu0 %v7940
      %9223 = vmatprep.subr.mxu0 0.0
      %9224 = vmatpush1.msra.mxu0 %v7941
      %9225 = vmatprep.subr.mxu0 0.0
      %9226 = vmatpush1.msra.mxu0 %v7942
      %9227 = vmatprep.subr.mxu0 0.0
      %9228 = vmatpush1.msra.mxu0 %v7943
      %9229 = vmatprep.subr.mxu0 0.0
      %9230 = vmatpush1.msra.mxu0 %v7944
      %9231 = vmatprep.subr.mxu0 0.0
      %9232 = vmatpush1.msra.mxu0 %v7945
      %9233 = vmatprep.subr.mxu0 0.0
      %9234 = vmatpush1.msra.mxu0 %v7946
      %9235 = vmatprep.subr.mxu0 0.0
      %9236 = vmatpush1.msra.mxu0 %v7947
      %9237 = vmatprep.subr.mxu0 0.0
      %9238 = vmatpush1.msra.mxu0 %v7948
      %9239 = vmatprep.subr.mxu0 0.0
      %9240 = vmatpush1.msra.mxu0 %v7949
      %9241 = vmatprep.subr.mxu0 0.0
      %9242 = vmatpush1.msra.mxu0 %v7950
      %9243 = vmatprep.subr.mxu0 0.0
      %9244 = vmatpush1.msra.mxu0 %v7951
      %9245 = vmatprep.subr.mxu0 0.0
      %9246 = vmatpush1.msra.mxu0 %v7952
      %9247 = vmatprep.subr.mxu0 0.0
      %9248 = vmatpush1.msra.mxu0 %v7953
      %9249 = vmatprep.subr.mxu0 0.0
      %9250 = vmatpush1.msra.mxu0 %v7954
      %9251 = vmatprep.subr.mxu0 0.0
      %9252 = vmatpush1.msra.mxu0 %v7955
      %9253 = vmatprep.subr.mxu0 0.0
      %9254 = vmatpush1.msra.mxu0 %v7956
      %9255 = vmatprep.subr.mxu0 0.0
      %9256 = vmatpush1.msra.mxu0 %v7957
      %9257 = vmatprep.subr.mxu0 0.0
      %9258 = vmatpush1.msra.mxu0 %v7958
      %9259 = vmatprep.mubr.f32.mxu0 %v7735
      %9260 = vmatmul.mubr.f32.gmra.mrb[0].mxu0 %v7703
      %v9261 = vpop.f32.mrb[0].mxu0
      %v9262 = vadd.f32 %v9037, %v9261
      %v9263 = vpop.f32.mrb[0].mxu0
      %9264 = vmatprep.mubr.f32.mxu0 %v7736
      %9265 = vmatmul.mubr.f32.gmra.mrb[0].mxu0 %v7704
      %v9266 = vpop.f32.mrb[0].mxu0
      %v9267 = vadd.f32 %v9042, %v9266
      %v9268 = vpop.f32.mrb[0].mxu0
      %9269 = vmatprep.mubr.f32.mxu0 %v7737
      %9270 = vmatmul.mubr.f32.gmra.mrb[0].mxu0 %v7705
      %v9271 = vpop.f32.mrb[0].mxu0
      %v9272 = vadd.f32 %v9047, %v9271
      %v9273 = vpop.f32.mrb[0].mxu0
      %9274 = vmatprep.mubr.f32.mxu0 %v7738
      %9275 = vmatmul.mubr.f32.gmra.mrb[0].mxu0 %v7706
      %v9276 = vpop.f32.mrb[0].mxu0
      %v9277 = vadd.f32 %v9052, %v9276
      %v9278 = vpop.f32.mrb[0].mxu0
      %9279 = vmatprep.mubr.f32.mxu0 %v7739
      %9280 = vmatmul.mubr.f32.gmra.mrb[0].mxu0 %v7707
      %v9281 = vpop.f32.mrb[0].mxu0
      %v9282 = vadd.f32 %v9057, %v9281
      %v9283 = vpop.f32.mrb[0].mxu0
      %9284 = vmatprep.mubr.f32.mxu0 %v7740
      %9285 = vmatmul.mubr.f32.gmra.mrb[0].mxu0 %v7708
      %v9286 = vpop.f32.mrb[0].mxu0
      %v9287 = vadd.f32 %v9062, %v9286
      %v9288 = vpop.f32.mrb[0].mxu0
      %9289 = vmatprep.mubr.f32.mxu0 %v7741
      %9290 = vmatmul.mubr.f32.gmra.mrb[0].mxu0 %v7709
      %v9291 = vpop.f32.mrb[0].mxu0
      %v9292 = vadd.f32 %v9067, %v9291
      %v9293 = vpop.f32.mrb[0].mxu0
      %9294 = vmatprep.mubr.f32.mxu0 %v7742
      %9295 = vmatmul.mubr.f32.gmra.mrb[0].mxu0 %v7710
      %v9296 = vpop.f32.mrb[0].mxu0
      %v9297 = vadd.f32 %v9072, %v9296
      %v9298 = vpop.f32.mrb[0].mxu0
      %9299 = vmatprep.mubr.f32.mxu0 %v7743
      %9300 = vmatmul.mubr.f32.gmra.mrb[0].mxu0 %v7711
      %v9301 = vpop.f32.mrb[0].mxu0
      %v9302 = vadd.f32 %v9077, %v9301
      %v9303 = vpop.f32.mrb[0].mxu0
      %9304 = vmatprep.mubr.f32.mxu0 %v7744
      %9305 = vmatmul.mubr.f32.gmra.mrb[0].mxu0 %v7712
      %v9306 = vpop.f32.mrb[0].mxu0
      %v9307 = vadd.f32 %v9082, %v9306
      %v9308 = vpop.f32.mrb[0].mxu0
      %9309 = vmatprep.mubr.f32.mxu0 %v7745
      %9310 = vmatmul.mubr.f32.gmra.mrb[0].mxu0 %v7713
      %v9311 = vpop.f32.mrb[0].mxu0
      %v9312 = vadd.f32 %v9087, %v9311
      %v9313 = vpop.f32.mrb[0].mxu0
      %9314 = vmatprep.mubr.f32.mxu0 %v7746
      %9315 = vmatmul.mubr.f32.gmra.mrb[0].mxu0 %v7714
      %v9316 = vpop.f32.mrb[0].mxu0
      %v9317 = vadd.f32 %v9092, %v9316
      %v9318 = vpop.f32.mrb[0].mxu0
      %9319 = vmatprep.mubr.f32.mxu0 %v7747
      %9320 = vmatmul.mubr.f32.gmra.mrb[0].mxu0 %v7715
      %v9321 = vpop.f32.mrb[0].mxu0
      %v9322 = vadd.f32 %v9097, %v9321
      %v9323 = vpop.f32.mrb[0].mxu0
      %9324 = vmatprep.mubr.f32.mxu0 %v7748
      %9325 = vmatmul.mubr.f32.gmra.mrb[0].mxu0 %v7716
      %v9326 = vpop.f32.mrb[0].mxu0
      %v9327 = vadd.f32 %v9102, %v9326
      %v9328 = vpop.f32.mrb[0].mxu0
      %9329 = vmatprep.mubr.f32.mxu0 %v7749
      %9330 = vmatmul.mubr.f32.gmra.mrb[0].mxu0 %v7717
      %v9331 = vpop.f32.mrb[0].mxu0
      %v9332 = vadd.f32 %v9107, %v9331
      %v9333 = vpop.f32.mrb[0].mxu0
      %9334 = vmatprep.mubr.f32.mxu0 %v7750
      %9335 = vmatmul.mubr.f32.gmra.mrb[0].mxu0 %v7718
      %v9336 = vpop.f32.mrb[0].mxu0
      %v9337 = vadd.f32 %v9112, %v9336
      %v9338 = vpop.f32.mrb[0].mxu0
      %9339 = vmatprep.mubr.f32.mxu0 %v7751
      %9340 = vmatmul.mubr.f32.gmra.mrb[0].mxu0 %v7719
      %v9341 = vpop.f32.mrb[0].mxu0
      %v9342 = vadd.f32 %v9117, %v9341
      %v9343 = vpop.f32.mrb[0].mxu0
      %9344 = vmatprep.mubr.f32.mxu0 %v7752
      %9345 = vmatmul.mubr.f32.gmra.mrb[0].mxu0 %v7720
      %v9346 = vpop.f32.mrb[0].mxu0
      %v9347 = vadd.f32 %v9122, %v9346
      %v9348 = vpop.f32.mrb[0].mxu0
      %9349 = vmatprep.mubr.f32.mxu0 %v7753
      %9350 = vmatmul.mubr.f32.gmra.mrb[0].mxu0 %v7721
      %v9351 = vpop.f32.mrb[0].mxu0
      %v9352 = vadd.f32 %v9127, %v9351
      %v9353 = vpop.f32.mrb[0].mxu0
      %9354 = vmatprep.mubr.f32.mxu0 %v7754
      %9355 = vmatmul.mubr.f32.gmra.mrb[0].mxu0 %v7722
      %v9356 = vpop.f32.mrb[0].mxu0
      %v9357 = vadd.f32 %v9132, %v9356
      %v9358 = vpop.f32.mrb[0].mxu0
      %9359 = vmatprep.mubr.f32.mxu0 %v7755
      %9360 = vmatmul.mubr.f32.gmra.mrb[0].mxu0 %v7723
      %v9361 = vpop.f32.mrb[0].mxu0
      %v9362 = vadd.f32 %v9137, %v9361
      %v9363 = vpop.f32.mrb[0].mxu0
      %9364 = vmatprep.mubr.f32.mxu0 %v7756
      %9365 = vmatmul.mubr.f32.gmra.mrb[0].mxu0 %v7724
      %v9366 = vpop.f32.mrb[0].mxu0
      %v9367 = vadd.f32 %v9142, %v9366
      %v9368 = vpop.f32.mrb[0].mxu0
      %9369 = vmatprep.mubr.f32.mxu0 %v7757
      %9370 = vmatmul.mubr.f32.gmra.mrb[0].mxu0 %v7725
      %v9371 = vpop.f32.mrb[0].mxu0
      %v9372 = vadd.f32 %v9147, %v9371
      %v9373 = vpop.f32.mrb[0].mxu0
      %9374 = vmatprep.mubr.f32.mxu0 %v7758
      %9375 = vmatmul.mubr.f32.gmra.mrb[0].mxu0 %v7726
      %v9376 = vpop.f32.mrb[0].mxu0
      %v9377 = vadd.f32 %v9152, %v9376
      %v9378 = vpop.f32.mrb[0].mxu0
      %9379 = vmatprep.mubr.f32.mxu0 %v7759
      %9380 = vmatmul.mubr.f32.gmra.mrb[0].mxu0 %v7727
      %v9381 = vpop.f32.mrb[0].mxu0
      %v9382 = vadd.f32 %v9157, %v9381
      %v9383 = vpop.f32.mrb[0].mxu0
      %9384 = vmatprep.mubr.f32.mxu0 %v7760
      %9385 = vmatmul.mubr.f32.gmra.mrb[0].mxu0 %v7728
      %v9386 = vpop.f32.mrb[0].mxu0
      %v9387 = vadd.f32 %v9162, %v9386
      %v9388 = vpop.f32.mrb[0].mxu0
      %9389 = vmatprep.mubr.f32.mxu0 %v7761
      %9390 = vmatmul.mubr.f32.gmra.mrb[0].mxu0 %v7729
      %v9391 = vpop.f32.mrb[0].mxu0
      %v9392 = vadd.f32 %v9167, %v9391
      %v9393 = vpop.f32.mrb[0].mxu0
      %9394 = vmatprep.mubr.f32.mxu0 %v7762
      %9395 = vmatmul.mubr.f32.gmra.mrb[0].mxu0 %v7730
      %v9396 = vpop.f32.mrb[0].mxu0
      %v9397 = vadd.f32 %v9172, %v9396
      %v9398 = vpop.f32.mrb[0].mxu0
      %9399 = vmatprep.mubr.f32.mxu0 %v7763
      %9400 = vmatmul.mubr.f32.gmra.mrb[0].mxu0 %v7731
      %v9401 = vpop.f32.mrb[0].mxu0
      %v9402 = vadd.f32 %v9177, %v9401
      %v9403 = vpop.f32.mrb[0].mxu0
      %9404 = vmatprep.mubr.f32.mxu0 %v7764
      %9405 = vmatmul.mubr.f32.gmra.mrb[0].mxu0 %v7732
      %v9406 = vpop.f32.mrb[0].mxu0
      %v9407 = vadd.f32 %v9182, %v9406
      %v9408 = vpop.f32.mrb[0].mxu0
      %9409 = vmatprep.mubr.f32.mxu0 %v7765
      %9410 = vmatmul.mubr.f32.gmra.mrb[0].mxu0 %v7733
      %v9411 = vpop.f32.mrb[0].mxu0
      %v9412 = vadd.f32 %v9187, %v9411
      %v9413 = vpop.f32.mrb[0].mxu0
      %9414 = vmatprep.mubr.f32.mxu0 %v7766
      %9415 = vmatmul.mubr.f32.gmra.mrb[0].mxu0 %v7734
      %v9416 = vpop.f32.mrb[0].mxu0
      %v9417 = vadd.f32 %v9192, %v9416
      %v9418 = vpop.f32.mrb[0].mxu0
      %9419 = vdwg.mxu0
      %9420 = vmatprep.subr.mxu0 0.0
      %9421 = vmatpush1.msra.mxu0 %v7959
      %9422 = vmatprep.subr.mxu0 0.0
      %9423 = vmatpush1.msra.mxu0 %v7960
      %9424 = vmatprep.subr.mxu0 0.0
      %9425 = vmatpush1.msra.mxu0 %v7961
      %9426 = vmatprep.subr.mxu0 0.0
      %9427 = vmatpush1.msra.mxu0 %v7962
      %9428 = vmatprep.subr.mxu0 0.0
      %9429 = vmatpush1.msra.mxu0 %v7963
      %9430 = vmatprep.subr.mxu0 0.0
      %9431 = vmatpush1.msra.mxu0 %v7964
      %9432 = vmatprep.subr.mxu0 0.0
      %9433 = vmatpush1.msra.mxu0 %v7965
      %9434 = vmatprep.subr.mxu0 0.0
      %9435 = vmatpush1.msra.mxu0 %v7966
      %9436 = vmatprep.subr.mxu0 0.0
      %9437 = vmatpush1.msra.mxu0 0.0
      %9438 = vmatprep.subr.mxu0 0.0
      %9439 = vmatpush1.msra.mxu0 0.0
      %9440 = vmatprep.subr.mxu0 0.0
      %9441 = vmatpush1.msra.mxu0 0.0
      %9442 = vmatprep.subr.mxu0 0.0
      %9443 = vmatpush1.msra.mxu0 0.0
      %9444 = vmatprep.subr.mxu0 0.0
      %9445 = vmatpush1.msra.mxu0 0.0
      %9446 = vmatprep.subr.mxu0 0.0
      %9447 = vmatpush1.msra.mxu0 0.0
      %9448 = vmatprep.subr.mxu0 0.0
      %9449 = vmatpush1.msra.mxu0 0.0
      %9450 = vmatprep.subr.mxu0 0.0
      %9451 = vmatpush1.msra.mxu0 0.0
      %9452 = vmatprep.subr.mxu0 0.0
      %9453 = vmatpush1.msra.mxu0 0.0
      %9454 = vmatprep.subr.mxu0 0.0
      %9455 = vmatpush1.msra.mxu0 0.0
      %9456 = vmatprep.subr.mxu0 0.0
      %9457 = vmatpush1.msra.mxu0 0.0
      %9458 = vmatprep.subr.mxu0 0.0
      %9459 = vmatpush1.msra.mxu0 0.0
      %9460 = vmatprep.subr.mxu0 0.0
      %9461 = vmatpush1.msra.mxu0 0.0
      %9462 = vmatprep.subr.mxu0 0.0
      %9463 = vmatpush1.msra.mxu0 0.0
      %9464 = vmatprep.subr.mxu0 0.0
      %9465 = vmatpush1.msra.mxu0 0.0
      %9466 = vmatprep.subr.mxu0 0.0
      %9467 = vmatpush1.msra.mxu0 0.0
      %9468 = vmatprep.subr.mxu0 0.0
      %9469 = vmatpush1.msra.mxu0 0.0
      %9470 = vmatprep.subr.mxu0 0.0
      %9471 = vmatpush1.msra.mxu0 0.0
      %9472 = vmatprep.subr.mxu0 0.0
      %9473 = vmatpush1.msra.mxu0 0.0
      %9474 = vmatprep.subr.mxu0 0.0
      %9475 = vmatpush1.msra.mxu0 0.0
      %9476 = vmatprep.subr.mxu0 0.0
      %9477 = vmatpush1.msra.mxu0 0.0
      %9478 = vmatprep.subr.mxu0 0.0
      %9479 = vmatpush1.msra.mxu0 0.0
      %9480 = vmatprep.subr.mxu0 0.0
      %9481 = vmatpush1.msra.mxu0 0.0
      %9482 = vmatprep.subr.mxu0 0.0
      %9483 = vmatpush1.msra.mxu0 0.0
      %9484 = vmatprep.mubr.f32.mxu0 0.0
      %9485 = vmatmul.mubr.f32.gmra.mrb[0].mxu0 %v7975
      %v9486 = vpop.f32.mrb[0].mxu0
      %v9487 = vadd.f32 %v9262, %v9486
      %v9488 = vpop.f32.mrb[0].mxu0
      %9489 = vmatprep.mubr.f32.mxu0 0.0
      %9490 = vmatmul.mubr.f32.gmra.mrb[0].mxu0 %v7978
      %v9491 = vpop.f32.mrb[0].mxu0
      %v9492 = vadd.f32 %v9267, %v9491
      %v9493 = vpop.f32.mrb[0].mxu0
      %9494 = vmatprep.mubr.f32.mxu0 0.0
      %9495 = vmatmul.mubr.f32.gmra.mrb[0].mxu0 %v7981
      %v9496 = vpop.f32.mrb[0].mxu0
      %v9497 = vadd.f32 %v9272, %v9496
      %v9498 = vpop.f32.mrb[0].mxu0
      %9499 = vmatprep.mubr.f32.mxu0 0.0
      %9500 = vmatmul.mubr.f32.gmra.mrb[0].mxu0 %v7984
      %v9501 = vpop.f32.mrb[0].mxu0
      %v9502 = vadd.f32 %v9277, %v9501
      %v9503 = vpop.f32.mrb[0].mxu0
      %9504 = vmatprep.mubr.f32.mxu0 0.0
      %9505 = vmatmul.mubr.f32.gmra.mrb[0].mxu0 %v7987
      %v9506 = vpop.f32.mrb[0].mxu0
      %v9507 = vadd.f32 %v9282, %v9506
      %v9508 = vpop.f32.mrb[0].mxu0
      %9509 = vmatprep.mubr.f32.mxu0 0.0
      %9510 = vmatmul.mubr.f32.gmra.mrb[0].mxu0 %v7990
      %v9511 = vpop.f32.mrb[0].mxu0
      %v9512 = vadd.f32 %v9287, %v9511
      %v9513 = vpop.f32.mrb[0].mxu0
      %9514 = vmatprep.mubr.f32.mxu0 0.0
      %9515 = vmatmul.mubr.f32.gmra.mrb[0].mxu0 %v7993
      %v9516 = vpop.f32.mrb[0].mxu0
      %v9517 = vadd.f32 %v9292, %v9516
      %v9518 = vpop.f32.mrb[0].mxu0
      %9519 = vmatprep.mubr.f32.mxu0 0.0
      %9520 = vmatmul.mubr.f32.gmra.mrb[0].mxu0 %v7996
      %v9521 = vpop.f32.mrb[0].mxu0
      %v9522 = vadd.f32 %v9297, %v9521
      %v9523 = vpop.f32.mrb[0].mxu0
      %9524 = vmatprep.mubr.f32.mxu0 0.0
      %9525 = vmatmul.mubr.f32.gmra.mrb[0].mxu0 %v7999
      %v9526 = vpop.f32.mrb[0].mxu0
      %v9527 = vadd.f32 %v9302, %v9526
      %v9528 = vpop.f32.mrb[0].mxu0
      %9529 = vmatprep.mubr.f32.mxu0 0.0
      %9530 = vmatmul.mubr.f32.gmra.mrb[0].mxu0 %v8002
      %v9531 = vpop.f32.mrb[0].mxu0
      %v9532 = vadd.f32 %v9307, %v9531
      %v9533 = vpop.f32.mrb[0].mxu0
      %9534 = vmatprep.mubr.f32.mxu0 0.0
      %9535 = vmatmul.mubr.f32.gmra.mrb[0].mxu0 %v8005
      %v9536 = vpop.f32.mrb[0].mxu0
      %v9537 = vadd.f32 %v9312, %v9536
      %v9538 = vpop.f32.mrb[0].mxu0
      %9539 = vmatprep.mubr.f32.mxu0 0.0
      %9540 = vmatmul.mubr.f32.gmra.mrb[0].mxu0 %v8008
      %v9541 = vpop.f32.mrb[0].mxu0
      %v9542 = vadd.f32 %v9317, %v9541
      %v9543 = vpop.f32.mrb[0].mxu0
      %9544 = vmatprep.mubr.f32.mxu0 0.0
      %9545 = vmatmul.mubr.f32.gmra.mrb[0].mxu0 %v8011
      %v9546 = vpop.f32.mrb[0].mxu0
      %v9547 = vadd.f32 %v9322, %v9546
      %v9548 = vpop.f32.mrb[0].mxu0
      %9549 = vmatprep.mubr.f32.mxu0 0.0
      %9550 = vmatmul.mubr.f32.gmra.mrb[0].mxu0 %v8014
      %v9551 = vpop.f32.mrb[0].mxu0
      %v9552 = vadd.f32 %v9327, %v9551
      %v9553 = vpop.f32.mrb[0].mxu0
      %9554 = vmatprep.mubr.f32.mxu0 0.0
      %9555 = vmatmul.mubr.f32.gmra.mrb[0].mxu0 %v8017
      %v9556 = vpop.f32.mrb[0].mxu0
      %v9557 = vadd.f32 %v9332, %v9556
      %v9558 = vpop.f32.mrb[0].mxu0
      %9559 = vmatprep.mubr.f32.mxu0 0.0
      %9560 = vmatmul.mubr.f32.gmra.mrb[0].mxu0 %v8020
      %v9561 = vpop.f32.mrb[0].mxu0
      %v9562 = vadd.f32 %v9337, %v9561
      %v9563 = vpop.f32.mrb[0].mxu0
      %9564 = vmatprep.mubr.f32.mxu0 0.0
      %9565 = vmatmul.mubr.f32.gmra.mrb[0].mxu0 %v8023
      %v9566 = vpop.f32.mrb[0].mxu0
      %v9567 = vadd.f32 %v9342, %v9566
      %v9568 = vpop.f32.mrb[0].mxu0
      %9569 = vmatprep.mubr.f32.mxu0 0.0
      %9570 = vmatmul.mubr.f32.gmra.mrb[0].mxu0 %v8026
      %v9571 = vpop.f32.mrb[0].mxu0
      %v9572 = vadd.f32 %v9347, %v9571
      %v9573 = vpop.f32.mrb[0].mxu0
      %9574 = vmatprep.mubr.f32.mxu0 0.0
      %9575 = vmatmul.mubr.f32.gmra.mrb[0].mxu0 %v8029
      %v9576 = vpop.f32.mrb[0].mxu0
      %v9577 = vadd.f32 %v9352, %v9576
      %v9578 = vpop.f32.mrb[0].mxu0
      %9579 = vmatprep.mubr.f32.mxu0 0.0
      %9580 = vmatmul.mubr.f32.gmra.mrb[0].mxu0 %v8032
      %v9581 = vpop.f32.mrb[0].mxu0
      %v9582 = vadd.f32 %v9357, %v9581
      %v9583 = vpop.f32.mrb[0].mxu0
      %9584 = vmatprep.mubr.f32.mxu0 0.0
      %9585 = vmatmul.mubr.f32.gmra.mrb[0].mxu0 %v8035
      %v9586 = vpop.f32.mrb[0].mxu0
      %v9587 = vadd.f32 %v9362, %v9586
      %v9588 = vpop.f32.mrb[0].mxu0
      %9589 = vmatprep.mubr.f32.mxu0 0.0
      %9590 = vmatmul.mubr.f32.gmra.mrb[0].mxu0 %v8038
      %v9591 = vpop.f32.mrb[0].mxu0
      %v9592 = vadd.f32 %v9367, %v9591
      %v9593 = vpop.f32.mrb[0].mxu0
      %9594 = vmatprep.mubr.f32.mxu0 0.0
      %9595 = vmatmul.mubr.f32.gmra.mrb[0].mxu0 %v8041
      %v9596 = vpop.f32.mrb[0].mxu0
      %v9597 = vadd.f32 %v9372, %v9596
      %v9598 = vpop.f32.mrb[0].mxu0
      %9599 = vmatprep.mubr.f32.mxu0 0.0
      %9600 = vmatmul.mubr.f32.gmra.mrb[0].mxu0 %v8044
      %v9601 = vpop.f32.mrb[0].mxu0
      %v9602 = vadd.f32 %v9377, %v9601
      %v9603 = vpop.f32.mrb[0].mxu0
      %9604 = vmatprep.mubr.f32.mxu0 0.0
      %9605 = vmatmul.mubr.f32.gmra.mrb[0].mxu0 %v8047
      %v9606 = vpop.f32.mrb[0].mxu0
      %v9607 = vadd.f32 %v9382, %v9606
      %v9608 = vpop.f32.mrb[0].mxu0
      %9609 = vmatprep.mubr.f32.mxu0 0.0
      %9610 = vmatmul.mubr.f32.gmra.mrb[0].mxu0 %v8050
      %v9611 = vpop.f32.mrb[0].mxu0
      %v9612 = vadd.f32 %v9387, %v9611
      %v9613 = vpop.f32.mrb[0].mxu0
      %9614 = vmatprep.mubr.f32.mxu0 0.0
      %9615 = vmatmul.mubr.f32.gmra.mrb[0].mxu0 %v8053
      %v9616 = vpop.f32.mrb[0].mxu0
      %v9617 = vadd.f32 %v9392, %v9616
      %v9618 = vpop.f32.mrb[0].mxu0
      %9619 = vmatprep.mubr.f32.mxu0 0.0
      %9620 = vmatmul.mubr.f32.gmra.mrb[0].mxu0 %v8056
      %v9621 = vpop.f32.mrb[0].mxu0
      %v9622 = vadd.f32 %v9397, %v9621
      %v9623 = vpop.f32.mrb[0].mxu0
      %9624 = vmatprep.mubr.f32.mxu0 0.0
      %9625 = vmatmul.mubr.f32.gmra.mrb[0].mxu0 %v8059
      %v9626 = vpop.f32.mrb[0].mxu0
      %v9627 = vadd.f32 %v9402, %v9626
      %v9628 = vpop.f32.mrb[0].mxu0
      %9629 = vmatprep.mubr.f32.mxu0 0.0
      %9630 = vmatmul.mubr.f32.gmra.mrb[0].mxu0 %v8062
      %v9631 = vpop.f32.mrb[0].mxu0
      %v9632 = vadd.f32 %v9407, %v9631
      %v9633 = vpop.f32.mrb[0].mxu0
      %9634 = vmatprep.mubr.f32.mxu0 0.0
      %9635 = vmatmul.mubr.f32.gmra.mrb[0].mxu0 %v8065
      %v9636 = vpop.f32.mrb[0].mxu0
      %v9637 = vadd.f32 %v9412, %v9636
      %v9638 = vpop.f32.mrb[0].mxu0
      %9639 = vmatprep.mubr.f32.mxu0 0.0
      %9640 = vmatmul.mubr.f32.gmra.mrb[0].mxu0 %v8068
      %v9641 = vpop.f32.mrb[0].mxu0
      %v9642 = vadd.f32 %v9417, %v9641
      %v9643 = vpop.f32.mrb[0].mxu0
      %9644 = vdwg.mxu0
      %vm9645 = vcmask 7168
      %9646 = vst.msk [vmem:[%s280] sm:$0xff] %vm9645, %v9487
      %9647 = vst.msk [vmem:[%s280 + $0x8] sm:$0xff] %vm9645, %v9492
      %9648 = vst.msk [vmem:[%s280 + $0x10] sm:$0xff] %vm9645, %v9497
      %9649 = vst.msk [vmem:[%s280 + $0x18] sm:$0xff] %vm9645, %v9502
      %9650 = vst.msk [vmem:[%s280 + $0x20] sm:$0xff] %vm9645, %v9507
      %9651 = vst.msk [vmem:[%s280 + $0x28] sm:$0xff] %vm9645, %v9512
      %9652 = vst.msk [vmem:[%s280 + $0x30] sm:$0xff] %vm9645, %v9517
      %9653 = vst.msk [vmem:[%s280 + $0x38] sm:$0xff] %vm9645, %v9522
      %9654 = vst.msk [vmem:[%s280 + $0x40] sm:$0xff] %vm9645, %v9527
      %9655 = vst.msk [vmem:[%s280 + $0x48] sm:$0xff] %vm9645, %v9532
      %9656 = vst.msk [vmem:[%s280 + $0x50] sm:$0xff] %vm9645, %v9537
      %9657 = vst.msk [vmem:[%s280 + $0x58] sm:$0xff] %vm9645, %v9542
      %9658 = vst.msk [vmem:[%s280 + $0x60] sm:$0xff] %vm9645, %v9547
      %9659 = vst.msk [vmem:[%s280 + $0x68] sm:$0xff] %vm9645, %v9552
      %9660 = vst.msk [vmem:[%s280 + $0x70] sm:$0xff] %vm9645, %v9557
      %9661 = vst.msk [vmem:[%s280 + $0x78] sm:$0xff] %vm9645, %v9562
      %9662 = vst.msk [vmem:[%s280 + $0x80] sm:$0xff] %vm9645, %v9567
      %9663 = vst.msk [vmem:[%s280 + $0x88] sm:$0xff] %vm9645, %v9572
      %9664 = vst.msk [vmem:[%s280 + $0x90] sm:$0xff] %vm9645, %v9577
      %9665 = vst.msk [vmem:[%s280 + $0x98] sm:$0xff] %vm9645, %v9582
      %9666 = vst.msk [vmem:[%s280 + $0xa0] sm:$0xff] %vm9645, %v9587
      %9667 = vst.msk [vmem:[%s280 + $0xa8] sm:$0xff] %vm9645, %v9592
      %9668 = vst.msk [vmem:[%s280 + $0xb0] sm:$0xff] %vm9645, %v9597
      %9669 = vst.msk [vmem:[%s280 + $0xb8] sm:$0xff] %vm9645, %v9602
      %9670 = vst.msk [vmem:[%s280 + $0xc0] sm:$0xff] %vm9645, %v9607
      %9671 = vst.msk [vmem:[%s280 + $0xc8] sm:$0xff] %vm9645, %v9612
      %9672 = vst.msk [vmem:[%s280 + $0xd0] sm:$0xff] %vm9645, %v9617
      %9673 = vst.msk [vmem:[%s280 + $0xd8] sm:$0xff] %vm9645, %v9622
      %9674 = vst.msk [vmem:[%s280 + $0xe0] sm:$0xff] %vm9645, %v9627
      %9675 = vst.msk [vmem:[%s280 + $0xe8] sm:$0xff] %vm9645, %v9632
      %9676 = vst.msk [vmem:[%s280 + $0xf0] sm:$0xff] %vm9645, %v9637
      %9677 = vst.msk [vmem:[%s280 + $0xf8] sm:$0xff] %vm9645, %v9642
      %p9678 = scmp.lt.s32.totalorder %s20, 1
      %s9679 = scalar_select %p9678, %s20, 1
      %s9680 = smul.addr %s9679, 32
      %s9681 = smul.addr %s9680, 8
      %s9682 = scalar_lea.vmem %s7, %s9681
      // Predicated region
      $region49: #{srcnn_forward.1} parent=47 // pred_check
        %p9683 = pneg %p190
      $region50: #{srcnn_forward.1} parent=47 // pred_check_branch
        %9685 = sbr.rel (%p9683) target = $region52
      $region51: #{srcnn_forward.1} parent=47 // pred_region
        _
      $region52: #{srcnn_forward.1} parent=47 // pred_fallthru
        _
    $region48: #{srcnn_forward.1} parent=5 // pred_fallthru
      _
    %p9686 = scmp.le.s32.totalorder 2, %s15
    // Predicated region
    $region53: #{srcnn_forward.1} parent=5 // pred_check
      %p9687 = pneg %p9686
    $region54: #{srcnn_forward.1} parent=5 // pred_check_branch
      %9689 = sbr.rel (%p9687) target = $region56
    $region55: #{srcnn_forward.1} parent=5 // pred_region
      %s9690 = ssub.s32 %s15, 2
      // Predicated region
      $region57: #{srcnn_forward.1} parent=55 // pred_check
        %p9691 = pneg %p196
      $region58: #{srcnn_forward.1} parent=55 // pred_check_branch
        %9693 = sbr.rel (%p9691) target = $region60
      $region59: #{srcnn_forward.1} parent=55 // pred_region
        %p9694 = scmp.lt.s32.totalorder %s21, 1
        %s9695 = scalar_select %p9694, %s21, 1
        %s9696 = smul.addr %s9695, 32
        %s9697 = smul.addr %s9696, 8
        %s9698 = scalar_lea.vmem %s7, %s9697
      $region60: #{srcnn_forward.1} parent=55 // pred_fallthru
        _
    $region56: #{srcnn_forward.1} parent=5 // pred_fallthru
      _
  $region6: #{srcnn_forward.1} parent=0 // loop_footer
    %s19 = sadd.s32 1, %s15
  $region7: #{srcnn_forward.1} parent=0 // loop_footer_branch
    %14 = sbr.rel target = $region3
  $region8: #{srcnn_forward.1} parent=0 // loop_exit
    _

</llo_original>
